<compile_context>
chip_gen: v7x
topology: tpu7x:2x2x1
jax: 0.10.0
libtpu: 0.0.40
codegen_flags: <defaults>
</compile_context>

<pallas_src>
import jax
import jax.numpy as jnp
from jax.experimental import pallas as pl
from jax.experimental.pallas import tpu as pltpu

EPS = 1e-5


def _write_padded(pad_ref, interior):
    """Write `interior` (N,H,W,C) into pad_ref (N,H+2,W+2,C); zero only the 1-wide border."""
    N, Hp2, Wp2, C = pad_ref.shape
    H, W = Hp2 - 2, Wp2 - 2
    dt = pad_ref.dtype
    pad_ref[:, 1:1 + H, 1:1 + W, :] = interior.astype(dt)
    pad_ref[:, 0:1, :, :] = jnp.zeros((N, 1, Wp2, C), dt)
    pad_ref[:, Hp2 - 1:Hp2, :, :] = jnp.zeros((N, 1, Wp2, C), dt)
    pad_ref[:, :, 0:1, :] = jnp.zeros((N, Hp2, 1, C), dt)
    pad_ref[:, :, Wp2 - 1:Wp2, :] = jnp.zeros((N, Hp2, 1, C), dt)


def _conv_bn_relu(pad_ref, w, gamma, beta):
    """3x3 conv (halo already materialized) + training-mode BN + ReLU.

    pad_ref: (N, H+2, W+2, C) VMEM scratch (f32), w: (9*C, Cout) in compute dtype,
    gamma/beta: (1,1,1,Cout) f32.  Returns (N, H, W, Cout) f32.
    """
    N, Hp2, Wp2, _ = pad_ref.shape
    H, W = Hp2 - 2, Wp2 - 2
    xp = pad_ref[...].astype(w.dtype)   # bf16 (or f32) MXU operand
    # im2col: single deep contraction (9*C) instead of 9 shallow matmuls + VPU adds.
    cols = jnp.concatenate(
        [xp[:, dh:dh + H, dw:dw + W, :] for dh in range(3) for dw in range(3)],
        axis=-1)                                              # (N, H, W, 9*C)
    acc = jax.lax.dot_general(
        cols, w, dimension_numbers=(((3,), (0,)), ((), ())),
        preferred_element_type=jnp.float32)                   # (N, H, W, Cout) f32

    # Single-pass BatchNorm statistics over (N, H, W) — biased variance, train mode.
    inv_cnt = 1.0 / float(N * H * W)
    s = jnp.sum(acc, axis=(0, 1, 2), keepdims=True)
    s2 = jnp.sum(acc * acc, axis=(0, 1, 2), keepdims=True)
    mean = s * inv_cnt
    var = jnp.maximum(s2 * inv_cnt - mean * mean, 0.0)
    scale = gamma * jax.lax.rsqrt(var + EPS)                  # EUP rsqrt (free slot)
    shift = beta - mean * scale
    return jnp.maximum(acc * scale + shift, 0.0)              # fused BN + ReLU


def double_conv_kernel(x_ref, w1_ref, g1_ref, be1_ref, w2_ref, g2_ref, be2_ref,
                       out_ref, xpad_ref, hpad_ref):
    # layer 1
    _write_padded(xpad_ref, x_ref[...])
    h1 = _conv_bn_relu(xpad_ref, w1_ref[...], g1_ref[...], be1_ref[...])
    # layer 2 (halo for h1 built directly in scratch, border-only zeroing)
    _write_padded(hpad_ref, h1)
    h2 = _conv_bn_relu(hpad_ref, w2_ref[...], g2_ref[...], be2_ref[...])
    out_ref[...] = h2


def double_conv(x_nchw, w1, b1, g1, be1, w2, b2, g2, be2,
                *, compute_dtype=jnp.bfloat16):
    """x_nchw: (N, Cin, H, W); conv weights in PyTorch OIHW layout.

    b1/b2 are accepted for interface parity with nn.Conv2d but are NOT passed to
    the kernel: a per-channel constant added before training-mode BatchNorm
    cancels exactly in the mean subtraction (bit-for-nothing to compute it).
    """
    N, Cin, H, W = x_nchw.shape
    Cout = w1.shape[0]
    del b1, b2

    x = jnp.transpose(x_nchw, (0, 2, 3, 1)).astype(compute_dtype)          # NHWC
    # OIHW -> ((kh, kw, cin) flattened, cout), matching the im2col tap order.
    w1k = jnp.transpose(w1, (2, 3, 1, 0)).reshape(9 * Cin, Cout).astype(compute_dtype)
    w2k = jnp.transpose(w2, (2, 3, 1, 0)).reshape(9 * Cout, Cout).astype(compute_dtype)
    vec = lambda v: v.reshape(1, 1, 1, -1).astype(jnp.float32)

    # Explicit scoped-VMEM budget (default is only 16/32 MiB depending on gen).
    csz = jnp.dtype(compute_dtype).itemsize
    est = (N * H * W * Cin * csz                        # input
           + N * H * W * Cout * 4                       # output
           + N * (H + 2) * (W + 2) * (Cin + Cout) * 4   # padded scratches (f32)
           + N * H * W * 9 * max(Cin, Cout) * csz       # im2col operand
           + 2 * N * H * W * Cout * 4)                  # acc + normalized
    vmem_limit = int(min(max(4 * est, 8 * 2 ** 20), 48 * 2 ** 20))

    vmem = pl.BlockSpec(memory_space=pltpu.MemorySpace.VMEM)
    out_nhwc = pl.pallas_call(
        double_conv_kernel,
        out_shape=jax.ShapeDtypeStruct((N, H, W, Cout), jnp.float32),
        in_specs=[vmem] * 7,
        out_specs=vmem,
        scratch_shapes=[pltpu.VMEM((N, H + 2, W + 2, Cin), jnp.float32),
                        pltpu.VMEM((N, H + 2, W + 2, Cout), jnp.float32)],
        compiler_params=pltpu.CompilerParams(vmem_limit_bytes=vmem_limit),
    )(x, w1k, vec(g1), vec(be1), w2k, vec(g2), vec(be2))

    return jnp.transpose(out_nhwc, (0, 3, 1, 2))                           # NCHW


# ---------------- pure-JAX reference (for correctness check) ----------------
def _ref_double_conv(x, w1, b1, g1, be1, w2, b2, g2, be2):
    def conv(x, w, b):
        y = jax.lax.conv_general_dilated(
            x, w, window_strides=(1, 1), padding=((1, 1), (1, 1)),
            dimension_numbers=('NCHW', 'OIHW', 'NCHW'))
        return y + b[None, :, None, None]

    def bn_relu(y, g, be):
        mean = jnp.mean(y, axis=(0, 2, 3), keepdims=True)
        var = jnp.mean((y - mean) ** 2, axis=(0, 2, 3), keepdims=True)
        yn = (y - mean) * jax.lax.rsqrt(var + EPS)
        return jnp.maximum(yn * g[None, :, None, None] + be[None, :, None, None], 0.0)

    h = bn_relu(conv(x, w1, b1), g1, be1)
    return bn_relu(conv(h, w2, b2), g2, be2)


if __name__ == "__main__":
    N, Cin, Cout, H, W = 2, 4, 8, 16, 16

    key = jax.random.PRNGKey(0)
    ks = jax.random.split(key, 9)
    x = jax.random.normal(ks[0], (N, Cin, H, W), jnp.float32)

    # deterministic synthetic parameters (shapes per nn.Conv2d / nn.BatchNorm2d)
    w1 = jax.random.normal(ks[1], (Cout, Cin, 3, 3), jnp.float32) * 0.1
    b1 = jax.random.normal(ks[2], (Cout,), jnp.float32) * 0.1
    w2 = jax.random.normal(ks[3], (Cout, Cout, 3, 3), jnp.float32) * 0.1
    b2 = jax.random.normal(ks[4], (Cout,), jnp.float32) * 0.1
    g1 = 1.0 + 0.1 * jax.random.normal(ks[5], (Cout,), jnp.float32)
    be1 = 0.1 * jax.random.normal(ks[6], (Cout,), jnp.float32)
    g2 = 1.0 + 0.1 * jax.random.normal(ks[7], (Cout,), jnp.float32)
    be2 = 0.1 * jax.random.normal(ks[8], (Cout,), jnp.float32)

    ref = _ref_double_conv(x, w1, b1, g1, be1, w2, b2, g2, be2)

    # Tight check with f32 compute (same kernel code path, exact math).
    out_f32 = jax.block_until_ready(
        double_conv(x, w1, b1, g1, be1, w2, b2, g2, be2, compute_dtype=jnp.float32))
    assert out_f32.shape == (N, Cout, H, W)
    assert jnp.allclose(out_f32, ref, atol=3e-4, rtol=3e-4), \
        float(jnp.max(jnp.abs(out_f32 - ref)))

    # Performance config: bf16 MXU operands, f32 accumulation / BN.
    out = jax.block_until_ready(
        double_conv(x, w1, b1, g1, be1, w2, b2, g2, be2))
    assert out.shape == (N, Cout, H, W)
    assert jnp.allclose(out, ref, atol=5e-2, rtol=5e-2), \
        float(jnp.max(jnp.abs(out - ref)))

    print("KERNEL_OK")
</pallas_src>

<mosaic_0001>
module attributes {stable_mosaic.version = 11 : i64} {
  func.func @double_conv_kernel(%arg0: memref<2x16x16x4xf32, #tpu.memory_space<vmem>>, %arg1: memref<36x8xf32, #tpu.memory_space<vmem>>, %arg2: memref<1x1x1x8xf32, #tpu.memory_space<vmem>>, %arg3: memref<1x1x1x8xf32, #tpu.memory_space<vmem>>, %arg4: memref<72x8xf32, #tpu.memory_space<vmem>>, %arg5: memref<1x1x1x8xf32, #tpu.memory_space<vmem>>, %arg6: memref<1x1x1x8xf32, #tpu.memory_space<vmem>>, %arg7: memref<2x16x16x8xf32, #tpu.memory_space<vmem>>, %arg8: memref<2x18x18x4xf32, #tpu.memory_space<vmem>>, %arg9: memref<2x18x18x8xf32, #tpu.memory_space<vmem>>) attributes {dimension_semantics = [], scalar_prefetch = 0 : i64, scratch_operands = 2 : i64, tpu.core_type = #tpu.core_type<tc>} {
    %c0 = arith.constant 0 : index
    %c0_0 = arith.constant 0 : index
    %c0_1 = arith.constant 0 : index
    %c0_2 = arith.constant 0 : index
    %0 = vector.load %arg0[%c0, %c0_0, %c0_1, %c0_2] : memref<2x16x16x4xf32, #tpu.memory_space<vmem>>, vector<2x16x16x4xf32>
    %c0_3 = arith.constant 0 : index
    %c1 = arith.constant 1 : index
    %c1_4 = arith.constant 1 : index
    %c0_5 = arith.constant 0 : index
    %1 = vector.load %arg8[%c0_3, %c1, %c1_4, %c0_5] : memref<2x18x18x4xf32, #tpu.memory_space<vmem>>, vector<2x16x16x4xf32>
    tpu.vector_store %arg8[%c0_3, %c1, %c1_4, %c0_5], %0 {strides = array<i32>} : memref<2x18x18x4xf32, #tpu.memory_space<vmem>>, vector<2x16x16x4xf32>,
    %cst = arith.constant 0.000000e+00 : f32
    %2 = vector.broadcast %cst : f32 to vector<2x1x18x4xf32>
    %c0_6 = arith.constant 0 : index
    %c0_7 = arith.constant 0 : index
    %c0_8 = arith.constant 0 : index
    %c0_9 = arith.constant 0 : index
    %3 = vector.load %arg8[%c0_6, %c0_7, %c0_8, %c0_9] : memref<2x18x18x4xf32, #tpu.memory_space<vmem>>, vector<2x1x18x4xf32>
    tpu.vector_store %arg8[%c0_6, %c0_7, %c0_8, %c0_9], %2 {strides = array<i32>} : memref<2x18x18x4xf32, #tpu.memory_space<vmem>>, vector<2x1x18x4xf32>,
    %cst_10 = arith.constant 0.000000e+00 : f32
    %4 = vector.broadcast %cst_10 : f32 to vector<2x1x18x4xf32>
    %c0_11 = arith.constant 0 : index
    %c17 = arith.constant 17 : index
    %c0_12 = arith.constant 0 : index
    %c0_13 = arith.constant 0 : index
    %5 = vector.load %arg8[%c0_11, %c17, %c0_12, %c0_13] : memref<2x18x18x4xf32, #tpu.memory_space<vmem>>, vector<2x1x18x4xf32>
    tpu.vector_store %arg8[%c0_11, %c17, %c0_12, %c0_13], %4 {strides = array<i32>} : memref<2x18x18x4xf32, #tpu.memory_space<vmem>>, vector<2x1x18x4xf32>,
    %cst_14 = arith.constant 0.000000e+00 : f32
    %6 = vector.broadcast %cst_14 : f32 to vector<2x18x1x4xf32>
    %c0_15 = arith.constant 0 : index
    %c0_16 = arith.constant 0 : index
    %c0_17 = arith.constant 0 : index
    %c0_18 = arith.constant 0 : index
    %7 = vector.load %arg8[%c0_15, %c0_16, %c0_17, %c0_18] : memref<2x18x18x4xf32, #tpu.memory_space<vmem>>, vector<2x18x1x4xf32>
    tpu.vector_store %arg8[%c0_15, %c0_16, %c0_17, %c0_18], %6 {strides = array<i32>} : memref<2x18x18x4xf32, #tpu.memory_space<vmem>>, vector<2x18x1x4xf32>,
    %cst_19 = arith.constant 0.000000e+00 : f32
    %8 = vector.broadcast %cst_19 : f32 to vector<2x18x1x4xf32>
    %c0_20 = arith.constant 0 : index
    %c0_21 = arith.constant 0 : index
    %c17_22 = arith.constant 17 : index
    %c0_23 = arith.constant 0 : index
    %9 = vector.load %arg8[%c0_20, %c0_21, %c17_22, %c0_23] : memref<2x18x18x4xf32, #tpu.memory_space<vmem>>, vector<2x18x1x4xf32>
    tpu.vector_store %arg8[%c0_20, %c0_21, %c17_22, %c0_23], %8 {strides = array<i32>} : memref<2x18x18x4xf32, #tpu.memory_space<vmem>>, vector<2x18x1x4xf32>,
    %c0_24 = arith.constant 0 : index
    %c0_25 = arith.constant 0 : index
    %10 = vector.load %arg1[%c0_24, %c0_25] : memref<36x8xf32, #tpu.memory_space<vmem>>, vector<36x8xf32>
    %c0_26 = arith.constant 0 : index
    %c0_27 = arith.constant 0 : index
    %c0_28 = arith.constant 0 : index
    %c0_29 = arith.constant 0 : index
    %11 = vector.load %arg2[%c0_26, %c0_27, %c0_28, %c0_29] : memref<1x1x1x8xf32, #tpu.memory_space<vmem>>, vector<1x1x1x8xf32>
    %c0_30 = arith.constant 0 : index
    %c0_31 = arith.constant 0 : index
    %c0_32 = arith.constant 0 : index
    %c0_33 = arith.constant 0 : index
    %12 = vector.load %arg3[%c0_30, %c0_31, %c0_32, %c0_33] : memref<1x1x1x8xf32, #tpu.memory_space<vmem>>, vector<1x1x1x8xf32>
    %c0_34 = arith.constant 0 : index
    %c0_35 = arith.constant 0 : index
    %c0_36 = arith.constant 0 : index
    %c0_37 = arith.constant 0 : index
    %13 = vector.load %arg8[%c0_34, %c0_35, %c0_36, %c0_37] : memref<2x18x18x4xf32, #tpu.memory_space<vmem>>, vector<2x18x18x4xf32>
    %14 = vector.extract_strided_slice %13 {offsets = [0, 0, 0, 0], sizes = [2, 16, 16, 4], strides = [1, 1, 1, 1]} : vector<2x18x18x4xf32> to vector<2x16x16x4xf32>
    %15 = vector.extract_strided_slice %13 {offsets = [0, 0, 1, 0], sizes = [2, 16, 16, 4], strides = [1, 1, 1, 1]} : vector<2x18x18x4xf32> to vector<2x16x16x4xf32>
    %16 = vector.extract_strided_slice %13 {offsets = [0, 0, 2, 0], sizes = [2, 16, 16, 4], strides = [1, 1, 1, 1]} : vector<2x18x18x4xf32> to vector<2x16x16x4xf32>
    %17 = vector.extract_strided_slice %13 {offsets = [0, 1, 0, 0], sizes = [2, 16, 16, 4], strides = [1, 1, 1, 1]} : vector<2x18x18x4xf32> to vector<2x16x16x4xf32>
    %18 = vector.extract_strided_slice %13 {offsets = [0, 1, 1, 0], sizes = [2, 16, 16, 4], strides = [1, 1, 1, 1]} : vector<2x18x18x4xf32> to vector<2x16x16x4xf32>
    %19 = vector.extract_strided_slice %13 {offsets = [0, 1, 2, 0], sizes = [2, 16, 16, 4], strides = [1, 1, 1, 1]} : vector<2x18x18x4xf32> to vector<2x16x16x4xf32>
    %20 = vector.extract_strided_slice %13 {offsets = [0, 2, 0, 0], sizes = [2, 16, 16, 4], strides = [1, 1, 1, 1]} : vector<2x18x18x4xf32> to vector<2x16x16x4xf32>
    %21 = vector.extract_strided_slice %13 {offsets = [0, 2, 1, 0], sizes = [2, 16, 16, 4], strides = [1, 1, 1, 1]} : vector<2x18x18x4xf32> to vector<2x16x16x4xf32>
    %22 = vector.extract_strided_slice %13 {offsets = [0, 2, 2, 0], sizes = [2, 16, 16, 4], strides = [1, 1, 1, 1]} : vector<2x18x18x4xf32> to vector<2x16x16x4xf32>
    %23 = tpu.concatenate %14, %15, %16, %17, %18, %19, %20, %21, %22 in 3 : vector<2x16x16x4xf32>, vector<2x16x16x4xf32>, vector<2x16x16x4xf32>, vector<2x16x16x4xf32>, vector<2x16x16x4xf32>, vector<2x16x16x4xf32>, vector<2x16x16x4xf32>, vector<2x16x16x4xf32>, vector<2x16x16x4xf32> -> vector<2x16x16x36xf32>
    %cst_38 = arith.constant dense<0.000000e+00> : vector<2x16x16x8xf32>
    %24 = tpu.matmul %23, %10, %cst_38 {dimension_numbers = #tpu.dot_dimension_numbers<[3], [0], [0, 1, 2], [1], [0, 0, 0, 1, 0, 2, 1, 1], [], []>} : vector<2x16x16x36xf32>, vector<36x8xf32>, vector<2x16x16x8xf32> -> vector<2x16x16x8xf32>
    %cst_39 = arith.constant dense<0.000000e+00> : vector<8xf32>
    %25 = vector.multi_reduction <add>, %24, %cst_39 [0, 1, 2] : vector<2x16x16x8xf32> to vector<8xf32>
    %26 = vector.shape_cast %25 : vector<8xf32> to vector<1x1x1x8xf32>
    %27 = arith.mulf %24, %24 : vector<2x16x16x8xf32>
    %cst_40 = arith.constant dense<0.000000e+00> : vector<8xf32>
    %28 = vector.multi_reduction <add>, %27, %cst_40 [0, 1, 2] : vector<2x16x16x8xf32> to vector<8xf32>
    %29 = vector.shape_cast %28 : vector<8xf32> to vector<1x1x1x8xf32>
    %cst_41 = arith.constant 0.001953125 : f32
    %30 = vector.broadcast %cst_41 : f32 to vector<1x1x1x8xf32>
    %31 = arith.mulf %26, %30 : vector<1x1x1x8xf32>
    %cst_42 = arith.constant 0.001953125 : f32
    %32 = vector.broadcast %cst_42 : f32 to vector<1x1x1x8xf32>
    %33 = arith.mulf %29, %32 : vector<1x1x1x8xf32>
    %34 = arith.mulf %31, %31 : vector<1x1x1x8xf32>
    %35 = arith.subf %33, %34 : vector<1x1x1x8xf32>
    %cst_43 = arith.constant 0.000000e+00 : f32
    %36 = vector.broadcast %cst_43 : f32 to vector<1x1x1x8xf32>
    %37 = arith.maximumf %35, %36 : vector<1x1x1x8xf32>
    %cst_44 = arith.constant 9.99999974E-6 : f32
    %38 = vector.broadcast %cst_44 : f32 to vector<1x1x1x8xf32>
    %39 = arith.addf %37, %38 : vector<1x1x1x8xf32>
    %40 = math.rsqrt %39 : vector<1x1x1x8xf32>
    %41 = arith.mulf %11, %40 : vector<1x1x1x8xf32>
    %42 = arith.mulf %31, %41 : vector<1x1x1x8xf32>
    %43 = arith.subf %12, %42 : vector<1x1x1x8xf32>
    %44 = vector.broadcast %41 : vector<1x1x1x8xf32> to vector<2x16x16x8xf32>
    %45 = arith.mulf %24, %44 : vector<2x16x16x8xf32>
    %46 = vector.broadcast %43 : vector<1x1x1x8xf32> to vector<2x16x16x8xf32>
    %47 = arith.addf %45, %46 : vector<2x16x16x8xf32>
    %cst_45 = arith.constant 0.000000e+00 : f32
    %48 = vector.broadcast %cst_45 : f32 to vector<2x16x16x8xf32>
    %49 = arith.maximumf %47, %48 : vector<2x16x16x8xf32>
    %c0_46 = arith.constant 0 : index
    %c1_47 = arith.constant 1 : index
    %c1_48 = arith.constant 1 : index
    %c0_49 = arith.constant 0 : index
    %50 = vector.load %arg9[%c0_46, %c1_47, %c1_48, %c0_49] : memref<2x18x18x8xf32, #tpu.memory_space<vmem>>, vector<2x16x16x8xf32>
    tpu.vector_store %arg9[%c0_46, %c1_47, %c1_48, %c0_49], %49 {strides = array<i32>} : memref<2x18x18x8xf32, #tpu.memory_space<vmem>>, vector<2x16x16x8xf32>,
    %cst_50 = arith.constant 0.000000e+00 : f32
    %51 = vector.broadcast %cst_50 : f32 to vector<2x1x18x8xf32>
    %c0_51 = arith.constant 0 : index
    %c0_52 = arith.constant 0 : index
    %c0_53 = arith.constant 0 : index
    %c0_54 = arith.constant 0 : index
    %52 = vector.load %arg9[%c0_51, %c0_52, %c0_53, %c0_54] : memref<2x18x18x8xf32, #tpu.memory_space<vmem>>, vector<2x1x18x8xf32>
    tpu.vector_store %arg9[%c0_51, %c0_52, %c0_53, %c0_54], %51 {strides = array<i32>} : memref<2x18x18x8xf32, #tpu.memory_space<vmem>>, vector<2x1x18x8xf32>,
    %cst_55 = arith.constant 0.000000e+00 : f32
    %53 = vector.broadcast %cst_55 : f32 to vector<2x1x18x8xf32>
    %c0_56 = arith.constant 0 : index
    %c17_57 = arith.constant 17 : index
    %c0_58 = arith.constant 0 : index
    %c0_59 = arith.constant 0 : index
    %54 = vector.load %arg9[%c0_56, %c17_57, %c0_58, %c0_59] : memref<2x18x18x8xf32, #tpu.memory_space<vmem>>, vector<2x1x18x8xf32>
    tpu.vector_store %arg9[%c0_56, %c17_57, %c0_58, %c0_59], %53 {strides = array<i32>} : memref<2x18x18x8xf32, #tpu.memory_space<vmem>>, vector<2x1x18x8xf32>,
    %cst_60 = arith.constant 0.000000e+00 : f32
    %55 = vector.broadcast %cst_60 : f32 to vector<2x18x1x8xf32>
    %c0_61 = arith.constant 0 : index
    %c0_62 = arith.constant 0 : index
    %c0_63 = arith.constant 0 : index
    %c0_64 = arith.constant 0 : index
    %56 = vector.load %arg9[%c0_61, %c0_62, %c0_63, %c0_64] : memref<2x18x18x8xf32, #tpu.memory_space<vmem>>, vector<2x18x1x8xf32>
    tpu.vector_store %arg9[%c0_61, %c0_62, %c0_63, %c0_64], %55 {strides = array<i32>} : memref<2x18x18x8xf32, #tpu.memory_space<vmem>>, vector<2x18x1x8xf32>,
    %cst_65 = arith.constant 0.000000e+00 : f32
    %57 = vector.broadcast %cst_65 : f32 to vector<2x18x1x8xf32>
    %c0_66 = arith.constant 0 : index
    %c0_67 = arith.constant 0 : index
    %c17_68 = arith.constant 17 : index
    %c0_69 = arith.constant 0 : index
    %58 = vector.load %arg9[%c0_66, %c0_67, %c17_68, %c0_69] : memref<2x18x18x8xf32, #tpu.memory_space<vmem>>, vector<2x18x1x8xf32>
    tpu.vector_store %arg9[%c0_66, %c0_67, %c17_68, %c0_69], %57 {strides = array<i32>} : memref<2x18x18x8xf32, #tpu.memory_space<vmem>>, vector<2x18x1x8xf32>,
    %c0_70 = arith.constant 0 : index
    %c0_71 = arith.constant 0 : index
    %59 = vector.load %arg4[%c0_70, %c0_71] : memref<72x8xf32, #tpu.memory_space<vmem>>, vector<72x8xf32>
    %c0_72 = arith.constant 0 : index
    %c0_73 = arith.constant 0 : index
    %c0_74 = arith.constant 0 : index
    %c0_75 = arith.constant 0 : index
    %60 = vector.load %arg5[%c0_72, %c0_73, %c0_74, %c0_75] : memref<1x1x1x8xf32, #tpu.memory_space<vmem>>, vector<1x1x1x8xf32>
    %c0_76 = arith.constant 0 : index
    %c0_77 = arith.constant 0 : index
    %c0_78 = arith.constant 0 : index
    %c0_79 = arith.constant 0 : index
    %61 = vector.load %arg6[%c0_76, %c0_77, %c0_78, %c0_79] : memref<1x1x1x8xf32, #tpu.memory_space<vmem>>, vector<1x1x1x8xf32>
    %c0_80 = arith.constant 0 : index
    %c0_81 = arith.constant 0 : index
    %c0_82 = arith.constant 0 : index
    %c0_83 = arith.constant 0 : index
    %62 = vector.load %arg9[%c0_80, %c0_81, %c0_82, %c0_83] : memref<2x18x18x8xf32, #tpu.memory_space<vmem>>, vector<2x18x18x8xf32>
    %63 = vector.extract_strided_slice %62 {offsets = [0, 0, 0, 0], sizes = [2, 16, 16, 8], strides = [1, 1, 1, 1]} : vector<2x18x18x8xf32> to vector<2x16x16x8xf32>
    %64 = vector.extract_strided_slice %62 {offsets = [0, 0, 1, 0], sizes = [2, 16, 16, 8], strides = [1, 1, 1, 1]} : vector<2x18x18x8xf32> to vector<2x16x16x8xf32>
    %65 = vector.extract_strided_slice %62 {offsets = [0, 0, 2, 0], sizes = [2, 16, 16, 8], strides = [1, 1, 1, 1]} : vector<2x18x18x8xf32> to vector<2x16x16x8xf32>
    %66 = vector.extract_strided_slice %62 {offsets = [0, 1, 0, 0], sizes = [2, 16, 16, 8], strides = [1, 1, 1, 1]} : vector<2x18x18x8xf32> to vector<2x16x16x8xf32>
    %67 = vector.extract_strided_slice %62 {offsets = [0, 1, 1, 0], sizes = [2, 16, 16, 8], strides = [1, 1, 1, 1]} : vector<2x18x18x8xf32> to vector<2x16x16x8xf32>
    %68 = vector.extract_strided_slice %62 {offsets = [0, 1, 2, 0], sizes = [2, 16, 16, 8], strides = [1, 1, 1, 1]} : vector<2x18x18x8xf32> to vector<2x16x16x8xf32>
    %69 = vector.extract_strided_slice %62 {offsets = [0, 2, 0, 0], sizes = [2, 16, 16, 8], strides = [1, 1, 1, 1]} : vector<2x18x18x8xf32> to vector<2x16x16x8xf32>
    %70 = vector.extract_strided_slice %62 {offsets = [0, 2, 1, 0], sizes = [2, 16, 16, 8], strides = [1, 1, 1, 1]} : vector<2x18x18x8xf32> to vector<2x16x16x8xf32>
    %71 = vector.extract_strided_slice %62 {offsets = [0, 2, 2, 0], sizes = [2, 16, 16, 8], strides = [1, 1, 1, 1]} : vector<2x18x18x8xf32> to vector<2x16x16x8xf32>
    %72 = tpu.concatenate %63, %64, %65, %66, %67, %68, %69, %70, %71 in 3 : vector<2x16x16x8xf32>, vector<2x16x16x8xf32>, vector<2x16x16x8xf32>, vector<2x16x16x8xf32>, vector<2x16x16x8xf32>, vector<2x16x16x8xf32>, vector<2x16x16x8xf32>, vector<2x16x16x8xf32>, vector<2x16x16x8xf32> -> vector<2x16x16x72xf32>
    %cst_84 = arith.constant dense<0.000000e+00> : vector<2x16x16x8xf32>
    %73 = tpu.matmul %72, %59, %cst_84 {dimension_numbers = #tpu.dot_dimension_numbers<[3], [0], [0, 1, 2], [1], [0, 0, 0, 1, 0, 2, 1, 1], [], []>} : vector<2x16x16x72xf32>, vector<72x8xf32>, vector<2x16x16x8xf32> -> vector<2x16x16x8xf32>
    %cst_85 = arith.constant dense<0.000000e+00> : vector<8xf32>
    %74 = vector.multi_reduction <add>, %73, %cst_85 [0, 1, 2] : vector<2x16x16x8xf32> to vector<8xf32>
    %75 = vector.shape_cast %74 : vector<8xf32> to vector<1x1x1x8xf32>
    %76 = arith.mulf %73, %73 : vector<2x16x16x8xf32>
    %cst_86 = arith.constant dense<0.000000e+00> : vector<8xf32>
    %77 = vector.multi_reduction <add>, %76, %cst_86 [0, 1, 2] : vector<2x16x16x8xf32> to vector<8xf32>
    %78 = vector.shape_cast %77 : vector<8xf32> to vector<1x1x1x8xf32>
    %cst_87 = arith.constant 0.001953125 : f32
    %79 = vector.broadcast %cst_87 : f32 to vector<1x1x1x8xf32>
    %80 = arith.mulf %75, %79 : vector<1x1x1x8xf32>
    %cst_88 = arith.constant 0.001953125 : f32
    %81 = vector.broadcast %cst_88 : f32 to vector<1x1x1x8xf32>
    %82 = arith.mulf %78, %81 : vector<1x1x1x8xf32>
    %83 = arith.mulf %80, %80 : vector<1x1x1x8xf32>
    %84 = arith.subf %82, %83 : vector<1x1x1x8xf32>
    %cst_89 = arith.constant 0.000000e+00 : f32
    %85 = vector.broadcast %cst_89 : f32 to vector<1x1x1x8xf32>
    %86 = arith.maximumf %84, %85 : vector<1x1x1x8xf32>
    %cst_90 = arith.constant 9.99999974E-6 : f32
    %87 = vector.broadcast %cst_90 : f32 to vector<1x1x1x8xf32>
    %88 = arith.addf %86, %87 : vector<1x1x1x8xf32>
    %89 = math.rsqrt %88 : vector<1x1x1x8xf32>
    %90 = arith.mulf %60, %89 : vector<1x1x1x8xf32>
    %91 = arith.mulf %80, %90 : vector<1x1x1x8xf32>
    %92 = arith.subf %61, %91 : vector<1x1x1x8xf32>
    %93 = vector.broadcast %90 : vector<1x1x1x8xf32> to vector<2x16x16x8xf32>
    %94 = arith.mulf %73, %93 : vector<2x16x16x8xf32>
    %95 = vector.broadcast %92 : vector<1x1x1x8xf32> to vector<2x16x16x8xf32>
    %96 = arith.addf %94, %95 : vector<2x16x16x8xf32>
    %cst_91 = arith.constant 0.000000e+00 : f32
    %97 = vector.broadcast %cst_91 : f32 to vector<2x16x16x8xf32>
    %98 = arith.maximumf %96, %97 : vector<2x16x16x8xf32>
    %c0_92 = arith.constant 0 : index
    %c0_93 = arith.constant 0 : index
    %c0_94 = arith.constant 0 : index
    %c0_95 = arith.constant 0 : index
    %99 = vector.load %arg7[%c0_92, %c0_93, %c0_94, %c0_95] : memref<2x16x16x8xf32, #tpu.memory_space<vmem>>, vector<2x16x16x8xf32>
    tpu.vector_store %arg7[%c0_92, %c0_93, %c0_94, %c0_95], %98 {strides = array<i32>} : memref<2x16x16x8xf32, #tpu.memory_space<vmem>>, vector<2x16x16x8xf32>,
    return
  }
}

</mosaic_0001>

<llo_original>
// kernel: tpu_custom_call.1
$region0: #{tpu_custom_call.1}
  #allocation0 [shape = 'u32[]', space=smem, size = 0x4, offset = 0x4, fixed_abs, tag = 'smem constant byte address 0x4 - core index']
  #allocation1 [shape = 'u32[144,128]{1,0:T(1,128)}', space=vmem, size = 0x12000, scoped, tag = 'internal scratch']
  #allocation2 [shape = 'f32[2,18,18,4]{3,2,1,0:T(8,128)}', space=vmem, size = 0x6c000, scoped, tag = 'scratch operand']
  #allocation3 [shape = 'f32[2,18,18,8]{3,2,1,0:T(8,128)}', space=vmem, size = 0x6c000, scoped, tag = 'scratch operand']
  %s0 = inlined_call_operand.vmem [shape: f32[2,16,16,4], index: 0, kind: input, shape index: {}]
  %s1 = inlined_call_operand.vmem [shape: f32[36,8], index: 1, kind: input, shape index: {}]
  %s2 = inlined_call_operand.vmem [shape: f32[1,1,1,8], index: 2, kind: input, shape index: {}]
  %s3 = inlined_call_operand.vmem [shape: f32[1,1,1,8], index: 3, kind: input, shape index: {}]
  %s4 = inlined_call_operand.vmem [shape: f32[72,8], index: 4, kind: input, shape index: {}]
  %s5 = inlined_call_operand.vmem [shape: f32[1,1,1,8], index: 5, kind: input, shape index: {}]
  %s6 = inlined_call_operand.vmem [shape: f32[1,1,1,8], index: 6, kind: input, shape index: {}]
  %s7 = inlined_call_operand.vmem [shape: f32[2,16,16,8], index: 7, kind: output, shape index: {}]
  %s8 = sld [smem:[#allocation0]]
  $region38: #{tpu_custom_call.1} parent=0
    _
  %s10 = ssub.s32 1, %s8
  %s11 = scalar_select 0, %s10, %s8
  // Predicated region
  $region2: #{tpu_custom_call.1} parent=0 // pred_check
    _
  $region3: #{tpu_custom_call.1} parent=0 // pred_check_branch
    %13 = sbr.rel (0) target = $region5
  $region4: #{tpu_custom_call.1} parent=0 // pred_region
    _
  $region5: #{tpu_custom_call.1} parent=0 // pred_fallthru
    _
  // Predicated region
  $region6: #{tpu_custom_call.1} parent=0 // pred_check
    _
  $region7: #{tpu_custom_call.1} parent=0 // pred_check_branch
    %15 = sbr.rel (0) target = $region9
  $region8: #{tpu_custom_call.1} parent=0 // pred_region
    _
  $region9: #{tpu_custom_call.1} parent=0 // pred_fallthru
    _
  // Predicated region
  $region10: #{tpu_custom_call.1} parent=0 // pred_check
    _
  $region11: #{tpu_custom_call.1} parent=0 // pred_check_branch
    %17 = sbr.rel (0) target = $region13
  $region12: #{tpu_custom_call.1} parent=0 // pred_region
    _
  $region13: #{tpu_custom_call.1} parent=0 // pred_fallthru
    _
  // Predicated region
  $region14: #{tpu_custom_call.1} parent=0 // pred_check
    _
  $region15: #{tpu_custom_call.1} parent=0 // pred_check_branch
    %19 = sbr.rel (0) target = $region17
  $region16: #{tpu_custom_call.1} parent=0 // pred_region
    _
  $region17: #{tpu_custom_call.1} parent=0 // pred_fallthru
    _
  // Predicated region
  $region18: #{tpu_custom_call.1} parent=0 // pred_check
    _
  $region19: #{tpu_custom_call.1} parent=0 // pred_check_branch
    %21 = sbr.rel (0) target = $region21
  $region20: #{tpu_custom_call.1} parent=0 // pred_region
    _
  $region21: #{tpu_custom_call.1} parent=0 // pred_fallthru
    _
  // Predicated region
  $region22: #{tpu_custom_call.1} parent=0 // pred_check
    _
  $region23: #{tpu_custom_call.1} parent=0 // pred_check_branch
    %23 = sbr.rel (0) target = $region25
  $region24: #{tpu_custom_call.1} parent=0 // pred_region
    _
  $region25: #{tpu_custom_call.1} parent=0 // pred_fallthru
    _
  // Predicated region
  $region26: #{tpu_custom_call.1} parent=0 // pred_check
    _
  $region27: #{tpu_custom_call.1} parent=0 // pred_check_branch
    %25 = sbr.rel (0) target = $region29
  $region28: #{tpu_custom_call.1} parent=0 // pred_region
    _
  $region29: #{tpu_custom_call.1} parent=0 // pred_fallthru
    _
  %v26 = vld [vmem:[%s0] sm:$0xff]
  %v27 = vld [vmem:[%s0 + $0x8] sm:$0xff]
  %v28 = vld [vmem:[%s0 + $0x10] sm:$0xff]
  %v29 = vld [vmem:[%s0 + $0x18] sm:$0xff]
  %v30 = vld [vmem:[%s0 + $0x20] sm:$0xff]
  %v31 = vld [vmem:[%s0 + $0x28] sm:$0xff]
  %v32 = vld [vmem:[%s0 + $0x30] sm:$0xff]
  %v33 = vld [vmem:[%s0 + $0x38] sm:$0xff]
  %v34 = vld [vmem:[%s0 + $0x40] sm:$0xff]
  %v35 = vld [vmem:[%s0 + $0x48] sm:$0xff]
  %v36 = vld [vmem:[%s0 + $0x50] sm:$0xff]
  %v37 = vld [vmem:[%s0 + $0x58] sm:$0xff]
  %v38 = vld [vmem:[%s0 + $0x60] sm:$0xff]
  %v39 = vld [vmem:[%s0 + $0x68] sm:$0xff]
  %v40 = vld [vmem:[%s0 + $0x70] sm:$0xff]
  %v41 = vld [vmem:[%s0 + $0x78] sm:$0xff]
  %v42 = vld [vmem:[%s0 + $0x80] sm:$0xff]
  %v43 = vld [vmem:[%s0 + $0x88] sm:$0xff]
  %v44 = vld [vmem:[%s0 + $0x90] sm:$0xff]
  %v45 = vld [vmem:[%s0 + $0x98] sm:$0xff]
  %v46 = vld [vmem:[%s0 + $0xa0] sm:$0xff]
  %v47 = vld [vmem:[%s0 + $0xa8] sm:$0xff]
  %v48 = vld [vmem:[%s0 + $0xb0] sm:$0xff]
  %v49 = vld [vmem:[%s0 + $0xb8] sm:$0xff]
  %v50 = vld [vmem:[%s0 + $0xc0] sm:$0xff]
  %v51 = vld [vmem:[%s0 + $0xc8] sm:$0xff]
  %v52 = vld [vmem:[%s0 + $0xd0] sm:$0xff]
  %v53 = vld [vmem:[%s0 + $0xd8] sm:$0xff]
  %v54 = vld [vmem:[%s0 + $0xe0] sm:$0xff]
  %v55 = vld [vmem:[%s0 + $0xe8] sm:$0xff]
  %v56 = vld [vmem:[%s0 + $0xf0] sm:$0xff]
  %v57 = vld [vmem:[%s0 + $0xf8] sm:$0xff]
  %v58 = vld [vmem:[%s0 + $0x100] sm:$0xff]
  %v59 = vld [vmem:[%s0 + $0x108] sm:$0xff]
  %v60 = vld [vmem:[%s0 + $0x110] sm:$0xff]
  %v61 = vld [vmem:[%s0 + $0x118] sm:$0xff]
  %v62 = vld [vmem:[%s0 + $0x120] sm:$0xff]
  %v63 = vld [vmem:[%s0 + $0x128] sm:$0xff]
  %v64 = vld [vmem:[%s0 + $0x130] sm:$0xff]
  %v65 = vld [vmem:[%s0 + $0x138] sm:$0xff]
  %v66 = vld [vmem:[%s0 + $0x140] sm:$0xff]
  %v67 = vld [vmem:[%s0 + $0x148] sm:$0xff]
  %v68 = vld [vmem:[%s0 + $0x150] sm:$0xff]
  %v69 = vld [vmem:[%s0 + $0x158] sm:$0xff]
  %v70 = vld [vmem:[%s0 + $0x160] sm:$0xff]
  %v71 = vld [vmem:[%s0 + $0x168] sm:$0xff]
  %v72 = vld [vmem:[%s0 + $0x170] sm:$0xff]
  %v73 = vld [vmem:[%s0 + $0x178] sm:$0xff]
  %v74 = vld [vmem:[%s0 + $0x180] sm:$0xff]
  %v75 = vld [vmem:[%s0 + $0x188] sm:$0xff]
  %v76 = vld [vmem:[%s0 + $0x190] sm:$0xff]
  %v77 = vld [vmem:[%s0 + $0x198] sm:$0xff]
  %v78 = vld [vmem:[%s0 + $0x1a0] sm:$0xff]
  %v79 = vld [vmem:[%s0 + $0x1a8] sm:$0xff]
  %v80 = vld [vmem:[%s0 + $0x1b0] sm:$0xff]
  %v81 = vld [vmem:[%s0 + $0x1b8] sm:$0xff]
  %v82 = vld [vmem:[%s0 + $0x1c0] sm:$0xff]
  %v83 = vld [vmem:[%s0 + $0x1c8] sm:$0xff]
  %v84 = vld [vmem:[%s0 + $0x1d0] sm:$0xff]
  %v85 = vld [vmem:[%s0 + $0x1d8] sm:$0xff]
  %v86 = vld [vmem:[%s0 + $0x1e0] sm:$0xff]
  %v87 = vld [vmem:[%s0 + $0x1e8] sm:$0xff]
  %v88 = vld [vmem:[%s0 + $0x1f0] sm:$0xff]
  %v89 = vld [vmem:[%s0 + $0x1f8] sm:$0xff]
  %s90 = scalar_lea.vmem [#allocation2], 24
  %vm91 = vcmask 31744
  %92 = vst.msk [vmem:[%s90 + $0x1] sm:$0xff] %vm91, %v26
  %93 = vst.msk [vmem:[%s90 + $0x9] sm:$0xff] %vm91, %v27
  %94 = vst.msk [vmem:[%s90 + $0x19] sm:$0xff] %vm91, %v28
  %95 = vst.msk [vmem:[%s90 + $0x21] sm:$0xff] %vm91, %v29
  %96 = vst.msk [vmem:[%s90 + $0x31] sm:$0xff] %vm91, %v30
  %97 = vst.msk [vmem:[%s90 + $0x39] sm:$0xff] %vm91, %v31
  %98 = vst.msk [vmem:[%s90 + $0x49] sm:$0xff] %vm91, %v32
  %99 = vst.msk [vmem:[%s90 + $0x51] sm:$0xff] %vm91, %v33
  %100 = vst.msk [vmem:[%s90 + $0x61] sm:$0xff] %vm91, %v34
  %101 = vst.msk [vmem:[%s90 + $0x69] sm:$0xff] %vm91, %v35
  %102 = vst.msk [vmem:[%s90 + $0x79] sm:$0xff] %vm91, %v36
  %103 = vst.msk [vmem:[%s90 + $0x81] sm:$0xff] %vm91, %v37
  %104 = vst.msk [vmem:[%s90 + $0x91] sm:$0xff] %vm91, %v38
  %105 = vst.msk [vmem:[%s90 + $0x99] sm:$0xff] %vm91, %v39
  %106 = vst.msk [vmem:[%s90 + $0xa9] sm:$0xff] %vm91, %v40
  %107 = vst.msk [vmem:[%s90 + $0xb1] sm:$0xff] %vm91, %v41
  %108 = vst.msk [vmem:[%s90 + $0xc1] sm:$0xff] %vm91, %v42
  %109 = vst.msk [vmem:[%s90 + $0xc9] sm:$0xff] %vm91, %v43
  %110 = vst.msk [vmem:[%s90 + $0xd9] sm:$0xff] %vm91, %v44
  %111 = vst.msk [vmem:[%s90 + $0xe1] sm:$0xff] %vm91, %v45
  %112 = vst.msk [vmem:[%s90 + $0xf1] sm:$0xff] %vm91, %v46
  %113 = vst.msk [vmem:[%s90 + $0xf9] sm:$0xff] %vm91, %v47
  %114 = vst.msk [vmem:[%s90 + $0x109] sm:$0xff] %vm91, %v48
  %115 = vst.msk [vmem:[%s90 + $0x111] sm:$0xff] %vm91, %v49
  %116 = vst.msk [vmem:[%s90 + $0x121] sm:$0xff] %vm91, %v50
  %117 = vst.msk [vmem:[%s90 + $0x129] sm:$0xff] %vm91, %v51
  %118 = vst.msk [vmem:[%s90 + $0x139] sm:$0xff] %vm91, %v52
  %119 = vst.msk [vmem:[%s90 + $0x141] sm:$0xff] %vm91, %v53
  %120 = vst.msk [vmem:[%s90 + $0x151] sm:$0xff] %vm91, %v54
  %121 = vst.msk [vmem:[%s90 + $0x159] sm:$0xff] %vm91, %v55
  %122 = vst.msk [vmem:[%s90 + $0x169] sm:$0xff] %vm91, %v56
  %123 = vst.msk [vmem:[%s90 + $0x171] sm:$0xff] %vm91, %v57
  %124 = vst.msk [vmem:[%s90 + $0x1b1] sm:$0xff] %vm91, %v58
  %125 = vst.msk [vmem:[%s90 + $0x1b9] sm:$0xff] %vm91, %v59
  %126 = vst.msk [vmem:[%s90 + $0x1c9] sm:$0xff] %vm91, %v60
  %127 = vst.msk [vmem:[%s90 + $0x1d1] sm:$0xff] %vm91, %v61
  %128 = vst.msk [vmem:[%s90 + $0x1e1] sm:$0xff] %vm91, %v62
  %129 = vst.msk [vmem:[%s90 + $0x1e9] sm:$0xff] %vm91, %v63
  %130 = vst.msk [vmem:[%s90 + $0x1f9] sm:$0xff] %vm91, %v64
  %131 = vst.msk [vmem:[%s90 + $0x201] sm:$0xff] %vm91, %v65
  %132 = vst.msk [vmem:[%s90 + $0x211] sm:$0xff] %vm91, %v66
  %133 = vst.msk [vmem:[%s90 + $0x219] sm:$0xff] %vm91, %v67
  %134 = vst.msk [vmem:[%s90 + $0x229] sm:$0xff] %vm91, %v68
  %135 = vst.msk [vmem:[%s90 + $0x231] sm:$0xff] %vm91, %v69
  %136 = vst.msk [vmem:[%s90 + $0x241] sm:$0xff] %vm91, %v70
  %137 = vst.msk [vmem:[%s90 + $0x249] sm:$0xff] %vm91, %v71
  %138 = vst.msk [vmem:[%s90 + $0x259] sm:$0xff] %vm91, %v72
  %139 = vst.msk [vmem:[%s90 + $0x261] sm:$0xff] %vm91, %v73
  %140 = vst.msk [vmem:[%s90 + $0x271] sm:$0xff] %vm91, %v74
  %141 = vst.msk [vmem:[%s90 + $0x279] sm:$0xff] %vm91, %v75
  %142 = vst.msk [vmem:[%s90 + $0x289] sm:$0xff] %vm91, %v76
  %143 = vst.msk [vmem:[%s90 + $0x291] sm:$0xff] %vm91, %v77
  %144 = vst.msk [vmem:[%s90 + $0x2a1] sm:$0xff] %vm91, %v78
  %145 = vst.msk [vmem:[%s90 + $0x2a9] sm:$0xff] %vm91, %v79
  %146 = vst.msk [vmem:[%s90 + $0x2b9] sm:$0xff] %vm91, %v80
  %147 = vst.msk [vmem:[%s90 + $0x2c1] sm:$0xff] %vm91, %v81
  %148 = vst.msk [vmem:[%s90 + $0x2d1] sm:$0xff] %vm91, %v82
  %149 = vst.msk [vmem:[%s90 + $0x2d9] sm:$0xff] %vm91, %v83
  %150 = vst.msk [vmem:[%s90 + $0x2e9] sm:$0xff] %vm91, %v84
  %151 = vst.msk [vmem:[%s90 + $0x2f1] sm:$0xff] %vm91, %v85
  %152 = vst.msk [vmem:[%s90 + $0x301] sm:$0xff] %vm91, %v86
  %153 = vst.msk [vmem:[%s90 + $0x309] sm:$0xff] %vm91, %v87
  %154 = vst.msk [vmem:[%s90 + $0x319] sm:$0xff] %vm91, %v88
  %155 = vst.msk [vmem:[%s90 + $0x321] sm:$0xff] %vm91, %v89
  %156 = vst.msk [vmem:[#allocation2] sm:$0xff] %vm91, 0.0
  %157 = vst.msk [vmem:[#allocation2 + $0x8] sm:$0xff] %vm91, 0.0
  %vm158 = vcmask 25600
  %159 = vst.msk [vmem:[#allocation2 + $0x10] sm:$0x3] %vm158, 0.0
  %160 = vst.msk [vmem:[#allocation2 + $0x1b0] sm:$0xff] %vm91, 0.0
  %161 = vst.msk [vmem:[#allocation2 + $0x1b8] sm:$0xff] %vm91, 0.0
  %162 = vst.msk [vmem:[#allocation2 + $0x1c0] sm:$0x3] %vm158, 0.0
  %s163 = scalar_lea.vmem [#allocation2], 408
  %164 = vst.msk [vmem:[%s163] sm:$0xff] %vm91, 0.0
  %165 = vst.msk [vmem:[%s163 + $0x8] sm:$0xff] %vm91, 0.0
  %166 = vst.msk [vmem:[%s163 + $0x10] sm:$0x3] %vm158, 0.0
  %167 = vst.msk [vmem:[%s163 + $0x1b0] sm:$0xff] %vm91, 0.0
  %168 = vst.msk [vmem:[%s163 + $0x1b8] sm:$0xff] %vm91, 0.0
  %169 = vst.msk [vmem:[%s163 + $0x1c0] sm:$0x3] %vm158, 0.0
  %vm170 = vcmask 24576
  %171 = vst.msk [vmem:[#allocation2] sm:$0x1] %vm170, 0.0
  %172 = vst.msk [vmem:[#allocation2 + $0x18] sm:$0x1] %vm170, 0.0
  %173 = vst.msk [vmem:[#allocation2 + $0x30] sm:$0x1] %vm170, 0.0
  %174 = vst.msk [vmem:[#allocation2 + $0x48] sm:$0x1] %vm170, 0.0
  %175 = vst.msk [vmem:[#allocation2 + $0x60] sm:$0x1] %vm170, 0.0
  %176 = vst.msk [vmem:[#allocation2 + $0x78] sm:$0x1] %vm170, 0.0
  %177 = vst.msk [vmem:[#allocation2 + $0x90] sm:$0x1] %vm170, 0.0
  %178 = vst.msk [vmem:[#allocation2 + $0xa8] sm:$0x1] %vm170, 0.0
  %179 = vst.msk [vmem:[#allocation2 + $0xc0] sm:$0x1] %vm170, 0.0
  %180 = vst.msk [vmem:[#allocation2 + $0xd8] sm:$0x1] %vm170, 0.0
  %181 = vst.msk [vmem:[#allocation2 + $0xf0] sm:$0x1] %vm170, 0.0
  %182 = vst.msk [vmem:[#allocation2 + $0x108] sm:$0x1] %vm170, 0.0
  %183 = vst.msk [vmem:[#allocation2 + $0x120] sm:$0x1] %vm170, 0.0
  %184 = vst.msk [vmem:[#allocation2 + $0x138] sm:$0x1] %vm170, 0.0
  %185 = vst.msk [vmem:[#allocation2 + $0x150] sm:$0x1] %vm170, 0.0
  %186 = vst.msk [vmem:[#allocation2 + $0x168] sm:$0x1] %vm170, 0.0
  %187 = vst.msk [vmem:[#allocation2 + $0x180] sm:$0x1] %vm170, 0.0
  %188 = vst.msk [vmem:[#allocation2 + $0x198] sm:$0x1] %vm170, 0.0
  %189 = vst.msk [vmem:[#allocation2 + $0x1b0] sm:$0x1] %vm170, 0.0
  %190 = vst.msk [vmem:[#allocation2 + $0x1c8] sm:$0x1] %vm170, 0.0
  %191 = vst.msk [vmem:[#allocation2 + $0x1e0] sm:$0x1] %vm170, 0.0
  %192 = vst.msk [vmem:[#allocation2 + $0x1f8] sm:$0x1] %vm170, 0.0
  %193 = vst.msk [vmem:[#allocation2 + $0x210] sm:$0x1] %vm170, 0.0
  %194 = vst.msk [vmem:[#allocation2 + $0x228] sm:$0x1] %vm170, 0.0
  %195 = vst.msk [vmem:[#allocation2 + $0x240] sm:$0x1] %vm170, 0.0
  %196 = vst.msk [vmem:[#allocation2 + $0x258] sm:$0x1] %vm170, 0.0
  %197 = vst.msk [vmem:[#allocation2 + $0x270] sm:$0x1] %vm170, 0.0
  %198 = vst.msk [vmem:[#allocation2 + $0x288] sm:$0x1] %vm170, 0.0
  %199 = vst.msk [vmem:[#allocation2 + $0x2a0] sm:$0x1] %vm170, 0.0
  %200 = vst.msk [vmem:[#allocation2 + $0x2b8] sm:$0x1] %vm170, 0.0
  %201 = vst.msk [vmem:[#allocation2 + $0x2d0] sm:$0x1] %vm170, 0.0
  %202 = vst.msk [vmem:[#allocation2 + $0x2e8] sm:$0x1] %vm170, 0.0
  %203 = vst.msk [vmem:[#allocation2 + $0x300] sm:$0x1] %vm170, 0.0
  %204 = vst.msk [vmem:[#allocation2 + $0x318] sm:$0x1] %vm170, 0.0
  %205 = vst.msk [vmem:[#allocation2 + $0x330] sm:$0x1] %vm170, 0.0
  %206 = vst.msk [vmem:[#allocation2 + $0x348] sm:$0x1] %vm170, 0.0
  %207 = vst.msk [vmem:[#allocation2 + $0x11] sm:$0x1] %vm170, 0.0
  %208 = vst.msk [vmem:[#allocation2 + $0x29] sm:$0x1] %vm170, 0.0
  %209 = vst.msk [vmem:[#allocation2 + $0x41] sm:$0x1] %vm170, 0.0
  %210 = vst.msk [vmem:[#allocation2 + $0x59] sm:$0x1] %vm170, 0.0
  %211 = vst.msk [vmem:[#allocation2 + $0x71] sm:$0x1] %vm170, 0.0
  %212 = vst.msk [vmem:[#allocation2 + $0x89] sm:$0x1] %vm170, 0.0
  %213 = vst.msk [vmem:[#allocation2 + $0xa1] sm:$0x1] %vm170, 0.0
  %214 = vst.msk [vmem:[#allocation2 + $0xb9] sm:$0x1] %vm170, 0.0
  %215 = vst.msk [vmem:[#allocation2 + $0xd1] sm:$0x1] %vm170, 0.0
  %216 = vst.msk [vmem:[#allocation2 + $0xe9] sm:$0x1] %vm170, 0.0
  %217 = vst.msk [vmem:[#allocation2 + $0x101] sm:$0x1] %vm170, 0.0
  %218 = vst.msk [vmem:[#allocation2 + $0x119] sm:$0x1] %vm170, 0.0
  %219 = vst.msk [vmem:[#allocation2 + $0x131] sm:$0x1] %vm170, 0.0
  %220 = vst.msk [vmem:[#allocation2 + $0x149] sm:$0x1] %vm170, 0.0
  %221 = vst.msk [vmem:[#allocation2 + $0x161] sm:$0x1] %vm170, 0.0
  %222 = vst.msk [vmem:[#allocation2 + $0x179] sm:$0x1] %vm170, 0.0
  %223 = vst.msk [vmem:[#allocation2 + $0x191] sm:$0x1] %vm170, 0.0
  %224 = vst.msk [vmem:[#allocation2 + $0x1a9] sm:$0x1] %vm170, 0.0
  %225 = vst.msk [vmem:[#allocation2 + $0x1c1] sm:$0x1] %vm170, 0.0
  %226 = vst.msk [vmem:[#allocation2 + $0x1d9] sm:$0x1] %vm170, 0.0
  %227 = vst.msk [vmem:[#allocation2 + $0x1f1] sm:$0x1] %vm170, 0.0
  %228 = vst.msk [vmem:[#allocation2 + $0x209] sm:$0x1] %vm170, 0.0
  %229 = vst.msk [vmem:[#allocation2 + $0x221] sm:$0x1] %vm170, 0.0
  %230 = vst.msk [vmem:[#allocation2 + $0x239] sm:$0x1] %vm170, 0.0
  %231 = vst.msk [vmem:[#allocation2 + $0x251] sm:$0x1] %vm170, 0.0
  %232 = vst.msk [vmem:[#allocation2 + $0x269] sm:$0x1] %vm170, 0.0
  %233 = vst.msk [vmem:[#allocation2 + $0x281] sm:$0x1] %vm170, 0.0
  %234 = vst.msk [vmem:[#allocation2 + $0x299] sm:$0x1] %vm170, 0.0
  %235 = vst.msk [vmem:[#allocation2 + $0x2b1] sm:$0x1] %vm170, 0.0
  %236 = vst.msk [vmem:[#allocation2 + $0x2c9] sm:$0x1] %vm170, 0.0
  %237 = vst.msk [vmem:[#allocation2 + $0x2e1] sm:$0x1] %vm170, 0.0
  %238 = vst.msk [vmem:[#allocation2 + $0x2f9] sm:$0x1] %vm170, 0.0
  %239 = vst.msk [vmem:[#allocation2 + $0x311] sm:$0x1] %vm170, 0.0
  %240 = vst.msk [vmem:[#allocation2 + $0x329] sm:$0x1] %vm170, 0.0
  %241 = vst.msk [vmem:[#allocation2 + $0x341] sm:$0x1] %vm170, 0.0
  %242 = vst.msk [vmem:[#allocation2 + $0x359] sm:$0x1] %vm170, 0.0
  %v243 = vld [vmem:[%s1] sm:$0xff]
  %v244 = vld [vmem:[%s1 + $0x8] sm:$0xff]
  %v245 = vld [vmem:[%s1 + $0x10] sm:$0xff]
  %v246 = vld [vmem:[%s1 + $0x18] sm:$0xff]
  %v247 = vld [vmem:[%s1 + $0x20] sm:$0xf]
  %v248 = vld [vmem:[%s2] sm:$0x1]
  %v249 = vld [vmem:[%s3] sm:$0x1]
  %v250 = vld [vmem:[#allocation2] sm:$0xff]
  %v251 = vld [vmem:[#allocation2 + $0x8] sm:$0xff]
  %v252 = vld [vmem:[#allocation2 + $0x10] sm:$0x3]
  %v253 = vld [vmem:[#allocation2 + $0x18] sm:$0xff]
  %v254 = vld [vmem:[#allocation2 + $0x20] sm:$0xff]
  %v255 = vld [vmem:[#allocation2 + $0x28] sm:$0x3]
  %v256 = vld [vmem:[#allocation2 + $0x30] sm:$0xff]
  %v257 = vld [vmem:[#allocation2 + $0x38] sm:$0xff]
  %v258 = vld [vmem:[#allocation2 + $0x40] sm:$0x3]
  %v259 = vld [vmem:[#allocation2 + $0x48] sm:$0xff]
  %v260 = vld [vmem:[#allocation2 + $0x50] sm:$0xff]
  %v261 = vld [vmem:[#allocation2 + $0x58] sm:$0x3]
  %v262 = vld [vmem:[#allocation2 + $0x60] sm:$0xff]
  %v263 = vld [vmem:[#allocation2 + $0x68] sm:$0xff]
  %v264 = vld [vmem:[#allocation2 + $0x70] sm:$0x3]
  %v265 = vld [vmem:[#allocation2 + $0x78] sm:$0xff]
  %v266 = vld [vmem:[#allocation2 + $0x80] sm:$0xff]
  %v267 = vld [vmem:[#allocation2 + $0x88] sm:$0x3]
  %v268 = vld [vmem:[#allocation2 + $0x90] sm:$0xff]
  %v269 = vld [vmem:[#allocation2 + $0x98] sm:$0xff]
  %v270 = vld [vmem:[#allocation2 + $0xa0] sm:$0x3]
  %v271 = vld [vmem:[#allocation2 + $0xa8] sm:$0xff]
  %v272 = vld [vmem:[#allocation2 + $0xb0] sm:$0xff]
  %v273 = vld [vmem:[#allocation2 + $0xb8] sm:$0x3]
  %v274 = vld [vmem:[#allocation2 + $0xc0] sm:$0xff]
  %v275 = vld [vmem:[#allocation2 + $0xc8] sm:$0xff]
  %v276 = vld [vmem:[#allocation2 + $0xd0] sm:$0x3]
  %v277 = vld [vmem:[#allocation2 + $0xd8] sm:$0xff]
  %v278 = vld [vmem:[#allocation2 + $0xe0] sm:$0xff]
  %v279 = vld [vmem:[#allocation2 + $0xe8] sm:$0x3]
  %v280 = vld [vmem:[#allocation2 + $0xf0] sm:$0xff]
  %v281 = vld [vmem:[#allocation2 + $0xf8] sm:$0xff]
  %v282 = vld [vmem:[#allocation2 + $0x100] sm:$0x3]
  %v283 = vld [vmem:[#allocation2 + $0x108] sm:$0xff]
  %v284 = vld [vmem:[#allocation2 + $0x110] sm:$0xff]
  %v285 = vld [vmem:[#allocation2 + $0x118] sm:$0x3]
  %v286 = vld [vmem:[#allocation2 + $0x120] sm:$0xff]
  %v287 = vld [vmem:[#allocation2 + $0x128] sm:$0xff]
  %v288 = vld [vmem:[#allocation2 + $0x130] sm:$0x3]
  %v289 = vld [vmem:[#allocation2 + $0x138] sm:$0xff]
  %v290 = vld [vmem:[#allocation2 + $0x140] sm:$0xff]
  %v291 = vld [vmem:[#allocation2 + $0x148] sm:$0x3]
  %v292 = vld [vmem:[#allocation2 + $0x150] sm:$0xff]
  %v293 = vld [vmem:[#allocation2 + $0x158] sm:$0xff]
  %v294 = vld [vmem:[#allocation2 + $0x160] sm:$0x3]
  %v295 = vld [vmem:[#allocation2 + $0x168] sm:$0xff]
  %v296 = vld [vmem:[#allocation2 + $0x170] sm:$0xff]
  %v297 = vld [vmem:[#allocation2 + $0x178] sm:$0x3]
  %v298 = vld [vmem:[#allocation2 + $0x180] sm:$0xff]
  %v299 = vld [vmem:[#allocation2 + $0x188] sm:$0xff]
  %v300 = vld [vmem:[#allocation2 + $0x190] sm:$0x3]
  %v301 = vld [vmem:[#allocation2 + $0x198] sm:$0xff]
  %v302 = vld [vmem:[#allocation2 + $0x1a0] sm:$0xff]
  %v303 = vld [vmem:[#allocation2 + $0x1a8] sm:$0x3]
  %v304 = vld [vmem:[#allocation2 + $0x1b0] sm:$0xff]
  %v305 = vld [vmem:[#allocation2 + $0x1b8] sm:$0xff]
  %v306 = vld [vmem:[#allocation2 + $0x1c0] sm:$0x3]
  %v307 = vld [vmem:[#allocation2 + $0x1c8] sm:$0xff]
  %v308 = vld [vmem:[#allocation2 + $0x1d0] sm:$0xff]
  %v309 = vld [vmem:[#allocation2 + $0x1d8] sm:$0x3]
  %v310 = vld [vmem:[#allocation2 + $0x1e0] sm:$0xff]
  %v311 = vld [vmem:[#allocation2 + $0x1e8] sm:$0xff]
  %v312 = vld [vmem:[#allocation2 + $0x1f0] sm:$0x3]
  %v313 = vld [vmem:[#allocation2 + $0x1f8] sm:$0xff]
  %v314 = vld [vmem:[#allocation2 + $0x200] sm:$0xff]
  %v315 = vld [vmem:[#allocation2 + $0x208] sm:$0x3]
  %v316 = vld [vmem:[#allocation2 + $0x210] sm:$0xff]
  %v317 = vld [vmem:[#allocation2 + $0x218] sm:$0xff]
  %v318 = vld [vmem:[#allocation2 + $0x220] sm:$0x3]
  %v319 = vld [vmem:[#allocation2 + $0x228] sm:$0xff]
  %v320 = vld [vmem:[#allocation2 + $0x230] sm:$0xff]
  %v321 = vld [vmem:[#allocation2 + $0x238] sm:$0x3]
  %v322 = vld [vmem:[#allocation2 + $0x240] sm:$0xff]
  %v323 = vld [vmem:[#allocation2 + $0x248] sm:$0xff]
  %v324 = vld [vmem:[#allocation2 + $0x250] sm:$0x3]
  %v325 = vld [vmem:[#allocation2 + $0x258] sm:$0xff]
  %v326 = vld [vmem:[#allocation2 + $0x260] sm:$0xff]
  %v327 = vld [vmem:[#allocation2 + $0x268] sm:$0x3]
  %v328 = vld [vmem:[#allocation2 + $0x270] sm:$0xff]
  %v329 = vld [vmem:[#allocation2 + $0x278] sm:$0xff]
  %v330 = vld [vmem:[#allocation2 + $0x280] sm:$0x3]
  %v331 = vld [vmem:[#allocation2 + $0x288] sm:$0xff]
  %v332 = vld [vmem:[#allocation2 + $0x290] sm:$0xff]
  %v333 = vld [vmem:[#allocation2 + $0x298] sm:$0x3]
  %v334 = vld [vmem:[#allocation2 + $0x2a0] sm:$0xff]
  %v335 = vld [vmem:[#allocation2 + $0x2a8] sm:$0xff]
  %v336 = vld [vmem:[#allocation2 + $0x2b0] sm:$0x3]
  %v337 = vld [vmem:[#allocation2 + $0x2b8] sm:$0xff]
  %v338 = vld [vmem:[#allocation2 + $0x2c0] sm:$0xff]
  %v339 = vld [vmem:[#allocation2 + $0x2c8] sm:$0x3]
  %v340 = vld [vmem:[#allocation2 + $0x2d0] sm:$0xff]
  %v341 = vld [vmem:[#allocation2 + $0x2d8] sm:$0xff]
  %v342 = vld [vmem:[#allocation2 + $0x2e0] sm:$0x3]
  %v343 = vld [vmem:[#allocation2 + $0x2e8] sm:$0xff]
  %v344 = vld [vmem:[#allocation2 + $0x2f0] sm:$0xff]
  %v345 = vld [vmem:[#allocation2 + $0x2f8] sm:$0x3]
  %v346 = vld [vmem:[#allocation2 + $0x300] sm:$0xff]
  %v347 = vld [vmem:[#allocation2 + $0x308] sm:$0xff]
  %v348 = vld [vmem:[#allocation2 + $0x310] sm:$0x3]
  %v349 = vld [vmem:[#allocation2 + $0x318] sm:$0xff]
  %v350 = vld [vmem:[#allocation2 + $0x320] sm:$0xff]
  %v351 = vld [vmem:[#allocation2 + $0x328] sm:$0x3]
  %v352 = vld [vmem:[#allocation2 + $0x330] sm:$0xff]
  %v353 = vld [vmem:[#allocation2 + $0x338] sm:$0xff]
  %v354 = vld [vmem:[#allocation2 + $0x340] sm:$0x3]
  %v355 = vld [vmem:[#allocation2 + $0x348] sm:$0xff]
  %v356 = vld [vmem:[#allocation2 + $0x350] sm:$0xff]
  %v357 = vld [vmem:[#allocation2 + $0x358] sm:$0x3]
  %vm454 = vcmask 1046528
  %v455 = vrot.slane %v250, 1
  %v456 = vrot.slane %v251, 1
  %v457 = vsel %vm454, %v455, %v456
  %v458 = vrot.slane %v252, 1
  %v459 = vsel %vm454, %v456, %v458
  %v460 = vrot.slane %v253, 1
  %v461 = vrot.slane %v254, 1
  %v462 = vsel %vm454, %v460, %v461
  %v463 = vrot.slane %v255, 1
  %v464 = vsel %vm454, %v461, %v463
  %v465 = vrot.slane %v256, 1
  %v466 = vrot.slane %v257, 1
  %v467 = vsel %vm454, %v465, %v466
  %v468 = vrot.slane %v258, 1
  %v469 = vsel %vm454, %v466, %v468
  %v470 = vrot.slane %v259, 1
  %v471 = vrot.slane %v260, 1
  %v472 = vsel %vm454, %v470, %v471
  %v473 = vrot.slane %v261, 1
  %v474 = vsel %vm454, %v471, %v473
  %v475 = vrot.slane %v262, 1
  %v476 = vrot.slane %v263, 1
  %v477 = vsel %vm454, %v475, %v476
  %v478 = vrot.slane %v264, 1
  %v479 = vsel %vm454, %v476, %v478
  %v480 = vrot.slane %v265, 1
  %v481 = vrot.slane %v266, 1
  %v482 = vsel %vm454, %v480, %v481
  %v483 = vrot.slane %v267, 1
  %v484 = vsel %vm454, %v481, %v483
  %v485 = vrot.slane %v268, 1
  %v486 = vrot.slane %v269, 1
  %v487 = vsel %vm454, %v485, %v486
  %v488 = vrot.slane %v270, 1
  %v489 = vsel %vm454, %v486, %v488
  %v490 = vrot.slane %v271, 1
  %v491 = vrot.slane %v272, 1
  %v492 = vsel %vm454, %v490, %v491
  %v493 = vrot.slane %v273, 1
  %v494 = vsel %vm454, %v491, %v493
  %v495 = vrot.slane %v274, 1
  %v496 = vrot.slane %v275, 1
  %v497 = vsel %vm454, %v495, %v496
  %v498 = vrot.slane %v276, 1
  %v499 = vsel %vm454, %v496, %v498
  %v500 = vrot.slane %v277, 1
  %v501 = vrot.slane %v278, 1
  %v502 = vsel %vm454, %v500, %v501
  %v503 = vrot.slane %v279, 1
  %v504 = vsel %vm454, %v501, %v503
  %v505 = vrot.slane %v280, 1
  %v506 = vrot.slane %v281, 1
  %v507 = vsel %vm454, %v505, %v506
  %v508 = vrot.slane %v282, 1
  %v509 = vsel %vm454, %v506, %v508
  %v510 = vrot.slane %v283, 1
  %v511 = vrot.slane %v284, 1
  %v512 = vsel %vm454, %v510, %v511
  %v513 = vrot.slane %v285, 1
  %v514 = vsel %vm454, %v511, %v513
  %v515 = vrot.slane %v286, 1
  %v516 = vrot.slane %v287, 1
  %v517 = vsel %vm454, %v515, %v516
  %v518 = vrot.slane %v288, 1
  %v519 = vsel %vm454, %v516, %v518
  %v520 = vrot.slane %v289, 1
  %v521 = vrot.slane %v290, 1
  %v522 = vsel %vm454, %v520, %v521
  %v523 = vrot.slane %v291, 1
  %v524 = vsel %vm454, %v521, %v523
  %v525 = vrot.slane %v292, 1
  %v526 = vrot.slane %v293, 1
  %v527 = vsel %vm454, %v525, %v526
  %v528 = vrot.slane %v294, 1
  %v529 = vsel %vm454, %v526, %v528
  %v530 = vrot.slane %v295, 1
  %v531 = vrot.slane %v296, 1
  %v532 = vsel %vm454, %v530, %v531
  %v533 = vrot.slane %v297, 1
  %v534 = vsel %vm454, %v531, %v533
  %v535 = vrot.slane %v304, 1
  %v536 = vrot.slane %v305, 1
  %v537 = vsel %vm454, %v535, %v536
  %v538 = vrot.slane %v306, 1
  %v539 = vsel %vm454, %v536, %v538
  %v540 = vrot.slane %v307, 1
  %v541 = vrot.slane %v308, 1
  %v542 = vsel %vm454, %v540, %v541
  %v543 = vrot.slane %v309, 1
  %v544 = vsel %vm454, %v541, %v543
  %v545 = vrot.slane %v310, 1
  %v546 = vrot.slane %v311, 1
  %v547 = vsel %vm454, %v545, %v546
  %v548 = vrot.slane %v312, 1
  %v549 = vsel %vm454, %v546, %v548
  %v550 = vrot.slane %v313, 1
  %v551 = vrot.slane %v314, 1
  %v552 = vsel %vm454, %v550, %v551
  %v553 = vrot.slane %v315, 1
  %v554 = vsel %vm454, %v551, %v553
  %v555 = vrot.slane %v316, 1
  %v556 = vrot.slane %v317, 1
  %v557 = vsel %vm454, %v555, %v556
  %v558 = vrot.slane %v318, 1
  %v559 = vsel %vm454, %v556, %v558
  %v560 = vrot.slane %v319, 1
  %v561 = vrot.slane %v320, 1
  %v562 = vsel %vm454, %v560, %v561
  %v563 = vrot.slane %v321, 1
  %v564 = vsel %vm454, %v561, %v563
  %v565 = vrot.slane %v322, 1
  %v566 = vrot.slane %v323, 1
  %v567 = vsel %vm454, %v565, %v566
  %v568 = vrot.slane %v324, 1
  %v569 = vsel %vm454, %v566, %v568
  %v570 = vrot.slane %v325, 1
  %v571 = vrot.slane %v326, 1
  %v572 = vsel %vm454, %v570, %v571
  %v573 = vrot.slane %v327, 1
  %v574 = vsel %vm454, %v571, %v573
  %v575 = vrot.slane %v328, 1
  %v576 = vrot.slane %v329, 1
  %v577 = vsel %vm454, %v575, %v576
  %v578 = vrot.slane %v330, 1
  %v579 = vsel %vm454, %v576, %v578
  %v580 = vrot.slane %v331, 1
  %v581 = vrot.slane %v332, 1
  %v582 = vsel %vm454, %v580, %v581
  %v583 = vrot.slane %v333, 1
  %v584 = vsel %vm454, %v581, %v583
  %v585 = vrot.slane %v334, 1
  %v586 = vrot.slane %v335, 1
  %v587 = vsel %vm454, %v585, %v586
  %v588 = vrot.slane %v336, 1
  %v589 = vsel %vm454, %v586, %v588
  %v590 = vrot.slane %v337, 1
  %v591 = vrot.slane %v338, 1
  %v592 = vsel %vm454, %v590, %v591
  %v593 = vrot.slane %v339, 1
  %v594 = vsel %vm454, %v591, %v593
  %v595 = vrot.slane %v340, 1
  %v596 = vrot.slane %v341, 1
  %v597 = vsel %vm454, %v595, %v596
  %v598 = vrot.slane %v342, 1
  %v599 = vsel %vm454, %v596, %v598
  %v600 = vrot.slane %v343, 1
  %v601 = vrot.slane %v344, 1
  %v602 = vsel %vm454, %v600, %v601
  %v603 = vrot.slane %v345, 1
  %v604 = vsel %vm454, %v601, %v603
  %v605 = vrot.slane %v346, 1
  %v606 = vrot.slane %v347, 1
  %v607 = vsel %vm454, %v605, %v606
  %v608 = vrot.slane %v348, 1
  %v609 = vsel %vm454, %v606, %v608
  %v610 = vrot.slane %v349, 1
  %v611 = vrot.slane %v350, 1
  %v612 = vsel %vm454, %v610, %v611
  %v613 = vrot.slane %v351, 1
  %v614 = vsel %vm454, %v611, %v613
  %615 = vrot.lane.b32.xlu0 %v457, 4
  %v616 = vpop.permute.xlu0 %615
  %617 = vrot.lane.b32.xlu0 %v459, 4
  %v618 = vpop.permute.xlu0 %617
  %619 = vrot.lane.b32.xlu0 %v462, 4
  %v620 = vpop.permute.xlu0 %619
  %621 = vrot.lane.b32.xlu0 %v464, 4
  %v622 = vpop.permute.xlu0 %621
  %623 = vrot.lane.b32.xlu0 %v467, 4
  %v624 = vpop.permute.xlu0 %623
  %625 = vrot.lane.b32.xlu0 %v469, 4
  %v626 = vpop.permute.xlu0 %625
  %627 = vrot.lane.b32.xlu0 %v472, 4
  %v628 = vpop.permute.xlu0 %627
  %629 = vrot.lane.b32.xlu0 %v474, 4
  %v630 = vpop.permute.xlu0 %629
  %631 = vrot.lane.b32.xlu0 %v477, 4
  %v632 = vpop.permute.xlu0 %631
  %633 = vrot.lane.b32.xlu0 %v479, 4
  %v634 = vpop.permute.xlu0 %633
  %635 = vrot.lane.b32.xlu0 %v482, 4
  %v636 = vpop.permute.xlu0 %635
  %637 = vrot.lane.b32.xlu0 %v484, 4
  %v638 = vpop.permute.xlu0 %637
  %639 = vrot.lane.b32.xlu0 %v487, 4
  %v640 = vpop.permute.xlu0 %639
  %641 = vrot.lane.b32.xlu0 %v489, 4
  %v642 = vpop.permute.xlu0 %641
  %643 = vrot.lane.b32.xlu0 %v492, 4
  %v644 = vpop.permute.xlu0 %643
  %645 = vrot.lane.b32.xlu0 %v494, 4
  %v646 = vpop.permute.xlu0 %645
  %647 = vrot.lane.b32.xlu0 %v497, 4
  %v648 = vpop.permute.xlu0 %647
  %649 = vrot.lane.b32.xlu0 %v499, 4
  %v650 = vpop.permute.xlu0 %649
  %651 = vrot.lane.b32.xlu0 %v502, 4
  %v652 = vpop.permute.xlu0 %651
  %653 = vrot.lane.b32.xlu0 %v504, 4
  %v654 = vpop.permute.xlu0 %653
  %655 = vrot.lane.b32.xlu0 %v507, 4
  %v656 = vpop.permute.xlu0 %655
  %657 = vrot.lane.b32.xlu0 %v509, 4
  %v658 = vpop.permute.xlu0 %657
  %659 = vrot.lane.b32.xlu0 %v512, 4
  %v660 = vpop.permute.xlu0 %659
  %661 = vrot.lane.b32.xlu0 %v514, 4
  %v662 = vpop.permute.xlu0 %661
  %663 = vrot.lane.b32.xlu0 %v517, 4
  %v664 = vpop.permute.xlu0 %663
  %665 = vrot.lane.b32.xlu0 %v519, 4
  %v666 = vpop.permute.xlu0 %665
  %667 = vrot.lane.b32.xlu0 %v522, 4
  %v668 = vpop.permute.xlu0 %667
  %669 = vrot.lane.b32.xlu0 %v524, 4
  %v670 = vpop.permute.xlu0 %669
  %671 = vrot.lane.b32.xlu0 %v527, 4
  %v672 = vpop.permute.xlu0 %671
  %673 = vrot.lane.b32.xlu0 %v529, 4
  %v674 = vpop.permute.xlu0 %673
  %675 = vrot.lane.b32.xlu0 %v532, 4
  %v676 = vpop.permute.xlu0 %675
  %677 = vrot.lane.b32.xlu0 %v534, 4
  %v678 = vpop.permute.xlu0 %677
  %679 = vrot.lane.b32.xlu0 %v537, 4
  %v680 = vpop.permute.xlu0 %679
  %681 = vrot.lane.b32.xlu0 %v539, 4
  %v682 = vpop.permute.xlu0 %681
  %683 = vrot.lane.b32.xlu0 %v542, 4
  %v684 = vpop.permute.xlu0 %683
  %685 = vrot.lane.b32.xlu0 %v544, 4
  %v686 = vpop.permute.xlu0 %685
  %687 = vrot.lane.b32.xlu0 %v547, 4
  %v688 = vpop.permute.xlu0 %687
  %689 = vrot.lane.b32.xlu0 %v549, 4
  %v690 = vpop.permute.xlu0 %689
  %691 = vrot.lane.b32.xlu0 %v552, 4
  %v692 = vpop.permute.xlu0 %691
  %693 = vrot.lane.b32.xlu0 %v554, 4
  %v694 = vpop.permute.xlu0 %693
  %695 = vrot.lane.b32.xlu0 %v557, 4
  %v696 = vpop.permute.xlu0 %695
  %697 = vrot.lane.b32.xlu0 %v559, 4
  %v698 = vpop.permute.xlu0 %697
  %699 = vrot.lane.b32.xlu0 %v562, 4
  %v700 = vpop.permute.xlu0 %699
  %701 = vrot.lane.b32.xlu0 %v564, 4
  %v702 = vpop.permute.xlu0 %701
  %703 = vrot.lane.b32.xlu0 %v567, 4
  %v704 = vpop.permute.xlu0 %703
  %705 = vrot.lane.b32.xlu0 %v569, 4
  %v706 = vpop.permute.xlu0 %705
  %707 = vrot.lane.b32.xlu0 %v572, 4
  %v708 = vpop.permute.xlu0 %707
  %709 = vrot.lane.b32.xlu0 %v574, 4
  %v710 = vpop.permute.xlu0 %709
  %711 = vrot.lane.b32.xlu0 %v577, 4
  %v712 = vpop.permute.xlu0 %711
  %713 = vrot.lane.b32.xlu0 %v579, 4
  %v714 = vpop.permute.xlu0 %713
  %715 = vrot.lane.b32.xlu0 %v582, 4
  %v716 = vpop.permute.xlu0 %715
  %717 = vrot.lane.b32.xlu0 %v584, 4
  %v718 = vpop.permute.xlu0 %717
  %719 = vrot.lane.b32.xlu0 %v587, 4
  %v720 = vpop.permute.xlu0 %719
  %721 = vrot.lane.b32.xlu0 %v589, 4
  %v722 = vpop.permute.xlu0 %721
  %723 = vrot.lane.b32.xlu0 %v592, 4
  %v724 = vpop.permute.xlu0 %723
  %725 = vrot.lane.b32.xlu0 %v594, 4
  %v726 = vpop.permute.xlu0 %725
  %727 = vrot.lane.b32.xlu0 %v597, 4
  %v728 = vpop.permute.xlu0 %727
  %729 = vrot.lane.b32.xlu0 %v599, 4
  %v730 = vpop.permute.xlu0 %729
  %731 = vrot.lane.b32.xlu0 %v602, 4
  %v732 = vpop.permute.xlu0 %731
  %733 = vrot.lane.b32.xlu0 %v604, 4
  %v734 = vpop.permute.xlu0 %733
  %735 = vrot.lane.b32.xlu0 %v607, 4
  %v736 = vpop.permute.xlu0 %735
  %737 = vrot.lane.b32.xlu0 %v609, 4
  %v738 = vpop.permute.xlu0 %737
  %739 = vrot.lane.b32.xlu0 %v612, 4
  %v740 = vpop.permute.xlu0 %739
  %741 = vrot.lane.b32.xlu0 %v614, 4
  %v742 = vpop.permute.xlu0 %741
  %vm807 = vcmask 1045504
  %v808 = vrot.slane %v250, 2
  %v809 = vrot.slane %v251, 2
  %v810 = vsel %vm807, %v808, %v809
  %v811 = vrot.slane %v252, 2
  %v812 = vsel %vm807, %v809, %v811
  %v813 = vrot.slane %v253, 2
  %v814 = vrot.slane %v254, 2
  %v815 = vsel %vm807, %v813, %v814
  %v816 = vrot.slane %v255, 2
  %v817 = vsel %vm807, %v814, %v816
  %v818 = vrot.slane %v256, 2
  %v819 = vrot.slane %v257, 2
  %v820 = vsel %vm807, %v818, %v819
  %v821 = vrot.slane %v258, 2
  %v822 = vsel %vm807, %v819, %v821
  %v823 = vrot.slane %v259, 2
  %v824 = vrot.slane %v260, 2
  %v825 = vsel %vm807, %v823, %v824
  %v826 = vrot.slane %v261, 2
  %v827 = vsel %vm807, %v824, %v826
  %v828 = vrot.slane %v262, 2
  %v829 = vrot.slane %v263, 2
  %v830 = vsel %vm807, %v828, %v829
  %v831 = vrot.slane %v264, 2
  %v832 = vsel %vm807, %v829, %v831
  %v833 = vrot.slane %v265, 2
  %v834 = vrot.slane %v266, 2
  %v835 = vsel %vm807, %v833, %v834
  %v836 = vrot.slane %v267, 2
  %v837 = vsel %vm807, %v834, %v836
  %v838 = vrot.slane %v268, 2
  %v839 = vrot.slane %v269, 2
  %v840 = vsel %vm807, %v838, %v839
  %v841 = vrot.slane %v270, 2
  %v842 = vsel %vm807, %v839, %v841
  %v843 = vrot.slane %v271, 2
  %v844 = vrot.slane %v272, 2
  %v845 = vsel %vm807, %v843, %v844
  %v846 = vrot.slane %v273, 2
  %v847 = vsel %vm807, %v844, %v846
  %v848 = vrot.slane %v274, 2
  %v849 = vrot.slane %v275, 2
  %v850 = vsel %vm807, %v848, %v849
  %v851 = vrot.slane %v276, 2
  %v852 = vsel %vm807, %v849, %v851
  %v853 = vrot.slane %v277, 2
  %v854 = vrot.slane %v278, 2
  %v855 = vsel %vm807, %v853, %v854
  %v856 = vrot.slane %v279, 2
  %v857 = vsel %vm807, %v854, %v856
  %v858 = vrot.slane %v280, 2
  %v859 = vrot.slane %v281, 2
  %v860 = vsel %vm807, %v858, %v859
  %v861 = vrot.slane %v282, 2
  %v862 = vsel %vm807, %v859, %v861
  %v863 = vrot.slane %v283, 2
  %v864 = vrot.slane %v284, 2
  %v865 = vsel %vm807, %v863, %v864
  %v866 = vrot.slane %v285, 2
  %v867 = vsel %vm807, %v864, %v866
  %v868 = vrot.slane %v286, 2
  %v869 = vrot.slane %v287, 2
  %v870 = vsel %vm807, %v868, %v869
  %v871 = vrot.slane %v288, 2
  %v872 = vsel %vm807, %v869, %v871
  %v873 = vrot.slane %v289, 2
  %v874 = vrot.slane %v290, 2
  %v875 = vsel %vm807, %v873, %v874
  %v876 = vrot.slane %v291, 2
  %v877 = vsel %vm807, %v874, %v876
  %v878 = vrot.slane %v292, 2
  %v879 = vrot.slane %v293, 2
  %v880 = vsel %vm807, %v878, %v879
  %v881 = vrot.slane %v294, 2
  %v882 = vsel %vm807, %v879, %v881
  %v883 = vrot.slane %v295, 2
  %v884 = vrot.slane %v296, 2
  %v885 = vsel %vm807, %v883, %v884
  %v886 = vrot.slane %v297, 2
  %v887 = vsel %vm807, %v884, %v886
  %v888 = vrot.slane %v304, 2
  %v889 = vrot.slane %v305, 2
  %v890 = vsel %vm807, %v888, %v889
  %v891 = vrot.slane %v306, 2
  %v892 = vsel %vm807, %v889, %v891
  %v893 = vrot.slane %v307, 2
  %v894 = vrot.slane %v308, 2
  %v895 = vsel %vm807, %v893, %v894
  %v896 = vrot.slane %v309, 2
  %v897 = vsel %vm807, %v894, %v896
  %v898 = vrot.slane %v310, 2
  %v899 = vrot.slane %v311, 2
  %v900 = vsel %vm807, %v898, %v899
  %v901 = vrot.slane %v312, 2
  %v902 = vsel %vm807, %v899, %v901
  %v903 = vrot.slane %v313, 2
  %v904 = vrot.slane %v314, 2
  %v905 = vsel %vm807, %v903, %v904
  %v906 = vrot.slane %v315, 2
  %v907 = vsel %vm807, %v904, %v906
  %v908 = vrot.slane %v316, 2
  %v909 = vrot.slane %v317, 2
  %v910 = vsel %vm807, %v908, %v909
  %v911 = vrot.slane %v318, 2
  %v912 = vsel %vm807, %v909, %v911
  %v913 = vrot.slane %v319, 2
  %v914 = vrot.slane %v320, 2
  %v915 = vsel %vm807, %v913, %v914
  %v916 = vrot.slane %v321, 2
  %v917 = vsel %vm807, %v914, %v916
  %v918 = vrot.slane %v322, 2
  %v919 = vrot.slane %v323, 2
  %v920 = vsel %vm807, %v918, %v919
  %v921 = vrot.slane %v324, 2
  %v922 = vsel %vm807, %v919, %v921
  %v923 = vrot.slane %v325, 2
  %v924 = vrot.slane %v326, 2
  %v925 = vsel %vm807, %v923, %v924
  %v926 = vrot.slane %v327, 2
  %v927 = vsel %vm807, %v924, %v926
  %v928 = vrot.slane %v328, 2
  %v929 = vrot.slane %v329, 2
  %v930 = vsel %vm807, %v928, %v929
  %v931 = vrot.slane %v330, 2
  %v932 = vsel %vm807, %v929, %v931
  %v933 = vrot.slane %v331, 2
  %v934 = vrot.slane %v332, 2
  %v935 = vsel %vm807, %v933, %v934
  %v936 = vrot.slane %v333, 2
  %v937 = vsel %vm807, %v934, %v936
  %v938 = vrot.slane %v334, 2
  %v939 = vrot.slane %v335, 2
  %v940 = vsel %vm807, %v938, %v939
  %v941 = vrot.slane %v336, 2
  %v942 = vsel %vm807, %v939, %v941
  %v943 = vrot.slane %v337, 2
  %v944 = vrot.slane %v338, 2
  %v945 = vsel %vm807, %v943, %v944
  %v946 = vrot.slane %v339, 2
  %v947 = vsel %vm807, %v944, %v946
  %v948 = vrot.slane %v340, 2
  %v949 = vrot.slane %v341, 2
  %v950 = vsel %vm807, %v948, %v949
  %v951 = vrot.slane %v342, 2
  %v952 = vsel %vm807, %v949, %v951
  %v953 = vrot.slane %v343, 2
  %v954 = vrot.slane %v344, 2
  %v955 = vsel %vm807, %v953, %v954
  %v956 = vrot.slane %v345, 2
  %v957 = vsel %vm807, %v954, %v956
  %v958 = vrot.slane %v346, 2
  %v959 = vrot.slane %v347, 2
  %v960 = vsel %vm807, %v958, %v959
  %v961 = vrot.slane %v348, 2
  %v962 = vsel %vm807, %v959, %v961
  %v963 = vrot.slane %v349, 2
  %v964 = vrot.slane %v350, 2
  %v965 = vsel %vm807, %v963, %v964
  %v966 = vrot.slane %v351, 2
  %v967 = vsel %vm807, %v964, %v966
  %968 = vrot.lane.b32.xlu0 %v810, 8
  %v969 = vpop.permute.xlu0 %968
  %970 = vrot.lane.b32.xlu0 %v812, 8
  %v971 = vpop.permute.xlu0 %970
  %972 = vrot.lane.b32.xlu0 %v815, 8
  %v973 = vpop.permute.xlu0 %972
  %974 = vrot.lane.b32.xlu0 %v817, 8
  %v975 = vpop.permute.xlu0 %974
  %976 = vrot.lane.b32.xlu0 %v820, 8
  %v977 = vpop.permute.xlu0 %976
  %978 = vrot.lane.b32.xlu0 %v822, 8
  %v979 = vpop.permute.xlu0 %978
  %980 = vrot.lane.b32.xlu0 %v825, 8
  %v981 = vpop.permute.xlu0 %980
  %982 = vrot.lane.b32.xlu0 %v827, 8
  %v983 = vpop.permute.xlu0 %982
  %984 = vrot.lane.b32.xlu0 %v830, 8
  %v985 = vpop.permute.xlu0 %984
  %986 = vrot.lane.b32.xlu0 %v832, 8
  %v987 = vpop.permute.xlu0 %986
  %988 = vrot.lane.b32.xlu0 %v835, 8
  %v989 = vpop.permute.xlu0 %988
  %990 = vrot.lane.b32.xlu0 %v837, 8
  %v991 = vpop.permute.xlu0 %990
  %992 = vrot.lane.b32.xlu0 %v840, 8
  %v993 = vpop.permute.xlu0 %992
  %994 = vrot.lane.b32.xlu0 %v842, 8
  %v995 = vpop.permute.xlu0 %994
  %996 = vrot.lane.b32.xlu0 %v845, 8
  %v997 = vpop.permute.xlu0 %996
  %998 = vrot.lane.b32.xlu0 %v847, 8
  %v999 = vpop.permute.xlu0 %998
  %1000 = vrot.lane.b32.xlu0 %v850, 8
  %v1001 = vpop.permute.xlu0 %1000
  %1002 = vrot.lane.b32.xlu0 %v852, 8
  %v1003 = vpop.permute.xlu0 %1002
  %1004 = vrot.lane.b32.xlu0 %v855, 8
  %v1005 = vpop.permute.xlu0 %1004
  %1006 = vrot.lane.b32.xlu0 %v857, 8
  %v1007 = vpop.permute.xlu0 %1006
  %1008 = vrot.lane.b32.xlu0 %v860, 8
  %v1009 = vpop.permute.xlu0 %1008
  %1010 = vrot.lane.b32.xlu0 %v862, 8
  %v1011 = vpop.permute.xlu0 %1010
  %1012 = vrot.lane.b32.xlu0 %v865, 8
  %v1013 = vpop.permute.xlu0 %1012
  %1014 = vrot.lane.b32.xlu0 %v867, 8
  %v1015 = vpop.permute.xlu0 %1014
  %1016 = vrot.lane.b32.xlu0 %v870, 8
  %v1017 = vpop.permute.xlu0 %1016
  %1018 = vrot.lane.b32.xlu0 %v872, 8
  %v1019 = vpop.permute.xlu0 %1018
  %1020 = vrot.lane.b32.xlu0 %v875, 8
  %v1021 = vpop.permute.xlu0 %1020
  %1022 = vrot.lane.b32.xlu0 %v877, 8
  %v1023 = vpop.permute.xlu0 %1022
  %1024 = vrot.lane.b32.xlu0 %v880, 8
  %v1025 = vpop.permute.xlu0 %1024
  %1026 = vrot.lane.b32.xlu0 %v882, 8
  %v1027 = vpop.permute.xlu0 %1026
  %1028 = vrot.lane.b32.xlu0 %v885, 8
  %v1029 = vpop.permute.xlu0 %1028
  %1030 = vrot.lane.b32.xlu0 %v887, 8
  %v1031 = vpop.permute.xlu0 %1030
  %1032 = vrot.lane.b32.xlu0 %v890, 8
  %v1033 = vpop.permute.xlu0 %1032
  %1034 = vrot.lane.b32.xlu0 %v892, 8
  %v1035 = vpop.permute.xlu0 %1034
  %1036 = vrot.lane.b32.xlu0 %v895, 8
  %v1037 = vpop.permute.xlu0 %1036
  %1038 = vrot.lane.b32.xlu0 %v897, 8
  %v1039 = vpop.permute.xlu0 %1038
  %1040 = vrot.lane.b32.xlu0 %v900, 8
  %v1041 = vpop.permute.xlu0 %1040
  %1042 = vrot.lane.b32.xlu0 %v902, 8
  %v1043 = vpop.permute.xlu0 %1042
  %1044 = vrot.lane.b32.xlu0 %v905, 8
  %v1045 = vpop.permute.xlu0 %1044
  %1046 = vrot.lane.b32.xlu0 %v907, 8
  %v1047 = vpop.permute.xlu0 %1046
  %1048 = vrot.lane.b32.xlu0 %v910, 8
  %v1049 = vpop.permute.xlu0 %1048
  %1050 = vrot.lane.b32.xlu0 %v912, 8
  %v1051 = vpop.permute.xlu0 %1050
  %1052 = vrot.lane.b32.xlu0 %v915, 8
  %v1053 = vpop.permute.xlu0 %1052
  %1054 = vrot.lane.b32.xlu0 %v917, 8
  %v1055 = vpop.permute.xlu0 %1054
  %1056 = vrot.lane.b32.xlu0 %v920, 8
  %v1057 = vpop.permute.xlu0 %1056
  %1058 = vrot.lane.b32.xlu0 %v922, 8
  %v1059 = vpop.permute.xlu0 %1058
  %1060 = vrot.lane.b32.xlu0 %v925, 8
  %v1061 = vpop.permute.xlu0 %1060
  %1062 = vrot.lane.b32.xlu0 %v927, 8
  %v1063 = vpop.permute.xlu0 %1062
  %1064 = vrot.lane.b32.xlu0 %v930, 8
  %v1065 = vpop.permute.xlu0 %1064
  %1066 = vrot.lane.b32.xlu0 %v932, 8
  %v1067 = vpop.permute.xlu0 %1066
  %1068 = vrot.lane.b32.xlu0 %v935, 8
  %v1069 = vpop.permute.xlu0 %1068
  %1070 = vrot.lane.b32.xlu0 %v937, 8
  %v1071 = vpop.permute.xlu0 %1070
  %1072 = vrot.lane.b32.xlu0 %v940, 8
  %v1073 = vpop.permute.xlu0 %1072
  %1074 = vrot.lane.b32.xlu0 %v942, 8
  %v1075 = vpop.permute.xlu0 %1074
  %1076 = vrot.lane.b32.xlu0 %v945, 8
  %v1077 = vpop.permute.xlu0 %1076
  %1078 = vrot.lane.b32.xlu0 %v947, 8
  %v1079 = vpop.permute.xlu0 %1078
  %1080 = vrot.lane.b32.xlu0 %v950, 8
  %v1081 = vpop.permute.xlu0 %1080
  %1082 = vrot.lane.b32.xlu0 %v952, 8
  %v1083 = vpop.permute.xlu0 %1082
  %1084 = vrot.lane.b32.xlu0 %v955, 8
  %v1085 = vpop.permute.xlu0 %1084
  %1086 = vrot.lane.b32.xlu0 %v957, 8
  %v1087 = vpop.permute.xlu0 %1086
  %1088 = vrot.lane.b32.xlu0 %v960, 8
  %v1089 = vpop.permute.xlu0 %1088
  %1090 = vrot.lane.b32.xlu0 %v962, 8
  %v1091 = vpop.permute.xlu0 %1090
  %1092 = vrot.lane.b32.xlu0 %v965, 8
  %v1093 = vpop.permute.xlu0 %1092
  %1094 = vrot.lane.b32.xlu0 %v967, 8
  %v1095 = vpop.permute.xlu0 %1094
  %1164 = vrot.lane.b32.xlu0 %v253, 12
  %v1165 = vpop.permute.xlu0 %1164
  %1166 = vrot.lane.b32.xlu0 %v254, 12
  %v1167 = vpop.permute.xlu0 %1166
  %1168 = vrot.lane.b32.xlu0 %v256, 12
  %v1169 = vpop.permute.xlu0 %1168
  %1170 = vrot.lane.b32.xlu0 %v257, 12
  %v1171 = vpop.permute.xlu0 %1170
  %1172 = vrot.lane.b32.xlu0 %v259, 12
  %v1173 = vpop.permute.xlu0 %1172
  %1174 = vrot.lane.b32.xlu0 %v260, 12
  %v1175 = vpop.permute.xlu0 %1174
  %1176 = vrot.lane.b32.xlu0 %v262, 12
  %v1177 = vpop.permute.xlu0 %1176
  %1178 = vrot.lane.b32.xlu0 %v263, 12
  %v1179 = vpop.permute.xlu0 %1178
  %1180 = vrot.lane.b32.xlu0 %v265, 12
  %v1181 = vpop.permute.xlu0 %1180
  %1182 = vrot.lane.b32.xlu0 %v266, 12
  %v1183 = vpop.permute.xlu0 %1182
  %1184 = vrot.lane.b32.xlu0 %v268, 12
  %v1185 = vpop.permute.xlu0 %1184
  %1186 = vrot.lane.b32.xlu0 %v269, 12
  %v1187 = vpop.permute.xlu0 %1186
  %1188 = vrot.lane.b32.xlu0 %v271, 12
  %v1189 = vpop.permute.xlu0 %1188
  %1190 = vrot.lane.b32.xlu0 %v272, 12
  %v1191 = vpop.permute.xlu0 %1190
  %1192 = vrot.lane.b32.xlu0 %v274, 12
  %v1193 = vpop.permute.xlu0 %1192
  %1194 = vrot.lane.b32.xlu0 %v275, 12
  %v1195 = vpop.permute.xlu0 %1194
  %1196 = vrot.lane.b32.xlu0 %v277, 12
  %v1197 = vpop.permute.xlu0 %1196
  %1198 = vrot.lane.b32.xlu0 %v278, 12
  %v1199 = vpop.permute.xlu0 %1198
  %1200 = vrot.lane.b32.xlu0 %v280, 12
  %v1201 = vpop.permute.xlu0 %1200
  %1202 = vrot.lane.b32.xlu0 %v281, 12
  %v1203 = vpop.permute.xlu0 %1202
  %1204 = vrot.lane.b32.xlu0 %v283, 12
  %v1205 = vpop.permute.xlu0 %1204
  %1206 = vrot.lane.b32.xlu0 %v284, 12
  %v1207 = vpop.permute.xlu0 %1206
  %1208 = vrot.lane.b32.xlu0 %v286, 12
  %v1209 = vpop.permute.xlu0 %1208
  %1210 = vrot.lane.b32.xlu0 %v287, 12
  %v1211 = vpop.permute.xlu0 %1210
  %1212 = vrot.lane.b32.xlu0 %v289, 12
  %v1213 = vpop.permute.xlu0 %1212
  %1214 = vrot.lane.b32.xlu0 %v290, 12
  %v1215 = vpop.permute.xlu0 %1214
  %1216 = vrot.lane.b32.xlu0 %v292, 12
  %v1217 = vpop.permute.xlu0 %1216
  %1218 = vrot.lane.b32.xlu0 %v293, 12
  %v1219 = vpop.permute.xlu0 %1218
  %1220 = vrot.lane.b32.xlu0 %v295, 12
  %v1221 = vpop.permute.xlu0 %1220
  %1222 = vrot.lane.b32.xlu0 %v296, 12
  %v1223 = vpop.permute.xlu0 %1222
  %1224 = vrot.lane.b32.xlu0 %v298, 12
  %v1225 = vpop.permute.xlu0 %1224
  %1226 = vrot.lane.b32.xlu0 %v299, 12
  %v1227 = vpop.permute.xlu0 %1226
  %1228 = vrot.lane.b32.xlu0 %v307, 12
  %v1229 = vpop.permute.xlu0 %1228
  %1230 = vrot.lane.b32.xlu0 %v308, 12
  %v1231 = vpop.permute.xlu0 %1230
  %1232 = vrot.lane.b32.xlu0 %v310, 12
  %v1233 = vpop.permute.xlu0 %1232
  %1234 = vrot.lane.b32.xlu0 %v311, 12
  %v1235 = vpop.permute.xlu0 %1234
  %1236 = vrot.lane.b32.xlu0 %v313, 12
  %v1237 = vpop.permute.xlu0 %1236
  %1238 = vrot.lane.b32.xlu0 %v314, 12
  %v1239 = vpop.permute.xlu0 %1238
  %1240 = vrot.lane.b32.xlu0 %v316, 12
  %v1241 = vpop.permute.xlu0 %1240
  %1242 = vrot.lane.b32.xlu0 %v317, 12
  %v1243 = vpop.permute.xlu0 %1242
  %1244 = vrot.lane.b32.xlu0 %v319, 12
  %v1245 = vpop.permute.xlu0 %1244
  %1246 = vrot.lane.b32.xlu0 %v320, 12
  %v1247 = vpop.permute.xlu0 %1246
  %1248 = vrot.lane.b32.xlu0 %v322, 12
  %v1249 = vpop.permute.xlu0 %1248
  %1250 = vrot.lane.b32.xlu0 %v323, 12
  %v1251 = vpop.permute.xlu0 %1250
  %1252 = vrot.lane.b32.xlu0 %v325, 12
  %v1253 = vpop.permute.xlu0 %1252
  %1254 = vrot.lane.b32.xlu0 %v326, 12
  %v1255 = vpop.permute.xlu0 %1254
  %1256 = vrot.lane.b32.xlu0 %v328, 12
  %v1257 = vpop.permute.xlu0 %1256
  %1258 = vrot.lane.b32.xlu0 %v329, 12
  %v1259 = vpop.permute.xlu0 %1258
  %1260 = vrot.lane.b32.xlu0 %v331, 12
  %v1261 = vpop.permute.xlu0 %1260
  %1262 = vrot.lane.b32.xlu0 %v332, 12
  %v1263 = vpop.permute.xlu0 %1262
  %1264 = vrot.lane.b32.xlu0 %v334, 12
  %v1265 = vpop.permute.xlu0 %1264
  %1266 = vrot.lane.b32.xlu0 %v335, 12
  %v1267 = vpop.permute.xlu0 %1266
  %1268 = vrot.lane.b32.xlu0 %v337, 12
  %v1269 = vpop.permute.xlu0 %1268
  %1270 = vrot.lane.b32.xlu0 %v338, 12
  %v1271 = vpop.permute.xlu0 %1270
  %1272 = vrot.lane.b32.xlu0 %v340, 12
  %v1273 = vpop.permute.xlu0 %1272
  %1274 = vrot.lane.b32.xlu0 %v341, 12
  %v1275 = vpop.permute.xlu0 %1274
  %1276 = vrot.lane.b32.xlu0 %v343, 12
  %v1277 = vpop.permute.xlu0 %1276
  %1278 = vrot.lane.b32.xlu0 %v344, 12
  %v1279 = vpop.permute.xlu0 %1278
  %1280 = vrot.lane.b32.xlu0 %v346, 12
  %v1281 = vpop.permute.xlu0 %1280
  %1282 = vrot.lane.b32.xlu0 %v347, 12
  %v1283 = vpop.permute.xlu0 %1282
  %1284 = vrot.lane.b32.xlu0 %v349, 12
  %v1285 = vpop.permute.xlu0 %1284
  %1286 = vrot.lane.b32.xlu0 %v350, 12
  %v1287 = vpop.permute.xlu0 %1286
  %1288 = vrot.lane.b32.xlu0 %v352, 12
  %v1289 = vpop.permute.xlu0 %1288
  %1290 = vrot.lane.b32.xlu0 %v353, 12
  %v1291 = vpop.permute.xlu0 %1290
  %v1358 = vrot.slane %v298, 1
  %v1359 = vrot.slane %v299, 1
  %v1360 = vsel %vm454, %v1358, %v1359
  %v1361 = vrot.slane %v300, 1
  %v1362 = vsel %vm454, %v1359, %v1361
  %v1363 = vrot.slane %v352, 1
  %v1364 = vrot.slane %v353, 1
  %v1365 = vsel %vm454, %v1363, %v1364
  %v1366 = vrot.slane %v354, 1
  %v1367 = vsel %vm454, %v1364, %v1366
  %1368 = vrot.lane.b32.xlu0 %v462, 16
  %v1369 = vpop.permute.xlu0 %1368
  %1370 = vrot.lane.b32.xlu0 %v464, 16
  %v1371 = vpop.permute.xlu0 %1370
  %1372 = vrot.lane.b32.xlu0 %v467, 16
  %v1373 = vpop.permute.xlu0 %1372
  %1374 = vrot.lane.b32.xlu0 %v469, 16
  %v1375 = vpop.permute.xlu0 %1374
  %1376 = vrot.lane.b32.xlu0 %v472, 16
  %v1377 = vpop.permute.xlu0 %1376
  %1378 = vrot.lane.b32.xlu0 %v474, 16
  %v1379 = vpop.permute.xlu0 %1378
  %1380 = vrot.lane.b32.xlu0 %v477, 16
  %v1381 = vpop.permute.xlu0 %1380
  %1382 = vrot.lane.b32.xlu0 %v479, 16
  %v1383 = vpop.permute.xlu0 %1382
  %1384 = vrot.lane.b32.xlu0 %v482, 16
  %v1385 = vpop.permute.xlu0 %1384
  %1386 = vrot.lane.b32.xlu0 %v484, 16
  %v1387 = vpop.permute.xlu0 %1386
  %1388 = vrot.lane.b32.xlu0 %v487, 16
  %v1389 = vpop.permute.xlu0 %1388
  %1390 = vrot.lane.b32.xlu0 %v489, 16
  %v1391 = vpop.permute.xlu0 %1390
  %1392 = vrot.lane.b32.xlu0 %v492, 16
  %v1393 = vpop.permute.xlu0 %1392
  %1394 = vrot.lane.b32.xlu0 %v494, 16
  %v1395 = vpop.permute.xlu0 %1394
  %1396 = vrot.lane.b32.xlu0 %v497, 16
  %v1397 = vpop.permute.xlu0 %1396
  %1398 = vrot.lane.b32.xlu0 %v499, 16
  %v1399 = vpop.permute.xlu0 %1398
  %1400 = vrot.lane.b32.xlu0 %v502, 16
  %v1401 = vpop.permute.xlu0 %1400
  %1402 = vrot.lane.b32.xlu0 %v504, 16
  %v1403 = vpop.permute.xlu0 %1402
  %1404 = vrot.lane.b32.xlu0 %v507, 16
  %v1405 = vpop.permute.xlu0 %1404
  %1406 = vrot.lane.b32.xlu0 %v509, 16
  %v1407 = vpop.permute.xlu0 %1406
  %1408 = vrot.lane.b32.xlu0 %v512, 16
  %v1409 = vpop.permute.xlu0 %1408
  %1410 = vrot.lane.b32.xlu0 %v514, 16
  %v1411 = vpop.permute.xlu0 %1410
  %1412 = vrot.lane.b32.xlu0 %v517, 16
  %v1413 = vpop.permute.xlu0 %1412
  %1414 = vrot.lane.b32.xlu0 %v519, 16
  %v1415 = vpop.permute.xlu0 %1414
  %1416 = vrot.lane.b32.xlu0 %v522, 16
  %v1417 = vpop.permute.xlu0 %1416
  %1418 = vrot.lane.b32.xlu0 %v524, 16
  %v1419 = vpop.permute.xlu0 %1418
  %1420 = vrot.lane.b32.xlu0 %v527, 16
  %v1421 = vpop.permute.xlu0 %1420
  %1422 = vrot.lane.b32.xlu0 %v529, 16
  %v1423 = vpop.permute.xlu0 %1422
  %1424 = vrot.lane.b32.xlu0 %v532, 16
  %v1425 = vpop.permute.xlu0 %1424
  %1426 = vrot.lane.b32.xlu0 %v534, 16
  %v1427 = vpop.permute.xlu0 %1426
  %1428 = vrot.lane.b32.xlu0 %v1360, 16
  %v1429 = vpop.permute.xlu0 %1428
  %1430 = vrot.lane.b32.xlu0 %v1362, 16
  %v1431 = vpop.permute.xlu0 %1430
  %1432 = vrot.lane.b32.xlu0 %v542, 16
  %v1433 = vpop.permute.xlu0 %1432
  %1434 = vrot.lane.b32.xlu0 %v544, 16
  %v1435 = vpop.permute.xlu0 %1434
  %1436 = vrot.lane.b32.xlu0 %v547, 16
  %v1437 = vpop.permute.xlu0 %1436
  %1438 = vrot.lane.b32.xlu0 %v549, 16
  %v1439 = vpop.permute.xlu0 %1438
  %1440 = vrot.lane.b32.xlu0 %v552, 16
  %v1441 = vpop.permute.xlu0 %1440
  %1442 = vrot.lane.b32.xlu0 %v554, 16
  %v1443 = vpop.permute.xlu0 %1442
  %1444 = vrot.lane.b32.xlu0 %v557, 16
  %v1445 = vpop.permute.xlu0 %1444
  %1446 = vrot.lane.b32.xlu0 %v559, 16
  %v1447 = vpop.permute.xlu0 %1446
  %1448 = vrot.lane.b32.xlu0 %v562, 16
  %v1449 = vpop.permute.xlu0 %1448
  %1450 = vrot.lane.b32.xlu0 %v564, 16
  %v1451 = vpop.permute.xlu0 %1450
  %1452 = vrot.lane.b32.xlu0 %v567, 16
  %v1453 = vpop.permute.xlu0 %1452
  %1454 = vrot.lane.b32.xlu0 %v569, 16
  %v1455 = vpop.permute.xlu0 %1454
  %1456 = vrot.lane.b32.xlu0 %v572, 16
  %v1457 = vpop.permute.xlu0 %1456
  %1458 = vrot.lane.b32.xlu0 %v574, 16
  %v1459 = vpop.permute.xlu0 %1458
  %1460 = vrot.lane.b32.xlu0 %v577, 16
  %v1461 = vpop.permute.xlu0 %1460
  %1462 = vrot.lane.b32.xlu0 %v579, 16
  %v1463 = vpop.permute.xlu0 %1462
  %1464 = vrot.lane.b32.xlu0 %v582, 16
  %v1465 = vpop.permute.xlu0 %1464
  %1466 = vrot.lane.b32.xlu0 %v584, 16
  %v1467 = vpop.permute.xlu0 %1466
  %1468 = vrot.lane.b32.xlu0 %v587, 16
  %v1469 = vpop.permute.xlu0 %1468
  %1470 = vrot.lane.b32.xlu0 %v589, 16
  %v1471 = vpop.permute.xlu0 %1470
  %1472 = vrot.lane.b32.xlu0 %v592, 16
  %v1473 = vpop.permute.xlu0 %1472
  %1474 = vrot.lane.b32.xlu0 %v594, 16
  %v1475 = vpop.permute.xlu0 %1474
  %1476 = vrot.lane.b32.xlu0 %v597, 16
  %v1477 = vpop.permute.xlu0 %1476
  %1478 = vrot.lane.b32.xlu0 %v599, 16
  %v1479 = vpop.permute.xlu0 %1478
  %1480 = vrot.lane.b32.xlu0 %v602, 16
  %v1481 = vpop.permute.xlu0 %1480
  %1482 = vrot.lane.b32.xlu0 %v604, 16
  %v1483 = vpop.permute.xlu0 %1482
  %1484 = vrot.lane.b32.xlu0 %v607, 16
  %v1485 = vpop.permute.xlu0 %1484
  %1486 = vrot.lane.b32.xlu0 %v609, 16
  %v1487 = vpop.permute.xlu0 %1486
  %1488 = vrot.lane.b32.xlu0 %v612, 16
  %v1489 = vpop.permute.xlu0 %1488
  %1490 = vrot.lane.b32.xlu0 %v614, 16
  %v1491 = vpop.permute.xlu0 %1490
  %1492 = vrot.lane.b32.xlu0 %v1365, 16
  %v1493 = vpop.permute.xlu0 %1492
  %1494 = vrot.lane.b32.xlu0 %v1367, 16
  %v1495 = vpop.permute.xlu0 %1494
  %v1560 = vrot.slane %v298, 2
  %v1561 = vrot.slane %v299, 2
  %v1562 = vsel %vm807, %v1560, %v1561
  %v1563 = vrot.slane %v300, 2
  %v1564 = vsel %vm807, %v1561, %v1563
  %v1565 = vrot.slane %v352, 2
  %v1566 = vrot.slane %v353, 2
  %v1567 = vsel %vm807, %v1565, %v1566
  %v1568 = vrot.slane %v354, 2
  %v1569 = vsel %vm807, %v1566, %v1568
  %1570 = vrot.lane.b32.xlu0 %v815, 20
  %v1571 = vpop.permute.xlu0 %1570
  %1572 = vrot.lane.b32.xlu0 %v817, 20
  %v1573 = vpop.permute.xlu0 %1572
  %1574 = vrot.lane.b32.xlu0 %v820, 20
  %v1575 = vpop.permute.xlu0 %1574
  %1576 = vrot.lane.b32.xlu0 %v822, 20
  %v1577 = vpop.permute.xlu0 %1576
  %1578 = vrot.lane.b32.xlu0 %v825, 20
  %v1579 = vpop.permute.xlu0 %1578
  %1580 = vrot.lane.b32.xlu0 %v827, 20
  %v1581 = vpop.permute.xlu0 %1580
  %1582 = vrot.lane.b32.xlu0 %v830, 20
  %v1583 = vpop.permute.xlu0 %1582
  %1584 = vrot.lane.b32.xlu0 %v832, 20
  %v1585 = vpop.permute.xlu0 %1584
  %1586 = vrot.lane.b32.xlu0 %v835, 20
  %v1587 = vpop.permute.xlu0 %1586
  %1588 = vrot.lane.b32.xlu0 %v837, 20
  %v1589 = vpop.permute.xlu0 %1588
  %1590 = vrot.lane.b32.xlu0 %v840, 20
  %v1591 = vpop.permute.xlu0 %1590
  %1592 = vrot.lane.b32.xlu0 %v842, 20
  %v1593 = vpop.permute.xlu0 %1592
  %1594 = vrot.lane.b32.xlu0 %v845, 20
  %v1595 = vpop.permute.xlu0 %1594
  %1596 = vrot.lane.b32.xlu0 %v847, 20
  %v1597 = vpop.permute.xlu0 %1596
  %1598 = vrot.lane.b32.xlu0 %v850, 20
  %v1599 = vpop.permute.xlu0 %1598
  %1600 = vrot.lane.b32.xlu0 %v852, 20
  %v1601 = vpop.permute.xlu0 %1600
  %1602 = vrot.lane.b32.xlu0 %v855, 20
  %v1603 = vpop.permute.xlu0 %1602
  %1604 = vrot.lane.b32.xlu0 %v857, 20
  %v1605 = vpop.permute.xlu0 %1604
  %1606 = vrot.lane.b32.xlu0 %v860, 20
  %v1607 = vpop.permute.xlu0 %1606
  %1608 = vrot.lane.b32.xlu0 %v862, 20
  %v1609 = vpop.permute.xlu0 %1608
  %1610 = vrot.lane.b32.xlu0 %v865, 20
  %v1611 = vpop.permute.xlu0 %1610
  %1612 = vrot.lane.b32.xlu0 %v867, 20
  %v1613 = vpop.permute.xlu0 %1612
  %1614 = vrot.lane.b32.xlu0 %v870, 20
  %v1615 = vpop.permute.xlu0 %1614
  %1616 = vrot.lane.b32.xlu0 %v872, 20
  %v1617 = vpop.permute.xlu0 %1616
  %1618 = vrot.lane.b32.xlu0 %v875, 20
  %v1619 = vpop.permute.xlu0 %1618
  %1620 = vrot.lane.b32.xlu0 %v877, 20
  %v1621 = vpop.permute.xlu0 %1620
  %1622 = vrot.lane.b32.xlu0 %v880, 20
  %v1623 = vpop.permute.xlu0 %1622
  %1624 = vrot.lane.b32.xlu0 %v882, 20
  %v1625 = vpop.permute.xlu0 %1624
  %1626 = vrot.lane.b32.xlu0 %v885, 20
  %v1627 = vpop.permute.xlu0 %1626
  %1628 = vrot.lane.b32.xlu0 %v887, 20
  %v1629 = vpop.permute.xlu0 %1628
  %1630 = vrot.lane.b32.xlu0 %v1562, 20
  %v1631 = vpop.permute.xlu0 %1630
  %1632 = vrot.lane.b32.xlu0 %v1564, 20
  %v1633 = vpop.permute.xlu0 %1632
  %1634 = vrot.lane.b32.xlu0 %v895, 20
  %v1635 = vpop.permute.xlu0 %1634
  %1636 = vrot.lane.b32.xlu0 %v897, 20
  %v1637 = vpop.permute.xlu0 %1636
  %1638 = vrot.lane.b32.xlu0 %v900, 20
  %v1639 = vpop.permute.xlu0 %1638
  %1640 = vrot.lane.b32.xlu0 %v902, 20
  %v1641 = vpop.permute.xlu0 %1640
  %1642 = vrot.lane.b32.xlu0 %v905, 20
  %v1643 = vpop.permute.xlu0 %1642
  %1644 = vrot.lane.b32.xlu0 %v907, 20
  %v1645 = vpop.permute.xlu0 %1644
  %1646 = vrot.lane.b32.xlu0 %v910, 20
  %v1647 = vpop.permute.xlu0 %1646
  %1648 = vrot.lane.b32.xlu0 %v912, 20
  %v1649 = vpop.permute.xlu0 %1648
  %1650 = vrot.lane.b32.xlu0 %v915, 20
  %v1651 = vpop.permute.xlu0 %1650
  %1652 = vrot.lane.b32.xlu0 %v917, 20
  %v1653 = vpop.permute.xlu0 %1652
  %1654 = vrot.lane.b32.xlu0 %v920, 20
  %v1655 = vpop.permute.xlu0 %1654
  %1656 = vrot.lane.b32.xlu0 %v922, 20
  %v1657 = vpop.permute.xlu0 %1656
  %1658 = vrot.lane.b32.xlu0 %v925, 20
  %v1659 = vpop.permute.xlu0 %1658
  %1660 = vrot.lane.b32.xlu0 %v927, 20
  %v1661 = vpop.permute.xlu0 %1660
  %1662 = vrot.lane.b32.xlu0 %v930, 20
  %v1663 = vpop.permute.xlu0 %1662
  %1664 = vrot.lane.b32.xlu0 %v932, 20
  %v1665 = vpop.permute.xlu0 %1664
  %1666 = vrot.lane.b32.xlu0 %v935, 20
  %v1667 = vpop.permute.xlu0 %1666
  %1668 = vrot.lane.b32.xlu0 %v937, 20
  %v1669 = vpop.permute.xlu0 %1668
  %1670 = vrot.lane.b32.xlu0 %v940, 20
  %v1671 = vpop.permute.xlu0 %1670
  %1672 = vrot.lane.b32.xlu0 %v942, 20
  %v1673 = vpop.permute.xlu0 %1672
  %1674 = vrot.lane.b32.xlu0 %v945, 20
  %v1675 = vpop.permute.xlu0 %1674
  %1676 = vrot.lane.b32.xlu0 %v947, 20
  %v1677 = vpop.permute.xlu0 %1676
  %1678 = vrot.lane.b32.xlu0 %v950, 20
  %v1679 = vpop.permute.xlu0 %1678
  %1680 = vrot.lane.b32.xlu0 %v952, 20
  %v1681 = vpop.permute.xlu0 %1680
  %1682 = vrot.lane.b32.xlu0 %v955, 20
  %v1683 = vpop.permute.xlu0 %1682
  %1684 = vrot.lane.b32.xlu0 %v957, 20
  %v1685 = vpop.permute.xlu0 %1684
  %1686 = vrot.lane.b32.xlu0 %v960, 20
  %v1687 = vpop.permute.xlu0 %1686
  %1688 = vrot.lane.b32.xlu0 %v962, 20
  %v1689 = vpop.permute.xlu0 %1688
  %1690 = vrot.lane.b32.xlu0 %v965, 20
  %v1691 = vpop.permute.xlu0 %1690
  %1692 = vrot.lane.b32.xlu0 %v967, 20
  %v1693 = vpop.permute.xlu0 %1692
  %1694 = vrot.lane.b32.xlu0 %v1567, 20
  %v1695 = vpop.permute.xlu0 %1694
  %1696 = vrot.lane.b32.xlu0 %v1569, 20
  %v1697 = vpop.permute.xlu0 %1696
  %1766 = vrot.lane.b32.xlu0 %v256, 24
  %v1767 = vpop.permute.xlu0 %1766
  %1768 = vrot.lane.b32.xlu0 %v257, 24
  %v1769 = vpop.permute.xlu0 %1768
  %1770 = vrot.lane.b32.xlu0 %v259, 24
  %v1771 = vpop.permute.xlu0 %1770
  %1772 = vrot.lane.b32.xlu0 %v260, 24
  %v1773 = vpop.permute.xlu0 %1772
  %1774 = vrot.lane.b32.xlu0 %v262, 24
  %v1775 = vpop.permute.xlu0 %1774
  %1776 = vrot.lane.b32.xlu0 %v263, 24
  %v1777 = vpop.permute.xlu0 %1776
  %1778 = vrot.lane.b32.xlu0 %v265, 24
  %v1779 = vpop.permute.xlu0 %1778
  %1780 = vrot.lane.b32.xlu0 %v266, 24
  %v1781 = vpop.permute.xlu0 %1780
  %1782 = vrot.lane.b32.xlu0 %v268, 24
  %v1783 = vpop.permute.xlu0 %1782
  %1784 = vrot.lane.b32.xlu0 %v269, 24
  %v1785 = vpop.permute.xlu0 %1784
  %1786 = vrot.lane.b32.xlu0 %v271, 24
  %v1787 = vpop.permute.xlu0 %1786
  %1788 = vrot.lane.b32.xlu0 %v272, 24
  %v1789 = vpop.permute.xlu0 %1788
  %1790 = vrot.lane.b32.xlu0 %v274, 24
  %v1791 = vpop.permute.xlu0 %1790
  %1792 = vrot.lane.b32.xlu0 %v275, 24
  %v1793 = vpop.permute.xlu0 %1792
  %1794 = vrot.lane.b32.xlu0 %v277, 24
  %v1795 = vpop.permute.xlu0 %1794
  %1796 = vrot.lane.b32.xlu0 %v278, 24
  %v1797 = vpop.permute.xlu0 %1796
  %1798 = vrot.lane.b32.xlu0 %v280, 24
  %v1799 = vpop.permute.xlu0 %1798
  %1800 = vrot.lane.b32.xlu0 %v281, 24
  %v1801 = vpop.permute.xlu0 %1800
  %1802 = vrot.lane.b32.xlu0 %v283, 24
  %v1803 = vpop.permute.xlu0 %1802
  %1804 = vrot.lane.b32.xlu0 %v284, 24
  %v1805 = vpop.permute.xlu0 %1804
  %1806 = vrot.lane.b32.xlu0 %v286, 24
  %v1807 = vpop.permute.xlu0 %1806
  %1808 = vrot.lane.b32.xlu0 %v287, 24
  %v1809 = vpop.permute.xlu0 %1808
  %1810 = vrot.lane.b32.xlu0 %v289, 24
  %v1811 = vpop.permute.xlu0 %1810
  %1812 = vrot.lane.b32.xlu0 %v290, 24
  %v1813 = vpop.permute.xlu0 %1812
  %1814 = vrot.lane.b32.xlu0 %v292, 24
  %v1815 = vpop.permute.xlu0 %1814
  %1816 = vrot.lane.b32.xlu0 %v293, 24
  %v1817 = vpop.permute.xlu0 %1816
  %1818 = vrot.lane.b32.xlu0 %v295, 24
  %v1819 = vpop.permute.xlu0 %1818
  %1820 = vrot.lane.b32.xlu0 %v296, 24
  %v1821 = vpop.permute.xlu0 %1820
  %1822 = vrot.lane.b32.xlu0 %v298, 24
  %v1823 = vpop.permute.xlu0 %1822
  %1824 = vrot.lane.b32.xlu0 %v299, 24
  %v1825 = vpop.permute.xlu0 %1824
  %1826 = vrot.lane.b32.xlu0 %v301, 24
  %v1827 = vpop.permute.xlu0 %1826
  %1828 = vrot.lane.b32.xlu0 %v302, 24
  %v1829 = vpop.permute.xlu0 %1828
  %1830 = vrot.lane.b32.xlu0 %v310, 24
  %v1831 = vpop.permute.xlu0 %1830
  %1832 = vrot.lane.b32.xlu0 %v311, 24
  %v1833 = vpop.permute.xlu0 %1832
  %1834 = vrot.lane.b32.xlu0 %v313, 24
  %v1835 = vpop.permute.xlu0 %1834
  %1836 = vrot.lane.b32.xlu0 %v314, 24
  %v1837 = vpop.permute.xlu0 %1836
  %1838 = vrot.lane.b32.xlu0 %v316, 24
  %v1839 = vpop.permute.xlu0 %1838
  %1840 = vrot.lane.b32.xlu0 %v317, 24
  %v1841 = vpop.permute.xlu0 %1840
  %1842 = vrot.lane.b32.xlu0 %v319, 24
  %v1843 = vpop.permute.xlu0 %1842
  %1844 = vrot.lane.b32.xlu0 %v320, 24
  %v1845 = vpop.permute.xlu0 %1844
  %1846 = vrot.lane.b32.xlu0 %v322, 24
  %v1847 = vpop.permute.xlu0 %1846
  %1848 = vrot.lane.b32.xlu0 %v323, 24
  %v1849 = vpop.permute.xlu0 %1848
  %1850 = vrot.lane.b32.xlu0 %v325, 24
  %v1851 = vpop.permute.xlu0 %1850
  %1852 = vrot.lane.b32.xlu0 %v326, 24
  %v1853 = vpop.permute.xlu0 %1852
  %1854 = vrot.lane.b32.xlu0 %v328, 24
  %v1855 = vpop.permute.xlu0 %1854
  %1856 = vrot.lane.b32.xlu0 %v329, 24
  %v1857 = vpop.permute.xlu0 %1856
  %1858 = vrot.lane.b32.xlu0 %v331, 24
  %v1859 = vpop.permute.xlu0 %1858
  %1860 = vrot.lane.b32.xlu0 %v332, 24
  %v1861 = vpop.permute.xlu0 %1860
  %1862 = vrot.lane.b32.xlu0 %v334, 24
  %v1863 = vpop.permute.xlu0 %1862
  %1864 = vrot.lane.b32.xlu0 %v335, 24
  %v1865 = vpop.permute.xlu0 %1864
  %1866 = vrot.lane.b32.xlu0 %v337, 24
  %v1867 = vpop.permute.xlu0 %1866
  %1868 = vrot.lane.b32.xlu0 %v338, 24
  %v1869 = vpop.permute.xlu0 %1868
  %1870 = vrot.lane.b32.xlu0 %v340, 24
  %v1871 = vpop.permute.xlu0 %1870
  %1872 = vrot.lane.b32.xlu0 %v341, 24
  %v1873 = vpop.permute.xlu0 %1872
  %1874 = vrot.lane.b32.xlu0 %v343, 24
  %v1875 = vpop.permute.xlu0 %1874
  %1876 = vrot.lane.b32.xlu0 %v344, 24
  %v1877 = vpop.permute.xlu0 %1876
  %1878 = vrot.lane.b32.xlu0 %v346, 24
  %v1879 = vpop.permute.xlu0 %1878
  %1880 = vrot.lane.b32.xlu0 %v347, 24
  %v1881 = vpop.permute.xlu0 %1880
  %1882 = vrot.lane.b32.xlu0 %v349, 24
  %v1883 = vpop.permute.xlu0 %1882
  %1884 = vrot.lane.b32.xlu0 %v350, 24
  %v1885 = vpop.permute.xlu0 %1884
  %1886 = vrot.lane.b32.xlu0 %v352, 24
  %v1887 = vpop.permute.xlu0 %1886
  %1888 = vrot.lane.b32.xlu0 %v353, 24
  %v1889 = vpop.permute.xlu0 %1888
  %1890 = vrot.lane.b32.xlu0 %v355, 24
  %v1891 = vpop.permute.xlu0 %1890
  %1892 = vrot.lane.b32.xlu0 %v356, 24
  %v1893 = vpop.permute.xlu0 %1892
  %v1960 = vrot.slane %v301, 1
  %v1961 = vrot.slane %v302, 1
  %v1962 = vsel %vm454, %v1960, %v1961
  %v1963 = vrot.slane %v303, 1
  %v1964 = vsel %vm454, %v1961, %v1963
  %v1965 = vrot.slane %v355, 1
  %v1966 = vrot.slane %v356, 1
  %v1967 = vsel %vm454, %v1965, %v1966
  %v1968 = vrot.slane %v357, 1
  %v1969 = vsel %vm454, %v1966, %v1968
  %1970 = vrot.lane.b32.xlu0 %v467, 28
  %v1971 = vpop.permute.xlu0 %1970
  %1972 = vrot.lane.b32.xlu0 %v469, 28
  %v1973 = vpop.permute.xlu0 %1972
  %1974 = vrot.lane.b32.xlu0 %v472, 28
  %v1975 = vpop.permute.xlu0 %1974
  %1976 = vrot.lane.b32.xlu0 %v474, 28
  %v1977 = vpop.permute.xlu0 %1976
  %1978 = vrot.lane.b32.xlu0 %v477, 28
  %v1979 = vpop.permute.xlu0 %1978
  %1980 = vrot.lane.b32.xlu0 %v479, 28
  %v1981 = vpop.permute.xlu0 %1980
  %1982 = vrot.lane.b32.xlu0 %v482, 28
  %v1983 = vpop.permute.xlu0 %1982
  %1984 = vrot.lane.b32.xlu0 %v484, 28
  %v1985 = vpop.permute.xlu0 %1984
  %1986 = vrot.lane.b32.xlu0 %v487, 28
  %v1987 = vpop.permute.xlu0 %1986
  %1988 = vrot.lane.b32.xlu0 %v489, 28
  %v1989 = vpop.permute.xlu0 %1988
  %1990 = vrot.lane.b32.xlu0 %v492, 28
  %v1991 = vpop.permute.xlu0 %1990
  %1992 = vrot.lane.b32.xlu0 %v494, 28
  %v1993 = vpop.permute.xlu0 %1992
  %1994 = vrot.lane.b32.xlu0 %v497, 28
  %v1995 = vpop.permute.xlu0 %1994
  %1996 = vrot.lane.b32.xlu0 %v499, 28
  %v1997 = vpop.permute.xlu0 %1996
  %1998 = vrot.lane.b32.xlu0 %v502, 28
  %v1999 = vpop.permute.xlu0 %1998
  %2000 = vrot.lane.b32.xlu0 %v504, 28
  %v2001 = vpop.permute.xlu0 %2000
  %2002 = vrot.lane.b32.xlu0 %v507, 28
  %v2003 = vpop.permute.xlu0 %2002
  %2004 = vrot.lane.b32.xlu0 %v509, 28
  %v2005 = vpop.permute.xlu0 %2004
  %2006 = vrot.lane.b32.xlu0 %v512, 28
  %v2007 = vpop.permute.xlu0 %2006
  %2008 = vrot.lane.b32.xlu0 %v514, 28
  %v2009 = vpop.permute.xlu0 %2008
  %2010 = vrot.lane.b32.xlu0 %v517, 28
  %v2011 = vpop.permute.xlu0 %2010
  %2012 = vrot.lane.b32.xlu0 %v519, 28
  %v2013 = vpop.permute.xlu0 %2012
  %2014 = vrot.lane.b32.xlu0 %v522, 28
  %v2015 = vpop.permute.xlu0 %2014
  %2016 = vrot.lane.b32.xlu0 %v524, 28
  %v2017 = vpop.permute.xlu0 %2016
  %2018 = vrot.lane.b32.xlu0 %v527, 28
  %v2019 = vpop.permute.xlu0 %2018
  %2020 = vrot.lane.b32.xlu0 %v529, 28
  %v2021 = vpop.permute.xlu0 %2020
  %2022 = vrot.lane.b32.xlu0 %v532, 28
  %v2023 = vpop.permute.xlu0 %2022
  %2024 = vrot.lane.b32.xlu0 %v534, 28
  %v2025 = vpop.permute.xlu0 %2024
  %2026 = vrot.lane.b32.xlu0 %v1360, 28
  %v2027 = vpop.permute.xlu0 %2026
  %2028 = vrot.lane.b32.xlu0 %v1362, 28
  %v2029 = vpop.permute.xlu0 %2028
  %2030 = vrot.lane.b32.xlu0 %v1962, 28
  %v2031 = vpop.permute.xlu0 %2030
  %2032 = vrot.lane.b32.xlu0 %v1964, 28
  %v2033 = vpop.permute.xlu0 %2032
  %2034 = vrot.lane.b32.xlu0 %v547, 28
  %v2035 = vpop.permute.xlu0 %2034
  %2036 = vrot.lane.b32.xlu0 %v549, 28
  %v2037 = vpop.permute.xlu0 %2036
  %2038 = vrot.lane.b32.xlu0 %v552, 28
  %v2039 = vpop.permute.xlu0 %2038
  %2040 = vrot.lane.b32.xlu0 %v554, 28
  %v2041 = vpop.permute.xlu0 %2040
  %2042 = vrot.lane.b32.xlu0 %v557, 28
  %v2043 = vpop.permute.xlu0 %2042
  %2044 = vrot.lane.b32.xlu0 %v559, 28
  %v2045 = vpop.permute.xlu0 %2044
  %2046 = vrot.lane.b32.xlu0 %v562, 28
  %v2047 = vpop.permute.xlu0 %2046
  %2048 = vrot.lane.b32.xlu0 %v564, 28
  %v2049 = vpop.permute.xlu0 %2048
  %2050 = vrot.lane.b32.xlu0 %v567, 28
  %v2051 = vpop.permute.xlu0 %2050
  %2052 = vrot.lane.b32.xlu0 %v569, 28
  %v2053 = vpop.permute.xlu0 %2052
  %2054 = vrot.lane.b32.xlu0 %v572, 28
  %v2055 = vpop.permute.xlu0 %2054
  %2056 = vrot.lane.b32.xlu0 %v574, 28
  %v2057 = vpop.permute.xlu0 %2056
  %2058 = vrot.lane.b32.xlu0 %v577, 28
  %v2059 = vpop.permute.xlu0 %2058
  %2060 = vrot.lane.b32.xlu0 %v579, 28
  %v2061 = vpop.permute.xlu0 %2060
  %2062 = vrot.lane.b32.xlu0 %v582, 28
  %v2063 = vpop.permute.xlu0 %2062
  %2064 = vrot.lane.b32.xlu0 %v584, 28
  %v2065 = vpop.permute.xlu0 %2064
  %2066 = vrot.lane.b32.xlu0 %v587, 28
  %v2067 = vpop.permute.xlu0 %2066
  %2068 = vrot.lane.b32.xlu0 %v589, 28
  %v2069 = vpop.permute.xlu0 %2068
  %2070 = vrot.lane.b32.xlu0 %v592, 28
  %v2071 = vpop.permute.xlu0 %2070
  %2072 = vrot.lane.b32.xlu0 %v594, 28
  %v2073 = vpop.permute.xlu0 %2072
  %2074 = vrot.lane.b32.xlu0 %v597, 28
  %v2075 = vpop.permute.xlu0 %2074
  %2076 = vrot.lane.b32.xlu0 %v599, 28
  %v2077 = vpop.permute.xlu0 %2076
  %2078 = vrot.lane.b32.xlu0 %v602, 28
  %v2079 = vpop.permute.xlu0 %2078
  %2080 = vrot.lane.b32.xlu0 %v604, 28
  %v2081 = vpop.permute.xlu0 %2080
  %2082 = vrot.lane.b32.xlu0 %v607, 28
  %v2083 = vpop.permute.xlu0 %2082
  %2084 = vrot.lane.b32.xlu0 %v609, 28
  %v2085 = vpop.permute.xlu0 %2084
  %2086 = vrot.lane.b32.xlu0 %v612, 28
  %v2087 = vpop.permute.xlu0 %2086
  %2088 = vrot.lane.b32.xlu0 %v614, 28
  %v2089 = vpop.permute.xlu0 %2088
  %2090 = vrot.lane.b32.xlu0 %v1365, 28
  %v2091 = vpop.permute.xlu0 %2090
  %2092 = vrot.lane.b32.xlu0 %v1367, 28
  %v2093 = vpop.permute.xlu0 %2092
  %2094 = vrot.lane.b32.xlu0 %v1967, 28
  %v2095 = vpop.permute.xlu0 %2094
  %2096 = vrot.lane.b32.xlu0 %v1969, 28
  %v2097 = vpop.permute.xlu0 %2096
  %v2162 = vrot.slane %v301, 2
  %v2163 = vrot.slane %v302, 2
  %v2164 = vsel %vm807, %v2162, %v2163
  %v2165 = vrot.slane %v303, 2
  %v2166 = vsel %vm807, %v2163, %v2165
  %v2167 = vrot.slane %v355, 2
  %v2168 = vrot.slane %v356, 2
  %v2169 = vsel %vm807, %v2167, %v2168
  %v2170 = vrot.slane %v357, 2
  %v2171 = vsel %vm807, %v2168, %v2170
  %2172 = vrot.lane.b32.xlu0 %v820, 32
  %v2173 = vpop.permute.xlu0 %2172
  %2174 = vrot.lane.b32.xlu0 %v822, 32
  %v2175 = vpop.permute.xlu0 %2174
  %2176 = vrot.lane.b32.xlu0 %v825, 32
  %v2177 = vpop.permute.xlu0 %2176
  %2178 = vrot.lane.b32.xlu0 %v827, 32
  %v2179 = vpop.permute.xlu0 %2178
  %2180 = vrot.lane.b32.xlu0 %v830, 32
  %v2181 = vpop.permute.xlu0 %2180
  %2182 = vrot.lane.b32.xlu0 %v832, 32
  %v2183 = vpop.permute.xlu0 %2182
  %2184 = vrot.lane.b32.xlu0 %v835, 32
  %v2185 = vpop.permute.xlu0 %2184
  %2186 = vrot.lane.b32.xlu0 %v837, 32
  %v2187 = vpop.permute.xlu0 %2186
  %2188 = vrot.lane.b32.xlu0 %v840, 32
  %v2189 = vpop.permute.xlu0 %2188
  %2190 = vrot.lane.b32.xlu0 %v842, 32
  %v2191 = vpop.permute.xlu0 %2190
  %2192 = vrot.lane.b32.xlu0 %v845, 32
  %v2193 = vpop.permute.xlu0 %2192
  %2194 = vrot.lane.b32.xlu0 %v847, 32
  %v2195 = vpop.permute.xlu0 %2194
  %2196 = vrot.lane.b32.xlu0 %v850, 32
  %v2197 = vpop.permute.xlu0 %2196
  %2198 = vrot.lane.b32.xlu0 %v852, 32
  %v2199 = vpop.permute.xlu0 %2198
  %2200 = vrot.lane.b32.xlu0 %v855, 32
  %v2201 = vpop.permute.xlu0 %2200
  %2202 = vrot.lane.b32.xlu0 %v857, 32
  %v2203 = vpop.permute.xlu0 %2202
  %2204 = vrot.lane.b32.xlu0 %v860, 32
  %v2205 = vpop.permute.xlu0 %2204
  %2206 = vrot.lane.b32.xlu0 %v862, 32
  %v2207 = vpop.permute.xlu0 %2206
  %2208 = vrot.lane.b32.xlu0 %v865, 32
  %v2209 = vpop.permute.xlu0 %2208
  %2210 = vrot.lane.b32.xlu0 %v867, 32
  %v2211 = vpop.permute.xlu0 %2210
  %2212 = vrot.lane.b32.xlu0 %v870, 32
  %v2213 = vpop.permute.xlu0 %2212
  %2214 = vrot.lane.b32.xlu0 %v872, 32
  %v2215 = vpop.permute.xlu0 %2214
  %2216 = vrot.lane.b32.xlu0 %v875, 32
  %v2217 = vpop.permute.xlu0 %2216
  %2218 = vrot.lane.b32.xlu0 %v877, 32
  %v2219 = vpop.permute.xlu0 %2218
  %2220 = vrot.lane.b32.xlu0 %v880, 32
  %v2221 = vpop.permute.xlu0 %2220
  %2222 = vrot.lane.b32.xlu0 %v882, 32
  %v2223 = vpop.permute.xlu0 %2222
  %2224 = vrot.lane.b32.xlu0 %v885, 32
  %v2225 = vpop.permute.xlu0 %2224
  %2226 = vrot.lane.b32.xlu0 %v887, 32
  %v2227 = vpop.permute.xlu0 %2226
  %2228 = vrot.lane.b32.xlu0 %v1562, 32
  %v2229 = vpop.permute.xlu0 %2228
  %2230 = vrot.lane.b32.xlu0 %v1564, 32
  %v2231 = vpop.permute.xlu0 %2230
  %2232 = vrot.lane.b32.xlu0 %v2164, 32
  %v2233 = vpop.permute.xlu0 %2232
  %2234 = vrot.lane.b32.xlu0 %v2166, 32
  %v2235 = vpop.permute.xlu0 %2234
  %2236 = vrot.lane.b32.xlu0 %v900, 32
  %v2237 = vpop.permute.xlu0 %2236
  %2238 = vrot.lane.b32.xlu0 %v902, 32
  %v2239 = vpop.permute.xlu0 %2238
  %2240 = vrot.lane.b32.xlu0 %v905, 32
  %v2241 = vpop.permute.xlu0 %2240
  %2242 = vrot.lane.b32.xlu0 %v907, 32
  %v2243 = vpop.permute.xlu0 %2242
  %2244 = vrot.lane.b32.xlu0 %v910, 32
  %v2245 = vpop.permute.xlu0 %2244
  %2246 = vrot.lane.b32.xlu0 %v912, 32
  %v2247 = vpop.permute.xlu0 %2246
  %2248 = vrot.lane.b32.xlu0 %v915, 32
  %v2249 = vpop.permute.xlu0 %2248
  %2250 = vrot.lane.b32.xlu0 %v917, 32
  %v2251 = vpop.permute.xlu0 %2250
  %2252 = vrot.lane.b32.xlu0 %v920, 32
  %v2253 = vpop.permute.xlu0 %2252
  %2254 = vrot.lane.b32.xlu0 %v922, 32
  %v2255 = vpop.permute.xlu0 %2254
  %2256 = vrot.lane.b32.xlu0 %v925, 32
  %v2257 = vpop.permute.xlu0 %2256
  %2258 = vrot.lane.b32.xlu0 %v927, 32
  %v2259 = vpop.permute.xlu0 %2258
  %2260 = vrot.lane.b32.xlu0 %v930, 32
  %v2261 = vpop.permute.xlu0 %2260
  %2262 = vrot.lane.b32.xlu0 %v932, 32
  %v2263 = vpop.permute.xlu0 %2262
  %2264 = vrot.lane.b32.xlu0 %v935, 32
  %v2265 = vpop.permute.xlu0 %2264
  %2266 = vrot.lane.b32.xlu0 %v937, 32
  %v2267 = vpop.permute.xlu0 %2266
  %2268 = vrot.lane.b32.xlu0 %v940, 32
  %v2269 = vpop.permute.xlu0 %2268
  %2270 = vrot.lane.b32.xlu0 %v942, 32
  %v2271 = vpop.permute.xlu0 %2270
  %2272 = vrot.lane.b32.xlu0 %v945, 32
  %v2273 = vpop.permute.xlu0 %2272
  %2274 = vrot.lane.b32.xlu0 %v947, 32
  %v2275 = vpop.permute.xlu0 %2274
  %2276 = vrot.lane.b32.xlu0 %v950, 32
  %v2277 = vpop.permute.xlu0 %2276
  %2278 = vrot.lane.b32.xlu0 %v952, 32
  %v2279 = vpop.permute.xlu0 %2278
  %2280 = vrot.lane.b32.xlu0 %v955, 32
  %v2281 = vpop.permute.xlu0 %2280
  %2282 = vrot.lane.b32.xlu0 %v957, 32
  %v2283 = vpop.permute.xlu0 %2282
  %2284 = vrot.lane.b32.xlu0 %v960, 32
  %v2285 = vpop.permute.xlu0 %2284
  %2286 = vrot.lane.b32.xlu0 %v962, 32
  %v2287 = vpop.permute.xlu0 %2286
  %2288 = vrot.lane.b32.xlu0 %v965, 32
  %v2289 = vpop.permute.xlu0 %2288
  %2290 = vrot.lane.b32.xlu0 %v967, 32
  %v2291 = vpop.permute.xlu0 %2290
  %2292 = vrot.lane.b32.xlu0 %v1567, 32
  %v2293 = vpop.permute.xlu0 %2292
  %2294 = vrot.lane.b32.xlu0 %v1569, 32
  %v2295 = vpop.permute.xlu0 %2294
  %2296 = vrot.lane.b32.xlu0 %v2169, 32
  %v2297 = vpop.permute.xlu0 %2296
  %2298 = vrot.lane.b32.xlu0 %v2171, 32
  %v2299 = vpop.permute.xlu0 %2298
  %v2364 = vsel %vm91, %v250, %v616
  %v2365 = vsel %vm91, %v251, %v618
  %v2366 = vsel %vm91, %v253, %v620
  %v2367 = vsel %vm91, %v254, %v622
  %v2368 = vsel %vm91, %v256, %v624
  %v2369 = vsel %vm91, %v257, %v626
  %v2370 = vsel %vm91, %v259, %v628
  %v2371 = vsel %vm91, %v260, %v630
  %v2372 = vsel %vm91, %v262, %v632
  %v2373 = vsel %vm91, %v263, %v634
  %v2374 = vsel %vm91, %v265, %v636
  %v2375 = vsel %vm91, %v266, %v638
  %v2376 = vsel %vm91, %v268, %v640
  %v2377 = vsel %vm91, %v269, %v642
  %v2378 = vsel %vm91, %v271, %v644
  %v2379 = vsel %vm91, %v272, %v646
  %v2380 = vsel %vm91, %v274, %v648
  %v2381 = vsel %vm91, %v275, %v650
  %v2382 = vsel %vm91, %v277, %v652
  %v2383 = vsel %vm91, %v278, %v654
  %v2384 = vsel %vm91, %v280, %v656
  %v2385 = vsel %vm91, %v281, %v658
  %v2386 = vsel %vm91, %v283, %v660
  %v2387 = vsel %vm91, %v284, %v662
  %v2388 = vsel %vm91, %v286, %v664
  %v2389 = vsel %vm91, %v287, %v666
  %v2390 = vsel %vm91, %v289, %v668
  %v2391 = vsel %vm91, %v290, %v670
  %v2392 = vsel %vm91, %v292, %v672
  %v2393 = vsel %vm91, %v293, %v674
  %v2394 = vsel %vm91, %v295, %v676
  %v2395 = vsel %vm91, %v296, %v678
  %v2396 = vsel %vm91, %v304, %v680
  %v2397 = vsel %vm91, %v305, %v682
  %v2398 = vsel %vm91, %v307, %v684
  %v2399 = vsel %vm91, %v308, %v686
  %v2400 = vsel %vm91, %v310, %v688
  %v2401 = vsel %vm91, %v311, %v690
  %v2402 = vsel %vm91, %v313, %v692
  %v2403 = vsel %vm91, %v314, %v694
  %v2404 = vsel %vm91, %v316, %v696
  %v2405 = vsel %vm91, %v317, %v698
  %v2406 = vsel %vm91, %v319, %v700
  %v2407 = vsel %vm91, %v320, %v702
  %v2408 = vsel %vm91, %v322, %v704
  %v2409 = vsel %vm91, %v323, %v706
  %v2410 = vsel %vm91, %v325, %v708
  %v2411 = vsel %vm91, %v326, %v710
  %v2412 = vsel %vm91, %v328, %v712
  %v2413 = vsel %vm91, %v329, %v714
  %v2414 = vsel %vm91, %v331, %v716
  %v2415 = vsel %vm91, %v332, %v718
  %v2416 = vsel %vm91, %v334, %v720
  %v2417 = vsel %vm91, %v335, %v722
  %v2418 = vsel %vm91, %v337, %v724
  %v2419 = vsel %vm91, %v338, %v726
  %v2420 = vsel %vm91, %v340, %v728
  %v2421 = vsel %vm91, %v341, %v730
  %v2422 = vsel %vm91, %v343, %v732
  %v2423 = vsel %vm91, %v344, %v734
  %v2424 = vsel %vm91, %v346, %v736
  %v2425 = vsel %vm91, %v347, %v738
  %v2426 = vsel %vm91, %v349, %v740
  %v2427 = vsel %vm91, %v350, %v742
  %vm2428 = vcmask 64512
  %v2429 = vsel %vm2428, %v2364, %v969
  %v2430 = vsel %vm2428, %v2365, %v971
  %v2431 = vsel %vm2428, %v2366, %v973
  %v2432 = vsel %vm2428, %v2367, %v975
  %v2433 = vsel %vm2428, %v2368, %v977
  %v2434 = vsel %vm2428, %v2369, %v979
  %v2435 = vsel %vm2428, %v2370, %v981
  %v2436 = vsel %vm2428, %v2371, %v983
  %v2437 = vsel %vm2428, %v2372, %v985
  %v2438 = vsel %vm2428, %v2373, %v987
  %v2439 = vsel %vm2428, %v2374, %v989
  %v2440 = vsel %vm2428, %v2375, %v991
  %v2441 = vsel %vm2428, %v2376, %v993
  %v2442 = vsel %vm2428, %v2377, %v995
  %v2443 = vsel %vm2428, %v2378, %v997
  %v2444 = vsel %vm2428, %v2379, %v999
  %v2445 = vsel %vm2428, %v2380, %v1001
  %v2446 = vsel %vm2428, %v2381, %v1003
  %v2447 = vsel %vm2428, %v2382, %v1005
  %v2448 = vsel %vm2428, %v2383, %v1007
  %v2449 = vsel %vm2428, %v2384, %v1009
  %v2450 = vsel %vm2428, %v2385, %v1011
  %v2451 = vsel %vm2428, %v2386, %v1013
  %v2452 = vsel %vm2428, %v2387, %v1015
  %v2453 = vsel %vm2428, %v2388, %v1017
  %v2454 = vsel %vm2428, %v2389, %v1019
  %v2455 = vsel %vm2428, %v2390, %v1021
  %v2456 = vsel %vm2428, %v2391, %v1023
  %v2457 = vsel %vm2428, %v2392, %v1025
  %v2458 = vsel %vm2428, %v2393, %v1027
  %v2459 = vsel %vm2428, %v2394, %v1029
  %v2460 = vsel %vm2428, %v2395, %v1031
  %v2461 = vsel %vm2428, %v2396, %v1033
  %v2462 = vsel %vm2428, %v2397, %v1035
  %v2463 = vsel %vm2428, %v2398, %v1037
  %v2464 = vsel %vm2428, %v2399, %v1039
  %v2465 = vsel %vm2428, %v2400, %v1041
  %v2466 = vsel %vm2428, %v2401, %v1043
  %v2467 = vsel %vm2428, %v2402, %v1045
  %v2468 = vsel %vm2428, %v2403, %v1047
  %v2469 = vsel %vm2428, %v2404, %v1049
  %v2470 = vsel %vm2428, %v2405, %v1051
  %v2471 = vsel %vm2428, %v2406, %v1053
  %v2472 = vsel %vm2428, %v2407, %v1055
  %v2473 = vsel %vm2428, %v2408, %v1057
  %v2474 = vsel %vm2428, %v2409, %v1059
  %v2475 = vsel %vm2428, %v2410, %v1061
  %v2476 = vsel %vm2428, %v2411, %v1063
  %v2477 = vsel %vm2428, %v2412, %v1065
  %v2478 = vsel %vm2428, %v2413, %v1067
  %v2479 = vsel %vm2428, %v2414, %v1069
  %v2480 = vsel %vm2428, %v2415, %v1071
  %v2481 = vsel %vm2428, %v2416, %v1073
  %v2482 = vsel %vm2428, %v2417, %v1075
  %v2483 = vsel %vm2428, %v2418, %v1077
  %v2484 = vsel %vm2428, %v2419, %v1079
  %v2485 = vsel %vm2428, %v2420, %v1081
  %v2486 = vsel %vm2428, %v2421, %v1083
  %v2487 = vsel %vm2428, %v2422, %v1085
  %v2488 = vsel %vm2428, %v2423, %v1087
  %v2489 = vsel %vm2428, %v2424, %v1089
  %v2490 = vsel %vm2428, %v2425, %v1091
  %v2491 = vsel %vm2428, %v2426, %v1093
  %v2492 = vsel %vm2428, %v2427, %v1095
  %vm2493 = vcmask 97280
  %v2494 = vsel %vm2493, %v2429, %v1165
  %v2495 = vsel %vm2493, %v2430, %v1167
  %v2496 = vsel %vm2493, %v2431, %v1169
  %v2497 = vsel %vm2493, %v2432, %v1171
  %v2498 = vsel %vm2493, %v2433, %v1173
  %v2499 = vsel %vm2493, %v2434, %v1175
  %v2500 = vsel %vm2493, %v2435, %v1177
  %v2501 = vsel %vm2493, %v2436, %v1179
  %v2502 = vsel %vm2493, %v2437, %v1181
  %v2503 = vsel %vm2493, %v2438, %v1183
  %v2504 = vsel %vm2493, %v2439, %v1185
  %v2505 = vsel %vm2493, %v2440, %v1187
  %v2506 = vsel %vm2493, %v2441, %v1189
  %v2507 = vsel %vm2493, %v2442, %v1191
  %v2508 = vsel %vm2493, %v2443, %v1193
  %v2509 = vsel %vm2493, %v2444, %v1195
  %v2510 = vsel %vm2493, %v2445, %v1197
  %v2511 = vsel %vm2493, %v2446, %v1199
  %v2512 = vsel %vm2493, %v2447, %v1201
  %v2513 = vsel %vm2493, %v2448, %v1203
  %v2514 = vsel %vm2493, %v2449, %v1205
  %v2515 = vsel %vm2493, %v2450, %v1207
  %v2516 = vsel %vm2493, %v2451, %v1209
  %v2517 = vsel %vm2493, %v2452, %v1211
  %v2518 = vsel %vm2493, %v2453, %v1213
  %v2519 = vsel %vm2493, %v2454, %v1215
  %v2520 = vsel %vm2493, %v2455, %v1217
  %v2521 = vsel %vm2493, %v2456, %v1219
  %v2522 = vsel %vm2493, %v2457, %v1221
  %v2523 = vsel %vm2493, %v2458, %v1223
  %v2524 = vsel %vm2493, %v2459, %v1225
  %v2525 = vsel %vm2493, %v2460, %v1227
  %v2526 = vsel %vm2493, %v2461, %v1229
  %v2527 = vsel %vm2493, %v2462, %v1231
  %v2528 = vsel %vm2493, %v2463, %v1233
  %v2529 = vsel %vm2493, %v2464, %v1235
  %v2530 = vsel %vm2493, %v2465, %v1237
  %v2531 = vsel %vm2493, %v2466, %v1239
  %v2532 = vsel %vm2493, %v2467, %v1241
  %v2533 = vsel %vm2493, %v2468, %v1243
  %v2534 = vsel %vm2493, %v2469, %v1245
  %v2535 = vsel %vm2493, %v2470, %v1247
  %v2536 = vsel %vm2493, %v2471, %v1249
  %v2537 = vsel %vm2493, %v2472, %v1251
  %v2538 = vsel %vm2493, %v2473, %v1253
  %v2539 = vsel %vm2493, %v2474, %v1255
  %v2540 = vsel %vm2493, %v2475, %v1257
  %v2541 = vsel %vm2493, %v2476, %v1259
  %v2542 = vsel %vm2493, %v2477, %v1261
  %v2543 = vsel %vm2493, %v2478, %v1263
  %v2544 = vsel %vm2493, %v2479, %v1265
  %v2545 = vsel %vm2493, %v2480, %v1267
  %v2546 = vsel %vm2493, %v2481, %v1269
  %v2547 = vsel %vm2493, %v2482, %v1271
  %v2548 = vsel %vm2493, %v2483, %v1273
  %v2549 = vsel %vm2493, %v2484, %v1275
  %v2550 = vsel %vm2493, %v2485, %v1277
  %v2551 = vsel %vm2493, %v2486, %v1279
  %v2552 = vsel %vm2493, %v2487, %v1281
  %v2553 = vsel %vm2493, %v2488, %v1283
  %v2554 = vsel %vm2493, %v2489, %v1285
  %v2555 = vsel %vm2493, %v2490, %v1287
  %v2556 = vsel %vm2493, %v2491, %v1289
  %v2557 = vsel %vm2493, %v2492, %v1291
  %vm2558 = vcmask 130048
  %v2559 = vsel %vm2558, %v2494, %v1369
  %v2560 = vsel %vm2558, %v2495, %v1371
  %v2561 = vsel %vm2558, %v2496, %v1373
  %v2562 = vsel %vm2558, %v2497, %v1375
  %v2563 = vsel %vm2558, %v2498, %v1377
  %v2564 = vsel %vm2558, %v2499, %v1379
  %v2565 = vsel %vm2558, %v2500, %v1381
  %v2566 = vsel %vm2558, %v2501, %v1383
  %v2567 = vsel %vm2558, %v2502, %v1385
  %v2568 = vsel %vm2558, %v2503, %v1387
  %v2569 = vsel %vm2558, %v2504, %v1389
  %v2570 = vsel %vm2558, %v2505, %v1391
  %v2571 = vsel %vm2558, %v2506, %v1393
  %v2572 = vsel %vm2558, %v2507, %v1395
  %v2573 = vsel %vm2558, %v2508, %v1397
  %v2574 = vsel %vm2558, %v2509, %v1399
  %v2575 = vsel %vm2558, %v2510, %v1401
  %v2576 = vsel %vm2558, %v2511, %v1403
  %v2577 = vsel %vm2558, %v2512, %v1405
  %v2578 = vsel %vm2558, %v2513, %v1407
  %v2579 = vsel %vm2558, %v2514, %v1409
  %v2580 = vsel %vm2558, %v2515, %v1411
  %v2581 = vsel %vm2558, %v2516, %v1413
  %v2582 = vsel %vm2558, %v2517, %v1415
  %v2583 = vsel %vm2558, %v2518, %v1417
  %v2584 = vsel %vm2558, %v2519, %v1419
  %v2585 = vsel %vm2558, %v2520, %v1421
  %v2586 = vsel %vm2558, %v2521, %v1423
  %v2587 = vsel %vm2558, %v2522, %v1425
  %v2588 = vsel %vm2558, %v2523, %v1427
  %v2589 = vsel %vm2558, %v2524, %v1429
  %v2590 = vsel %vm2558, %v2525, %v1431
  %v2591 = vsel %vm2558, %v2526, %v1433
  %v2592 = vsel %vm2558, %v2527, %v1435
  %v2593 = vsel %vm2558, %v2528, %v1437
  %v2594 = vsel %vm2558, %v2529, %v1439
  %v2595 = vsel %vm2558, %v2530, %v1441
  %v2596 = vsel %vm2558, %v2531, %v1443
  %v2597 = vsel %vm2558, %v2532, %v1445
  %v2598 = vsel %vm2558, %v2533, %v1447
  %v2599 = vsel %vm2558, %v2534, %v1449
  %v2600 = vsel %vm2558, %v2535, %v1451
  %v2601 = vsel %vm2558, %v2536, %v1453
  %v2602 = vsel %vm2558, %v2537, %v1455
  %v2603 = vsel %vm2558, %v2538, %v1457
  %v2604 = vsel %vm2558, %v2539, %v1459
  %v2605 = vsel %vm2558, %v2540, %v1461
  %v2606 = vsel %vm2558, %v2541, %v1463
  %v2607 = vsel %vm2558, %v2542, %v1465
  %v2608 = vsel %vm2558, %v2543, %v1467
  %v2609 = vsel %vm2558, %v2544, %v1469
  %v2610 = vsel %vm2558, %v2545, %v1471
  %v2611 = vsel %vm2558, %v2546, %v1473
  %v2612 = vsel %vm2558, %v2547, %v1475
  %v2613 = vsel %vm2558, %v2548, %v1477
  %v2614 = vsel %vm2558, %v2549, %v1479
  %v2615 = vsel %vm2558, %v2550, %v1481
  %v2616 = vsel %vm2558, %v2551, %v1483
  %v2617 = vsel %vm2558, %v2552, %v1485
  %v2618 = vsel %vm2558, %v2553, %v1487
  %v2619 = vsel %vm2558, %v2554, %v1489
  %v2620 = vsel %vm2558, %v2555, %v1491
  %v2621 = vsel %vm2558, %v2556, %v1493
  %v2622 = vsel %vm2558, %v2557, %v1495
  %vm2623 = vcmask 162816
  %v2624 = vsel %vm2623, %v2559, %v1571
  %v2625 = vsel %vm2623, %v2560, %v1573
  %v2626 = vsel %vm2623, %v2561, %v1575
  %v2627 = vsel %vm2623, %v2562, %v1577
  %v2628 = vsel %vm2623, %v2563, %v1579
  %v2629 = vsel %vm2623, %v2564, %v1581
  %v2630 = vsel %vm2623, %v2565, %v1583
  %v2631 = vsel %vm2623, %v2566, %v1585
  %v2632 = vsel %vm2623, %v2567, %v1587
  %v2633 = vsel %vm2623, %v2568, %v1589
  %v2634 = vsel %vm2623, %v2569, %v1591
  %v2635 = vsel %vm2623, %v2570, %v1593
  %v2636 = vsel %vm2623, %v2571, %v1595
  %v2637 = vsel %vm2623, %v2572, %v1597
  %v2638 = vsel %vm2623, %v2573, %v1599
  %v2639 = vsel %vm2623, %v2574, %v1601
  %v2640 = vsel %vm2623, %v2575, %v1603
  %v2641 = vsel %vm2623, %v2576, %v1605
  %v2642 = vsel %vm2623, %v2577, %v1607
  %v2643 = vsel %vm2623, %v2578, %v1609
  %v2644 = vsel %vm2623, %v2579, %v1611
  %v2645 = vsel %vm2623, %v2580, %v1613
  %v2646 = vsel %vm2623, %v2581, %v1615
  %v2647 = vsel %vm2623, %v2582, %v1617
  %v2648 = vsel %vm2623, %v2583, %v1619
  %v2649 = vsel %vm2623, %v2584, %v1621
  %v2650 = vsel %vm2623, %v2585, %v1623
  %v2651 = vsel %vm2623, %v2586, %v1625
  %v2652 = vsel %vm2623, %v2587, %v1627
  %v2653 = vsel %vm2623, %v2588, %v1629
  %v2654 = vsel %vm2623, %v2589, %v1631
  %v2655 = vsel %vm2623, %v2590, %v1633
  %v2656 = vsel %vm2623, %v2591, %v1635
  %v2657 = vsel %vm2623, %v2592, %v1637
  %v2658 = vsel %vm2623, %v2593, %v1639
  %v2659 = vsel %vm2623, %v2594, %v1641
  %v2660 = vsel %vm2623, %v2595, %v1643
  %v2661 = vsel %vm2623, %v2596, %v1645
  %v2662 = vsel %vm2623, %v2597, %v1647
  %v2663 = vsel %vm2623, %v2598, %v1649
  %v2664 = vsel %vm2623, %v2599, %v1651
  %v2665 = vsel %vm2623, %v2600, %v1653
  %v2666 = vsel %vm2623, %v2601, %v1655
  %v2667 = vsel %vm2623, %v2602, %v1657
  %v2668 = vsel %vm2623, %v2603, %v1659
  %v2669 = vsel %vm2623, %v2604, %v1661
  %v2670 = vsel %vm2623, %v2605, %v1663
  %v2671 = vsel %vm2623, %v2606, %v1665
  %v2672 = vsel %vm2623, %v2607, %v1667
  %v2673 = vsel %vm2623, %v2608, %v1669
  %v2674 = vsel %vm2623, %v2609, %v1671
  %v2675 = vsel %vm2623, %v2610, %v1673
  %v2676 = vsel %vm2623, %v2611, %v1675
  %v2677 = vsel %vm2623, %v2612, %v1677
  %v2678 = vsel %vm2623, %v2613, %v1679
  %v2679 = vsel %vm2623, %v2614, %v1681
  %v2680 = vsel %vm2623, %v2615, %v1683
  %v2681 = vsel %vm2623, %v2616, %v1685
  %v2682 = vsel %vm2623, %v2617, %v1687
  %v2683 = vsel %vm2623, %v2618, %v1689
  %v2684 = vsel %vm2623, %v2619, %v1691
  %v2685 = vsel %vm2623, %v2620, %v1693
  %v2686 = vsel %vm2623, %v2621, %v1695
  %v2687 = vsel %vm2623, %v2622, %v1697
  %vm2688 = vcmask 195584
  %v2689 = vsel %vm2688, %v2624, %v1767
  %v2690 = vsel %vm2688, %v2625, %v1769
  %v2691 = vsel %vm2688, %v2626, %v1771
  %v2692 = vsel %vm2688, %v2627, %v1773
  %v2693 = vsel %vm2688, %v2628, %v1775
  %v2694 = vsel %vm2688, %v2629, %v1777
  %v2695 = vsel %vm2688, %v2630, %v1779
  %v2696 = vsel %vm2688, %v2631, %v1781
  %v2697 = vsel %vm2688, %v2632, %v1783
  %v2698 = vsel %vm2688, %v2633, %v1785
  %v2699 = vsel %vm2688, %v2634, %v1787
  %v2700 = vsel %vm2688, %v2635, %v1789
  %v2701 = vsel %vm2688, %v2636, %v1791
  %v2702 = vsel %vm2688, %v2637, %v1793
  %v2703 = vsel %vm2688, %v2638, %v1795
  %v2704 = vsel %vm2688, %v2639, %v1797
  %v2705 = vsel %vm2688, %v2640, %v1799
  %v2706 = vsel %vm2688, %v2641, %v1801
  %v2707 = vsel %vm2688, %v2642, %v1803
  %v2708 = vsel %vm2688, %v2643, %v1805
  %v2709 = vsel %vm2688, %v2644, %v1807
  %v2710 = vsel %vm2688, %v2645, %v1809
  %v2711 = vsel %vm2688, %v2646, %v1811
  %v2712 = vsel %vm2688, %v2647, %v1813
  %v2713 = vsel %vm2688, %v2648, %v1815
  %v2714 = vsel %vm2688, %v2649, %v1817
  %v2715 = vsel %vm2688, %v2650, %v1819
  %v2716 = vsel %vm2688, %v2651, %v1821
  %v2717 = vsel %vm2688, %v2652, %v1823
  %v2718 = vsel %vm2688, %v2653, %v1825
  %v2719 = vsel %vm2688, %v2654, %v1827
  %v2720 = vsel %vm2688, %v2655, %v1829
  %v2721 = vsel %vm2688, %v2656, %v1831
  %v2722 = vsel %vm2688, %v2657, %v1833
  %v2723 = vsel %vm2688, %v2658, %v1835
  %v2724 = vsel %vm2688, %v2659, %v1837
  %v2725 = vsel %vm2688, %v2660, %v1839
  %v2726 = vsel %vm2688, %v2661, %v1841
  %v2727 = vsel %vm2688, %v2662, %v1843
  %v2728 = vsel %vm2688, %v2663, %v1845
  %v2729 = vsel %vm2688, %v2664, %v1847
  %v2730 = vsel %vm2688, %v2665, %v1849
  %v2731 = vsel %vm2688, %v2666, %v1851
  %v2732 = vsel %vm2688, %v2667, %v1853
  %v2733 = vsel %vm2688, %v2668, %v1855
  %v2734 = vsel %vm2688, %v2669, %v1857
  %v2735 = vsel %vm2688, %v2670, %v1859
  %v2736 = vsel %vm2688, %v2671, %v1861
  %v2737 = vsel %vm2688, %v2672, %v1863
  %v2738 = vsel %vm2688, %v2673, %v1865
  %v2739 = vsel %vm2688, %v2674, %v1867
  %v2740 = vsel %vm2688, %v2675, %v1869
  %v2741 = vsel %vm2688, %v2676, %v1871
  %v2742 = vsel %vm2688, %v2677, %v1873
  %v2743 = vsel %vm2688, %v2678, %v1875
  %v2744 = vsel %vm2688, %v2679, %v1877
  %v2745 = vsel %vm2688, %v2680, %v1879
  %v2746 = vsel %vm2688, %v2681, %v1881
  %v2747 = vsel %vm2688, %v2682, %v1883
  %v2748 = vsel %vm2688, %v2683, %v1885
  %v2749 = vsel %vm2688, %v2684, %v1887
  %v2750 = vsel %vm2688, %v2685, %v1889
  %v2751 = vsel %vm2688, %v2686, %v1891
  %v2752 = vsel %vm2688, %v2687, %v1893
  %vm2753 = vcmask 228352
  %v2754 = vsel %vm2753, %v2689, %v1971
  %v2755 = vsel %vm2753, %v2690, %v1973
  %v2756 = vsel %vm2753, %v2691, %v1975
  %v2757 = vsel %vm2753, %v2692, %v1977
  %v2758 = vsel %vm2753, %v2693, %v1979
  %v2759 = vsel %vm2753, %v2694, %v1981
  %v2760 = vsel %vm2753, %v2695, %v1983
  %v2761 = vsel %vm2753, %v2696, %v1985
  %v2762 = vsel %vm2753, %v2697, %v1987
  %v2763 = vsel %vm2753, %v2698, %v1989
  %v2764 = vsel %vm2753, %v2699, %v1991
  %v2765 = vsel %vm2753, %v2700, %v1993
  %v2766 = vsel %vm2753, %v2701, %v1995
  %v2767 = vsel %vm2753, %v2702, %v1997
  %v2768 = vsel %vm2753, %v2703, %v1999
  %v2769 = vsel %vm2753, %v2704, %v2001
  %v2770 = vsel %vm2753, %v2705, %v2003
  %v2771 = vsel %vm2753, %v2706, %v2005
  %v2772 = vsel %vm2753, %v2707, %v2007
  %v2773 = vsel %vm2753, %v2708, %v2009
  %v2774 = vsel %vm2753, %v2709, %v2011
  %v2775 = vsel %vm2753, %v2710, %v2013
  %v2776 = vsel %vm2753, %v2711, %v2015
  %v2777 = vsel %vm2753, %v2712, %v2017
  %v2778 = vsel %vm2753, %v2713, %v2019
  %v2779 = vsel %vm2753, %v2714, %v2021
  %v2780 = vsel %vm2753, %v2715, %v2023
  %v2781 = vsel %vm2753, %v2716, %v2025
  %v2782 = vsel %vm2753, %v2717, %v2027
  %v2783 = vsel %vm2753, %v2718, %v2029
  %v2784 = vsel %vm2753, %v2719, %v2031
  %v2785 = vsel %vm2753, %v2720, %v2033
  %v2786 = vsel %vm2753, %v2721, %v2035
  %v2787 = vsel %vm2753, %v2722, %v2037
  %v2788 = vsel %vm2753, %v2723, %v2039
  %v2789 = vsel %vm2753, %v2724, %v2041
  %v2790 = vsel %vm2753, %v2725, %v2043
  %v2791 = vsel %vm2753, %v2726, %v2045
  %v2792 = vsel %vm2753, %v2727, %v2047
  %v2793 = vsel %vm2753, %v2728, %v2049
  %v2794 = vsel %vm2753, %v2729, %v2051
  %v2795 = vsel %vm2753, %v2730, %v2053
  %v2796 = vsel %vm2753, %v2731, %v2055
  %v2797 = vsel %vm2753, %v2732, %v2057
  %v2798 = vsel %vm2753, %v2733, %v2059
  %v2799 = vsel %vm2753, %v2734, %v2061
  %v2800 = vsel %vm2753, %v2735, %v2063
  %v2801 = vsel %vm2753, %v2736, %v2065
  %v2802 = vsel %vm2753, %v2737, %v2067
  %v2803 = vsel %vm2753, %v2738, %v2069
  %v2804 = vsel %vm2753, %v2739, %v2071
  %v2805 = vsel %vm2753, %v2740, %v2073
  %v2806 = vsel %vm2753, %v2741, %v2075
  %v2807 = vsel %vm2753, %v2742, %v2077
  %v2808 = vsel %vm2753, %v2743, %v2079
  %v2809 = vsel %vm2753, %v2744, %v2081
  %v2810 = vsel %vm2753, %v2745, %v2083
  %v2811 = vsel %vm2753, %v2746, %v2085
  %v2812 = vsel %vm2753, %v2747, %v2087
  %v2813 = vsel %vm2753, %v2748, %v2089
  %v2814 = vsel %vm2753, %v2749, %v2091
  %v2815 = vsel %vm2753, %v2750, %v2093
  %v2816 = vsel %vm2753, %v2751, %v2095
  %v2817 = vsel %vm2753, %v2752, %v2097
  %vm2818 = vcmask 261120
  %v2819 = vsel %vm2818, %v2754, %v2173
  %v2820 = vsel %vm2818, %v2755, %v2175
  %v2821 = vsel %vm2818, %v2756, %v2177
  %v2822 = vsel %vm2818, %v2757, %v2179
  %v2823 = vsel %vm2818, %v2758, %v2181
  %v2824 = vsel %vm2818, %v2759, %v2183
  %v2825 = vsel %vm2818, %v2760, %v2185
  %v2826 = vsel %vm2818, %v2761, %v2187
  %v2827 = vsel %vm2818, %v2762, %v2189
  %v2828 = vsel %vm2818, %v2763, %v2191
  %v2829 = vsel %vm2818, %v2764, %v2193
  %v2830 = vsel %vm2818, %v2765, %v2195
  %v2831 = vsel %vm2818, %v2766, %v2197
  %v2832 = vsel %vm2818, %v2767, %v2199
  %v2833 = vsel %vm2818, %v2768, %v2201
  %v2834 = vsel %vm2818, %v2769, %v2203
  %v2835 = vsel %vm2818, %v2770, %v2205
  %v2836 = vsel %vm2818, %v2771, %v2207
  %v2837 = vsel %vm2818, %v2772, %v2209
  %v2838 = vsel %vm2818, %v2773, %v2211
  %v2839 = vsel %vm2818, %v2774, %v2213
  %v2840 = vsel %vm2818, %v2775, %v2215
  %v2841 = vsel %vm2818, %v2776, %v2217
  %v2842 = vsel %vm2818, %v2777, %v2219
  %v2843 = vsel %vm2818, %v2778, %v2221
  %v2844 = vsel %vm2818, %v2779, %v2223
  %v2845 = vsel %vm2818, %v2780, %v2225
  %v2846 = vsel %vm2818, %v2781, %v2227
  %v2847 = vsel %vm2818, %v2782, %v2229
  %v2848 = vsel %vm2818, %v2783, %v2231
  %v2849 = vsel %vm2818, %v2784, %v2233
  %v2850 = vsel %vm2818, %v2785, %v2235
  %v2851 = vsel %vm2818, %v2786, %v2237
  %v2852 = vsel %vm2818, %v2787, %v2239
  %v2853 = vsel %vm2818, %v2788, %v2241
  %v2854 = vsel %vm2818, %v2789, %v2243
  %v2855 = vsel %vm2818, %v2790, %v2245
  %v2856 = vsel %vm2818, %v2791, %v2247
  %v2857 = vsel %vm2818, %v2792, %v2249
  %v2858 = vsel %vm2818, %v2793, %v2251
  %v2859 = vsel %vm2818, %v2794, %v2253
  %v2860 = vsel %vm2818, %v2795, %v2255
  %v2861 = vsel %vm2818, %v2796, %v2257
  %v2862 = vsel %vm2818, %v2797, %v2259
  %v2863 = vsel %vm2818, %v2798, %v2261
  %v2864 = vsel %vm2818, %v2799, %v2263
  %v2865 = vsel %vm2818, %v2800, %v2265
  %v2866 = vsel %vm2818, %v2801, %v2267
  %v2867 = vsel %vm2818, %v2802, %v2269
  %v2868 = vsel %vm2818, %v2803, %v2271
  %v2869 = vsel %vm2818, %v2804, %v2273
  %v2870 = vsel %vm2818, %v2805, %v2275
  %v2871 = vsel %vm2818, %v2806, %v2277
  %v2872 = vsel %vm2818, %v2807, %v2279
  %v2873 = vsel %vm2818, %v2808, %v2281
  %v2874 = vsel %vm2818, %v2809, %v2283
  %v2875 = vsel %vm2818, %v2810, %v2285
  %v2876 = vsel %vm2818, %v2811, %v2287
  %v2877 = vsel %vm2818, %v2812, %v2289
  %v2878 = vsel %vm2818, %v2813, %v2291
  %v2879 = vsel %vm2818, %v2814, %v2293
  %v2880 = vsel %vm2818, %v2815, %v2295
  %v2881 = vsel %vm2818, %v2816, %v2297
  %v2882 = vsel %vm2818, %v2817, %v2299
  %vm2883 = vcmask 293888
  %v2885 = vsel %vm2883, %v2819, 0
  %v2888 = vsel %vm2883, %v2820, 0
  %v2891 = vsel %vm2883, %v2821, 0
  %v2894 = vsel %vm2883, %v2822, 0
  %v2897 = vsel %vm2883, %v2823, 0
  %v2900 = vsel %vm2883, %v2824, 0
  %v2903 = vsel %vm2883, %v2825, 0
  %v2906 = vsel %vm2883, %v2826, 0
  %v2909 = vsel %vm2883, %v2827, 0
  %v2912 = vsel %vm2883, %v2828, 0
  %v2915 = vsel %vm2883, %v2829, 0
  %v2918 = vsel %vm2883, %v2830, 0
  %v2921 = vsel %vm2883, %v2831, 0
  %v2924 = vsel %vm2883, %v2832, 0
  %v2927 = vsel %vm2883, %v2833, 0
  %v2930 = vsel %vm2883, %v2834, 0
  %v2933 = vsel %vm2883, %v2835, 0
  %v2936 = vsel %vm2883, %v2836, 0
  %v2939 = vsel %vm2883, %v2837, 0
  %v2942 = vsel %vm2883, %v2838, 0
  %v2945 = vsel %vm2883, %v2839, 0
  %v2948 = vsel %vm2883, %v2840, 0
  %v2951 = vsel %vm2883, %v2841, 0
  %v2954 = vsel %vm2883, %v2842, 0
  %v2957 = vsel %vm2883, %v2843, 0
  %v2960 = vsel %vm2883, %v2844, 0
  %v2963 = vsel %vm2883, %v2845, 0
  %v2966 = vsel %vm2883, %v2846, 0
  %v2969 = vsel %vm2883, %v2847, 0
  %v2972 = vsel %vm2883, %v2848, 0
  %v2975 = vsel %vm2883, %v2849, 0
  %v2978 = vsel %vm2883, %v2850, 0
  %v2981 = vsel %vm2883, %v2851, 0
  %v2984 = vsel %vm2883, %v2852, 0
  %v2987 = vsel %vm2883, %v2853, 0
  %v2990 = vsel %vm2883, %v2854, 0
  %v2993 = vsel %vm2883, %v2855, 0
  %v2996 = vsel %vm2883, %v2856, 0
  %v2999 = vsel %vm2883, %v2857, 0
  %v3002 = vsel %vm2883, %v2858, 0
  %v3005 = vsel %vm2883, %v2859, 0
  %v3008 = vsel %vm2883, %v2860, 0
  %v3011 = vsel %vm2883, %v2861, 0
  %v3014 = vsel %vm2883, %v2862, 0
  %v3017 = vsel %vm2883, %v2863, 0
  %v3020 = vsel %vm2883, %v2864, 0
  %v3023 = vsel %vm2883, %v2865, 0
  %v3026 = vsel %vm2883, %v2866, 0
  %v3029 = vsel %vm2883, %v2867, 0
  %v3032 = vsel %vm2883, %v2868, 0
  %v3035 = vsel %vm2883, %v2869, 0
  %v3038 = vsel %vm2883, %v2870, 0
  %v3041 = vsel %vm2883, %v2871, 0
  %v3044 = vsel %vm2883, %v2872, 0
  %v3047 = vsel %vm2883, %v2873, 0
  %v3050 = vsel %vm2883, %v2874, 0
  %v3053 = vsel %vm2883, %v2875, 0
  %v3056 = vsel %vm2883, %v2876, 0
  %v3059 = vsel %vm2883, %v2877, 0
  %v3062 = vsel %vm2883, %v2878, 0
  %v3065 = vsel %vm2883, %v2879, 0
  %v3068 = vsel %vm2883, %v2880, 0
  %v3071 = vsel %vm2883, %v2881, 0
  %v3074 = vsel %vm2883, %v2882, 0
  %vm3076 = vcmask 1043456
  %v3078 = vsel %vm3076, %v247, 0
  %3080 = vmatprep.subr.mxu0 0.0
  %3081 = vmatpush1.msra.mxu0 %v243
  %3082 = vmatprep.subr.mxu0 0.0
  %3083 = vmatpush1.msra.mxu0 %v244
  %3084 = vmatprep.subr.mxu0 0.0
  %3085 = vmatpush1.msra.mxu0 %v245
  %3086 = vmatprep.subr.mxu0 0.0
  %3087 = vmatpush1.msra.mxu0 %v246
  %3088 = vmatprep.subr.mxu0 0.0
  %3089 = vmatpush1.msra.mxu0 %v3078
  %3090 = vmatprep.subr.mxu0 0.0
  %3091 = vmatpush1.msra.mxu0 0.0
  %3092 = vmatprep.subr.mxu0 0.0
  %3093 = vmatpush1.msra.mxu0 0.0
  %3094 = vmatprep.subr.mxu0 0.0
  %3095 = vmatpush1.msra.mxu0 0.0
  %3096 = vmatprep.subr.mxu0 0.0
  %3097 = vmatpush1.msra.mxu0 0.0
  %3098 = vmatprep.subr.mxu0 0.0
  %3099 = vmatpush1.msra.mxu0 0.0
  %3100 = vmatprep.subr.mxu0 0.0
  %3101 = vmatpush1.msra.mxu0 0.0
  %3102 = vmatprep.subr.mxu0 0.0
  %3103 = vmatpush1.msra.mxu0 0.0
  %3104 = vmatprep.subr.mxu0 0.0
  %3105 = vmatpush1.msra.mxu0 0.0
  %3106 = vmatprep.subr.mxu0 0.0
  %3107 = vmatpush1.msra.mxu0 0.0
  %3108 = vmatprep.subr.mxu0 0.0
  %3109 = vmatpush1.msra.mxu0 0.0
  %3110 = vmatprep.subr.mxu0 0.0
  %3111 = vmatpush1.msra.mxu0 0.0
  %3112 = vmatprep.subr.mxu0 0.0
  %3113 = vmatpush1.msra.mxu0 0.0
  %3114 = vmatprep.subr.mxu0 0.0
  %3115 = vmatpush1.msra.mxu0 0.0
  %3116 = vmatprep.subr.mxu0 0.0
  %3117 = vmatpush1.msra.mxu0 0.0
  %3118 = vmatprep.subr.mxu0 0.0
  %3119 = vmatpush1.msra.mxu0 0.0
  %3120 = vmatprep.subr.mxu0 0.0
  %3121 = vmatpush1.msra.mxu0 0.0
  %3122 = vmatprep.subr.mxu0 0.0
  %3123 = vmatpush1.msra.mxu0 0.0
  %3124 = vmatprep.subr.mxu0 0.0
  %3125 = vmatpush1.msra.mxu0 0.0
  %3126 = vmatprep.subr.mxu0 0.0
  %3127 = vmatpush1.msra.mxu0 0.0
  %3128 = vmatprep.subr.mxu0 0.0
  %3129 = vmatpush1.msra.mxu0 0.0
  %3130 = vmatprep.subr.mxu0 0.0
  %3131 = vmatpush1.msra.mxu0 0.0
  %3132 = vmatprep.subr.mxu0 0.0
  %3133 = vmatpush1.msra.mxu0 0.0
  %3134 = vmatprep.subr.mxu0 0.0
  %3135 = vmatpush1.msra.mxu0 0.0
  %3136 = vmatprep.subr.mxu0 0.0
  %3137 = vmatpush1.msra.mxu0 0.0
  %3138 = vmatprep.subr.mxu0 0.0
  %3139 = vmatpush1.msra.mxu0 0.0
  %3140 = vmatprep.subr.mxu0 0.0
  %3141 = vmatpush1.msra.mxu0 0.0
  %3142 = vmatprep.subr.mxu0 0.0
  %3143 = vmatpush1.msra.mxu0 0.0
  %3144 = vmatprep.mubr.f32.mxu0 0.0
  %3145 = vmatmul.mubr.f32.gmra.mrb[0].mxu0 %v2885
  %v3146 = vpop.f32.mrb[0].mxu0
  %v3147 = vadd.f32 0.0, %v3146
  %v3148 = vpop.f32.mrb[0].mxu0
  %3149 = vmatprep.mubr.f32.mxu0 0.0
  %3150 = vmatmul.mubr.f32.gmra.mrb[0].mxu0 %v2888
  %v3151 = vpop.f32.mrb[0].mxu0
  %v3152 = vadd.f32 0.0, %v3151
  %v3153 = vpop.f32.mrb[0].mxu0
  %3154 = vmatprep.mubr.f32.mxu0 0.0
  %3155 = vmatmul.mubr.f32.gmra.mrb[0].mxu0 %v2891
  %v3156 = vpop.f32.mrb[0].mxu0
  %v3157 = vadd.f32 0.0, %v3156
  %v3158 = vpop.f32.mrb[0].mxu0
  %3159 = vmatprep.mubr.f32.mxu0 0.0
  %3160 = vmatmul.mubr.f32.gmra.mrb[0].mxu0 %v2894
  %v3161 = vpop.f32.mrb[0].mxu0
  %v3162 = vadd.f32 0.0, %v3161
  %v3163 = vpop.f32.mrb[0].mxu0
  %3164 = vmatprep.mubr.f32.mxu0 0.0
  %3165 = vmatmul.mubr.f32.gmra.mrb[0].mxu0 %v2897
  %v3166 = vpop.f32.mrb[0].mxu0
  %v3167 = vadd.f32 0.0, %v3166
  %v3168 = vpop.f32.mrb[0].mxu0
  %3169 = vmatprep.mubr.f32.mxu0 0.0
  %3170 = vmatmul.mubr.f32.gmra.mrb[0].mxu0 %v2900
  %v3171 = vpop.f32.mrb[0].mxu0
  %v3172 = vadd.f32 0.0, %v3171
  %v3173 = vpop.f32.mrb[0].mxu0
  %3174 = vmatprep.mubr.f32.mxu0 0.0
  %3175 = vmatmul.mubr.f32.gmra.mrb[0].mxu0 %v2903
  %v3176 = vpop.f32.mrb[0].mxu0
  %v3177 = vadd.f32 0.0, %v3176
  %v3178 = vpop.f32.mrb[0].mxu0
  %3179 = vmatprep.mubr.f32.mxu0 0.0
  %3180 = vmatmul.mubr.f32.gmra.mrb[0].mxu0 %v2906
  %v3181 = vpop.f32.mrb[0].mxu0
  %v3182 = vadd.f32 0.0, %v3181
  %v3183 = vpop.f32.mrb[0].mxu0
  %3184 = vmatprep.mubr.f32.mxu0 0.0
  %3185 = vmatmul.mubr.f32.gmra.mrb[0].mxu0 %v2909
  %v3186 = vpop.f32.mrb[0].mxu0
  %v3187 = vadd.f32 0.0, %v3186
  %v3188 = vpop.f32.mrb[0].mxu0
  %3189 = vmatprep.mubr.f32.mxu0 0.0
  %3190 = vmatmul.mubr.f32.gmra.mrb[0].mxu0 %v2912
  %v3191 = vpop.f32.mrb[0].mxu0
  %v3192 = vadd.f32 0.0, %v3191
  %v3193 = vpop.f32.mrb[0].mxu0
  %3194 = vmatprep.mubr.f32.mxu0 0.0
  %3195 = vmatmul.mubr.f32.gmra.mrb[0].mxu0 %v2915
  %v3196 = vpop.f32.mrb[0].mxu0
  %v3197 = vadd.f32 0.0, %v3196
  %v3198 = vpop.f32.mrb[0].mxu0
  %3199 = vmatprep.mubr.f32.mxu0 0.0
  %3200 = vmatmul.mubr.f32.gmra.mrb[0].mxu0 %v2918
  %v3201 = vpop.f32.mrb[0].mxu0
  %v3202 = vadd.f32 0.0, %v3201
  %v3203 = vpop.f32.mrb[0].mxu0
  %3204 = vmatprep.mubr.f32.mxu0 0.0
  %3205 = vmatmul.mubr.f32.gmra.mrb[0].mxu0 %v2921
  %v3206 = vpop.f32.mrb[0].mxu0
  %v3207 = vadd.f32 0.0, %v3206
  %v3208 = vpop.f32.mrb[0].mxu0
  %3209 = vmatprep.mubr.f32.mxu0 0.0
  %3210 = vmatmul.mubr.f32.gmra.mrb[0].mxu0 %v2924
  %v3211 = vpop.f32.mrb[0].mxu0
  %v3212 = vadd.f32 0.0, %v3211
  %v3213 = vpop.f32.mrb[0].mxu0
  %3214 = vmatprep.mubr.f32.mxu0 0.0
  %3215 = vmatmul.mubr.f32.gmra.mrb[0].mxu0 %v2927
  %v3216 = vpop.f32.mrb[0].mxu0
  %v3217 = vadd.f32 0.0, %v3216
  %v3218 = vpop.f32.mrb[0].mxu0
  %3219 = vmatprep.mubr.f32.mxu0 0.0
  %3220 = vmatmul.mubr.f32.gmra.mrb[0].mxu0 %v2930
  %v3221 = vpop.f32.mrb[0].mxu0
  %v3222 = vadd.f32 0.0, %v3221
  %v3223 = vpop.f32.mrb[0].mxu0
  %3224 = vmatprep.mubr.f32.mxu0 0.0
  %3225 = vmatmul.mubr.f32.gmra.mrb[0].mxu0 %v2933
  %v3226 = vpop.f32.mrb[0].mxu0
  %v3227 = vadd.f32 0.0, %v3226
  %v3228 = vpop.f32.mrb[0].mxu0
  %3229 = vmatprep.mubr.f32.mxu0 0.0
  %3230 = vmatmul.mubr.f32.gmra.mrb[0].mxu0 %v2936
  %v3231 = vpop.f32.mrb[0].mxu0
  %v3232 = vadd.f32 0.0, %v3231
  %v3233 = vpop.f32.mrb[0].mxu0
  %3234 = vmatprep.mubr.f32.mxu0 0.0
  %3235 = vmatmul.mubr.f32.gmra.mrb[0].mxu0 %v2939
  %v3236 = vpop.f32.mrb[0].mxu0
  %v3237 = vadd.f32 0.0, %v3236
  %v3238 = vpop.f32.mrb[0].mxu0
  %3239 = vmatprep.mubr.f32.mxu0 0.0
  %3240 = vmatmul.mubr.f32.gmra.mrb[0].mxu0 %v2942
  %v3241 = vpop.f32.mrb[0].mxu0
  %v3242 = vadd.f32 0.0, %v3241
  %v3243 = vpop.f32.mrb[0].mxu0
  %3244 = vmatprep.mubr.f32.mxu0 0.0
  %3245 = vmatmul.mubr.f32.gmra.mrb[0].mxu0 %v2945
  %v3246 = vpop.f32.mrb[0].mxu0
  %v3247 = vadd.f32 0.0, %v3246
  %v3248 = vpop.f32.mrb[0].mxu0
  %3249 = vmatprep.mubr.f32.mxu0 0.0
  %3250 = vmatmul.mubr.f32.gmra.mrb[0].mxu0 %v2948
  %v3251 = vpop.f32.mrb[0].mxu0
  %v3252 = vadd.f32 0.0, %v3251
  %v3253 = vpop.f32.mrb[0].mxu0
  %3254 = vmatprep.mubr.f32.mxu0 0.0
  %3255 = vmatmul.mubr.f32.gmra.mrb[0].mxu0 %v2951
  %v3256 = vpop.f32.mrb[0].mxu0
  %v3257 = vadd.f32 0.0, %v3256
  %v3258 = vpop.f32.mrb[0].mxu0
  %3259 = vmatprep.mubr.f32.mxu0 0.0
  %3260 = vmatmul.mubr.f32.gmra.mrb[0].mxu0 %v2954
  %v3261 = vpop.f32.mrb[0].mxu0
  %v3262 = vadd.f32 0.0, %v3261
  %v3263 = vpop.f32.mrb[0].mxu0
  %3264 = vmatprep.mubr.f32.mxu0 0.0
  %3265 = vmatmul.mubr.f32.gmra.mrb[0].mxu0 %v2957
  %v3266 = vpop.f32.mrb[0].mxu0
  %v3267 = vadd.f32 0.0, %v3266
  %v3268 = vpop.f32.mrb[0].mxu0
  %3269 = vmatprep.mubr.f32.mxu0 0.0
  %3270 = vmatmul.mubr.f32.gmra.mrb[0].mxu0 %v2960
  %v3271 = vpop.f32.mrb[0].mxu0
  %v3272 = vadd.f32 0.0, %v3271
  %v3273 = vpop.f32.mrb[0].mxu0
  %3274 = vmatprep.mubr.f32.mxu0 0.0
  %3275 = vmatmul.mubr.f32.gmra.mrb[0].mxu0 %v2963
  %v3276 = vpop.f32.mrb[0].mxu0
  %v3277 = vadd.f32 0.0, %v3276
  %v3278 = vpop.f32.mrb[0].mxu0
  %3279 = vmatprep.mubr.f32.mxu0 0.0
  %3280 = vmatmul.mubr.f32.gmra.mrb[0].mxu0 %v2966
  %v3281 = vpop.f32.mrb[0].mxu0
  %v3282 = vadd.f32 0.0, %v3281
  %v3283 = vpop.f32.mrb[0].mxu0
  %3284 = vmatprep.mubr.f32.mxu0 0.0
  %3285 = vmatmul.mubr.f32.gmra.mrb[0].mxu0 %v2969
  %v3286 = vpop.f32.mrb[0].mxu0
  %v3287 = vadd.f32 0.0, %v3286
  %v3288 = vpop.f32.mrb[0].mxu0
  %3289 = vmatprep.mubr.f32.mxu0 0.0
  %3290 = vmatmul.mubr.f32.gmra.mrb[0].mxu0 %v2972
  %v3291 = vpop.f32.mrb[0].mxu0
  %v3292 = vadd.f32 0.0, %v3291
  %v3293 = vpop.f32.mrb[0].mxu0
  %3294 = vmatprep.mubr.f32.mxu0 0.0
  %3295 = vmatmul.mubr.f32.gmra.mrb[0].mxu0 %v2975
  %v3296 = vpop.f32.mrb[0].mxu0
  %v3297 = vadd.f32 0.0, %v3296
  %v3298 = vpop.f32.mrb[0].mxu0
  %3299 = vmatprep.mubr.f32.mxu0 0.0
  %3300 = vmatmul.mubr.f32.gmra.mrb[0].mxu0 %v2978
  %v3301 = vpop.f32.mrb[0].mxu0
  %v3302 = vadd.f32 0.0, %v3301
  %v3303 = vpop.f32.mrb[0].mxu0
  %3304 = vmatprep.mubr.f32.mxu0 0.0
  %3305 = vmatmul.mubr.f32.gmra.mrb[0].mxu0 %v2981
  %v3306 = vpop.f32.mrb[0].mxu0
  %v3307 = vadd.f32 0.0, %v3306
  %v3308 = vpop.f32.mrb[0].mxu0
  %3309 = vmatprep.mubr.f32.mxu0 0.0
  %3310 = vmatmul.mubr.f32.gmra.mrb[0].mxu0 %v2984
  %v3311 = vpop.f32.mrb[0].mxu0
  %v3312 = vadd.f32 0.0, %v3311
  %v3313 = vpop.f32.mrb[0].mxu0
  %3314 = vmatprep.mubr.f32.mxu0 0.0
  %3315 = vmatmul.mubr.f32.gmra.mrb[0].mxu0 %v2987
  %v3316 = vpop.f32.mrb[0].mxu0
  %v3317 = vadd.f32 0.0, %v3316
  %v3318 = vpop.f32.mrb[0].mxu0
  %3319 = vmatprep.mubr.f32.mxu0 0.0
  %3320 = vmatmul.mubr.f32.gmra.mrb[0].mxu0 %v2990
  %v3321 = vpop.f32.mrb[0].mxu0
  %v3322 = vadd.f32 0.0, %v3321
  %v3323 = vpop.f32.mrb[0].mxu0
  %3324 = vmatprep.mubr.f32.mxu0 0.0
  %3325 = vmatmul.mubr.f32.gmra.mrb[0].mxu0 %v2993
  %v3326 = vpop.f32.mrb[0].mxu0
  %v3327 = vadd.f32 0.0, %v3326
  %v3328 = vpop.f32.mrb[0].mxu0
  %3329 = vmatprep.mubr.f32.mxu0 0.0
  %3330 = vmatmul.mubr.f32.gmra.mrb[0].mxu0 %v2996
  %v3331 = vpop.f32.mrb[0].mxu0
  %v3332 = vadd.f32 0.0, %v3331
  %v3333 = vpop.f32.mrb[0].mxu0
  %3334 = vmatprep.mubr.f32.mxu0 0.0
  %3335 = vmatmul.mubr.f32.gmra.mrb[0].mxu0 %v2999
  %v3336 = vpop.f32.mrb[0].mxu0
  %v3337 = vadd.f32 0.0, %v3336
  %v3338 = vpop.f32.mrb[0].mxu0
  %3339 = vmatprep.mubr.f32.mxu0 0.0
  %3340 = vmatmul.mubr.f32.gmra.mrb[0].mxu0 %v3002
  %v3341 = vpop.f32.mrb[0].mxu0
  %v3342 = vadd.f32 0.0, %v3341
  %v3343 = vpop.f32.mrb[0].mxu0
  %3344 = vmatprep.mubr.f32.mxu0 0.0
  %3345 = vmatmul.mubr.f32.gmra.mrb[0].mxu0 %v3005
  %v3346 = vpop.f32.mrb[0].mxu0
  %v3347 = vadd.f32 0.0, %v3346
  %v3348 = vpop.f32.mrb[0].mxu0
  %3349 = vmatprep.mubr.f32.mxu0 0.0
  %3350 = vmatmul.mubr.f32.gmra.mrb[0].mxu0 %v3008
  %v3351 = vpop.f32.mrb[0].mxu0
  %v3352 = vadd.f32 0.0, %v3351
  %v3353 = vpop.f32.mrb[0].mxu0
  %3354 = vmatprep.mubr.f32.mxu0 0.0
  %3355 = vmatmul.mubr.f32.gmra.mrb[0].mxu0 %v3011
  %v3356 = vpop.f32.mrb[0].mxu0
  %v3357 = vadd.f32 0.0, %v3356
  %v3358 = vpop.f32.mrb[0].mxu0
  %3359 = vmatprep.mubr.f32.mxu0 0.0
  %3360 = vmatmul.mubr.f32.gmra.mrb[0].mxu0 %v3014
  %v3361 = vpop.f32.mrb[0].mxu0
  %v3362 = vadd.f32 0.0, %v3361
  %v3363 = vpop.f32.mrb[0].mxu0
  %3364 = vmatprep.mubr.f32.mxu0 0.0
  %3365 = vmatmul.mubr.f32.gmra.mrb[0].mxu0 %v3017
  %v3366 = vpop.f32.mrb[0].mxu0
  %v3367 = vadd.f32 0.0, %v3366
  %v3368 = vpop.f32.mrb[0].mxu0
  %3369 = vmatprep.mubr.f32.mxu0 0.0
  %3370 = vmatmul.mubr.f32.gmra.mrb[0].mxu0 %v3020
  %v3371 = vpop.f32.mrb[0].mxu0
  %v3372 = vadd.f32 0.0, %v3371
  %v3373 = vpop.f32.mrb[0].mxu0
  %3374 = vmatprep.mubr.f32.mxu0 0.0
  %3375 = vmatmul.mubr.f32.gmra.mrb[0].mxu0 %v3023
  %v3376 = vpop.f32.mrb[0].mxu0
  %v3377 = vadd.f32 0.0, %v3376
  %v3378 = vpop.f32.mrb[0].mxu0
  %3379 = vmatprep.mubr.f32.mxu0 0.0
  %3380 = vmatmul.mubr.f32.gmra.mrb[0].mxu0 %v3026
  %v3381 = vpop.f32.mrb[0].mxu0
  %v3382 = vadd.f32 0.0, %v3381
  %v3383 = vpop.f32.mrb[0].mxu0
  %3384 = vmatprep.mubr.f32.mxu0 0.0
  %3385 = vmatmul.mubr.f32.gmra.mrb[0].mxu0 %v3029
  %v3386 = vpop.f32.mrb[0].mxu0
  %v3387 = vadd.f32 0.0, %v3386
  %v3388 = vpop.f32.mrb[0].mxu0
  %3389 = vmatprep.mubr.f32.mxu0 0.0
  %3390 = vmatmul.mubr.f32.gmra.mrb[0].mxu0 %v3032
  %v3391 = vpop.f32.mrb[0].mxu0
  %v3392 = vadd.f32 0.0, %v3391
  %v3393 = vpop.f32.mrb[0].mxu0
  %3394 = vmatprep.mubr.f32.mxu0 0.0
  %3395 = vmatmul.mubr.f32.gmra.mrb[0].mxu0 %v3035
  %v3396 = vpop.f32.mrb[0].mxu0
  %v3397 = vadd.f32 0.0, %v3396
  %v3398 = vpop.f32.mrb[0].mxu0
  %3399 = vmatprep.mubr.f32.mxu0 0.0
  %3400 = vmatmul.mubr.f32.gmra.mrb[0].mxu0 %v3038
  %v3401 = vpop.f32.mrb[0].mxu0
  %v3402 = vadd.f32 0.0, %v3401
  %v3403 = vpop.f32.mrb[0].mxu0
  %3404 = vmatprep.mubr.f32.mxu0 0.0
  %3405 = vmatmul.mubr.f32.gmra.mrb[0].mxu0 %v3041
  %v3406 = vpop.f32.mrb[0].mxu0
  %v3407 = vadd.f32 0.0, %v3406
  %v3408 = vpop.f32.mrb[0].mxu0
  %3409 = vmatprep.mubr.f32.mxu0 0.0
  %3410 = vmatmul.mubr.f32.gmra.mrb[0].mxu0 %v3044
  %v3411 = vpop.f32.mrb[0].mxu0
  %v3412 = vadd.f32 0.0, %v3411
  %v3413 = vpop.f32.mrb[0].mxu0
  %3414 = vmatprep.mubr.f32.mxu0 0.0
  %3415 = vmatmul.mubr.f32.gmra.mrb[0].mxu0 %v3047
  %v3416 = vpop.f32.mrb[0].mxu0
  %v3417 = vadd.f32 0.0, %v3416
  %v3418 = vpop.f32.mrb[0].mxu0
  %3419 = vmatprep.mubr.f32.mxu0 0.0
  %3420 = vmatmul.mubr.f32.gmra.mrb[0].mxu0 %v3050
  %v3421 = vpop.f32.mrb[0].mxu0
  %v3422 = vadd.f32 0.0, %v3421
  %v3423 = vpop.f32.mrb[0].mxu0
  %3424 = vmatprep.mubr.f32.mxu0 0.0
  %3425 = vmatmul.mubr.f32.gmra.mrb[0].mxu0 %v3053
  %v3426 = vpop.f32.mrb[0].mxu0
  %v3427 = vadd.f32 0.0, %v3426
  %v3428 = vpop.f32.mrb[0].mxu0
  %3429 = vmatprep.mubr.f32.mxu0 0.0
  %3430 = vmatmul.mubr.f32.gmra.mrb[0].mxu0 %v3056
  %v3431 = vpop.f32.mrb[0].mxu0
  %v3432 = vadd.f32 0.0, %v3431
  %v3433 = vpop.f32.mrb[0].mxu0
  %3434 = vmatprep.mubr.f32.mxu0 0.0
  %3435 = vmatmul.mubr.f32.gmra.mrb[0].mxu0 %v3059
  %v3436 = vpop.f32.mrb[0].mxu0
  %v3437 = vadd.f32 0.0, %v3436
  %v3438 = vpop.f32.mrb[0].mxu0
  %3439 = vmatprep.mubr.f32.mxu0 0.0
  %3440 = vmatmul.mubr.f32.gmra.mrb[0].mxu0 %v3062
  %v3441 = vpop.f32.mrb[0].mxu0
  %v3442 = vadd.f32 0.0, %v3441
  %v3443 = vpop.f32.mrb[0].mxu0
  %3444 = vmatprep.mubr.f32.mxu0 0.0
  %3445 = vmatmul.mubr.f32.gmra.mrb[0].mxu0 %v3065
  %v3446 = vpop.f32.mrb[0].mxu0
  %v3447 = vadd.f32 0.0, %v3446
  %v3448 = vpop.f32.mrb[0].mxu0
  %3449 = vmatprep.mubr.f32.mxu0 0.0
  %3450 = vmatmul.mubr.f32.gmra.mrb[0].mxu0 %v3068
  %v3451 = vpop.f32.mrb[0].mxu0
  %v3452 = vadd.f32 0.0, %v3451
  %v3453 = vpop.f32.mrb[0].mxu0
  %3454 = vmatprep.mubr.f32.mxu0 0.0
  %3455 = vmatmul.mubr.f32.gmra.mrb[0].mxu0 %v3071
  %v3456 = vpop.f32.mrb[0].mxu0
  %v3457 = vadd.f32 0.0, %v3456
  %v3458 = vpop.f32.mrb[0].mxu0
  %3459 = vmatprep.mubr.f32.mxu0 0.0
  %3460 = vmatmul.mubr.f32.gmra.mrb[0].mxu0 %v3074
  %v3461 = vpop.f32.mrb[0].mxu0
  %v3462 = vadd.f32 0.0, %v3461
  %v3463 = vpop.f32.mrb[0].mxu0
  %3464 = vdwg.mxu0
  %v3465 = vsel %vm2428, %v3147, 0.0
  %v3466 = vsel %vm2428, %v3152, 0.0
  %v3467 = vadd.f32 %v3465, %v3466
  %v3468 = vsel %vm2428, %v3157, 0.0
  %v3469 = vadd.f32 %v3467, %v3468
  %v3470 = vsel %vm2428, %v3162, 0.0
  %v3471 = vadd.f32 %v3469, %v3470
  %v3472 = vsel %vm2428, %v3167, 0.0
  %v3473 = vadd.f32 %v3471, %v3472
  %v3474 = vsel %vm2428, %v3172, 0.0
  %v3475 = vadd.f32 %v3473, %v3474
  %v3476 = vsel %vm2428, %v3177, 0.0
  %v3477 = vadd.f32 %v3475, %v3476
  %v3478 = vsel %vm2428, %v3182, 0.0
  %v3479 = vadd.f32 %v3477, %v3478
  %v3480 = vsel %vm2428, %v3187, 0.0
  %v3481 = vadd.f32 %v3479, %v3480
  %v3482 = vsel %vm2428, %v3192, 0.0
  %v3483 = vadd.f32 %v3481, %v3482
  %v3484 = vsel %vm2428, %v3197, 0.0
  %v3485 = vadd.f32 %v3483, %v3484
  %v3486 = vsel %vm2428, %v3202, 0.0
  %v3487 = vadd.f32 %v3485, %v3486
  %v3488 = vsel %vm2428, %v3207, 0.0
  %v3489 = vadd.f32 %v3487, %v3488
  %v3490 = vsel %vm2428, %v3212, 0.0
  %v3491 = vadd.f32 %v3489, %v3490
  %v3492 = vsel %vm2428, %v3217, 0.0
  %v3493 = vadd.f32 %v3491, %v3492
  %v3494 = vsel %vm2428, %v3222, 0.0
  %v3495 = vadd.f32 %v3493, %v3494
  %v3496 = vsel %vm2428, %v3227, 0.0
  %v3497 = vadd.f32 %v3495, %v3496
  %v3498 = vsel %vm2428, %v3232, 0.0
  %v3499 = vadd.f32 %v3497, %v3498
  %v3500 = vsel %vm2428, %v3237, 0.0
  %v3501 = vadd.f32 %v3499, %v3500
  %v3502 = vsel %vm2428, %v3242, 0.0
  %v3503 = vadd.f32 %v3501, %v3502
  %v3504 = vsel %vm2428, %v3247, 0.0
  %v3505 = vadd.f32 %v3503, %v3504
  %v3506 = vsel %vm2428, %v3252, 0.0
  %v3507 = vadd.f32 %v3505, %v3506
  %v3508 = vsel %vm2428, %v3257, 0.0
  %v3509 = vadd.f32 %v3507, %v3508
  %v3510 = vsel %vm2428, %v3262, 0.0
  %v3511 = vadd.f32 %v3509, %v3510
  %v3512 = vsel %vm2428, %v3267, 0.0
  %v3513 = vadd.f32 %v3511, %v3512
  %v3514 = vsel %vm2428, %v3272, 0.0
  %v3515 = vadd.f32 %v3513, %v3514
  %v3516 = vsel %vm2428, %v3277, 0.0
  %v3517 = vadd.f32 %v3515, %v3516
  %v3518 = vsel %vm2428, %v3282, 0.0
  %v3519 = vadd.f32 %v3517, %v3518
  %v3520 = vsel %vm2428, %v3287, 0.0
  %v3521 = vadd.f32 %v3519, %v3520
  %v3522 = vsel %vm2428, %v3292, 0.0
  %v3523 = vadd.f32 %v3521, %v3522
  %v3524 = vsel %vm2428, %v3297, 0.0
  %v3525 = vadd.f32 %v3523, %v3524
  %v3526 = vsel %vm2428, %v3302, 0.0
  %v3527 = vadd.f32 %v3525, %v3526
  %v3528 = vsel %vm2428, %v3307, 0.0
  %v3529 = vadd.f32 %v3527, %v3528
  %v3530 = vsel %vm2428, %v3312, 0.0
  %v3531 = vadd.f32 %v3529, %v3530
  %v3532 = vsel %vm2428, %v3317, 0.0
  %v3533 = vadd.f32 %v3531, %v3532
  %v3534 = vsel %vm2428, %v3322, 0.0
  %v3535 = vadd.f32 %v3533, %v3534
  %v3536 = vsel %vm2428, %v3327, 0.0
  %v3537 = vadd.f32 %v3535, %v3536
  %v3538 = vsel %vm2428, %v3332, 0.0
  %v3539 = vadd.f32 %v3537, %v3538
  %v3540 = vsel %vm2428, %v3337, 0.0
  %v3541 = vadd.f32 %v3539, %v3540
  %v3542 = vsel %vm2428, %v3342, 0.0
  %v3543 = vadd.f32 %v3541, %v3542
  %v3544 = vsel %vm2428, %v3347, 0.0
  %v3545 = vadd.f32 %v3543, %v3544
  %v3546 = vsel %vm2428, %v3352, 0.0
  %v3547 = vadd.f32 %v3545, %v3546
  %v3548 = vsel %vm2428, %v3357, 0.0
  %v3549 = vadd.f32 %v3547, %v3548
  %v3550 = vsel %vm2428, %v3362, 0.0
  %v3551 = vadd.f32 %v3549, %v3550
  %v3552 = vsel %vm2428, %v3367, 0.0
  %v3553 = vadd.f32 %v3551, %v3552
  %v3554 = vsel %vm2428, %v3372, 0.0
  %v3555 = vadd.f32 %v3553, %v3554
  %v3556 = vsel %vm2428, %v3377, 0.0
  %v3557 = vadd.f32 %v3555, %v3556
  %v3558 = vsel %vm2428, %v3382, 0.0
  %v3559 = vadd.f32 %v3557, %v3558
  %v3560 = vsel %vm2428, %v3387, 0.0
  %v3561 = vadd.f32 %v3559, %v3560
  %v3562 = vsel %vm2428, %v3392, 0.0
  %v3563 = vadd.f32 %v3561, %v3562
  %v3564 = vsel %vm2428, %v3397, 0.0
  %v3565 = vadd.f32 %v3563, %v3564
  %v3566 = vsel %vm2428, %v3402, 0.0
  %v3567 = vadd.f32 %v3565, %v3566
  %v3568 = vsel %vm2428, %v3407, 0.0
  %v3569 = vadd.f32 %v3567, %v3568
  %v3570 = vsel %vm2428, %v3412, 0.0
  %v3571 = vadd.f32 %v3569, %v3570
  %v3572 = vsel %vm2428, %v3417, 0.0
  %v3573 = vadd.f32 %v3571, %v3572
  %v3574 = vsel %vm2428, %v3422, 0.0
  %v3575 = vadd.f32 %v3573, %v3574
  %v3576 = vsel %vm2428, %v3427, 0.0
  %v3577 = vadd.f32 %v3575, %v3576
  %v3578 = vsel %vm2428, %v3432, 0.0
  %v3579 = vadd.f32 %v3577, %v3578
  %v3580 = vsel %vm2428, %v3437, 0.0
  %v3581 = vadd.f32 %v3579, %v3580
  %v3582 = vsel %vm2428, %v3442, 0.0
  %v3583 = vadd.f32 %v3581, %v3582
  %v3584 = vsel %vm2428, %v3447, 0.0
  %v3585 = vadd.f32 %v3583, %v3584
  %v3586 = vsel %vm2428, %v3452, 0.0
  %v3587 = vadd.f32 %v3585, %v3586
  %v3588 = vsel %vm2428, %v3457, 0.0
  %v3589 = vadd.f32 %v3587, %v3588
  %v3590 = vsel %vm2428, %v3462, 0.0
  %v3591 = vadd.f32 %v3589, %v3590
  %v3592 = vrot.slane %v3591, 4
  %v3593 = vadd.f32 %v3591, %v3592
  %v3594 = vrot.slane %v3593, 2
  %v3595 = vadd.f32 %v3593, %v3594
  %v3596 = vrot.slane %v3595, 1
  %v3597 = vadd.f32 %v3595, %v3596
  %v3598 = vmul.f32 %v3147, %v3147
  %v3599 = vmul.f32 %v3152, %v3152
  %v3600 = vmul.f32 %v3157, %v3157
  %v3601 = vmul.f32 %v3162, %v3162
  %v3602 = vmul.f32 %v3167, %v3167
  %v3603 = vmul.f32 %v3172, %v3172
  %v3604 = vmul.f32 %v3177, %v3177
  %v3605 = vmul.f32 %v3182, %v3182
  %v3606 = vmul.f32 %v3187, %v3187
  %v3607 = vmul.f32 %v3192, %v3192
  %v3608 = vmul.f32 %v3197, %v3197
  %v3609 = vmul.f32 %v3202, %v3202
  %v3610 = vmul.f32 %v3207, %v3207
  %v3611 = vmul.f32 %v3212, %v3212
  %v3612 = vmul.f32 %v3217, %v3217
  %v3613 = vmul.f32 %v3222, %v3222
  %v3614 = vmul.f32 %v3227, %v3227
  %v3615 = vmul.f32 %v3232, %v3232
  %v3616 = vmul.f32 %v3237, %v3237
  %v3617 = vmul.f32 %v3242, %v3242
  %v3618 = vmul.f32 %v3247, %v3247
  %v3619 = vmul.f32 %v3252, %v3252
  %v3620 = vmul.f32 %v3257, %v3257
  %v3621 = vmul.f32 %v3262, %v3262
  %v3622 = vmul.f32 %v3267, %v3267
  %v3623 = vmul.f32 %v3272, %v3272
  %v3624 = vmul.f32 %v3277, %v3277
  %v3625 = vmul.f32 %v3282, %v3282
  %v3626 = vmul.f32 %v3287, %v3287
  %v3627 = vmul.f32 %v3292, %v3292
  %v3628 = vmul.f32 %v3297, %v3297
  %v3629 = vmul.f32 %v3302, %v3302
  %v3630 = vmul.f32 %v3307, %v3307
  %v3631 = vmul.f32 %v3312, %v3312
  %v3632 = vmul.f32 %v3317, %v3317
  %v3633 = vmul.f32 %v3322, %v3322
  %v3634 = vmul.f32 %v3327, %v3327
  %v3635 = vmul.f32 %v3332, %v3332
  %v3636 = vmul.f32 %v3337, %v3337
  %v3637 = vmul.f32 %v3342, %v3342
  %v3638 = vmul.f32 %v3347, %v3347
  %v3639 = vmul.f32 %v3352, %v3352
  %v3640 = vmul.f32 %v3357, %v3357
  %v3641 = vmul.f32 %v3362, %v3362
  %v3642 = vmul.f32 %v3367, %v3367
  %v3643 = vmul.f32 %v3372, %v3372
  %v3644 = vmul.f32 %v3377, %v3377
  %v3645 = vmul.f32 %v3382, %v3382
  %v3646 = vmul.f32 %v3387, %v3387
  %v3647 = vmul.f32 %v3392, %v3392
  %v3648 = vmul.f32 %v3397, %v3397
  %v3649 = vmul.f32 %v3402, %v3402
  %v3650 = vmul.f32 %v3407, %v3407
  %v3651 = vmul.f32 %v3412, %v3412
  %v3652 = vmul.f32 %v3417, %v3417
  %v3653 = vmul.f32 %v3422, %v3422
  %v3654 = vmul.f32 %v3427, %v3427
  %v3655 = vmul.f32 %v3432, %v3432
  %v3656 = vmul.f32 %v3437, %v3437
  %v3657 = vmul.f32 %v3442, %v3442
  %v3658 = vmul.f32 %v3447, %v3447
  %v3659 = vmul.f32 %v3452, %v3452
  %v3660 = vmul.f32 %v3457, %v3457
  %v3661 = vmul.f32 %v3462, %v3462
  %v3662 = vsel %vm2428, %v3598, 0.0
  %v3663 = vsel %vm2428, %v3599, 0.0
  %v3664 = vadd.f32 %v3662, %v3663
  %v3665 = vsel %vm2428, %v3600, 0.0
  %v3666 = vadd.f32 %v3664, %v3665
  %v3667 = vsel %vm2428, %v3601, 0.0
  %v3668 = vadd.f32 %v3666, %v3667
  %v3669 = vsel %vm2428, %v3602, 0.0
  %v3670 = vadd.f32 %v3668, %v3669
  %v3671 = vsel %vm2428, %v3603, 0.0
  %v3672 = vadd.f32 %v3670, %v3671
  %v3673 = vsel %vm2428, %v3604, 0.0
  %v3674 = vadd.f32 %v3672, %v3673
  %v3675 = vsel %vm2428, %v3605, 0.0
  %v3676 = vadd.f32 %v3674, %v3675
  %v3677 = vsel %vm2428, %v3606, 0.0
  %v3678 = vadd.f32 %v3676, %v3677
  %v3679 = vsel %vm2428, %v3607, 0.0
  %v3680 = vadd.f32 %v3678, %v3679
  %v3681 = vsel %vm2428, %v3608, 0.0
  %v3682 = vadd.f32 %v3680, %v3681
  %v3683 = vsel %vm2428, %v3609, 0.0
  %v3684 = vadd.f32 %v3682, %v3683
  %v3685 = vsel %vm2428, %v3610, 0.0
  %v3686 = vadd.f32 %v3684, %v3685
  %v3687 = vsel %vm2428, %v3611, 0.0
  %v3688 = vadd.f32 %v3686, %v3687
  %v3689 = vsel %vm2428, %v3612, 0.0
  %v3690 = vadd.f32 %v3688, %v3689
  %v3691 = vsel %vm2428, %v3613, 0.0
  %v3692 = vadd.f32 %v3690, %v3691
  %v3693 = vsel %vm2428, %v3614, 0.0
  %v3694 = vadd.f32 %v3692, %v3693
  %v3695 = vsel %vm2428, %v3615, 0.0
  %v3696 = vadd.f32 %v3694, %v3695
  %v3697 = vsel %vm2428, %v3616, 0.0
  %v3698 = vadd.f32 %v3696, %v3697
  %v3699 = vsel %vm2428, %v3617, 0.0
  %v3700 = vadd.f32 %v3698, %v3699
  %v3701 = vsel %vm2428, %v3618, 0.0
  %v3702 = vadd.f32 %v3700, %v3701
  %v3703 = vsel %vm2428, %v3619, 0.0
  %v3704 = vadd.f32 %v3702, %v3703
  %v3705 = vsel %vm2428, %v3620, 0.0
  %v3706 = vadd.f32 %v3704, %v3705
  %v3707 = vsel %vm2428, %v3621, 0.0
  %v3708 = vadd.f32 %v3706, %v3707
  %v3709 = vsel %vm2428, %v3622, 0.0
  %v3710 = vadd.f32 %v3708, %v3709
  %v3711 = vsel %vm2428, %v3623, 0.0
  %v3712 = vadd.f32 %v3710, %v3711
  %v3713 = vsel %vm2428, %v3624, 0.0
  %v3714 = vadd.f32 %v3712, %v3713
  %v3715 = vsel %vm2428, %v3625, 0.0
  %v3716 = vadd.f32 %v3714, %v3715
  %v3717 = vsel %vm2428, %v3626, 0.0
  %v3718 = vadd.f32 %v3716, %v3717
  %v3719 = vsel %vm2428, %v3627, 0.0
  %v3720 = vadd.f32 %v3718, %v3719
  %v3721 = vsel %vm2428, %v3628, 0.0
  %v3722 = vadd.f32 %v3720, %v3721
  %v3723 = vsel %vm2428, %v3629, 0.0
  %v3724 = vadd.f32 %v3722, %v3723
  %v3725 = vsel %vm2428, %v3630, 0.0
  %v3726 = vadd.f32 %v3724, %v3725
  %v3727 = vsel %vm2428, %v3631, 0.0
  %v3728 = vadd.f32 %v3726, %v3727
  %v3729 = vsel %vm2428, %v3632, 0.0
  %v3730 = vadd.f32 %v3728, %v3729
  %v3731 = vsel %vm2428, %v3633, 0.0
  %v3732 = vadd.f32 %v3730, %v3731
  %v3733 = vsel %vm2428, %v3634, 0.0
  %v3734 = vadd.f32 %v3732, %v3733
  %v3735 = vsel %vm2428, %v3635, 0.0
  %v3736 = vadd.f32 %v3734, %v3735
  %v3737 = vsel %vm2428, %v3636, 0.0
  %v3738 = vadd.f32 %v3736, %v3737
  %v3739 = vsel %vm2428, %v3637, 0.0
  %v3740 = vadd.f32 %v3738, %v3739
  %v3741 = vsel %vm2428, %v3638, 0.0
  %v3742 = vadd.f32 %v3740, %v3741
  %v3743 = vsel %vm2428, %v3639, 0.0
  %v3744 = vadd.f32 %v3742, %v3743
  %v3745 = vsel %vm2428, %v3640, 0.0
  %v3746 = vadd.f32 %v3744, %v3745
  %v3747 = vsel %vm2428, %v3641, 0.0
  %v3748 = vadd.f32 %v3746, %v3747
  %v3749 = vsel %vm2428, %v3642, 0.0
  %v3750 = vadd.f32 %v3748, %v3749
  %v3751 = vsel %vm2428, %v3643, 0.0
  %v3752 = vadd.f32 %v3750, %v3751
  %v3753 = vsel %vm2428, %v3644, 0.0
  %v3754 = vadd.f32 %v3752, %v3753
  %v3755 = vsel %vm2428, %v3645, 0.0
  %v3756 = vadd.f32 %v3754, %v3755
  %v3757 = vsel %vm2428, %v3646, 0.0
  %v3758 = vadd.f32 %v3756, %v3757
  %v3759 = vsel %vm2428, %v3647, 0.0
  %v3760 = vadd.f32 %v3758, %v3759
  %v3761 = vsel %vm2428, %v3648, 0.0
  %v3762 = vadd.f32 %v3760, %v3761
  %v3763 = vsel %vm2428, %v3649, 0.0
  %v3764 = vadd.f32 %v3762, %v3763
  %v3765 = vsel %vm2428, %v3650, 0.0
  %v3766 = vadd.f32 %v3764, %v3765
  %v3767 = vsel %vm2428, %v3651, 0.0
  %v3768 = vadd.f32 %v3766, %v3767
  %v3769 = vsel %vm2428, %v3652, 0.0
  %v3770 = vadd.f32 %v3768, %v3769
  %v3771 = vsel %vm2428, %v3653, 0.0
  %v3772 = vadd.f32 %v3770, %v3771
  %v3773 = vsel %vm2428, %v3654, 0.0
  %v3774 = vadd.f32 %v3772, %v3773
  %v3775 = vsel %vm2428, %v3655, 0.0
  %v3776 = vadd.f32 %v3774, %v3775
  %v3777 = vsel %vm2428, %v3656, 0.0
  %v3778 = vadd.f32 %v3776, %v3777
  %v3779 = vsel %vm2428, %v3657, 0.0
  %v3780 = vadd.f32 %v3778, %v3779
  %v3781 = vsel %vm2428, %v3658, 0.0
  %v3782 = vadd.f32 %v3780, %v3781
  %v3783 = vsel %vm2428, %v3659, 0.0
  %v3784 = vadd.f32 %v3782, %v3783
  %v3785 = vsel %vm2428, %v3660, 0.0
  %v3786 = vadd.f32 %v3784, %v3785
  %v3787 = vsel %vm2428, %v3661, 0.0
  %v3788 = vadd.f32 %v3786, %v3787
  %v3789 = vrot.slane %v3788, 4
  %v3790 = vadd.f32 %v3788, %v3789
  %v3791 = vrot.slane %v3790, 2
  %v3792 = vadd.f32 %v3790, %v3791
  %v3793 = vrot.slane %v3792, 1
  %v3794 = vadd.f32 %v3792, %v3793
  %v3795 = vmul.f32 %v3597, 0.001953125
  %v3796 = vmul.f32 %v3794, 0.001953125
  %v3797 = vmul.f32 %v3795, %v3795
  %v3798 = vsub.f32 %v3796, %v3797
  %v3799 = vmax.f32 %v3798, 0.0
  %v3800 = vadd.f32 %v3799, 1e-05
  %v3801 = vrsqrt.pop %v3800
  %v3802 = vmul.f32 %v248, %v3801
  %v3803 = vmul.f32 %v3795, %v3802
  %v3804 = vsub.f32 %v249, %v3803
  %v3806 = vlaneseq
  %v3807 = vshrl.u32 %v3806, 7
  %v3808 = vsub.s32 0, %v3807
  %v3809 = vrot.slane %v3802, %v3808
  %v3811 = vmul.f32 %v3147, %v3809
  %v3812 = vmul.f32 %v3152, %v3809
  %v3813 = vmul.f32 %v3157, %v3809
  %v3814 = vmul.f32 %v3162, %v3809
  %v3815 = vmul.f32 %v3167, %v3809
  %v3816 = vmul.f32 %v3172, %v3809
  %v3817 = vmul.f32 %v3177, %v3809
  %v3818 = vmul.f32 %v3182, %v3809
  %v3819 = vmul.f32 %v3187, %v3809
  %v3820 = vmul.f32 %v3192, %v3809
  %v3821 = vmul.f32 %v3197, %v3809
  %v3822 = vmul.f32 %v3202, %v3809
  %v3823 = vmul.f32 %v3207, %v3809
  %v3824 = vmul.f32 %v3212, %v3809
  %v3825 = vmul.f32 %v3217, %v3809
  %v3826 = vmul.f32 %v3222, %v3809
  %v3827 = vmul.f32 %v3227, %v3809
  %v3828 = vmul.f32 %v3232, %v3809
  %v3829 = vmul.f32 %v3237, %v3809
  %v3830 = vmul.f32 %v3242, %v3809
  %v3831 = vmul.f32 %v3247, %v3809
  %v3832 = vmul.f32 %v3252, %v3809
  %v3833 = vmul.f32 %v3257, %v3809
  %v3834 = vmul.f32 %v3262, %v3809
  %v3835 = vmul.f32 %v3267, %v3809
  %v3836 = vmul.f32 %v3272, %v3809
  %v3837 = vmul.f32 %v3277, %v3809
  %v3838 = vmul.f32 %v3282, %v3809
  %v3839 = vmul.f32 %v3287, %v3809
  %v3840 = vmul.f32 %v3292, %v3809
  %v3841 = vmul.f32 %v3297, %v3809
  %v3842 = vmul.f32 %v3302, %v3809
  %v3843 = vmul.f32 %v3307, %v3809
  %v3844 = vmul.f32 %v3312, %v3809
  %v3845 = vmul.f32 %v3317, %v3809
  %v3846 = vmul.f32 %v3322, %v3809
  %v3847 = vmul.f32 %v3327, %v3809
  %v3848 = vmul.f32 %v3332, %v3809
  %v3849 = vmul.f32 %v3337, %v3809
  %v3850 = vmul.f32 %v3342, %v3809
  %v3851 = vmul.f32 %v3347, %v3809
  %v3852 = vmul.f32 %v3352, %v3809
  %v3853 = vmul.f32 %v3357, %v3809
  %v3854 = vmul.f32 %v3362, %v3809
  %v3855 = vmul.f32 %v3367, %v3809
  %v3856 = vmul.f32 %v3372, %v3809
  %v3857 = vmul.f32 %v3377, %v3809
  %v3858 = vmul.f32 %v3382, %v3809
  %v3859 = vmul.f32 %v3387, %v3809
  %v3860 = vmul.f32 %v3392, %v3809
  %v3861 = vmul.f32 %v3397, %v3809
  %v3862 = vmul.f32 %v3402, %v3809
  %v3863 = vmul.f32 %v3407, %v3809
  %v3864 = vmul.f32 %v3412, %v3809
  %v3865 = vmul.f32 %v3417, %v3809
  %v3866 = vmul.f32 %v3422, %v3809
  %v3867 = vmul.f32 %v3427, %v3809
  %v3868 = vmul.f32 %v3432, %v3809
  %v3869 = vmul.f32 %v3437, %v3809
  %v3870 = vmul.f32 %v3442, %v3809
  %v3871 = vmul.f32 %v3447, %v3809
  %v3872 = vmul.f32 %v3452, %v3809
  %v3873 = vmul.f32 %v3457, %v3809
  %v3874 = vmul.f32 %v3462, %v3809
  %v3876 = vlaneseq
  %v3877 = vshrl.u32 %v3876, 7
  %v3878 = vsub.s32 0, %v3877
  %v3879 = vrot.slane %v3804, %v3878
  %v3881 = vadd.f32 %v3811, %v3879
  %v3882 = vadd.f32 %v3812, %v3879
  %v3883 = vadd.f32 %v3813, %v3879
  %v3884 = vadd.f32 %v3814, %v3879
  %v3885 = vadd.f32 %v3815, %v3879
  %v3886 = vadd.f32 %v3816, %v3879
  %v3887 = vadd.f32 %v3817, %v3879
  %v3888 = vadd.f32 %v3818, %v3879
  %v3889 = vadd.f32 %v3819, %v3879
  %v3890 = vadd.f32 %v3820, %v3879
  %v3891 = vadd.f32 %v3821, %v3879
  %v3892 = vadd.f32 %v3822, %v3879
  %v3893 = vadd.f32 %v3823, %v3879
  %v3894 = vadd.f32 %v3824, %v3879
  %v3895 = vadd.f32 %v3825, %v3879
  %v3896 = vadd.f32 %v3826, %v3879
  %v3897 = vadd.f32 %v3827, %v3879
  %v3898 = vadd.f32 %v3828, %v3879
  %v3899 = vadd.f32 %v3829, %v3879
  %v3900 = vadd.f32 %v3830, %v3879
  %v3901 = vadd.f32 %v3831, %v3879
  %v3902 = vadd.f32 %v3832, %v3879
  %v3903 = vadd.f32 %v3833, %v3879
  %v3904 = vadd.f32 %v3834, %v3879
  %v3905 = vadd.f32 %v3835, %v3879
  %v3906 = vadd.f32 %v3836, %v3879
  %v3907 = vadd.f32 %v3837, %v3879
  %v3908 = vadd.f32 %v3838, %v3879
  %v3909 = vadd.f32 %v3839, %v3879
  %v3910 = vadd.f32 %v3840, %v3879
  %v3911 = vadd.f32 %v3841, %v3879
  %v3912 = vadd.f32 %v3842, %v3879
  %v3913 = vadd.f32 %v3843, %v3879
  %v3914 = vadd.f32 %v3844, %v3879
  %v3915 = vadd.f32 %v3845, %v3879
  %v3916 = vadd.f32 %v3846, %v3879
  %v3917 = vadd.f32 %v3847, %v3879
  %v3918 = vadd.f32 %v3848, %v3879
  %v3919 = vadd.f32 %v3849, %v3879
  %v3920 = vadd.f32 %v3850, %v3879
  %v3921 = vadd.f32 %v3851, %v3879
  %v3922 = vadd.f32 %v3852, %v3879
  %v3923 = vadd.f32 %v3853, %v3879
  %v3924 = vadd.f32 %v3854, %v3879
  %v3925 = vadd.f32 %v3855, %v3879
  %v3926 = vadd.f32 %v3856, %v3879
  %v3927 = vadd.f32 %v3857, %v3879
  %v3928 = vadd.f32 %v3858, %v3879
  %v3929 = vadd.f32 %v3859, %v3879
  %v3930 = vadd.f32 %v3860, %v3879
  %v3931 = vadd.f32 %v3861, %v3879
  %v3932 = vadd.f32 %v3862, %v3879
  %v3933 = vadd.f32 %v3863, %v3879
  %v3934 = vadd.f32 %v3864, %v3879
  %v3935 = vadd.f32 %v3865, %v3879
  %v3936 = vadd.f32 %v3866, %v3879
  %v3937 = vadd.f32 %v3867, %v3879
  %v3938 = vadd.f32 %v3868, %v3879
  %v3939 = vadd.f32 %v3869, %v3879
  %v3940 = vadd.f32 %v3870, %v3879
  %v3941 = vadd.f32 %v3871, %v3879
  %v3942 = vadd.f32 %v3872, %v3879
  %v3943 = vadd.f32 %v3873, %v3879
  %v3944 = vadd.f32 %v3874, %v3879
  %v3945 = vmax.f32 %v3881, 0.0
  %v3946 = vmax.f32 %v3882, 0.0
  %v3947 = vmax.f32 %v3883, 0.0
  %v3948 = vmax.f32 %v3884, 0.0
  %v3949 = vmax.f32 %v3885, 0.0
  %v3950 = vmax.f32 %v3886, 0.0
  %v3951 = vmax.f32 %v3887, 0.0
  %v3952 = vmax.f32 %v3888, 0.0
  %v3953 = vmax.f32 %v3889, 0.0
  %v3954 = vmax.f32 %v3890, 0.0
  %v3955 = vmax.f32 %v3891, 0.0
  %v3956 = vmax.f32 %v3892, 0.0
  %v3957 = vmax.f32 %v3893, 0.0
  %v3958 = vmax.f32 %v3894, 0.0
  %v3959 = vmax.f32 %v3895, 0.0
  %v3960 = vmax.f32 %v3896, 0.0
  %v3961 = vmax.f32 %v3897, 0.0
  %v3962 = vmax.f32 %v3898, 0.0
  %v3963 = vmax.f32 %v3899, 0.0
  %v3964 = vmax.f32 %v3900, 0.0
  %v3965 = vmax.f32 %v3901, 0.0
  %v3966 = vmax.f32 %v3902, 0.0
  %v3967 = vmax.f32 %v3903, 0.0
  %v3968 = vmax.f32 %v3904, 0.0
  %v3969 = vmax.f32 %v3905, 0.0
  %v3970 = vmax.f32 %v3906, 0.0
  %v3971 = vmax.f32 %v3907, 0.0
  %v3972 = vmax.f32 %v3908, 0.0
  %v3973 = vmax.f32 %v3909, 0.0
  %v3974 = vmax.f32 %v3910, 0.0
  %v3975 = vmax.f32 %v3911, 0.0
  %v3976 = vmax.f32 %v3912, 0.0
  %v3977 = vmax.f32 %v3913, 0.0
  %v3978 = vmax.f32 %v3914, 0.0
  %v3979 = vmax.f32 %v3915, 0.0
  %v3980 = vmax.f32 %v3916, 0.0
  %v3981 = vmax.f32 %v3917, 0.0
  %v3982 = vmax.f32 %v3918, 0.0
  %v3983 = vmax.f32 %v3919, 0.0
  %v3984 = vmax.f32 %v3920, 0.0
  %v3985 = vmax.f32 %v3921, 0.0
  %v3986 = vmax.f32 %v3922, 0.0
  %v3987 = vmax.f32 %v3923, 0.0
  %v3988 = vmax.f32 %v3924, 0.0
  %v3989 = vmax.f32 %v3925, 0.0
  %v3990 = vmax.f32 %v3926, 0.0
  %v3991 = vmax.f32 %v3927, 0.0
  %v3992 = vmax.f32 %v3928, 0.0
  %v3993 = vmax.f32 %v3929, 0.0
  %v3994 = vmax.f32 %v3930, 0.0
  %v3995 = vmax.f32 %v3931, 0.0
  %v3996 = vmax.f32 %v3932, 0.0
  %v3997 = vmax.f32 %v3933, 0.0
  %v3998 = vmax.f32 %v3934, 0.0
  %v3999 = vmax.f32 %v3935, 0.0
  %v4000 = vmax.f32 %v3936, 0.0
  %v4001 = vmax.f32 %v3937, 0.0
  %v4002 = vmax.f32 %v3938, 0.0
  %v4003 = vmax.f32 %v3939, 0.0
  %v4004 = vmax.f32 %v3940, 0.0
  %v4005 = vmax.f32 %v3941, 0.0
  %v4006 = vmax.f32 %v3942, 0.0
  %v4007 = vmax.f32 %v3943, 0.0
  %v4008 = vmax.f32 %v3944, 0.0
  %s4009 = scalar_lea.vmem [#allocation3], 24
  %4010 = vst.msk [vmem:[%s4009 + $0x1] sm:$0xff] %vm2428, %v3945
  %4011 = vst.msk [vmem:[%s4009 + $0x9] sm:$0xff] %vm2428, %v3946
  %4012 = vst.msk [vmem:[%s4009 + $0x19] sm:$0xff] %vm2428, %v3947
  %4013 = vst.msk [vmem:[%s4009 + $0x21] sm:$0xff] %vm2428, %v3948
  %4014 = vst.msk [vmem:[%s4009 + $0x31] sm:$0xff] %vm2428, %v3949
  %4015 = vst.msk [vmem:[%s4009 + $0x39] sm:$0xff] %vm2428, %v3950
  %4016 = vst.msk [vmem:[%s4009 + $0x49] sm:$0xff] %vm2428, %v3951
  %4017 = vst.msk [vmem:[%s4009 + $0x51] sm:$0xff] %vm2428, %v3952
  %4018 = vst.msk [vmem:[%s4009 + $0x61] sm:$0xff] %vm2428, %v3953
  %4019 = vst.msk [vmem:[%s4009 + $0x69] sm:$0xff] %vm2428, %v3954
  %4020 = vst.msk [vmem:[%s4009 + $0x79] sm:$0xff] %vm2428, %v3955
  %4021 = vst.msk [vmem:[%s4009 + $0x81] sm:$0xff] %vm2428, %v3956
  %4022 = vst.msk [vmem:[%s4009 + $0x91] sm:$0xff] %vm2428, %v3957
  %4023 = vst.msk [vmem:[%s4009 + $0x99] sm:$0xff] %vm2428, %v3958
  %4024 = vst.msk [vmem:[%s4009 + $0xa9] sm:$0xff] %vm2428, %v3959
  %4025 = vst.msk [vmem:[%s4009 + $0xb1] sm:$0xff] %vm2428, %v3960
  %4026 = vst.msk [vmem:[%s4009 + $0xc1] sm:$0xff] %vm2428, %v3961
  %4027 = vst.msk [vmem:[%s4009 + $0xc9] sm:$0xff] %vm2428, %v3962
  %4028 = vst.msk [vmem:[%s4009 + $0xd9] sm:$0xff] %vm2428, %v3963
  %4029 = vst.msk [vmem:[%s4009 + $0xe1] sm:$0xff] %vm2428, %v3964
  %4030 = vst.msk [vmem:[%s4009 + $0xf1] sm:$0xff] %vm2428, %v3965
  %4031 = vst.msk [vmem:[%s4009 + $0xf9] sm:$0xff] %vm2428, %v3966
  %4032 = vst.msk [vmem:[%s4009 + $0x109] sm:$0xff] %vm2428, %v3967
  %4033 = vst.msk [vmem:[%s4009 + $0x111] sm:$0xff] %vm2428, %v3968
  %4034 = vst.msk [vmem:[%s4009 + $0x121] sm:$0xff] %vm2428, %v3969
  %4035 = vst.msk [vmem:[%s4009 + $0x129] sm:$0xff] %vm2428, %v3970
  %4036 = vst.msk [vmem:[%s4009 + $0x139] sm:$0xff] %vm2428, %v3971
  %4037 = vst.msk [vmem:[%s4009 + $0x141] sm:$0xff] %vm2428, %v3972
  %4038 = vst.msk [vmem:[%s4009 + $0x151] sm:$0xff] %vm2428, %v3973
  %4039 = vst.msk [vmem:[%s4009 + $0x159] sm:$0xff] %vm2428, %v3974
  %4040 = vst.msk [vmem:[%s4009 + $0x169] sm:$0xff] %vm2428, %v3975
  %4041 = vst.msk [vmem:[%s4009 + $0x171] sm:$0xff] %vm2428, %v3976
  %4042 = vst.msk [vmem:[%s4009 + $0x1b1] sm:$0xff] %vm2428, %v3977
  %4043 = vst.msk [vmem:[%s4009 + $0x1b9] sm:$0xff] %vm2428, %v3978
  %4044 = vst.msk [vmem:[%s4009 + $0x1c9] sm:$0xff] %vm2428, %v3979
  %4045 = vst.msk [vmem:[%s4009 + $0x1d1] sm:$0xff] %vm2428, %v3980
  %4046 = vst.msk [vmem:[%s4009 + $0x1e1] sm:$0xff] %vm2428, %v3981
  %4047 = vst.msk [vmem:[%s4009 + $0x1e9] sm:$0xff] %vm2428, %v3982
  %4048 = vst.msk [vmem:[%s4009 + $0x1f9] sm:$0xff] %vm2428, %v3983
  %4049 = vst.msk [vmem:[%s4009 + $0x201] sm:$0xff] %vm2428, %v3984
  %4050 = vst.msk [vmem:[%s4009 + $0x211] sm:$0xff] %vm2428, %v3985
  %4051 = vst.msk [vmem:[%s4009 + $0x219] sm:$0xff] %vm2428, %v3986
  %4052 = vst.msk [vmem:[%s4009 + $0x229] sm:$0xff] %vm2428, %v3987
  %4053 = vst.msk [vmem:[%s4009 + $0x231] sm:$0xff] %vm2428, %v3988
  %4054 = vst.msk [vmem:[%s4009 + $0x241] sm:$0xff] %vm2428, %v3989
  %4055 = vst.msk [vmem:[%s4009 + $0x249] sm:$0xff] %vm2428, %v3990
  %4056 = vst.msk [vmem:[%s4009 + $0x259] sm:$0xff] %vm2428, %v3991
  %4057 = vst.msk [vmem:[%s4009 + $0x261] sm:$0xff] %vm2428, %v3992
  %4058 = vst.msk [vmem:[%s4009 + $0x271] sm:$0xff] %vm2428, %v3993
  %4059 = vst.msk [vmem:[%s4009 + $0x279] sm:$0xff] %vm2428, %v3994
  %4060 = vst.msk [vmem:[%s4009 + $0x289] sm:$0xff] %vm2428, %v3995
  %4061 = vst.msk [vmem:[%s4009 + $0x291] sm:$0xff] %vm2428, %v3996
  %4062 = vst.msk [vmem:[%s4009 + $0x2a1] sm:$0xff] %vm2428, %v3997
  %4063 = vst.msk [vmem:[%s4009 + $0x2a9] sm:$0xff] %vm2428, %v3998
  %4064 = vst.msk [vmem:[%s4009 + $0x2b9] sm:$0xff] %vm2428, %v3999
  %4065 = vst.msk [vmem:[%s4009 + $0x2c1] sm:$0xff] %vm2428, %v4000
  %4066 = vst.msk [vmem:[%s4009 + $0x2d1] sm:$0xff] %vm2428, %v4001
  %4067 = vst.msk [vmem:[%s4009 + $0x2d9] sm:$0xff] %vm2428, %v4002
  %4068 = vst.msk [vmem:[%s4009 + $0x2e9] sm:$0xff] %vm2428, %v4003
  %4069 = vst.msk [vmem:[%s4009 + $0x2f1] sm:$0xff] %vm2428, %v4004
  %4070 = vst.msk [vmem:[%s4009 + $0x301] sm:$0xff] %vm2428, %v4005
  %4071 = vst.msk [vmem:[%s4009 + $0x309] sm:$0xff] %vm2428, %v4006
  %4072 = vst.msk [vmem:[%s4009 + $0x319] sm:$0xff] %vm2428, %v4007
  %4073 = vst.msk [vmem:[%s4009 + $0x321] sm:$0xff] %vm2428, %v4008
  %4074 = vst.msk [vmem:[#allocation3] sm:$0xff] %vm2428, 0.0
  %4075 = vst.msk [vmem:[#allocation3 + $0x8] sm:$0xff] %vm2428, 0.0
  %vm4076 = vcmask 58368
  %4077 = vst.msk [vmem:[#allocation3 + $0x10] sm:$0x3] %vm4076, 0.0
  %4078 = vst.msk [vmem:[#allocation3 + $0x1b0] sm:$0xff] %vm2428, 0.0
  %4079 = vst.msk [vmem:[#allocation3 + $0x1b8] sm:$0xff] %vm2428, 0.0
  %4080 = vst.msk [vmem:[#allocation3 + $0x1c0] sm:$0x3] %vm4076, 0.0
  %s4081 = scalar_lea.vmem [#allocation3], 408
  %4082 = vst.msk [vmem:[%s4081] sm:$0xff] %vm2428, 0.0
  %4083 = vst.msk [vmem:[%s4081 + $0x8] sm:$0xff] %vm2428, 0.0
  %4084 = vst.msk [vmem:[%s4081 + $0x10] sm:$0x3] %vm4076, 0.0
  %4085 = vst.msk [vmem:[%s4081 + $0x1b0] sm:$0xff] %vm2428, 0.0
  %4086 = vst.msk [vmem:[%s4081 + $0x1b8] sm:$0xff] %vm2428, 0.0
  %4087 = vst.msk [vmem:[%s4081 + $0x1c0] sm:$0x3] %vm4076, 0.0
  %vm4088 = vcmask 57344
  %4089 = vst.msk [vmem:[#allocation3] sm:$0x1] %vm4088, 0.0
  %4090 = vst.msk [vmem:[#allocation3 + $0x18] sm:$0x1] %vm4088, 0.0
  %4091 = vst.msk [vmem:[#allocation3 + $0x30] sm:$0x1] %vm4088, 0.0
  %4092 = vst.msk [vmem:[#allocation3 + $0x48] sm:$0x1] %vm4088, 0.0
  %4093 = vst.msk [vmem:[#allocation3 + $0x60] sm:$0x1] %vm4088, 0.0
  %4094 = vst.msk [vmem:[#allocation3 + $0x78] sm:$0x1] %vm4088, 0.0
  %4095 = vst.msk [vmem:[#allocation3 + $0x90] sm:$0x1] %vm4088, 0.0
  %4096 = vst.msk [vmem:[#allocation3 + $0xa8] sm:$0x1] %vm4088, 0.0
  %4097 = vst.msk [vmem:[#allocation3 + $0xc0] sm:$0x1] %vm4088, 0.0
  %4098 = vst.msk [vmem:[#allocation3 + $0xd8] sm:$0x1] %vm4088, 0.0
  %4099 = vst.msk [vmem:[#allocation3 + $0xf0] sm:$0x1] %vm4088, 0.0
  %4100 = vst.msk [vmem:[#allocation3 + $0x108] sm:$0x1] %vm4088, 0.0
  %4101 = vst.msk [vmem:[#allocation3 + $0x120] sm:$0x1] %vm4088, 0.0
  %4102 = vst.msk [vmem:[#allocation3 + $0x138] sm:$0x1] %vm4088, 0.0
  %4103 = vst.msk [vmem:[#allocation3 + $0x150] sm:$0x1] %vm4088, 0.0
  %4104 = vst.msk [vmem:[#allocation3 + $0x168] sm:$0x1] %vm4088, 0.0
  %4105 = vst.msk [vmem:[#allocation3 + $0x180] sm:$0x1] %vm4088, 0.0
  %4106 = vst.msk [vmem:[#allocation3 + $0x198] sm:$0x1] %vm4088, 0.0
  %4107 = vst.msk [vmem:[#allocation3 + $0x1b0] sm:$0x1] %vm4088, 0.0
  %4108 = vst.msk [vmem:[#allocation3 + $0x1c8] sm:$0x1] %vm4088, 0.0
  %4109 = vst.msk [vmem:[#allocation3 + $0x1e0] sm:$0x1] %vm4088, 0.0
  %4110 = vst.msk [vmem:[#allocation3 + $0x1f8] sm:$0x1] %vm4088, 0.0
  %4111 = vst.msk [vmem:[#allocation3 + $0x210] sm:$0x1] %vm4088, 0.0
  %4112 = vst.msk [vmem:[#allocation3 + $0x228] sm:$0x1] %vm4088, 0.0
  %4113 = vst.msk [vmem:[#allocation3 + $0x240] sm:$0x1] %vm4088, 0.0
  %4114 = vst.msk [vmem:[#allocation3 + $0x258] sm:$0x1] %vm4088, 0.0
  %4115 = vst.msk [vmem:[#allocation3 + $0x270] sm:$0x1] %vm4088, 0.0
  %4116 = vst.msk [vmem:[#allocation3 + $0x288] sm:$0x1] %vm4088, 0.0
  %4117 = vst.msk [vmem:[#allocation3 + $0x2a0] sm:$0x1] %vm4088, 0.0
  %4118 = vst.msk [vmem:[#allocation3 + $0x2b8] sm:$0x1] %vm4088, 0.0
  %4119 = vst.msk [vmem:[#allocation3 + $0x2d0] sm:$0x1] %vm4088, 0.0
  %4120 = vst.msk [vmem:[#allocation3 + $0x2e8] sm:$0x1] %vm4088, 0.0
  %4121 = vst.msk [vmem:[#allocation3 + $0x300] sm:$0x1] %vm4088, 0.0
  %4122 = vst.msk [vmem:[#allocation3 + $0x318] sm:$0x1] %vm4088, 0.0
  %4123 = vst.msk [vmem:[#allocation3 + $0x330] sm:$0x1] %vm4088, 0.0
  %4124 = vst.msk [vmem:[#allocation3 + $0x348] sm:$0x1] %vm4088, 0.0
  %4125 = vst.msk [vmem:[#allocation3 + $0x11] sm:$0x1] %vm4088, 0.0
  %4126 = vst.msk [vmem:[#allocation3 + $0x29] sm:$0x1] %vm4088, 0.0
  %4127 = vst.msk [vmem:[#allocation3 + $0x41] sm:$0x1] %vm4088, 0.0
  %4128 = vst.msk [vmem:[#allocation3 + $0x59] sm:$0x1] %vm4088, 0.0
  %4129 = vst.msk [vmem:[#allocation3 + $0x71] sm:$0x1] %vm4088, 0.0
  %4130 = vst.msk [vmem:[#allocation3 + $0x89] sm:$0x1] %vm4088, 0.0
  %4131 = vst.msk [vmem:[#allocation3 + $0xa1] sm:$0x1] %vm4088, 0.0
  %4132 = vst.msk [vmem:[#allocation3 + $0xb9] sm:$0x1] %vm4088, 0.0
  %4133 = vst.msk [vmem:[#allocation3 + $0xd1] sm:$0x1] %vm4088, 0.0
  %4134 = vst.msk [vmem:[#allocation3 + $0xe9] sm:$0x1] %vm4088, 0.0
  %4135 = vst.msk [vmem:[#allocation3 + $0x101] sm:$0x1] %vm4088, 0.0
  %4136 = vst.msk [vmem:[#allocation3 + $0x119] sm:$0x1] %vm4088, 0.0
  %4137 = vst.msk [vmem:[#allocation3 + $0x131] sm:$0x1] %vm4088, 0.0
  %4138 = vst.msk [vmem:[#allocation3 + $0x149] sm:$0x1] %vm4088, 0.0
  %4139 = vst.msk [vmem:[#allocation3 + $0x161] sm:$0x1] %vm4088, 0.0
  %4140 = vst.msk [vmem:[#allocation3 + $0x179] sm:$0x1] %vm4088, 0.0
  %4141 = vst.msk [vmem:[#allocation3 + $0x191] sm:$0x1] %vm4088, 0.0
  %4142 = vst.msk [vmem:[#allocation3 + $0x1a9] sm:$0x1] %vm4088, 0.0
  %4143 = vst.msk [vmem:[#allocation3 + $0x1c1] sm:$0x1] %vm4088, 0.0
  %4144 = vst.msk [vmem:[#allocation3 + $0x1d9] sm:$0x1] %vm4088, 0.0
  %4145 = vst.msk [vmem:[#allocation3 + $0x1f1] sm:$0x1] %vm4088, 0.0
  %4146 = vst.msk [vmem:[#allocation3 + $0x209] sm:$0x1] %vm4088, 0.0
  %4147 = vst.msk [vmem:[#allocation3 + $0x221] sm:$0x1] %vm4088, 0.0
  %4148 = vst.msk [vmem:[#allocation3 + $0x239] sm:$0x1] %vm4088, 0.0
  %4149 = vst.msk [vmem:[#allocation3 + $0x251] sm:$0x1] %vm4088, 0.0
  %4150 = vst.msk [vmem:[#allocation3 + $0x269] sm:$0x1] %vm4088, 0.0
  %4151 = vst.msk [vmem:[#allocation3 + $0x281] sm:$0x1] %vm4088, 0.0
  %4152 = vst.msk [vmem:[#allocation3 + $0x299] sm:$0x1] %vm4088, 0.0
  %4153 = vst.msk [vmem:[#allocation3 + $0x2b1] sm:$0x1] %vm4088, 0.0
  %4154 = vst.msk [vmem:[#allocation3 + $0x2c9] sm:$0x1] %vm4088, 0.0
  %4155 = vst.msk [vmem:[#allocation3 + $0x2e1] sm:$0x1] %vm4088, 0.0
  %4156 = vst.msk [vmem:[#allocation3 + $0x2f9] sm:$0x1] %vm4088, 0.0
  %4157 = vst.msk [vmem:[#allocation3 + $0x311] sm:$0x1] %vm4088, 0.0
  %4158 = vst.msk [vmem:[#allocation3 + $0x329] sm:$0x1] %vm4088, 0.0
  %4159 = vst.msk [vmem:[#allocation3 + $0x341] sm:$0x1] %vm4088, 0.0
  %4160 = vst.msk [vmem:[#allocation3 + $0x359] sm:$0x1] %vm4088, 0.0
  %v4161 = vld [vmem:[%s4] sm:$0xff]
  %v4162 = vld [vmem:[%s4 + $0x8] sm:$0xff]
  %v4163 = vld [vmem:[%s4 + $0x10] sm:$0xff]
  %v4164 = vld [vmem:[%s4 + $0x18] sm:$0xff]
  %v4165 = vld [vmem:[%s4 + $0x20] sm:$0xff]
  %v4166 = vld [vmem:[%s4 + $0x28] sm:$0xff]
  %v4167 = vld [vmem:[%s4 + $0x30] sm:$0xff]
  %v4168 = vld [vmem:[%s4 + $0x38] sm:$0xff]
  %v4169 = vld [vmem:[%s4 + $0x40] sm:$0xff]
  %v4170 = vld [vmem:[%s5] sm:$0x1]
  %v4171 = vld [vmem:[%s6] sm:$0x1]
  %v4172 = vld [vmem:[#allocation3] sm:$0xff]
  %v4173 = vld [vmem:[#allocation3 + $0x8] sm:$0xff]
  %v4174 = vld [vmem:[#allocation3 + $0x10] sm:$0x3]
  %v4175 = vld [vmem:[#allocation3 + $0x18] sm:$0xff]
  %v4176 = vld [vmem:[#allocation3 + $0x20] sm:$0xff]
  %v4177 = vld [vmem:[#allocation3 + $0x28] sm:$0x3]
  %v4178 = vld [vmem:[#allocation3 + $0x30] sm:$0xff]
  %v4179 = vld [vmem:[#allocation3 + $0x38] sm:$0xff]
  %v4180 = vld [vmem:[#allocation3 + $0x40] sm:$0x3]
  %v4181 = vld [vmem:[#allocation3 + $0x48] sm:$0xff]
  %v4182 = vld [vmem:[#allocation3 + $0x50] sm:$0xff]
  %v4183 = vld [vmem:[#allocation3 + $0x58] sm:$0x3]
  %v4184 = vld [vmem:[#allocation3 + $0x60] sm:$0xff]
  %v4185 = vld [vmem:[#allocation3 + $0x68] sm:$0xff]
  %v4186 = vld [vmem:[#allocation3 + $0x70] sm:$0x3]
  %v4187 = vld [vmem:[#allocation3 + $0x78] sm:$0xff]
  %v4188 = vld [vmem:[#allocation3 + $0x80] sm:$0xff]
  %v4189 = vld [vmem:[#allocation3 + $0x88] sm:$0x3]
  %v4190 = vld [vmem:[#allocation3 + $0x90] sm:$0xff]
  %v4191 = vld [vmem:[#allocation3 + $0x98] sm:$0xff]
  %v4192 = vld [vmem:[#allocation3 + $0xa0] sm:$0x3]
  %v4193 = vld [vmem:[#allocation3 + $0xa8] sm:$0xff]
  %v4194 = vld [vmem:[#allocation3 + $0xb0] sm:$0xff]
  %v4195 = vld [vmem:[#allocation3 + $0xb8] sm:$0x3]
  %v4196 = vld [vmem:[#allocation3 + $0xc0] sm:$0xff]
  %v4197 = vld [vmem:[#allocation3 + $0xc8] sm:$0xff]
  %v4198 = vld [vmem:[#allocation3 + $0xd0] sm:$0x3]
  %v4199 = vld [vmem:[#allocation3 + $0xd8] sm:$0xff]
  %v4200 = vld [vmem:[#allocation3 + $0xe0] sm:$0xff]
  %v4201 = vld [vmem:[#allocation3 + $0xe8] sm:$0x3]
  %v4202 = vld [vmem:[#allocation3 + $0xf0] sm:$0xff]
  %v4203 = vld [vmem:[#allocation3 + $0xf8] sm:$0xff]
  %v4204 = vld [vmem:[#allocation3 + $0x100] sm:$0x3]
  %v4205 = vld [vmem:[#allocation3 + $0x108] sm:$0xff]
  %v4206 = vld [vmem:[#allocation3 + $0x110] sm:$0xff]
  %v4207 = vld [vmem:[#allocation3 + $0x118] sm:$0x3]
  %v4208 = vld [vmem:[#allocation3 + $0x120] sm:$0xff]
  %v4209 = vld [vmem:[#allocation3 + $0x128] sm:$0xff]
  %v4210 = vld [vmem:[#allocation3 + $0x130] sm:$0x3]
  %v4211 = vld [vmem:[#allocation3 + $0x138] sm:$0xff]
  %v4212 = vld [vmem:[#allocation3 + $0x140] sm:$0xff]
  %v4213 = vld [vmem:[#allocation3 + $0x148] sm:$0x3]
  %v4214 = vld [vmem:[#allocation3 + $0x150] sm:$0xff]
  %v4215 = vld [vmem:[#allocation3 + $0x158] sm:$0xff]
  %v4216 = vld [vmem:[#allocation3 + $0x160] sm:$0x3]
  %v4217 = vld [vmem:[#allocation3 + $0x168] sm:$0xff]
  %v4218 = vld [vmem:[#allocation3 + $0x170] sm:$0xff]
  %v4219 = vld [vmem:[#allocation3 + $0x178] sm:$0x3]
  %v4220 = vld [vmem:[#allocation3 + $0x180] sm:$0xff]
  %v4221 = vld [vmem:[#allocation3 + $0x188] sm:$0xff]
  %v4222 = vld [vmem:[#allocation3 + $0x190] sm:$0x3]
  %v4223 = vld [vmem:[#allocation3 + $0x198] sm:$0xff]
  %v4224 = vld [vmem:[#allocation3 + $0x1a0] sm:$0xff]
  %v4225 = vld [vmem:[#allocation3 + $0x1a8] sm:$0x3]
  %v4226 = vld [vmem:[#allocation3 + $0x1b0] sm:$0xff]
  %v4227 = vld [vmem:[#allocation3 + $0x1b8] sm:$0xff]
  %v4228 = vld [vmem:[#allocation3 + $0x1c0] sm:$0x3]
  %v4229 = vld [vmem:[#allocation3 + $0x1c8] sm:$0xff]
  %v4230 = vld [vmem:[#allocation3 + $0x1d0] sm:$0xff]
  %v4231 = vld [vmem:[#allocation3 + $0x1d8] sm:$0x3]
  %v4232 = vld [vmem:[#allocation3 + $0x1e0] sm:$0xff]
  %v4233 = vld [vmem:[#allocation3 + $0x1e8] sm:$0xff]
  %v4234 = vld [vmem:[#allocation3 + $0x1f0] sm:$0x3]
  %v4235 = vld [vmem:[#allocation3 + $0x1f8] sm:$0xff]
  %v4236 = vld [vmem:[#allocation3 + $0x200] sm:$0xff]
  %v4237 = vld [vmem:[#allocation3 + $0x208] sm:$0x3]
  %v4238 = vld [vmem:[#allocation3 + $0x210] sm:$0xff]
  %v4239 = vld [vmem:[#allocation3 + $0x218] sm:$0xff]
  %v4240 = vld [vmem:[#allocation3 + $0x220] sm:$0x3]
  %v4241 = vld [vmem:[#allocation3 + $0x228] sm:$0xff]
  %v4242 = vld [vmem:[#allocation3 + $0x230] sm:$0xff]
  %v4243 = vld [vmem:[#allocation3 + $0x238] sm:$0x3]
  %v4244 = vld [vmem:[#allocation3 + $0x240] sm:$0xff]
  %v4245 = vld [vmem:[#allocation3 + $0x248] sm:$0xff]
  %v4246 = vld [vmem:[#allocation3 + $0x250] sm:$0x3]
  %v4247 = vld [vmem:[#allocation3 + $0x258] sm:$0xff]
  %v4248 = vld [vmem:[#allocation3 + $0x260] sm:$0xff]
  %v4249 = vld [vmem:[#allocation3 + $0x268] sm:$0x3]
  %v4250 = vld [vmem:[#allocation3 + $0x270] sm:$0xff]
  %v4251 = vld [vmem:[#allocation3 + $0x278] sm:$0xff]
  %v4252 = vld [vmem:[#allocation3 + $0x280] sm:$0x3]
  %v4253 = vld [vmem:[#allocation3 + $0x288] sm:$0xff]
  %v4254 = vld [vmem:[#allocation3 + $0x290] sm:$0xff]
  %v4255 = vld [vmem:[#allocation3 + $0x298] sm:$0x3]
  %v4256 = vld [vmem:[#allocation3 + $0x2a0] sm:$0xff]
  %v4257 = vld [vmem:[#allocation3 + $0x2a8] sm:$0xff]
  %v4258 = vld [vmem:[#allocation3 + $0x2b0] sm:$0x3]
  %v4259 = vld [vmem:[#allocation3 + $0x2b8] sm:$0xff]
  %v4260 = vld [vmem:[#allocation3 + $0x2c0] sm:$0xff]
  %v4261 = vld [vmem:[#allocation3 + $0x2c8] sm:$0x3]
  %v4262 = vld [vmem:[#allocation3 + $0x2d0] sm:$0xff]
  %v4263 = vld [vmem:[#allocation3 + $0x2d8] sm:$0xff]
  %v4264 = vld [vmem:[#allocation3 + $0x2e0] sm:$0x3]
  %v4265 = vld [vmem:[#allocation3 + $0x2e8] sm:$0xff]
  %v4266 = vld [vmem:[#allocation3 + $0x2f0] sm:$0xff]
  %v4267 = vld [vmem:[#allocation3 + $0x2f8] sm:$0x3]
  %v4268 = vld [vmem:[#allocation3 + $0x300] sm:$0xff]
  %v4269 = vld [vmem:[#allocation3 + $0x308] sm:$0xff]
  %v4270 = vld [vmem:[#allocation3 + $0x310] sm:$0x3]
  %v4271 = vld [vmem:[#allocation3 + $0x318] sm:$0xff]
  %v4272 = vld [vmem:[#allocation3 + $0x320] sm:$0xff]
  %v4273 = vld [vmem:[#allocation3 + $0x328] sm:$0x3]
  %v4274 = vld [vmem:[#allocation3 + $0x330] sm:$0xff]
  %v4275 = vld [vmem:[#allocation3 + $0x338] sm:$0xff]
  %v4276 = vld [vmem:[#allocation3 + $0x340] sm:$0x3]
  %v4277 = vld [vmem:[#allocation3 + $0x348] sm:$0xff]
  %v4278 = vld [vmem:[#allocation3 + $0x350] sm:$0xff]
  %v4279 = vld [vmem:[#allocation3 + $0x358] sm:$0x3]
  %v4376 = vrot.slane %v4172, 1
  %v4377 = vrot.slane %v4173, 1
  %v4378 = vsel %vm454, %v4376, %v4377
  %v4379 = vrot.slane %v4174, 1
  %v4380 = vsel %vm454, %v4377, %v4379
  %v4381 = vrot.slane %v4175, 1
  %v4382 = vrot.slane %v4176, 1
  %v4383 = vsel %vm454, %v4381, %v4382
  %v4384 = vrot.slane %v4177, 1
  %v4385 = vsel %vm454, %v4382, %v4384
  %v4386 = vrot.slane %v4178, 1
  %v4387 = vrot.slane %v4179, 1
  %v4388 = vsel %vm454, %v4386, %v4387
  %v4389 = vrot.slane %v4180, 1
  %v4390 = vsel %vm454, %v4387, %v4389
  %v4391 = vrot.slane %v4181, 1
  %v4392 = vrot.slane %v4182, 1
  %v4393 = vsel %vm454, %v4391, %v4392
  %v4394 = vrot.slane %v4183, 1
  %v4395 = vsel %vm454, %v4392, %v4394
  %v4396 = vrot.slane %v4184, 1
  %v4397 = vrot.slane %v4185, 1
  %v4398 = vsel %vm454, %v4396, %v4397
  %v4399 = vrot.slane %v4186, 1
  %v4400 = vsel %vm454, %v4397, %v4399
  %v4401 = vrot.slane %v4187, 1
  %v4402 = vrot.slane %v4188, 1
  %v4403 = vsel %vm454, %v4401, %v4402
  %v4404 = vrot.slane %v4189, 1
  %v4405 = vsel %vm454, %v4402, %v4404
  %v4406 = vrot.slane %v4190, 1
  %v4407 = vrot.slane %v4191, 1
  %v4408 = vsel %vm454, %v4406, %v4407
  %v4409 = vrot.slane %v4192, 1
  %v4410 = vsel %vm454, %v4407, %v4409
  %v4411 = vrot.slane %v4193, 1
  %v4412 = vrot.slane %v4194, 1
  %v4413 = vsel %vm454, %v4411, %v4412
  %v4414 = vrot.slane %v4195, 1
  %v4415 = vsel %vm454, %v4412, %v4414
  %v4416 = vrot.slane %v4196, 1
  %v4417 = vrot.slane %v4197, 1
  %v4418 = vsel %vm454, %v4416, %v4417
  %v4419 = vrot.slane %v4198, 1
  %v4420 = vsel %vm454, %v4417, %v4419
  %v4421 = vrot.slane %v4199, 1
  %v4422 = vrot.slane %v4200, 1
  %v4423 = vsel %vm454, %v4421, %v4422
  %v4424 = vrot.slane %v4201, 1
  %v4425 = vsel %vm454, %v4422, %v4424
  %v4426 = vrot.slane %v4202, 1
  %v4427 = vrot.slane %v4203, 1
  %v4428 = vsel %vm454, %v4426, %v4427
  %v4429 = vrot.slane %v4204, 1
  %v4430 = vsel %vm454, %v4427, %v4429
  %v4431 = vrot.slane %v4205, 1
  %v4432 = vrot.slane %v4206, 1
  %v4433 = vsel %vm454, %v4431, %v4432
  %v4434 = vrot.slane %v4207, 1
  %v4435 = vsel %vm454, %v4432, %v4434
  %v4436 = vrot.slane %v4208, 1
  %v4437 = vrot.slane %v4209, 1
  %v4438 = vsel %vm454, %v4436, %v4437
  %v4439 = vrot.slane %v4210, 1
  %v4440 = vsel %vm454, %v4437, %v4439
  %v4441 = vrot.slane %v4211, 1
  %v4442 = vrot.slane %v4212, 1
  %v4443 = vsel %vm454, %v4441, %v4442
  %v4444 = vrot.slane %v4213, 1
  %v4445 = vsel %vm454, %v4442, %v4444
  %v4446 = vrot.slane %v4214, 1
  %v4447 = vrot.slane %v4215, 1
  %v4448 = vsel %vm454, %v4446, %v4447
  %v4449 = vrot.slane %v4216, 1
  %v4450 = vsel %vm454, %v4447, %v4449
  %v4451 = vrot.slane %v4217, 1
  %v4452 = vrot.slane %v4218, 1
  %v4453 = vsel %vm454, %v4451, %v4452
  %v4454 = vrot.slane %v4219, 1
  %v4455 = vsel %vm454, %v4452, %v4454
  %v4456 = vrot.slane %v4226, 1
  %v4457 = vrot.slane %v4227, 1
  %v4458 = vsel %vm454, %v4456, %v4457
  %v4459 = vrot.slane %v4228, 1
  %v4460 = vsel %vm454, %v4457, %v4459
  %v4461 = vrot.slane %v4229, 1
  %v4462 = vrot.slane %v4230, 1
  %v4463 = vsel %vm454, %v4461, %v4462
  %v4464 = vrot.slane %v4231, 1
  %v4465 = vsel %vm454, %v4462, %v4464
  %v4466 = vrot.slane %v4232, 1
  %v4467 = vrot.slane %v4233, 1
  %v4468 = vsel %vm454, %v4466, %v4467
  %v4469 = vrot.slane %v4234, 1
  %v4470 = vsel %vm454, %v4467, %v4469
  %v4471 = vrot.slane %v4235, 1
  %v4472 = vrot.slane %v4236, 1
  %v4473 = vsel %vm454, %v4471, %v4472
  %v4474 = vrot.slane %v4237, 1
  %v4475 = vsel %vm454, %v4472, %v4474
  %v4476 = vrot.slane %v4238, 1
  %v4477 = vrot.slane %v4239, 1
  %v4478 = vsel %vm454, %v4476, %v4477
  %v4479 = vrot.slane %v4240, 1
  %v4480 = vsel %vm454, %v4477, %v4479
  %v4481 = vrot.slane %v4241, 1
  %v4482 = vrot.slane %v4242, 1
  %v4483 = vsel %vm454, %v4481, %v4482
  %v4484 = vrot.slane %v4243, 1
  %v4485 = vsel %vm454, %v4482, %v4484
  %v4486 = vrot.slane %v4244, 1
  %v4487 = vrot.slane %v4245, 1
  %v4488 = vsel %vm454, %v4486, %v4487
  %v4489 = vrot.slane %v4246, 1
  %v4490 = vsel %vm454, %v4487, %v4489
  %v4491 = vrot.slane %v4247, 1
  %v4492 = vrot.slane %v4248, 1
  %v4493 = vsel %vm454, %v4491, %v4492
  %v4494 = vrot.slane %v4249, 1
  %v4495 = vsel %vm454, %v4492, %v4494
  %v4496 = vrot.slane %v4250, 1
  %v4497 = vrot.slane %v4251, 1
  %v4498 = vsel %vm454, %v4496, %v4497
  %v4499 = vrot.slane %v4252, 1
  %v4500 = vsel %vm454, %v4497, %v4499
  %v4501 = vrot.slane %v4253, 1
  %v4502 = vrot.slane %v4254, 1
  %v4503 = vsel %vm454, %v4501, %v4502
  %v4504 = vrot.slane %v4255, 1
  %v4505 = vsel %vm454, %v4502, %v4504
  %v4506 = vrot.slane %v4256, 1
  %v4507 = vrot.slane %v4257, 1
  %v4508 = vsel %vm454, %v4506, %v4507
  %v4509 = vrot.slane %v4258, 1
  %v4510 = vsel %vm454, %v4507, %v4509
  %v4511 = vrot.slane %v4259, 1
  %v4512 = vrot.slane %v4260, 1
  %v4513 = vsel %vm454, %v4511, %v4512
  %v4514 = vrot.slane %v4261, 1
  %v4515 = vsel %vm454, %v4512, %v4514
  %v4516 = vrot.slane %v4262, 1
  %v4517 = vrot.slane %v4263, 1
  %v4518 = vsel %vm454, %v4516, %v4517
  %v4519 = vrot.slane %v4264, 1
  %v4520 = vsel %vm454, %v4517, %v4519
  %v4521 = vrot.slane %v4265, 1
  %v4522 = vrot.slane %v4266, 1
  %v4523 = vsel %vm454, %v4521, %v4522
  %v4524 = vrot.slane %v4267, 1
  %v4525 = vsel %vm454, %v4522, %v4524
  %v4526 = vrot.slane %v4268, 1
  %v4527 = vrot.slane %v4269, 1
  %v4528 = vsel %vm454, %v4526, %v4527
  %v4529 = vrot.slane %v4270, 1
  %v4530 = vsel %vm454, %v4527, %v4529
  %v4531 = vrot.slane %v4271, 1
  %v4532 = vrot.slane %v4272, 1
  %v4533 = vsel %vm454, %v4531, %v4532
  %v4534 = vrot.slane %v4273, 1
  %v4535 = vsel %vm454, %v4532, %v4534
  %4536 = vrot.lane.b32.xlu0 %v4378, 8
  %v4537 = vpop.permute.xlu0 %4536
  %4538 = vrot.lane.b32.xlu0 %v4380, 8
  %v4539 = vpop.permute.xlu0 %4538
  %4540 = vrot.lane.b32.xlu0 %v4383, 8
  %v4541 = vpop.permute.xlu0 %4540
  %4542 = vrot.lane.b32.xlu0 %v4385, 8
  %v4543 = vpop.permute.xlu0 %4542
  %4544 = vrot.lane.b32.xlu0 %v4388, 8
  %v4545 = vpop.permute.xlu0 %4544
  %4546 = vrot.lane.b32.xlu0 %v4390, 8
  %v4547 = vpop.permute.xlu0 %4546
  %4548 = vrot.lane.b32.xlu0 %v4393, 8
  %v4549 = vpop.permute.xlu0 %4548
  %4550 = vrot.lane.b32.xlu0 %v4395, 8
  %v4551 = vpop.permute.xlu0 %4550
  %4552 = vrot.lane.b32.xlu0 %v4398, 8
  %v4553 = vpop.permute.xlu0 %4552
  %4554 = vrot.lane.b32.xlu0 %v4400, 8
  %v4555 = vpop.permute.xlu0 %4554
  %4556 = vrot.lane.b32.xlu0 %v4403, 8
  %v4557 = vpop.permute.xlu0 %4556
  %4558 = vrot.lane.b32.xlu0 %v4405, 8
  %v4559 = vpop.permute.xlu0 %4558
  %4560 = vrot.lane.b32.xlu0 %v4408, 8
  %v4561 = vpop.permute.xlu0 %4560
  %4562 = vrot.lane.b32.xlu0 %v4410, 8
  %v4563 = vpop.permute.xlu0 %4562
  %4564 = vrot.lane.b32.xlu0 %v4413, 8
  %v4565 = vpop.permute.xlu0 %4564
  %4566 = vrot.lane.b32.xlu0 %v4415, 8
  %v4567 = vpop.permute.xlu0 %4566
  %4568 = vrot.lane.b32.xlu0 %v4418, 8
  %v4569 = vpop.permute.xlu0 %4568
  %4570 = vrot.lane.b32.xlu0 %v4420, 8
  %v4571 = vpop.permute.xlu0 %4570
  %4572 = vrot.lane.b32.xlu0 %v4423, 8
  %v4573 = vpop.permute.xlu0 %4572
  %4574 = vrot.lane.b32.xlu0 %v4425, 8
  %v4575 = vpop.permute.xlu0 %4574
  %4576 = vrot.lane.b32.xlu0 %v4428, 8
  %v4577 = vpop.permute.xlu0 %4576
  %4578 = vrot.lane.b32.xlu0 %v4430, 8
  %v4579 = vpop.permute.xlu0 %4578
  %4580 = vrot.lane.b32.xlu0 %v4433, 8
  %v4581 = vpop.permute.xlu0 %4580
  %4582 = vrot.lane.b32.xlu0 %v4435, 8
  %v4583 = vpop.permute.xlu0 %4582
  %4584 = vrot.lane.b32.xlu0 %v4438, 8
  %v4585 = vpop.permute.xlu0 %4584
  %4586 = vrot.lane.b32.xlu0 %v4440, 8
  %v4587 = vpop.permute.xlu0 %4586
  %4588 = vrot.lane.b32.xlu0 %v4443, 8
  %v4589 = vpop.permute.xlu0 %4588
  %4590 = vrot.lane.b32.xlu0 %v4445, 8
  %v4591 = vpop.permute.xlu0 %4590
  %4592 = vrot.lane.b32.xlu0 %v4448, 8
  %v4593 = vpop.permute.xlu0 %4592
  %4594 = vrot.lane.b32.xlu0 %v4450, 8
  %v4595 = vpop.permute.xlu0 %4594
  %4596 = vrot.lane.b32.xlu0 %v4453, 8
  %v4597 = vpop.permute.xlu0 %4596
  %4598 = vrot.lane.b32.xlu0 %v4455, 8
  %v4599 = vpop.permute.xlu0 %4598
  %4600 = vrot.lane.b32.xlu0 %v4458, 8
  %v4601 = vpop.permute.xlu0 %4600
  %4602 = vrot.lane.b32.xlu0 %v4460, 8
  %v4603 = vpop.permute.xlu0 %4602
  %4604 = vrot.lane.b32.xlu0 %v4463, 8
  %v4605 = vpop.permute.xlu0 %4604
  %4606 = vrot.lane.b32.xlu0 %v4465, 8
  %v4607 = vpop.permute.xlu0 %4606
  %4608 = vrot.lane.b32.xlu0 %v4468, 8
  %v4609 = vpop.permute.xlu0 %4608
  %4610 = vrot.lane.b32.xlu0 %v4470, 8
  %v4611 = vpop.permute.xlu0 %4610
  %4612 = vrot.lane.b32.xlu0 %v4473, 8
  %v4613 = vpop.permute.xlu0 %4612
  %4614 = vrot.lane.b32.xlu0 %v4475, 8
  %v4615 = vpop.permute.xlu0 %4614
  %4616 = vrot.lane.b32.xlu0 %v4478, 8
  %v4617 = vpop.permute.xlu0 %4616
  %4618 = vrot.lane.b32.xlu0 %v4480, 8
  %v4619 = vpop.permute.xlu0 %4618
  %4620 = vrot.lane.b32.xlu0 %v4483, 8
  %v4621 = vpop.permute.xlu0 %4620
  %4622 = vrot.lane.b32.xlu0 %v4485, 8
  %v4623 = vpop.permute.xlu0 %4622
  %4624 = vrot.lane.b32.xlu0 %v4488, 8
  %v4625 = vpop.permute.xlu0 %4624
  %4626 = vrot.lane.b32.xlu0 %v4490, 8
  %v4627 = vpop.permute.xlu0 %4626
  %4628 = vrot.lane.b32.xlu0 %v4493, 8
  %v4629 = vpop.permute.xlu0 %4628
  %4630 = vrot.lane.b32.xlu0 %v4495, 8
  %v4631 = vpop.permute.xlu0 %4630
  %4632 = vrot.lane.b32.xlu0 %v4498, 8
  %v4633 = vpop.permute.xlu0 %4632
  %4634 = vrot.lane.b32.xlu0 %v4500, 8
  %v4635 = vpop.permute.xlu0 %4634
  %4636 = vrot.lane.b32.xlu0 %v4503, 8
  %v4637 = vpop.permute.xlu0 %4636
  %4638 = vrot.lane.b32.xlu0 %v4505, 8
  %v4639 = vpop.permute.xlu0 %4638
  %4640 = vrot.lane.b32.xlu0 %v4508, 8
  %v4641 = vpop.permute.xlu0 %4640
  %4642 = vrot.lane.b32.xlu0 %v4510, 8
  %v4643 = vpop.permute.xlu0 %4642
  %4644 = vrot.lane.b32.xlu0 %v4513, 8
  %v4645 = vpop.permute.xlu0 %4644
  %4646 = vrot.lane.b32.xlu0 %v4515, 8
  %v4647 = vpop.permute.xlu0 %4646
  %4648 = vrot.lane.b32.xlu0 %v4518, 8
  %v4649 = vpop.permute.xlu0 %4648
  %4650 = vrot.lane.b32.xlu0 %v4520, 8
  %v4651 = vpop.permute.xlu0 %4650
  %4652 = vrot.lane.b32.xlu0 %v4523, 8
  %v4653 = vpop.permute.xlu0 %4652
  %4654 = vrot.lane.b32.xlu0 %v4525, 8
  %v4655 = vpop.permute.xlu0 %4654
  %4656 = vrot.lane.b32.xlu0 %v4528, 8
  %v4657 = vpop.permute.xlu0 %4656
  %4658 = vrot.lane.b32.xlu0 %v4530, 8
  %v4659 = vpop.permute.xlu0 %4658
  %4660 = vrot.lane.b32.xlu0 %v4533, 8
  %v4661 = vpop.permute.xlu0 %4660
  %4662 = vrot.lane.b32.xlu0 %v4535, 8
  %v4663 = vpop.permute.xlu0 %4662
  %v4728 = vrot.slane %v4172, 2
  %v4729 = vrot.slane %v4173, 2
  %v4730 = vsel %vm807, %v4728, %v4729
  %v4731 = vrot.slane %v4174, 2
  %v4732 = vsel %vm807, %v4729, %v4731
  %v4733 = vrot.slane %v4175, 2
  %v4734 = vrot.slane %v4176, 2
  %v4735 = vsel %vm807, %v4733, %v4734
  %v4736 = vrot.slane %v4177, 2
  %v4737 = vsel %vm807, %v4734, %v4736
  %v4738 = vrot.slane %v4178, 2
  %v4739 = vrot.slane %v4179, 2
  %v4740 = vsel %vm807, %v4738, %v4739
  %v4741 = vrot.slane %v4180, 2
  %v4742 = vsel %vm807, %v4739, %v4741
  %v4743 = vrot.slane %v4181, 2
  %v4744 = vrot.slane %v4182, 2
  %v4745 = vsel %vm807, %v4743, %v4744
  %v4746 = vrot.slane %v4183, 2
  %v4747 = vsel %vm807, %v4744, %v4746
  %v4748 = vrot.slane %v4184, 2
  %v4749 = vrot.slane %v4185, 2
  %v4750 = vsel %vm807, %v4748, %v4749
  %v4751 = vrot.slane %v4186, 2
  %v4752 = vsel %vm807, %v4749, %v4751
  %v4753 = vrot.slane %v4187, 2
  %v4754 = vrot.slane %v4188, 2
  %v4755 = vsel %vm807, %v4753, %v4754
  %v4756 = vrot.slane %v4189, 2
  %v4757 = vsel %vm807, %v4754, %v4756
  %v4758 = vrot.slane %v4190, 2
  %v4759 = vrot.slane %v4191, 2
  %v4760 = vsel %vm807, %v4758, %v4759
  %v4761 = vrot.slane %v4192, 2
  %v4762 = vsel %vm807, %v4759, %v4761
  %v4763 = vrot.slane %v4193, 2
  %v4764 = vrot.slane %v4194, 2
  %v4765 = vsel %vm807, %v4763, %v4764
  %v4766 = vrot.slane %v4195, 2
  %v4767 = vsel %vm807, %v4764, %v4766
  %v4768 = vrot.slane %v4196, 2
  %v4769 = vrot.slane %v4197, 2
  %v4770 = vsel %vm807, %v4768, %v4769
  %v4771 = vrot.slane %v4198, 2
  %v4772 = vsel %vm807, %v4769, %v4771
  %v4773 = vrot.slane %v4199, 2
  %v4774 = vrot.slane %v4200, 2
  %v4775 = vsel %vm807, %v4773, %v4774
  %v4776 = vrot.slane %v4201, 2
  %v4777 = vsel %vm807, %v4774, %v4776
  %v4778 = vrot.slane %v4202, 2
  %v4779 = vrot.slane %v4203, 2
  %v4780 = vsel %vm807, %v4778, %v4779
  %v4781 = vrot.slane %v4204, 2
  %v4782 = vsel %vm807, %v4779, %v4781
  %v4783 = vrot.slane %v4205, 2
  %v4784 = vrot.slane %v4206, 2
  %v4785 = vsel %vm807, %v4783, %v4784
  %v4786 = vrot.slane %v4207, 2
  %v4787 = vsel %vm807, %v4784, %v4786
  %v4788 = vrot.slane %v4208, 2
  %v4789 = vrot.slane %v4209, 2
  %v4790 = vsel %vm807, %v4788, %v4789
  %v4791 = vrot.slane %v4210, 2
  %v4792 = vsel %vm807, %v4789, %v4791
  %v4793 = vrot.slane %v4211, 2
  %v4794 = vrot.slane %v4212, 2
  %v4795 = vsel %vm807, %v4793, %v4794
  %v4796 = vrot.slane %v4213, 2
  %v4797 = vsel %vm807, %v4794, %v4796
  %v4798 = vrot.slane %v4214, 2
  %v4799 = vrot.slane %v4215, 2
  %v4800 = vsel %vm807, %v4798, %v4799
  %v4801 = vrot.slane %v4216, 2
  %v4802 = vsel %vm807, %v4799, %v4801
  %v4803 = vrot.slane %v4217, 2
  %v4804 = vrot.slane %v4218, 2
  %v4805 = vsel %vm807, %v4803, %v4804
  %v4806 = vrot.slane %v4219, 2
  %v4807 = vsel %vm807, %v4804, %v4806
  %v4808 = vrot.slane %v4226, 2
  %v4809 = vrot.slane %v4227, 2
  %v4810 = vsel %vm807, %v4808, %v4809
  %v4811 = vrot.slane %v4228, 2
  %v4812 = vsel %vm807, %v4809, %v4811
  %v4813 = vrot.slane %v4229, 2
  %v4814 = vrot.slane %v4230, 2
  %v4815 = vsel %vm807, %v4813, %v4814
  %v4816 = vrot.slane %v4231, 2
  %v4817 = vsel %vm807, %v4814, %v4816
  %v4818 = vrot.slane %v4232, 2
  %v4819 = vrot.slane %v4233, 2
  %v4820 = vsel %vm807, %v4818, %v4819
  %v4821 = vrot.slane %v4234, 2
  %v4822 = vsel %vm807, %v4819, %v4821
  %v4823 = vrot.slane %v4235, 2
  %v4824 = vrot.slane %v4236, 2
  %v4825 = vsel %vm807, %v4823, %v4824
  %v4826 = vrot.slane %v4237, 2
  %v4827 = vsel %vm807, %v4824, %v4826
  %v4828 = vrot.slane %v4238, 2
  %v4829 = vrot.slane %v4239, 2
  %v4830 = vsel %vm807, %v4828, %v4829
  %v4831 = vrot.slane %v4240, 2
  %v4832 = vsel %vm807, %v4829, %v4831
  %v4833 = vrot.slane %v4241, 2
  %v4834 = vrot.slane %v4242, 2
  %v4835 = vsel %vm807, %v4833, %v4834
  %v4836 = vrot.slane %v4243, 2
  %v4837 = vsel %vm807, %v4834, %v4836
  %v4838 = vrot.slane %v4244, 2
  %v4839 = vrot.slane %v4245, 2
  %v4840 = vsel %vm807, %v4838, %v4839
  %v4841 = vrot.slane %v4246, 2
  %v4842 = vsel %vm807, %v4839, %v4841
  %v4843 = vrot.slane %v4247, 2
  %v4844 = vrot.slane %v4248, 2
  %v4845 = vsel %vm807, %v4843, %v4844
  %v4846 = vrot.slane %v4249, 2
  %v4847 = vsel %vm807, %v4844, %v4846
  %v4848 = vrot.slane %v4250, 2
  %v4849 = vrot.slane %v4251, 2
  %v4850 = vsel %vm807, %v4848, %v4849
  %v4851 = vrot.slane %v4252, 2
  %v4852 = vsel %vm807, %v4849, %v4851
  %v4853 = vrot.slane %v4253, 2
  %v4854 = vrot.slane %v4254, 2
  %v4855 = vsel %vm807, %v4853, %v4854
  %v4856 = vrot.slane %v4255, 2
  %v4857 = vsel %vm807, %v4854, %v4856
  %v4858 = vrot.slane %v4256, 2
  %v4859 = vrot.slane %v4257, 2
  %v4860 = vsel %vm807, %v4858, %v4859
  %v4861 = vrot.slane %v4258, 2
  %v4862 = vsel %vm807, %v4859, %v4861
  %v4863 = vrot.slane %v4259, 2
  %v4864 = vrot.slane %v4260, 2
  %v4865 = vsel %vm807, %v4863, %v4864
  %v4866 = vrot.slane %v4261, 2
  %v4867 = vsel %vm807, %v4864, %v4866
  %v4868 = vrot.slane %v4262, 2
  %v4869 = vrot.slane %v4263, 2
  %v4870 = vsel %vm807, %v4868, %v4869
  %v4871 = vrot.slane %v4264, 2
  %v4872 = vsel %vm807, %v4869, %v4871
  %v4873 = vrot.slane %v4265, 2
  %v4874 = vrot.slane %v4266, 2
  %v4875 = vsel %vm807, %v4873, %v4874
  %v4876 = vrot.slane %v4267, 2
  %v4877 = vsel %vm807, %v4874, %v4876
  %v4878 = vrot.slane %v4268, 2
  %v4879 = vrot.slane %v4269, 2
  %v4880 = vsel %vm807, %v4878, %v4879
  %v4881 = vrot.slane %v4270, 2
  %v4882 = vsel %vm807, %v4879, %v4881
  %v4883 = vrot.slane %v4271, 2
  %v4884 = vrot.slane %v4272, 2
  %v4885 = vsel %vm807, %v4883, %v4884
  %v4886 = vrot.slane %v4273, 2
  %v4887 = vsel %vm807, %v4884, %v4886
  %4888 = vrot.lane.b32.xlu0 %v4730, 16
  %v4889 = vpop.permute.xlu0 %4888
  %4890 = vrot.lane.b32.xlu0 %v4732, 16
  %v4891 = vpop.permute.xlu0 %4890
  %4892 = vrot.lane.b32.xlu0 %v4735, 16
  %v4893 = vpop.permute.xlu0 %4892
  %4894 = vrot.lane.b32.xlu0 %v4737, 16
  %v4895 = vpop.permute.xlu0 %4894
  %4896 = vrot.lane.b32.xlu0 %v4740, 16
  %v4897 = vpop.permute.xlu0 %4896
  %4898 = vrot.lane.b32.xlu0 %v4742, 16
  %v4899 = vpop.permute.xlu0 %4898
  %4900 = vrot.lane.b32.xlu0 %v4745, 16
  %v4901 = vpop.permute.xlu0 %4900
  %4902 = vrot.lane.b32.xlu0 %v4747, 16
  %v4903 = vpop.permute.xlu0 %4902
  %4904 = vrot.lane.b32.xlu0 %v4750, 16
  %v4905 = vpop.permute.xlu0 %4904
  %4906 = vrot.lane.b32.xlu0 %v4752, 16
  %v4907 = vpop.permute.xlu0 %4906
  %4908 = vrot.lane.b32.xlu0 %v4755, 16
  %v4909 = vpop.permute.xlu0 %4908
  %4910 = vrot.lane.b32.xlu0 %v4757, 16
  %v4911 = vpop.permute.xlu0 %4910
  %4912 = vrot.lane.b32.xlu0 %v4760, 16
  %v4913 = vpop.permute.xlu0 %4912
  %4914 = vrot.lane.b32.xlu0 %v4762, 16
  %v4915 = vpop.permute.xlu0 %4914
  %4916 = vrot.lane.b32.xlu0 %v4765, 16
  %v4917 = vpop.permute.xlu0 %4916
  %4918 = vrot.lane.b32.xlu0 %v4767, 16
  %v4919 = vpop.permute.xlu0 %4918
  %4920 = vrot.lane.b32.xlu0 %v4770, 16
  %v4921 = vpop.permute.xlu0 %4920
  %4922 = vrot.lane.b32.xlu0 %v4772, 16
  %v4923 = vpop.permute.xlu0 %4922
  %4924 = vrot.lane.b32.xlu0 %v4775, 16
  %v4925 = vpop.permute.xlu0 %4924
  %4926 = vrot.lane.b32.xlu0 %v4777, 16
  %v4927 = vpop.permute.xlu0 %4926
  %4928 = vrot.lane.b32.xlu0 %v4780, 16
  %v4929 = vpop.permute.xlu0 %4928
  %4930 = vrot.lane.b32.xlu0 %v4782, 16
  %v4931 = vpop.permute.xlu0 %4930
  %4932 = vrot.lane.b32.xlu0 %v4785, 16
  %v4933 = vpop.permute.xlu0 %4932
  %4934 = vrot.lane.b32.xlu0 %v4787, 16
  %v4935 = vpop.permute.xlu0 %4934
  %4936 = vrot.lane.b32.xlu0 %v4790, 16
  %v4937 = vpop.permute.xlu0 %4936
  %4938 = vrot.lane.b32.xlu0 %v4792, 16
  %v4939 = vpop.permute.xlu0 %4938
  %4940 = vrot.lane.b32.xlu0 %v4795, 16
  %v4941 = vpop.permute.xlu0 %4940
  %4942 = vrot.lane.b32.xlu0 %v4797, 16
  %v4943 = vpop.permute.xlu0 %4942
  %4944 = vrot.lane.b32.xlu0 %v4800, 16
  %v4945 = vpop.permute.xlu0 %4944
  %4946 = vrot.lane.b32.xlu0 %v4802, 16
  %v4947 = vpop.permute.xlu0 %4946
  %4948 = vrot.lane.b32.xlu0 %v4805, 16
  %v4949 = vpop.permute.xlu0 %4948
  %4950 = vrot.lane.b32.xlu0 %v4807, 16
  %v4951 = vpop.permute.xlu0 %4950
  %4952 = vrot.lane.b32.xlu0 %v4810, 16
  %v4953 = vpop.permute.xlu0 %4952
  %4954 = vrot.lane.b32.xlu0 %v4812, 16
  %v4955 = vpop.permute.xlu0 %4954
  %4956 = vrot.lane.b32.xlu0 %v4815, 16
  %v4957 = vpop.permute.xlu0 %4956
  %4958 = vrot.lane.b32.xlu0 %v4817, 16
  %v4959 = vpop.permute.xlu0 %4958
  %4960 = vrot.lane.b32.xlu0 %v4820, 16
  %v4961 = vpop.permute.xlu0 %4960
  %4962 = vrot.lane.b32.xlu0 %v4822, 16
  %v4963 = vpop.permute.xlu0 %4962
  %4964 = vrot.lane.b32.xlu0 %v4825, 16
  %v4965 = vpop.permute.xlu0 %4964
  %4966 = vrot.lane.b32.xlu0 %v4827, 16
  %v4967 = vpop.permute.xlu0 %4966
  %4968 = vrot.lane.b32.xlu0 %v4830, 16
  %v4969 = vpop.permute.xlu0 %4968
  %4970 = vrot.lane.b32.xlu0 %v4832, 16
  %v4971 = vpop.permute.xlu0 %4970
  %4972 = vrot.lane.b32.xlu0 %v4835, 16
  %v4973 = vpop.permute.xlu0 %4972
  %4974 = vrot.lane.b32.xlu0 %v4837, 16
  %v4975 = vpop.permute.xlu0 %4974
  %4976 = vrot.lane.b32.xlu0 %v4840, 16
  %v4977 = vpop.permute.xlu0 %4976
  %4978 = vrot.lane.b32.xlu0 %v4842, 16
  %v4979 = vpop.permute.xlu0 %4978
  %4980 = vrot.lane.b32.xlu0 %v4845, 16
  %v4981 = vpop.permute.xlu0 %4980
  %4982 = vrot.lane.b32.xlu0 %v4847, 16
  %v4983 = vpop.permute.xlu0 %4982
  %4984 = vrot.lane.b32.xlu0 %v4850, 16
  %v4985 = vpop.permute.xlu0 %4984
  %4986 = vrot.lane.b32.xlu0 %v4852, 16
  %v4987 = vpop.permute.xlu0 %4986
  %4988 = vrot.lane.b32.xlu0 %v4855, 16
  %v4989 = vpop.permute.xlu0 %4988
  %4990 = vrot.lane.b32.xlu0 %v4857, 16
  %v4991 = vpop.permute.xlu0 %4990
  %4992 = vrot.lane.b32.xlu0 %v4860, 16
  %v4993 = vpop.permute.xlu0 %4992
  %4994 = vrot.lane.b32.xlu0 %v4862, 16
  %v4995 = vpop.permute.xlu0 %4994
  %4996 = vrot.lane.b32.xlu0 %v4865, 16
  %v4997 = vpop.permute.xlu0 %4996
  %4998 = vrot.lane.b32.xlu0 %v4867, 16
  %v4999 = vpop.permute.xlu0 %4998
  %5000 = vrot.lane.b32.xlu0 %v4870, 16
  %v5001 = vpop.permute.xlu0 %5000
  %5002 = vrot.lane.b32.xlu0 %v4872, 16
  %v5003 = vpop.permute.xlu0 %5002
  %5004 = vrot.lane.b32.xlu0 %v4875, 16
  %v5005 = vpop.permute.xlu0 %5004
  %5006 = vrot.lane.b32.xlu0 %v4877, 16
  %v5007 = vpop.permute.xlu0 %5006
  %5008 = vrot.lane.b32.xlu0 %v4880, 16
  %v5009 = vpop.permute.xlu0 %5008
  %5010 = vrot.lane.b32.xlu0 %v4882, 16
  %v5011 = vpop.permute.xlu0 %5010
  %5012 = vrot.lane.b32.xlu0 %v4885, 16
  %v5013 = vpop.permute.xlu0 %5012
  %5014 = vrot.lane.b32.xlu0 %v4887, 16
  %v5015 = vpop.permute.xlu0 %5014
  %5084 = vrot.lane.b32.xlu0 %v4175, 24
  %v5085 = vpop.permute.xlu0 %5084
  %5086 = vrot.lane.b32.xlu0 %v4176, 24
  %v5087 = vpop.permute.xlu0 %5086
  %5088 = vrot.lane.b32.xlu0 %v4178, 24
  %v5089 = vpop.permute.xlu0 %5088
  %5090 = vrot.lane.b32.xlu0 %v4179, 24
  %v5091 = vpop.permute.xlu0 %5090
  %5092 = vrot.lane.b32.xlu0 %v4181, 24
  %v5093 = vpop.permute.xlu0 %5092
  %5094 = vrot.lane.b32.xlu0 %v4182, 24
  %v5095 = vpop.permute.xlu0 %5094
  %5096 = vrot.lane.b32.xlu0 %v4184, 24
  %v5097 = vpop.permute.xlu0 %5096
  %5098 = vrot.lane.b32.xlu0 %v4185, 24
  %v5099 = vpop.permute.xlu0 %5098
  %5100 = vrot.lane.b32.xlu0 %v4187, 24
  %v5101 = vpop.permute.xlu0 %5100
  %5102 = vrot.lane.b32.xlu0 %v4188, 24
  %v5103 = vpop.permute.xlu0 %5102
  %5104 = vrot.lane.b32.xlu0 %v4190, 24
  %v5105 = vpop.permute.xlu0 %5104
  %5106 = vrot.lane.b32.xlu0 %v4191, 24
  %v5107 = vpop.permute.xlu0 %5106
  %5108 = vrot.lane.b32.xlu0 %v4193, 24
  %v5109 = vpop.permute.xlu0 %5108
  %5110 = vrot.lane.b32.xlu0 %v4194, 24
  %v5111 = vpop.permute.xlu0 %5110
  %5112 = vrot.lane.b32.xlu0 %v4196, 24
  %v5113 = vpop.permute.xlu0 %5112
  %5114 = vrot.lane.b32.xlu0 %v4197, 24
  %v5115 = vpop.permute.xlu0 %5114
  %5116 = vrot.lane.b32.xlu0 %v4199, 24
  %v5117 = vpop.permute.xlu0 %5116
  %5118 = vrot.lane.b32.xlu0 %v4200, 24
  %v5119 = vpop.permute.xlu0 %5118
  %5120 = vrot.lane.b32.xlu0 %v4202, 24
  %v5121 = vpop.permute.xlu0 %5120
  %5122 = vrot.lane.b32.xlu0 %v4203, 24
  %v5123 = vpop.permute.xlu0 %5122
  %5124 = vrot.lane.b32.xlu0 %v4205, 24
  %v5125 = vpop.permute.xlu0 %5124
  %5126 = vrot.lane.b32.xlu0 %v4206, 24
  %v5127 = vpop.permute.xlu0 %5126
  %5128 = vrot.lane.b32.xlu0 %v4208, 24
  %v5129 = vpop.permute.xlu0 %5128
  %5130 = vrot.lane.b32.xlu0 %v4209, 24
  %v5131 = vpop.permute.xlu0 %5130
  %5132 = vrot.lane.b32.xlu0 %v4211, 24
  %v5133 = vpop.permute.xlu0 %5132
  %5134 = vrot.lane.b32.xlu0 %v4212, 24
  %v5135 = vpop.permute.xlu0 %5134
  %5136 = vrot.lane.b32.xlu0 %v4214, 24
  %v5137 = vpop.permute.xlu0 %5136
  %5138 = vrot.lane.b32.xlu0 %v4215, 24
  %v5139 = vpop.permute.xlu0 %5138
  %5140 = vrot.lane.b32.xlu0 %v4217, 24
  %v5141 = vpop.permute.xlu0 %5140
  %5142 = vrot.lane.b32.xlu0 %v4218, 24
  %v5143 = vpop.permute.xlu0 %5142
  %5144 = vrot.lane.b32.xlu0 %v4220, 24
  %v5145 = vpop.permute.xlu0 %5144
  %5146 = vrot.lane.b32.xlu0 %v4221, 24
  %v5147 = vpop.permute.xlu0 %5146
  %5148 = vrot.lane.b32.xlu0 %v4229, 24
  %v5149 = vpop.permute.xlu0 %5148
  %5150 = vrot.lane.b32.xlu0 %v4230, 24
  %v5151 = vpop.permute.xlu0 %5150
  %5152 = vrot.lane.b32.xlu0 %v4232, 24
  %v5153 = vpop.permute.xlu0 %5152
  %5154 = vrot.lane.b32.xlu0 %v4233, 24
  %v5155 = vpop.permute.xlu0 %5154
  %5156 = vrot.lane.b32.xlu0 %v4235, 24
  %v5157 = vpop.permute.xlu0 %5156
  %5158 = vrot.lane.b32.xlu0 %v4236, 24
  %v5159 = vpop.permute.xlu0 %5158
  %5160 = vrot.lane.b32.xlu0 %v4238, 24
  %v5161 = vpop.permute.xlu0 %5160
  %5162 = vrot.lane.b32.xlu0 %v4239, 24
  %v5163 = vpop.permute.xlu0 %5162
  %5164 = vrot.lane.b32.xlu0 %v4241, 24
  %v5165 = vpop.permute.xlu0 %5164
  %5166 = vrot.lane.b32.xlu0 %v4242, 24
  %v5167 = vpop.permute.xlu0 %5166
  %5168 = vrot.lane.b32.xlu0 %v4244, 24
  %v5169 = vpop.permute.xlu0 %5168
  %5170 = vrot.lane.b32.xlu0 %v4245, 24
  %v5171 = vpop.permute.xlu0 %5170
  %5172 = vrot.lane.b32.xlu0 %v4247, 24
  %v5173 = vpop.permute.xlu0 %5172
  %5174 = vrot.lane.b32.xlu0 %v4248, 24
  %v5175 = vpop.permute.xlu0 %5174
  %5176 = vrot.lane.b32.xlu0 %v4250, 24
  %v5177 = vpop.permute.xlu0 %5176
  %5178 = vrot.lane.b32.xlu0 %v4251, 24
  %v5179 = vpop.permute.xlu0 %5178
  %5180 = vrot.lane.b32.xlu0 %v4253, 24
  %v5181 = vpop.permute.xlu0 %5180
  %5182 = vrot.lane.b32.xlu0 %v4254, 24
  %v5183 = vpop.permute.xlu0 %5182
  %5184 = vrot.lane.b32.xlu0 %v4256, 24
  %v5185 = vpop.permute.xlu0 %5184
  %5186 = vrot.lane.b32.xlu0 %v4257, 24
  %v5187 = vpop.permute.xlu0 %5186
  %5188 = vrot.lane.b32.xlu0 %v4259, 24
  %v5189 = vpop.permute.xlu0 %5188
  %5190 = vrot.lane.b32.xlu0 %v4260, 24
  %v5191 = vpop.permute.xlu0 %5190
  %5192 = vrot.lane.b32.xlu0 %v4262, 24
  %v5193 = vpop.permute.xlu0 %5192
  %5194 = vrot.lane.b32.xlu0 %v4263, 24
  %v5195 = vpop.permute.xlu0 %5194
  %5196 = vrot.lane.b32.xlu0 %v4265, 24
  %v5197 = vpop.permute.xlu0 %5196
  %5198 = vrot.lane.b32.xlu0 %v4266, 24
  %v5199 = vpop.permute.xlu0 %5198
  %5200 = vrot.lane.b32.xlu0 %v4268, 24
  %v5201 = vpop.permute.xlu0 %5200
  %5202 = vrot.lane.b32.xlu0 %v4269, 24
  %v5203 = vpop.permute.xlu0 %5202
  %5204 = vrot.lane.b32.xlu0 %v4271, 24
  %v5205 = vpop.permute.xlu0 %5204
  %5206 = vrot.lane.b32.xlu0 %v4272, 24
  %v5207 = vpop.permute.xlu0 %5206
  %5208 = vrot.lane.b32.xlu0 %v4274, 24
  %v5209 = vpop.permute.xlu0 %5208
  %5210 = vrot.lane.b32.xlu0 %v4275, 24
  %v5211 = vpop.permute.xlu0 %5210
  %v5278 = vrot.slane %v4220, 1
  %v5279 = vrot.slane %v4221, 1
  %v5280 = vsel %vm454, %v5278, %v5279
  %v5281 = vrot.slane %v4222, 1
  %v5282 = vsel %vm454, %v5279, %v5281
  %v5283 = vrot.slane %v4274, 1
  %v5284 = vrot.slane %v4275, 1
  %v5285 = vsel %vm454, %v5283, %v5284
  %v5286 = vrot.slane %v4276, 1
  %v5287 = vsel %vm454, %v5284, %v5286
  %5288 = vrot.lane.b32.xlu0 %v4383, 32
  %v5289 = vpop.permute.xlu0 %5288
  %5290 = vrot.lane.b32.xlu0 %v4385, 32
  %v5291 = vpop.permute.xlu0 %5290
  %5292 = vrot.lane.b32.xlu0 %v4388, 32
  %v5293 = vpop.permute.xlu0 %5292
  %5294 = vrot.lane.b32.xlu0 %v4390, 32
  %v5295 = vpop.permute.xlu0 %5294
  %5296 = vrot.lane.b32.xlu0 %v4393, 32
  %v5297 = vpop.permute.xlu0 %5296
  %5298 = vrot.lane.b32.xlu0 %v4395, 32
  %v5299 = vpop.permute.xlu0 %5298
  %5300 = vrot.lane.b32.xlu0 %v4398, 32
  %v5301 = vpop.permute.xlu0 %5300
  %5302 = vrot.lane.b32.xlu0 %v4400, 32
  %v5303 = vpop.permute.xlu0 %5302
  %5304 = vrot.lane.b32.xlu0 %v4403, 32
  %v5305 = vpop.permute.xlu0 %5304
  %5306 = vrot.lane.b32.xlu0 %v4405, 32
  %v5307 = vpop.permute.xlu0 %5306
  %5308 = vrot.lane.b32.xlu0 %v4408, 32
  %v5309 = vpop.permute.xlu0 %5308
  %5310 = vrot.lane.b32.xlu0 %v4410, 32
  %v5311 = vpop.permute.xlu0 %5310
  %5312 = vrot.lane.b32.xlu0 %v4413, 32
  %v5313 = vpop.permute.xlu0 %5312
  %5314 = vrot.lane.b32.xlu0 %v4415, 32
  %v5315 = vpop.permute.xlu0 %5314
  %5316 = vrot.lane.b32.xlu0 %v4418, 32
  %v5317 = vpop.permute.xlu0 %5316
  %5318 = vrot.lane.b32.xlu0 %v4420, 32
  %v5319 = vpop.permute.xlu0 %5318
  %5320 = vrot.lane.b32.xlu0 %v4423, 32
  %v5321 = vpop.permute.xlu0 %5320
  %5322 = vrot.lane.b32.xlu0 %v4425, 32
  %v5323 = vpop.permute.xlu0 %5322
  %5324 = vrot.lane.b32.xlu0 %v4428, 32
  %v5325 = vpop.permute.xlu0 %5324
  %5326 = vrot.lane.b32.xlu0 %v4430, 32
  %v5327 = vpop.permute.xlu0 %5326
  %5328 = vrot.lane.b32.xlu0 %v4433, 32
  %v5329 = vpop.permute.xlu0 %5328
  %5330 = vrot.lane.b32.xlu0 %v4435, 32
  %v5331 = vpop.permute.xlu0 %5330
  %5332 = vrot.lane.b32.xlu0 %v4438, 32
  %v5333 = vpop.permute.xlu0 %5332
  %5334 = vrot.lane.b32.xlu0 %v4440, 32
  %v5335 = vpop.permute.xlu0 %5334
  %5336 = vrot.lane.b32.xlu0 %v4443, 32
  %v5337 = vpop.permute.xlu0 %5336
  %5338 = vrot.lane.b32.xlu0 %v4445, 32
  %v5339 = vpop.permute.xlu0 %5338
  %5340 = vrot.lane.b32.xlu0 %v4448, 32
  %v5341 = vpop.permute.xlu0 %5340
  %5342 = vrot.lane.b32.xlu0 %v4450, 32
  %v5343 = vpop.permute.xlu0 %5342
  %5344 = vrot.lane.b32.xlu0 %v4453, 32
  %v5345 = vpop.permute.xlu0 %5344
  %5346 = vrot.lane.b32.xlu0 %v4455, 32
  %v5347 = vpop.permute.xlu0 %5346
  %5348 = vrot.lane.b32.xlu0 %v5280, 32
  %v5349 = vpop.permute.xlu0 %5348
  %5350 = vrot.lane.b32.xlu0 %v5282, 32
  %v5351 = vpop.permute.xlu0 %5350
  %5352 = vrot.lane.b32.xlu0 %v4463, 32
  %v5353 = vpop.permute.xlu0 %5352
  %5354 = vrot.lane.b32.xlu0 %v4465, 32
  %v5355 = vpop.permute.xlu0 %5354
  %5356 = vrot.lane.b32.xlu0 %v4468, 32
  %v5357 = vpop.permute.xlu0 %5356
  %5358 = vrot.lane.b32.xlu0 %v4470, 32
  %v5359 = vpop.permute.xlu0 %5358
  %5360 = vrot.lane.b32.xlu0 %v4473, 32
  %v5361 = vpop.permute.xlu0 %5360
  %5362 = vrot.lane.b32.xlu0 %v4475, 32
  %v5363 = vpop.permute.xlu0 %5362
  %5364 = vrot.lane.b32.xlu0 %v4478, 32
  %v5365 = vpop.permute.xlu0 %5364
  %5366 = vrot.lane.b32.xlu0 %v4480, 32
  %v5367 = vpop.permute.xlu0 %5366
  %5368 = vrot.lane.b32.xlu0 %v4483, 32
  %v5369 = vpop.permute.xlu0 %5368
  %5370 = vrot.lane.b32.xlu0 %v4485, 32
  %v5371 = vpop.permute.xlu0 %5370
  %5372 = vrot.lane.b32.xlu0 %v4488, 32
  %v5373 = vpop.permute.xlu0 %5372
  %5374 = vrot.lane.b32.xlu0 %v4490, 32
  %v5375 = vpop.permute.xlu0 %5374
  %5376 = vrot.lane.b32.xlu0 %v4493, 32
  %v5377 = vpop.permute.xlu0 %5376
  %5378 = vrot.lane.b32.xlu0 %v4495, 32
  %v5379 = vpop.permute.xlu0 %5378
  %5380 = vrot.lane.b32.xlu0 %v4498, 32
  %v5381 = vpop.permute.xlu0 %5380
  %5382 = vrot.lane.b32.xlu0 %v4500, 32
  %v5383 = vpop.permute.xlu0 %5382
  %5384 = vrot.lane.b32.xlu0 %v4503, 32
  %v5385 = vpop.permute.xlu0 %5384
  %5386 = vrot.lane.b32.xlu0 %v4505, 32
  %v5387 = vpop.permute.xlu0 %5386
  %5388 = vrot.lane.b32.xlu0 %v4508, 32
  %v5389 = vpop.permute.xlu0 %5388
  %5390 = vrot.lane.b32.xlu0 %v4510, 32
  %v5391 = vpop.permute.xlu0 %5390
  %5392 = vrot.lane.b32.xlu0 %v4513, 32
  %v5393 = vpop.permute.xlu0 %5392
  %5394 = vrot.lane.b32.xlu0 %v4515, 32
  %v5395 = vpop.permute.xlu0 %5394
  %5396 = vrot.lane.b32.xlu0 %v4518, 32
  %v5397 = vpop.permute.xlu0 %5396
  %5398 = vrot.lane.b32.xlu0 %v4520, 32
  %v5399 = vpop.permute.xlu0 %5398
  %5400 = vrot.lane.b32.xlu0 %v4523, 32
  %v5401 = vpop.permute.xlu0 %5400
  %5402 = vrot.lane.b32.xlu0 %v4525, 32
  %v5403 = vpop.permute.xlu0 %5402
  %5404 = vrot.lane.b32.xlu0 %v4528, 32
  %v5405 = vpop.permute.xlu0 %5404
  %5406 = vrot.lane.b32.xlu0 %v4530, 32
  %v5407 = vpop.permute.xlu0 %5406
  %5408 = vrot.lane.b32.xlu0 %v4533, 32
  %v5409 = vpop.permute.xlu0 %5408
  %5410 = vrot.lane.b32.xlu0 %v4535, 32
  %v5411 = vpop.permute.xlu0 %5410
  %5412 = vrot.lane.b32.xlu0 %v5285, 32
  %v5413 = vpop.permute.xlu0 %5412
  %5414 = vrot.lane.b32.xlu0 %v5287, 32
  %v5415 = vpop.permute.xlu0 %5414
  %v5480 = vrot.slane %v4220, 2
  %v5481 = vrot.slane %v4221, 2
  %v5482 = vsel %vm807, %v5480, %v5481
  %v5483 = vrot.slane %v4222, 2
  %v5484 = vsel %vm807, %v5481, %v5483
  %v5485 = vrot.slane %v4274, 2
  %v5486 = vrot.slane %v4275, 2
  %v5487 = vsel %vm807, %v5485, %v5486
  %v5488 = vrot.slane %v4276, 2
  %v5489 = vsel %vm807, %v5486, %v5488
  %5490 = vrot.lane.b32.xlu0 %v4735, 40
  %v5491 = vpop.permute.xlu0 %5490
  %5492 = vrot.lane.b32.xlu0 %v4737, 40
  %v5493 = vpop.permute.xlu0 %5492
  %5494 = vrot.lane.b32.xlu0 %v4740, 40
  %v5495 = vpop.permute.xlu0 %5494
  %5496 = vrot.lane.b32.xlu0 %v4742, 40
  %v5497 = vpop.permute.xlu0 %5496
  %5498 = vrot.lane.b32.xlu0 %v4745, 40
  %v5499 = vpop.permute.xlu0 %5498
  %5500 = vrot.lane.b32.xlu0 %v4747, 40
  %v5501 = vpop.permute.xlu0 %5500
  %5502 = vrot.lane.b32.xlu0 %v4750, 40
  %v5503 = vpop.permute.xlu0 %5502
  %5504 = vrot.lane.b32.xlu0 %v4752, 40
  %v5505 = vpop.permute.xlu0 %5504
  %5506 = vrot.lane.b32.xlu0 %v4755, 40
  %v5507 = vpop.permute.xlu0 %5506
  %5508 = vrot.lane.b32.xlu0 %v4757, 40
  %v5509 = vpop.permute.xlu0 %5508
  %5510 = vrot.lane.b32.xlu0 %v4760, 40
  %v5511 = vpop.permute.xlu0 %5510
  %5512 = vrot.lane.b32.xlu0 %v4762, 40
  %v5513 = vpop.permute.xlu0 %5512
  %5514 = vrot.lane.b32.xlu0 %v4765, 40
  %v5515 = vpop.permute.xlu0 %5514
  %5516 = vrot.lane.b32.xlu0 %v4767, 40
  %v5517 = vpop.permute.xlu0 %5516
  %5518 = vrot.lane.b32.xlu0 %v4770, 40
  %v5519 = vpop.permute.xlu0 %5518
  %5520 = vrot.lane.b32.xlu0 %v4772, 40
  %v5521 = vpop.permute.xlu0 %5520
  %5522 = vrot.lane.b32.xlu0 %v4775, 40
  %v5523 = vpop.permute.xlu0 %5522
  %5524 = vrot.lane.b32.xlu0 %v4777, 40
  %v5525 = vpop.permute.xlu0 %5524
  %5526 = vrot.lane.b32.xlu0 %v4780, 40
  %v5527 = vpop.permute.xlu0 %5526
  %5528 = vrot.lane.b32.xlu0 %v4782, 40
  %v5529 = vpop.permute.xlu0 %5528
  %5530 = vrot.lane.b32.xlu0 %v4785, 40
  %v5531 = vpop.permute.xlu0 %5530
  %5532 = vrot.lane.b32.xlu0 %v4787, 40
  %v5533 = vpop.permute.xlu0 %5532
  %5534 = vrot.lane.b32.xlu0 %v4790, 40
  %v5535 = vpop.permute.xlu0 %5534
  %5536 = vrot.lane.b32.xlu0 %v4792, 40
  %v5537 = vpop.permute.xlu0 %5536
  %5538 = vrot.lane.b32.xlu0 %v4795, 40
  %v5539 = vpop.permute.xlu0 %5538
  %5540 = vrot.lane.b32.xlu0 %v4797, 40
  %v5541 = vpop.permute.xlu0 %5540
  %5542 = vrot.lane.b32.xlu0 %v4800, 40
  %v5543 = vpop.permute.xlu0 %5542
  %5544 = vrot.lane.b32.xlu0 %v4802, 40
  %v5545 = vpop.permute.xlu0 %5544
  %5546 = vrot.lane.b32.xlu0 %v4805, 40
  %v5547 = vpop.permute.xlu0 %5546
  %5548 = vrot.lane.b32.xlu0 %v4807, 40
  %v5549 = vpop.permute.xlu0 %5548
  %5550 = vrot.lane.b32.xlu0 %v5482, 40
  %v5551 = vpop.permute.xlu0 %5550
  %5552 = vrot.lane.b32.xlu0 %v5484, 40
  %v5553 = vpop.permute.xlu0 %5552
  %5554 = vrot.lane.b32.xlu0 %v4815, 40
  %v5555 = vpop.permute.xlu0 %5554
  %5556 = vrot.lane.b32.xlu0 %v4817, 40
  %v5557 = vpop.permute.xlu0 %5556
  %5558 = vrot.lane.b32.xlu0 %v4820, 40
  %v5559 = vpop.permute.xlu0 %5558
  %5560 = vrot.lane.b32.xlu0 %v4822, 40
  %v5561 = vpop.permute.xlu0 %5560
  %5562 = vrot.lane.b32.xlu0 %v4825, 40
  %v5563 = vpop.permute.xlu0 %5562
  %5564 = vrot.lane.b32.xlu0 %v4827, 40
  %v5565 = vpop.permute.xlu0 %5564
  %5566 = vrot.lane.b32.xlu0 %v4830, 40
  %v5567 = vpop.permute.xlu0 %5566
  %5568 = vrot.lane.b32.xlu0 %v4832, 40
  %v5569 = vpop.permute.xlu0 %5568
  %5570 = vrot.lane.b32.xlu0 %v4835, 40
  %v5571 = vpop.permute.xlu0 %5570
  %5572 = vrot.lane.b32.xlu0 %v4837, 40
  %v5573 = vpop.permute.xlu0 %5572
  %5574 = vrot.lane.b32.xlu0 %v4840, 40
  %v5575 = vpop.permute.xlu0 %5574
  %5576 = vrot.lane.b32.xlu0 %v4842, 40
  %v5577 = vpop.permute.xlu0 %5576
  %5578 = vrot.lane.b32.xlu0 %v4845, 40
  %v5579 = vpop.permute.xlu0 %5578
  %5580 = vrot.lane.b32.xlu0 %v4847, 40
  %v5581 = vpop.permute.xlu0 %5580
  %5582 = vrot.lane.b32.xlu0 %v4850, 40
  %v5583 = vpop.permute.xlu0 %5582
  %5584 = vrot.lane.b32.xlu0 %v4852, 40
  %v5585 = vpop.permute.xlu0 %5584
  %5586 = vrot.lane.b32.xlu0 %v4855, 40
  %v5587 = vpop.permute.xlu0 %5586
  %5588 = vrot.lane.b32.xlu0 %v4857, 40
  %v5589 = vpop.permute.xlu0 %5588
  %5590 = vrot.lane.b32.xlu0 %v4860, 40
  %v5591 = vpop.permute.xlu0 %5590
  %5592 = vrot.lane.b32.xlu0 %v4862, 40
  %v5593 = vpop.permute.xlu0 %5592
  %5594 = vrot.lane.b32.xlu0 %v4865, 40
  %v5595 = vpop.permute.xlu0 %5594
  %5596 = vrot.lane.b32.xlu0 %v4867, 40
  %v5597 = vpop.permute.xlu0 %5596
  %5598 = vrot.lane.b32.xlu0 %v4870, 40
  %v5599 = vpop.permute.xlu0 %5598
  %5600 = vrot.lane.b32.xlu0 %v4872, 40
  %v5601 = vpop.permute.xlu0 %5600
  %5602 = vrot.lane.b32.xlu0 %v4875, 40
  %v5603 = vpop.permute.xlu0 %5602
  %5604 = vrot.lane.b32.xlu0 %v4877, 40
  %v5605 = vpop.permute.xlu0 %5604
  %5606 = vrot.lane.b32.xlu0 %v4880, 40
  %v5607 = vpop.permute.xlu0 %5606
  %5608 = vrot.lane.b32.xlu0 %v4882, 40
  %v5609 = vpop.permute.xlu0 %5608
  %5610 = vrot.lane.b32.xlu0 %v4885, 40
  %v5611 = vpop.permute.xlu0 %5610
  %5612 = vrot.lane.b32.xlu0 %v4887, 40
  %v5613 = vpop.permute.xlu0 %5612
  %5614 = vrot.lane.b32.xlu0 %v5487, 40
  %v5615 = vpop.permute.xlu0 %5614
  %5616 = vrot.lane.b32.xlu0 %v5489, 40
  %v5617 = vpop.permute.xlu0 %5616
  %5686 = vrot.lane.b32.xlu0 %v4178, 48
  %v5687 = vpop.permute.xlu0 %5686
  %5688 = vrot.lane.b32.xlu0 %v4179, 48
  %v5689 = vpop.permute.xlu0 %5688
  %5690 = vrot.lane.b32.xlu0 %v4181, 48
  %v5691 = vpop.permute.xlu0 %5690
  %5692 = vrot.lane.b32.xlu0 %v4182, 48
  %v5693 = vpop.permute.xlu0 %5692
  %5694 = vrot.lane.b32.xlu0 %v4184, 48
  %v5695 = vpop.permute.xlu0 %5694
  %5696 = vrot.lane.b32.xlu0 %v4185, 48
  %v5697 = vpop.permute.xlu0 %5696
  %5698 = vrot.lane.b32.xlu0 %v4187, 48
  %v5699 = vpop.permute.xlu0 %5698
  %5700 = vrot.lane.b32.xlu0 %v4188, 48
  %v5701 = vpop.permute.xlu0 %5700
  %5702 = vrot.lane.b32.xlu0 %v4190, 48
  %v5703 = vpop.permute.xlu0 %5702
  %5704 = vrot.lane.b32.xlu0 %v4191, 48
  %v5705 = vpop.permute.xlu0 %5704
  %5706 = vrot.lane.b32.xlu0 %v4193, 48
  %v5707 = vpop.permute.xlu0 %5706
  %5708 = vrot.lane.b32.xlu0 %v4194, 48
  %v5709 = vpop.permute.xlu0 %5708
  %5710 = vrot.lane.b32.xlu0 %v4196, 48
  %v5711 = vpop.permute.xlu0 %5710
  %5712 = vrot.lane.b32.xlu0 %v4197, 48
  %v5713 = vpop.permute.xlu0 %5712
  %5714 = vrot.lane.b32.xlu0 %v4199, 48
  %v5715 = vpop.permute.xlu0 %5714
  %5716 = vrot.lane.b32.xlu0 %v4200, 48
  %v5717 = vpop.permute.xlu0 %5716
  %5718 = vrot.lane.b32.xlu0 %v4202, 48
  %v5719 = vpop.permute.xlu0 %5718
  %5720 = vrot.lane.b32.xlu0 %v4203, 48
  %v5721 = vpop.permute.xlu0 %5720
  %5722 = vrot.lane.b32.xlu0 %v4205, 48
  %v5723 = vpop.permute.xlu0 %5722
  %5724 = vrot.lane.b32.xlu0 %v4206, 48
  %v5725 = vpop.permute.xlu0 %5724
  %5726 = vrot.lane.b32.xlu0 %v4208, 48
  %v5727 = vpop.permute.xlu0 %5726
  %5728 = vrot.lane.b32.xlu0 %v4209, 48
  %v5729 = vpop.permute.xlu0 %5728
  %5730 = vrot.lane.b32.xlu0 %v4211, 48
  %v5731 = vpop.permute.xlu0 %5730
  %5732 = vrot.lane.b32.xlu0 %v4212, 48
  %v5733 = vpop.permute.xlu0 %5732
  %5734 = vrot.lane.b32.xlu0 %v4214, 48
  %v5735 = vpop.permute.xlu0 %5734
  %5736 = vrot.lane.b32.xlu0 %v4215, 48
  %v5737 = vpop.permute.xlu0 %5736
  %5738 = vrot.lane.b32.xlu0 %v4217, 48
  %v5739 = vpop.permute.xlu0 %5738
  %5740 = vrot.lane.b32.xlu0 %v4218, 48
  %v5741 = vpop.permute.xlu0 %5740
  %5742 = vrot.lane.b32.xlu0 %v4220, 48
  %v5743 = vpop.permute.xlu0 %5742
  %5744 = vrot.lane.b32.xlu0 %v4221, 48
  %v5745 = vpop.permute.xlu0 %5744
  %5746 = vrot.lane.b32.xlu0 %v4223, 48
  %v5747 = vpop.permute.xlu0 %5746
  %5748 = vrot.lane.b32.xlu0 %v4224, 48
  %v5749 = vpop.permute.xlu0 %5748
  %5750 = vrot.lane.b32.xlu0 %v4232, 48
  %v5751 = vpop.permute.xlu0 %5750
  %5752 = vrot.lane.b32.xlu0 %v4233, 48
  %v5753 = vpop.permute.xlu0 %5752
  %5754 = vrot.lane.b32.xlu0 %v4235, 48
  %v5755 = vpop.permute.xlu0 %5754
  %5756 = vrot.lane.b32.xlu0 %v4236, 48
  %v5757 = vpop.permute.xlu0 %5756
  %5758 = vrot.lane.b32.xlu0 %v4238, 48
  %v5759 = vpop.permute.xlu0 %5758
  %5760 = vrot.lane.b32.xlu0 %v4239, 48
  %v5761 = vpop.permute.xlu0 %5760
  %5762 = vrot.lane.b32.xlu0 %v4241, 48
  %v5763 = vpop.permute.xlu0 %5762
  %5764 = vrot.lane.b32.xlu0 %v4242, 48
  %v5765 = vpop.permute.xlu0 %5764
  %5766 = vrot.lane.b32.xlu0 %v4244, 48
  %v5767 = vpop.permute.xlu0 %5766
  %5768 = vrot.lane.b32.xlu0 %v4245, 48
  %v5769 = vpop.permute.xlu0 %5768
  %5770 = vrot.lane.b32.xlu0 %v4247, 48
  %v5771 = vpop.permute.xlu0 %5770
  %5772 = vrot.lane.b32.xlu0 %v4248, 48
  %v5773 = vpop.permute.xlu0 %5772
  %5774 = vrot.lane.b32.xlu0 %v4250, 48
  %v5775 = vpop.permute.xlu0 %5774
  %5776 = vrot.lane.b32.xlu0 %v4251, 48
  %v5777 = vpop.permute.xlu0 %5776
  %5778 = vrot.lane.b32.xlu0 %v4253, 48
  %v5779 = vpop.permute.xlu0 %5778
  %5780 = vrot.lane.b32.xlu0 %v4254, 48
  %v5781 = vpop.permute.xlu0 %5780
  %5782 = vrot.lane.b32.xlu0 %v4256, 48
  %v5783 = vpop.permute.xlu0 %5782
  %5784 = vrot.lane.b32.xlu0 %v4257, 48
  %v5785 = vpop.permute.xlu0 %5784
  %5786 = vrot.lane.b32.xlu0 %v4259, 48
  %v5787 = vpop.permute.xlu0 %5786
  %5788 = vrot.lane.b32.xlu0 %v4260, 48
  %v5789 = vpop.permute.xlu0 %5788
  %5790 = vrot.lane.b32.xlu0 %v4262, 48
  %v5791 = vpop.permute.xlu0 %5790
  %5792 = vrot.lane.b32.xlu0 %v4263, 48
  %v5793 = vpop.permute.xlu0 %5792
  %5794 = vrot.lane.b32.xlu0 %v4265, 48
  %v5795 = vpop.permute.xlu0 %5794
  %5796 = vrot.lane.b32.xlu0 %v4266, 48
  %v5797 = vpop.permute.xlu0 %5796
  %5798 = vrot.lane.b32.xlu0 %v4268, 48
  %v5799 = vpop.permute.xlu0 %5798
  %5800 = vrot.lane.b32.xlu0 %v4269, 48
  %v5801 = vpop.permute.xlu0 %5800
  %5802 = vrot.lane.b32.xlu0 %v4271, 48
  %v5803 = vpop.permute.xlu0 %5802
  %5804 = vrot.lane.b32.xlu0 %v4272, 48
  %v5805 = vpop.permute.xlu0 %5804
  %5806 = vrot.lane.b32.xlu0 %v4274, 48
  %v5807 = vpop.permute.xlu0 %5806
  %5808 = vrot.lane.b32.xlu0 %v4275, 48
  %v5809 = vpop.permute.xlu0 %5808
  %5810 = vrot.lane.b32.xlu0 %v4277, 48
  %v5811 = vpop.permute.xlu0 %5810
  %5812 = vrot.lane.b32.xlu0 %v4278, 48
  %v5813 = vpop.permute.xlu0 %5812
  %v5880 = vrot.slane %v4223, 1
  %v5881 = vrot.slane %v4224, 1
  %v5882 = vsel %vm454, %v5880, %v5881
  %v5883 = vrot.slane %v4225, 1
  %v5884 = vsel %vm454, %v5881, %v5883
  %v5885 = vrot.slane %v4277, 1
  %v5886 = vrot.slane %v4278, 1
  %v5887 = vsel %vm454, %v5885, %v5886
  %v5888 = vrot.slane %v4279, 1
  %v5889 = vsel %vm454, %v5886, %v5888
  %5890 = vrot.lane.b32.xlu0 %v4388, 56
  %v5891 = vpop.permute.xlu0 %5890
  %5892 = vrot.lane.b32.xlu0 %v4390, 56
  %v5893 = vpop.permute.xlu0 %5892
  %5894 = vrot.lane.b32.xlu0 %v4393, 56
  %v5895 = vpop.permute.xlu0 %5894
  %5896 = vrot.lane.b32.xlu0 %v4395, 56
  %v5897 = vpop.permute.xlu0 %5896
  %5898 = vrot.lane.b32.xlu0 %v4398, 56
  %v5899 = vpop.permute.xlu0 %5898
  %5900 = vrot.lane.b32.xlu0 %v4400, 56
  %v5901 = vpop.permute.xlu0 %5900
  %5902 = vrot.lane.b32.xlu0 %v4403, 56
  %v5903 = vpop.permute.xlu0 %5902
  %5904 = vrot.lane.b32.xlu0 %v4405, 56
  %v5905 = vpop.permute.xlu0 %5904
  %5906 = vrot.lane.b32.xlu0 %v4408, 56
  %v5907 = vpop.permute.xlu0 %5906
  %5908 = vrot.lane.b32.xlu0 %v4410, 56
  %v5909 = vpop.permute.xlu0 %5908
  %5910 = vrot.lane.b32.xlu0 %v4413, 56
  %v5911 = vpop.permute.xlu0 %5910
  %5912 = vrot.lane.b32.xlu0 %v4415, 56
  %v5913 = vpop.permute.xlu0 %5912
  %5914 = vrot.lane.b32.xlu0 %v4418, 56
  %v5915 = vpop.permute.xlu0 %5914
  %5916 = vrot.lane.b32.xlu0 %v4420, 56
  %v5917 = vpop.permute.xlu0 %5916
  %5918 = vrot.lane.b32.xlu0 %v4423, 56
  %v5919 = vpop.permute.xlu0 %5918
  %5920 = vrot.lane.b32.xlu0 %v4425, 56
  %v5921 = vpop.permute.xlu0 %5920
  %5922 = vrot.lane.b32.xlu0 %v4428, 56
  %v5923 = vpop.permute.xlu0 %5922
  %5924 = vrot.lane.b32.xlu0 %v4430, 56
  %v5925 = vpop.permute.xlu0 %5924
  %5926 = vrot.lane.b32.xlu0 %v4433, 56
  %v5927 = vpop.permute.xlu0 %5926
  %5928 = vrot.lane.b32.xlu0 %v4435, 56
  %v5929 = vpop.permute.xlu0 %5928
  %5930 = vrot.lane.b32.xlu0 %v4438, 56
  %v5931 = vpop.permute.xlu0 %5930
  %5932 = vrot.lane.b32.xlu0 %v4440, 56
  %v5933 = vpop.permute.xlu0 %5932
  %5934 = vrot.lane.b32.xlu0 %v4443, 56
  %v5935 = vpop.permute.xlu0 %5934
  %5936 = vrot.lane.b32.xlu0 %v4445, 56
  %v5937 = vpop.permute.xlu0 %5936
  %5938 = vrot.lane.b32.xlu0 %v4448, 56
  %v5939 = vpop.permute.xlu0 %5938
  %5940 = vrot.lane.b32.xlu0 %v4450, 56
  %v5941 = vpop.permute.xlu0 %5940
  %5942 = vrot.lane.b32.xlu0 %v4453, 56
  %v5943 = vpop.permute.xlu0 %5942
  %5944 = vrot.lane.b32.xlu0 %v4455, 56
  %v5945 = vpop.permute.xlu0 %5944
  %5946 = vrot.lane.b32.xlu0 %v5280, 56
  %v5947 = vpop.permute.xlu0 %5946
  %5948 = vrot.lane.b32.xlu0 %v5282, 56
  %v5949 = vpop.permute.xlu0 %5948
  %5950 = vrot.lane.b32.xlu0 %v5882, 56
  %v5951 = vpop.permute.xlu0 %5950
  %5952 = vrot.lane.b32.xlu0 %v5884, 56
  %v5953 = vpop.permute.xlu0 %5952
  %5954 = vrot.lane.b32.xlu0 %v4468, 56
  %v5955 = vpop.permute.xlu0 %5954
  %5956 = vrot.lane.b32.xlu0 %v4470, 56
  %v5957 = vpop.permute.xlu0 %5956
  %5958 = vrot.lane.b32.xlu0 %v4473, 56
  %v5959 = vpop.permute.xlu0 %5958
  %5960 = vrot.lane.b32.xlu0 %v4475, 56
  %v5961 = vpop.permute.xlu0 %5960
  %5962 = vrot.lane.b32.xlu0 %v4478, 56
  %v5963 = vpop.permute.xlu0 %5962
  %5964 = vrot.lane.b32.xlu0 %v4480, 56
  %v5965 = vpop.permute.xlu0 %5964
  %5966 = vrot.lane.b32.xlu0 %v4483, 56
  %v5967 = vpop.permute.xlu0 %5966
  %5968 = vrot.lane.b32.xlu0 %v4485, 56
  %v5969 = vpop.permute.xlu0 %5968
  %5970 = vrot.lane.b32.xlu0 %v4488, 56
  %v5971 = vpop.permute.xlu0 %5970
  %5972 = vrot.lane.b32.xlu0 %v4490, 56
  %v5973 = vpop.permute.xlu0 %5972
  %5974 = vrot.lane.b32.xlu0 %v4493, 56
  %v5975 = vpop.permute.xlu0 %5974
  %5976 = vrot.lane.b32.xlu0 %v4495, 56
  %v5977 = vpop.permute.xlu0 %5976
  %5978 = vrot.lane.b32.xlu0 %v4498, 56
  %v5979 = vpop.permute.xlu0 %5978
  %5980 = vrot.lane.b32.xlu0 %v4500, 56
  %v5981 = vpop.permute.xlu0 %5980
  %5982 = vrot.lane.b32.xlu0 %v4503, 56
  %v5983 = vpop.permute.xlu0 %5982
  %5984 = vrot.lane.b32.xlu0 %v4505, 56
  %v5985 = vpop.permute.xlu0 %5984
  %5986 = vrot.lane.b32.xlu0 %v4508, 56
  %v5987 = vpop.permute.xlu0 %5986
  %5988 = vrot.lane.b32.xlu0 %v4510, 56
  %v5989 = vpop.permute.xlu0 %5988
  %5990 = vrot.lane.b32.xlu0 %v4513, 56
  %v5991 = vpop.permute.xlu0 %5990
  %5992 = vrot.lane.b32.xlu0 %v4515, 56
  %v5993 = vpop.permute.xlu0 %5992
  %5994 = vrot.lane.b32.xlu0 %v4518, 56
  %v5995 = vpop.permute.xlu0 %5994
  %5996 = vrot.lane.b32.xlu0 %v4520, 56
  %v5997 = vpop.permute.xlu0 %5996
  %5998 = vrot.lane.b32.xlu0 %v4523, 56
  %v5999 = vpop.permute.xlu0 %5998
  %6000 = vrot.lane.b32.xlu0 %v4525, 56
  %v6001 = vpop.permute.xlu0 %6000
  %6002 = vrot.lane.b32.xlu0 %v4528, 56
  %v6003 = vpop.permute.xlu0 %6002
  %6004 = vrot.lane.b32.xlu0 %v4530, 56
  %v6005 = vpop.permute.xlu0 %6004
  %6006 = vrot.lane.b32.xlu0 %v4533, 56
  %v6007 = vpop.permute.xlu0 %6006
  %6008 = vrot.lane.b32.xlu0 %v4535, 56
  %v6009 = vpop.permute.xlu0 %6008
  %6010 = vrot.lane.b32.xlu0 %v5285, 56
  %v6011 = vpop.permute.xlu0 %6010
  %6012 = vrot.lane.b32.xlu0 %v5287, 56
  %v6013 = vpop.permute.xlu0 %6012
  %6014 = vrot.lane.b32.xlu0 %v5887, 56
  %v6015 = vpop.permute.xlu0 %6014
  %6016 = vrot.lane.b32.xlu0 %v5889, 56
  %v6017 = vpop.permute.xlu0 %6016
  %v6082 = vrot.slane %v4223, 2
  %v6083 = vrot.slane %v4224, 2
  %v6084 = vsel %vm807, %v6082, %v6083
  %v6085 = vrot.slane %v4225, 2
  %v6086 = vsel %vm807, %v6083, %v6085
  %v6087 = vrot.slane %v4277, 2
  %v6088 = vrot.slane %v4278, 2
  %v6089 = vsel %vm807, %v6087, %v6088
  %v6090 = vrot.slane %v4279, 2
  %v6091 = vsel %vm807, %v6088, %v6090
  %6092 = vrot.lane.b32.xlu0 %v4740, 64
  %v6093 = vpop.permute.xlu0 %6092
  %6094 = vrot.lane.b32.xlu0 %v4742, 64
  %v6095 = vpop.permute.xlu0 %6094
  %6096 = vrot.lane.b32.xlu0 %v4745, 64
  %v6097 = vpop.permute.xlu0 %6096
  %6098 = vrot.lane.b32.xlu0 %v4747, 64
  %v6099 = vpop.permute.xlu0 %6098
  %6100 = vrot.lane.b32.xlu0 %v4750, 64
  %v6101 = vpop.permute.xlu0 %6100
  %6102 = vrot.lane.b32.xlu0 %v4752, 64
  %v6103 = vpop.permute.xlu0 %6102
  %6104 = vrot.lane.b32.xlu0 %v4755, 64
  %v6105 = vpop.permute.xlu0 %6104
  %6106 = vrot.lane.b32.xlu0 %v4757, 64
  %v6107 = vpop.permute.xlu0 %6106
  %6108 = vrot.lane.b32.xlu0 %v4760, 64
  %v6109 = vpop.permute.xlu0 %6108
  %6110 = vrot.lane.b32.xlu0 %v4762, 64
  %v6111 = vpop.permute.xlu0 %6110
  %6112 = vrot.lane.b32.xlu0 %v4765, 64
  %v6113 = vpop.permute.xlu0 %6112
  %6114 = vrot.lane.b32.xlu0 %v4767, 64
  %v6115 = vpop.permute.xlu0 %6114
  %6116 = vrot.lane.b32.xlu0 %v4770, 64
  %v6117 = vpop.permute.xlu0 %6116
  %6118 = vrot.lane.b32.xlu0 %v4772, 64
  %v6119 = vpop.permute.xlu0 %6118
  %6120 = vrot.lane.b32.xlu0 %v4775, 64
  %v6121 = vpop.permute.xlu0 %6120
  %6122 = vrot.lane.b32.xlu0 %v4777, 64
  %v6123 = vpop.permute.xlu0 %6122
  %6124 = vrot.lane.b32.xlu0 %v4780, 64
  %v6125 = vpop.permute.xlu0 %6124
  %6126 = vrot.lane.b32.xlu0 %v4782, 64
  %v6127 = vpop.permute.xlu0 %6126
  %6128 = vrot.lane.b32.xlu0 %v4785, 64
  %v6129 = vpop.permute.xlu0 %6128
  %6130 = vrot.lane.b32.xlu0 %v4787, 64
  %v6131 = vpop.permute.xlu0 %6130
  %6132 = vrot.lane.b32.xlu0 %v4790, 64
  %v6133 = vpop.permute.xlu0 %6132
  %6134 = vrot.lane.b32.xlu0 %v4792, 64
  %v6135 = vpop.permute.xlu0 %6134
  %6136 = vrot.lane.b32.xlu0 %v4795, 64
  %v6137 = vpop.permute.xlu0 %6136
  %6138 = vrot.lane.b32.xlu0 %v4797, 64
  %v6139 = vpop.permute.xlu0 %6138
  %6140 = vrot.lane.b32.xlu0 %v4800, 64
  %v6141 = vpop.permute.xlu0 %6140
  %6142 = vrot.lane.b32.xlu0 %v4802, 64
  %v6143 = vpop.permute.xlu0 %6142
  %6144 = vrot.lane.b32.xlu0 %v4805, 64
  %v6145 = vpop.permute.xlu0 %6144
  %6146 = vrot.lane.b32.xlu0 %v4807, 64
  %v6147 = vpop.permute.xlu0 %6146
  %6148 = vrot.lane.b32.xlu0 %v5482, 64
  %v6149 = vpop.permute.xlu0 %6148
  %6150 = vrot.lane.b32.xlu0 %v5484, 64
  %v6151 = vpop.permute.xlu0 %6150
  %6152 = vrot.lane.b32.xlu0 %v6084, 64
  %v6153 = vpop.permute.xlu0 %6152
  %6154 = vrot.lane.b32.xlu0 %v6086, 64
  %v6155 = vpop.permute.xlu0 %6154
  %6156 = vrot.lane.b32.xlu0 %v4820, 64
  %v6157 = vpop.permute.xlu0 %6156
  %6158 = vrot.lane.b32.xlu0 %v4822, 64
  %v6159 = vpop.permute.xlu0 %6158
  %6160 = vrot.lane.b32.xlu0 %v4825, 64
  %v6161 = vpop.permute.xlu0 %6160
  %6162 = vrot.lane.b32.xlu0 %v4827, 64
  %v6163 = vpop.permute.xlu0 %6162
  %6164 = vrot.lane.b32.xlu0 %v4830, 64
  %v6165 = vpop.permute.xlu0 %6164
  %6166 = vrot.lane.b32.xlu0 %v4832, 64
  %v6167 = vpop.permute.xlu0 %6166
  %6168 = vrot.lane.b32.xlu0 %v4835, 64
  %v6169 = vpop.permute.xlu0 %6168
  %6170 = vrot.lane.b32.xlu0 %v4837, 64
  %v6171 = vpop.permute.xlu0 %6170
  %6172 = vrot.lane.b32.xlu0 %v4840, 64
  %v6173 = vpop.permute.xlu0 %6172
  %6174 = vrot.lane.b32.xlu0 %v4842, 64
  %v6175 = vpop.permute.xlu0 %6174
  %6176 = vrot.lane.b32.xlu0 %v4845, 64
  %v6177 = vpop.permute.xlu0 %6176
  %6178 = vrot.lane.b32.xlu0 %v4847, 64
  %v6179 = vpop.permute.xlu0 %6178
  %6180 = vrot.lane.b32.xlu0 %v4850, 64
  %v6181 = vpop.permute.xlu0 %6180
  %6182 = vrot.lane.b32.xlu0 %v4852, 64
  %v6183 = vpop.permute.xlu0 %6182
  %6184 = vrot.lane.b32.xlu0 %v4855, 64
  %v6185 = vpop.permute.xlu0 %6184
  %6186 = vrot.lane.b32.xlu0 %v4857, 64
  %v6187 = vpop.permute.xlu0 %6186
  %6188 = vrot.lane.b32.xlu0 %v4860, 64
  %v6189 = vpop.permute.xlu0 %6188
  %6190 = vrot.lane.b32.xlu0 %v4862, 64
  %v6191 = vpop.permute.xlu0 %6190
  %6192 = vrot.lane.b32.xlu0 %v4865, 64
  %v6193 = vpop.permute.xlu0 %6192
  %6194 = vrot.lane.b32.xlu0 %v4867, 64
  %v6195 = vpop.permute.xlu0 %6194
  %6196 = vrot.lane.b32.xlu0 %v4870, 64
  %v6197 = vpop.permute.xlu0 %6196
  %6198 = vrot.lane.b32.xlu0 %v4872, 64
  %v6199 = vpop.permute.xlu0 %6198
  %6200 = vrot.lane.b32.xlu0 %v4875, 64
  %v6201 = vpop.permute.xlu0 %6200
  %6202 = vrot.lane.b32.xlu0 %v4877, 64
  %v6203 = vpop.permute.xlu0 %6202
  %6204 = vrot.lane.b32.xlu0 %v4880, 64
  %v6205 = vpop.permute.xlu0 %6204
  %6206 = vrot.lane.b32.xlu0 %v4882, 64
  %v6207 = vpop.permute.xlu0 %6206
  %6208 = vrot.lane.b32.xlu0 %v4885, 64
  %v6209 = vpop.permute.xlu0 %6208
  %6210 = vrot.lane.b32.xlu0 %v4887, 64
  %v6211 = vpop.permute.xlu0 %6210
  %6212 = vrot.lane.b32.xlu0 %v5487, 64
  %v6213 = vpop.permute.xlu0 %6212
  %6214 = vrot.lane.b32.xlu0 %v5489, 64
  %v6215 = vpop.permute.xlu0 %6214
  %6216 = vrot.lane.b32.xlu0 %v6089, 64
  %v6217 = vpop.permute.xlu0 %6216
  %6218 = vrot.lane.b32.xlu0 %v6091, 64
  %v6219 = vpop.permute.xlu0 %6218
  %v6284 = vsel %vm2428, %v4172, %v4537
  %v6285 = vsel %vm2428, %v4173, %v4539
  %v6286 = vsel %vm2428, %v4175, %v4541
  %v6287 = vsel %vm2428, %v4176, %v4543
  %v6288 = vsel %vm2428, %v4178, %v4545
  %v6289 = vsel %vm2428, %v4179, %v4547
  %v6290 = vsel %vm2428, %v4181, %v4549
  %v6291 = vsel %vm2428, %v4182, %v4551
  %v6292 = vsel %vm2428, %v4184, %v4553
  %v6293 = vsel %vm2428, %v4185, %v4555
  %v6294 = vsel %vm2428, %v4187, %v4557
  %v6295 = vsel %vm2428, %v4188, %v4559
  %v6296 = vsel %vm2428, %v4190, %v4561
  %v6297 = vsel %vm2428, %v4191, %v4563
  %v6298 = vsel %vm2428, %v4193, %v4565
  %v6299 = vsel %vm2428, %v4194, %v4567
  %v6300 = vsel %vm2428, %v4196, %v4569
  %v6301 = vsel %vm2428, %v4197, %v4571
  %v6302 = vsel %vm2428, %v4199, %v4573
  %v6303 = vsel %vm2428, %v4200, %v4575
  %v6304 = vsel %vm2428, %v4202, %v4577
  %v6305 = vsel %vm2428, %v4203, %v4579
  %v6306 = vsel %vm2428, %v4205, %v4581
  %v6307 = vsel %vm2428, %v4206, %v4583
  %v6308 = vsel %vm2428, %v4208, %v4585
  %v6309 = vsel %vm2428, %v4209, %v4587
  %v6310 = vsel %vm2428, %v4211, %v4589
  %v6311 = vsel %vm2428, %v4212, %v4591
  %v6312 = vsel %vm2428, %v4214, %v4593
  %v6313 = vsel %vm2428, %v4215, %v4595
  %v6314 = vsel %vm2428, %v4217, %v4597
  %v6315 = vsel %vm2428, %v4218, %v4599
  %v6316 = vsel %vm2428, %v4226, %v4601
  %v6317 = vsel %vm2428, %v4227, %v4603
  %v6318 = vsel %vm2428, %v4229, %v4605
  %v6319 = vsel %vm2428, %v4230, %v4607
  %v6320 = vsel %vm2428, %v4232, %v4609
  %v6321 = vsel %vm2428, %v4233, %v4611
  %v6322 = vsel %vm2428, %v4235, %v4613
  %v6323 = vsel %vm2428, %v4236, %v4615
  %v6324 = vsel %vm2428, %v4238, %v4617
  %v6325 = vsel %vm2428, %v4239, %v4619
  %v6326 = vsel %vm2428, %v4241, %v4621
  %v6327 = vsel %vm2428, %v4242, %v4623
  %v6328 = vsel %vm2428, %v4244, %v4625
  %v6329 = vsel %vm2428, %v4245, %v4627
  %v6330 = vsel %vm2428, %v4247, %v4629
  %v6331 = vsel %vm2428, %v4248, %v4631
  %v6332 = vsel %vm2428, %v4250, %v4633
  %v6333 = vsel %vm2428, %v4251, %v4635
  %v6334 = vsel %vm2428, %v4253, %v4637
  %v6335 = vsel %vm2428, %v4254, %v4639
  %v6336 = vsel %vm2428, %v4256, %v4641
  %v6337 = vsel %vm2428, %v4257, %v4643
  %v6338 = vsel %vm2428, %v4259, %v4645
  %v6339 = vsel %vm2428, %v4260, %v4647
  %v6340 = vsel %vm2428, %v4262, %v4649
  %v6341 = vsel %vm2428, %v4263, %v4651
  %v6342 = vsel %vm2428, %v4265, %v4653
  %v6343 = vsel %vm2428, %v4266, %v4655
  %v6344 = vsel %vm2428, %v4268, %v4657
  %v6345 = vsel %vm2428, %v4269, %v4659
  %v6346 = vsel %vm2428, %v4271, %v4661
  %v6347 = vsel %vm2428, %v4272, %v4663
  %v6348 = vsel %vm2558, %v6284, %v4889
  %v6349 = vsel %vm2558, %v6285, %v4891
  %v6350 = vsel %vm2558, %v6286, %v4893
  %v6351 = vsel %vm2558, %v6287, %v4895
  %v6352 = vsel %vm2558, %v6288, %v4897
  %v6353 = vsel %vm2558, %v6289, %v4899
  %v6354 = vsel %vm2558, %v6290, %v4901
  %v6355 = vsel %vm2558, %v6291, %v4903
  %v6356 = vsel %vm2558, %v6292, %v4905
  %v6357 = vsel %vm2558, %v6293, %v4907
  %v6358 = vsel %vm2558, %v6294, %v4909
  %v6359 = vsel %vm2558, %v6295, %v4911
  %v6360 = vsel %vm2558, %v6296, %v4913
  %v6361 = vsel %vm2558, %v6297, %v4915
  %v6362 = vsel %vm2558, %v6298, %v4917
  %v6363 = vsel %vm2558, %v6299, %v4919
  %v6364 = vsel %vm2558, %v6300, %v4921
  %v6365 = vsel %vm2558, %v6301, %v4923
  %v6366 = vsel %vm2558, %v6302, %v4925
  %v6367 = vsel %vm2558, %v6303, %v4927
  %v6368 = vsel %vm2558, %v6304, %v4929
  %v6369 = vsel %vm2558, %v6305, %v4931
  %v6370 = vsel %vm2558, %v6306, %v4933
  %v6371 = vsel %vm2558, %v6307, %v4935
  %v6372 = vsel %vm2558, %v6308, %v4937
  %v6373 = vsel %vm2558, %v6309, %v4939
  %v6374 = vsel %vm2558, %v6310, %v4941
  %v6375 = vsel %vm2558, %v6311, %v4943
  %v6376 = vsel %vm2558, %v6312, %v4945
  %v6377 = vsel %vm2558, %v6313, %v4947
  %v6378 = vsel %vm2558, %v6314, %v4949
  %v6379 = vsel %vm2558, %v6315, %v4951
  %v6380 = vsel %vm2558, %v6316, %v4953
  %v6381 = vsel %vm2558, %v6317, %v4955
  %v6382 = vsel %vm2558, %v6318, %v4957
  %v6383 = vsel %vm2558, %v6319, %v4959
  %v6384 = vsel %vm2558, %v6320, %v4961
  %v6385 = vsel %vm2558, %v6321, %v4963
  %v6386 = vsel %vm2558, %v6322, %v4965
  %v6387 = vsel %vm2558, %v6323, %v4967
  %v6388 = vsel %vm2558, %v6324, %v4969
  %v6389 = vsel %vm2558, %v6325, %v4971
  %v6390 = vsel %vm2558, %v6326, %v4973
  %v6391 = vsel %vm2558, %v6327, %v4975
  %v6392 = vsel %vm2558, %v6328, %v4977
  %v6393 = vsel %vm2558, %v6329, %v4979
  %v6394 = vsel %vm2558, %v6330, %v4981
  %v6395 = vsel %vm2558, %v6331, %v4983
  %v6396 = vsel %vm2558, %v6332, %v4985
  %v6397 = vsel %vm2558, %v6333, %v4987
  %v6398 = vsel %vm2558, %v6334, %v4989
  %v6399 = vsel %vm2558, %v6335, %v4991
  %v6400 = vsel %vm2558, %v6336, %v4993
  %v6401 = vsel %vm2558, %v6337, %v4995
  %v6402 = vsel %vm2558, %v6338, %v4997
  %v6403 = vsel %vm2558, %v6339, %v4999
  %v6404 = vsel %vm2558, %v6340, %v5001
  %v6405 = vsel %vm2558, %v6341, %v5003
  %v6406 = vsel %vm2558, %v6342, %v5005
  %v6407 = vsel %vm2558, %v6343, %v5007
  %v6408 = vsel %vm2558, %v6344, %v5009
  %v6409 = vsel %vm2558, %v6345, %v5011
  %v6410 = vsel %vm2558, %v6346, %v5013
  %v6411 = vsel %vm2558, %v6347, %v5015
  %v6412 = vsel %vm2688, %v6348, %v5085
  %v6413 = vsel %vm2688, %v6349, %v5087
  %v6414 = vsel %vm2688, %v6350, %v5089
  %v6415 = vsel %vm2688, %v6351, %v5091
  %v6416 = vsel %vm2688, %v6352, %v5093
  %v6417 = vsel %vm2688, %v6353, %v5095
  %v6418 = vsel %vm2688, %v6354, %v5097
  %v6419 = vsel %vm2688, %v6355, %v5099
  %v6420 = vsel %vm2688, %v6356, %v5101
  %v6421 = vsel %vm2688, %v6357, %v5103
  %v6422 = vsel %vm2688, %v6358, %v5105
  %v6423 = vsel %vm2688, %v6359, %v5107
  %v6424 = vsel %vm2688, %v6360, %v5109
  %v6425 = vsel %vm2688, %v6361, %v5111
  %v6426 = vsel %vm2688, %v6362, %v5113
  %v6427 = vsel %vm2688, %v6363, %v5115
  %v6428 = vsel %vm2688, %v6364, %v5117
  %v6429 = vsel %vm2688, %v6365, %v5119
  %v6430 = vsel %vm2688, %v6366, %v5121
  %v6431 = vsel %vm2688, %v6367, %v5123
  %v6432 = vsel %vm2688, %v6368, %v5125
  %v6433 = vsel %vm2688, %v6369, %v5127
  %v6434 = vsel %vm2688, %v6370, %v5129
  %v6435 = vsel %vm2688, %v6371, %v5131
  %v6436 = vsel %vm2688, %v6372, %v5133
  %v6437 = vsel %vm2688, %v6373, %v5135
  %v6438 = vsel %vm2688, %v6374, %v5137
  %v6439 = vsel %vm2688, %v6375, %v5139
  %v6440 = vsel %vm2688, %v6376, %v5141
  %v6441 = vsel %vm2688, %v6377, %v5143
  %v6442 = vsel %vm2688, %v6378, %v5145
  %v6443 = vsel %vm2688, %v6379, %v5147
  %v6444 = vsel %vm2688, %v6380, %v5149
  %v6445 = vsel %vm2688, %v6381, %v5151
  %v6446 = vsel %vm2688, %v6382, %v5153
  %v6447 = vsel %vm2688, %v6383, %v5155
  %v6448 = vsel %vm2688, %v6384, %v5157
  %v6449 = vsel %vm2688, %v6385, %v5159
  %v6450 = vsel %vm2688, %v6386, %v5161
  %v6451 = vsel %vm2688, %v6387, %v5163
  %v6452 = vsel %vm2688, %v6388, %v5165
  %v6453 = vsel %vm2688, %v6389, %v5167
  %v6454 = vsel %vm2688, %v6390, %v5169
  %v6455 = vsel %vm2688, %v6391, %v5171
  %v6456 = vsel %vm2688, %v6392, %v5173
  %v6457 = vsel %vm2688, %v6393, %v5175
  %v6458 = vsel %vm2688, %v6394, %v5177
  %v6459 = vsel %vm2688, %v6395, %v5179
  %v6460 = vsel %vm2688, %v6396, %v5181
  %v6461 = vsel %vm2688, %v6397, %v5183
  %v6462 = vsel %vm2688, %v6398, %v5185
  %v6463 = vsel %vm2688, %v6399, %v5187
  %v6464 = vsel %vm2688, %v6400, %v5189
  %v6465 = vsel %vm2688, %v6401, %v5191
  %v6466 = vsel %vm2688, %v6402, %v5193
  %v6467 = vsel %vm2688, %v6403, %v5195
  %v6468 = vsel %vm2688, %v6404, %v5197
  %v6469 = vsel %vm2688, %v6405, %v5199
  %v6470 = vsel %vm2688, %v6406, %v5201
  %v6471 = vsel %vm2688, %v6407, %v5203
  %v6472 = vsel %vm2688, %v6408, %v5205
  %v6473 = vsel %vm2688, %v6409, %v5207
  %v6474 = vsel %vm2688, %v6410, %v5209
  %v6475 = vsel %vm2688, %v6411, %v5211
  %v6476 = vsel %vm2818, %v6412, %v5289
  %v6477 = vsel %vm2818, %v6413, %v5291
  %v6478 = vsel %vm2818, %v6414, %v5293
  %v6479 = vsel %vm2818, %v6415, %v5295
  %v6480 = vsel %vm2818, %v6416, %v5297
  %v6481 = vsel %vm2818, %v6417, %v5299
  %v6482 = vsel %vm2818, %v6418, %v5301
  %v6483 = vsel %vm2818, %v6419, %v5303
  %v6484 = vsel %vm2818, %v6420, %v5305
  %v6485 = vsel %vm2818, %v6421, %v5307
  %v6486 = vsel %vm2818, %v6422, %v5309
  %v6487 = vsel %vm2818, %v6423, %v5311
  %v6488 = vsel %vm2818, %v6424, %v5313
  %v6489 = vsel %vm2818, %v6425, %v5315
  %v6490 = vsel %vm2818, %v6426, %v5317
  %v6491 = vsel %vm2818, %v6427, %v5319
  %v6492 = vsel %vm2818, %v6428, %v5321
  %v6493 = vsel %vm2818, %v6429, %v5323
  %v6494 = vsel %vm2818, %v6430, %v5325
  %v6495 = vsel %vm2818, %v6431, %v5327
  %v6496 = vsel %vm2818, %v6432, %v5329
  %v6497 = vsel %vm2818, %v6433, %v5331
  %v6498 = vsel %vm2818, %v6434, %v5333
  %v6499 = vsel %vm2818, %v6435, %v5335
  %v6500 = vsel %vm2818, %v6436, %v5337
  %v6501 = vsel %vm2818, %v6437, %v5339
  %v6502 = vsel %vm2818, %v6438, %v5341
  %v6503 = vsel %vm2818, %v6439, %v5343
  %v6504 = vsel %vm2818, %v6440, %v5345
  %v6505 = vsel %vm2818, %v6441, %v5347
  %v6506 = vsel %vm2818, %v6442, %v5349
  %v6507 = vsel %vm2818, %v6443, %v5351
  %v6508 = vsel %vm2818, %v6444, %v5353
  %v6509 = vsel %vm2818, %v6445, %v5355
  %v6510 = vsel %vm2818, %v6446, %v5357
  %v6511 = vsel %vm2818, %v6447, %v5359
  %v6512 = vsel %vm2818, %v6448, %v5361
  %v6513 = vsel %vm2818, %v6449, %v5363
  %v6514 = vsel %vm2818, %v6450, %v5365
  %v6515 = vsel %vm2818, %v6451, %v5367
  %v6516 = vsel %vm2818, %v6452, %v5369
  %v6517 = vsel %vm2818, %v6453, %v5371
  %v6518 = vsel %vm2818, %v6454, %v5373
  %v6519 = vsel %vm2818, %v6455, %v5375
  %v6520 = vsel %vm2818, %v6456, %v5377
  %v6521 = vsel %vm2818, %v6457, %v5379
  %v6522 = vsel %vm2818, %v6458, %v5381
  %v6523 = vsel %vm2818, %v6459, %v5383
  %v6524 = vsel %vm2818, %v6460, %v5385
  %v6525 = vsel %vm2818, %v6461, %v5387
  %v6526 = vsel %vm2818, %v6462, %v5389
  %v6527 = vsel %vm2818, %v6463, %v5391
  %v6528 = vsel %vm2818, %v6464, %v5393
  %v6529 = vsel %vm2818, %v6465, %v5395
  %v6530 = vsel %vm2818, %v6466, %v5397
  %v6531 = vsel %vm2818, %v6467, %v5399
  %v6532 = vsel %vm2818, %v6468, %v5401
  %v6533 = vsel %vm2818, %v6469, %v5403
  %v6534 = vsel %vm2818, %v6470, %v5405
  %v6535 = vsel %vm2818, %v6471, %v5407
  %v6536 = vsel %vm2818, %v6472, %v5409
  %v6537 = vsel %vm2818, %v6473, %v5411
  %v6538 = vsel %vm2818, %v6474, %v5413
  %v6539 = vsel %vm2818, %v6475, %v5415
  %vm6540 = vcmask 326656
  %v6541 = vsel %vm6540, %v6476, %v5491
  %v6542 = vsel %vm6540, %v6477, %v5493
  %v6543 = vsel %vm6540, %v6478, %v5495
  %v6544 = vsel %vm6540, %v6479, %v5497
  %v6545 = vsel %vm6540, %v6480, %v5499
  %v6546 = vsel %vm6540, %v6481, %v5501
  %v6547 = vsel %vm6540, %v6482, %v5503
  %v6548 = vsel %vm6540, %v6483, %v5505
  %v6549 = vsel %vm6540, %v6484, %v5507
  %v6550 = vsel %vm6540, %v6485, %v5509
  %v6551 = vsel %vm6540, %v6486, %v5511
  %v6552 = vsel %vm6540, %v6487, %v5513
  %v6553 = vsel %vm6540, %v6488, %v5515
  %v6554 = vsel %vm6540, %v6489, %v5517
  %v6555 = vsel %vm6540, %v6490, %v5519
  %v6556 = vsel %vm6540, %v6491, %v5521
  %v6557 = vsel %vm6540, %v6492, %v5523
  %v6558 = vsel %vm6540, %v6493, %v5525
  %v6559 = vsel %vm6540, %v6494, %v5527
  %v6560 = vsel %vm6540, %v6495, %v5529
  %v6561 = vsel %vm6540, %v6496, %v5531
  %v6562 = vsel %vm6540, %v6497, %v5533
  %v6563 = vsel %vm6540, %v6498, %v5535
  %v6564 = vsel %vm6540, %v6499, %v5537
  %v6565 = vsel %vm6540, %v6500, %v5539
  %v6566 = vsel %vm6540, %v6501, %v5541
  %v6567 = vsel %vm6540, %v6502, %v5543
  %v6568 = vsel %vm6540, %v6503, %v5545
  %v6569 = vsel %vm6540, %v6504, %v5547
  %v6570 = vsel %vm6540, %v6505, %v5549
  %v6571 = vsel %vm6540, %v6506, %v5551
  %v6572 = vsel %vm6540, %v6507, %v5553
  %v6573 = vsel %vm6540, %v6508, %v5555
  %v6574 = vsel %vm6540, %v6509, %v5557
  %v6575 = vsel %vm6540, %v6510, %v5559
  %v6576 = vsel %vm6540, %v6511, %v5561
  %v6577 = vsel %vm6540, %v6512, %v5563
  %v6578 = vsel %vm6540, %v6513, %v5565
  %v6579 = vsel %vm6540, %v6514, %v5567
  %v6580 = vsel %vm6540, %v6515, %v5569
  %v6581 = vsel %vm6540, %v6516, %v5571
  %v6582 = vsel %vm6540, %v6517, %v5573
  %v6583 = vsel %vm6540, %v6518, %v5575
  %v6584 = vsel %vm6540, %v6519, %v5577
  %v6585 = vsel %vm6540, %v6520, %v5579
  %v6586 = vsel %vm6540, %v6521, %v5581
  %v6587 = vsel %vm6540, %v6522, %v5583
  %v6588 = vsel %vm6540, %v6523, %v5585
  %v6589 = vsel %vm6540, %v6524, %v5587
  %v6590 = vsel %vm6540, %v6525, %v5589
  %v6591 = vsel %vm6540, %v6526, %v5591
  %v6592 = vsel %vm6540, %v6527, %v5593
  %v6593 = vsel %vm6540, %v6528, %v5595
  %v6594 = vsel %vm6540, %v6529, %v5597
  %v6595 = vsel %vm6540, %v6530, %v5599
  %v6596 = vsel %vm6540, %v6531, %v5601
  %v6597 = vsel %vm6540, %v6532, %v5603
  %v6598 = vsel %vm6540, %v6533, %v5605
  %v6599 = vsel %vm6540, %v6534, %v5607
  %v6600 = vsel %vm6540, %v6535, %v5609
  %v6601 = vsel %vm6540, %v6536, %v5611
  %v6602 = vsel %vm6540, %v6537, %v5613
  %v6603 = vsel %vm6540, %v6538, %v5615
  %v6604 = vsel %vm6540, %v6539, %v5617
  %vm6605 = vcmask 392192
  %v6606 = vsel %vm6605, %v6541, %v5687
  %v6607 = vsel %vm6605, %v6542, %v5689
  %v6608 = vsel %vm6605, %v6543, %v5691
  %v6609 = vsel %vm6605, %v6544, %v5693
  %v6610 = vsel %vm6605, %v6545, %v5695
  %v6611 = vsel %vm6605, %v6546, %v5697
  %v6612 = vsel %vm6605, %v6547, %v5699
  %v6613 = vsel %vm6605, %v6548, %v5701
  %v6614 = vsel %vm6605, %v6549, %v5703
  %v6615 = vsel %vm6605, %v6550, %v5705
  %v6616 = vsel %vm6605, %v6551, %v5707
  %v6617 = vsel %vm6605, %v6552, %v5709
  %v6618 = vsel %vm6605, %v6553, %v5711
  %v6619 = vsel %vm6605, %v6554, %v5713
  %v6620 = vsel %vm6605, %v6555, %v5715
  %v6621 = vsel %vm6605, %v6556, %v5717
  %v6622 = vsel %vm6605, %v6557, %v5719
  %v6623 = vsel %vm6605, %v6558, %v5721
  %v6624 = vsel %vm6605, %v6559, %v5723
  %v6625 = vsel %vm6605, %v6560, %v5725
  %v6626 = vsel %vm6605, %v6561, %v5727
  %v6627 = vsel %vm6605, %v6562, %v5729
  %v6628 = vsel %vm6605, %v6563, %v5731
  %v6629 = vsel %vm6605, %v6564, %v5733
  %v6630 = vsel %vm6605, %v6565, %v5735
  %v6631 = vsel %vm6605, %v6566, %v5737
  %v6632 = vsel %vm6605, %v6567, %v5739
  %v6633 = vsel %vm6605, %v6568, %v5741
  %v6634 = vsel %vm6605, %v6569, %v5743
  %v6635 = vsel %vm6605, %v6570, %v5745
  %v6636 = vsel %vm6605, %v6571, %v5747
  %v6637 = vsel %vm6605, %v6572, %v5749
  %v6638 = vsel %vm6605, %v6573, %v5751
  %v6639 = vsel %vm6605, %v6574, %v5753
  %v6640 = vsel %vm6605, %v6575, %v5755
  %v6641 = vsel %vm6605, %v6576, %v5757
  %v6642 = vsel %vm6605, %v6577, %v5759
  %v6643 = vsel %vm6605, %v6578, %v5761
  %v6644 = vsel %vm6605, %v6579, %v5763
  %v6645 = vsel %vm6605, %v6580, %v5765
  %v6646 = vsel %vm6605, %v6581, %v5767
  %v6647 = vsel %vm6605, %v6582, %v5769
  %v6648 = vsel %vm6605, %v6583, %v5771
  %v6649 = vsel %vm6605, %v6584, %v5773
  %v6650 = vsel %vm6605, %v6585, %v5775
  %v6651 = vsel %vm6605, %v6586, %v5777
  %v6652 = vsel %vm6605, %v6587, %v5779
  %v6653 = vsel %vm6605, %v6588, %v5781
  %v6654 = vsel %vm6605, %v6589, %v5783
  %v6655 = vsel %vm6605, %v6590, %v5785
  %v6656 = vsel %vm6605, %v6591, %v5787
  %v6657 = vsel %vm6605, %v6592, %v5789
  %v6658 = vsel %vm6605, %v6593, %v5791
  %v6659 = vsel %vm6605, %v6594, %v5793
  %v6660 = vsel %vm6605, %v6595, %v5795
  %v6661 = vsel %vm6605, %v6596, %v5797
  %v6662 = vsel %vm6605, %v6597, %v5799
  %v6663 = vsel %vm6605, %v6598, %v5801
  %v6664 = vsel %vm6605, %v6599, %v5803
  %v6665 = vsel %vm6605, %v6600, %v5805
  %v6666 = vsel %vm6605, %v6601, %v5807
  %v6667 = vsel %vm6605, %v6602, %v5809
  %v6668 = vsel %vm6605, %v6603, %v5811
  %v6669 = vsel %vm6605, %v6604, %v5813
  %vm6670 = vcmask 457728
  %v6671 = vsel %vm6670, %v6606, %v5891
  %v6672 = vsel %vm6670, %v6607, %v5893
  %v6673 = vsel %vm6670, %v6608, %v5895
  %v6674 = vsel %vm6670, %v6609, %v5897
  %v6675 = vsel %vm6670, %v6610, %v5899
  %v6676 = vsel %vm6670, %v6611, %v5901
  %v6677 = vsel %vm6670, %v6612, %v5903
  %v6678 = vsel %vm6670, %v6613, %v5905
  %v6679 = vsel %vm6670, %v6614, %v5907
  %v6680 = vsel %vm6670, %v6615, %v5909
  %v6681 = vsel %vm6670, %v6616, %v5911
  %v6682 = vsel %vm6670, %v6617, %v5913
  %v6683 = vsel %vm6670, %v6618, %v5915
  %v6684 = vsel %vm6670, %v6619, %v5917
  %v6685 = vsel %vm6670, %v6620, %v5919
  %v6686 = vsel %vm6670, %v6621, %v5921
  %v6687 = vsel %vm6670, %v6622, %v5923
  %v6688 = vsel %vm6670, %v6623, %v5925
  %v6689 = vsel %vm6670, %v6624, %v5927
  %v6690 = vsel %vm6670, %v6625, %v5929
  %v6691 = vsel %vm6670, %v6626, %v5931
  %v6692 = vsel %vm6670, %v6627, %v5933
  %v6693 = vsel %vm6670, %v6628, %v5935
  %v6694 = vsel %vm6670, %v6629, %v5937
  %v6695 = vsel %vm6670, %v6630, %v5939
  %v6696 = vsel %vm6670, %v6631, %v5941
  %v6697 = vsel %vm6670, %v6632, %v5943
  %v6698 = vsel %vm6670, %v6633, %v5945
  %v6699 = vsel %vm6670, %v6634, %v5947
  %v6700 = vsel %vm6670, %v6635, %v5949
  %v6701 = vsel %vm6670, %v6636, %v5951
  %v6702 = vsel %vm6670, %v6637, %v5953
  %v6703 = vsel %vm6670, %v6638, %v5955
  %v6704 = vsel %vm6670, %v6639, %v5957
  %v6705 = vsel %vm6670, %v6640, %v5959
  %v6706 = vsel %vm6670, %v6641, %v5961
  %v6707 = vsel %vm6670, %v6642, %v5963
  %v6708 = vsel %vm6670, %v6643, %v5965
  %v6709 = vsel %vm6670, %v6644, %v5967
  %v6710 = vsel %vm6670, %v6645, %v5969
  %v6711 = vsel %vm6670, %v6646, %v5971
  %v6712 = vsel %vm6670, %v6647, %v5973
  %v6713 = vsel %vm6670, %v6648, %v5975
  %v6714 = vsel %vm6670, %v6649, %v5977
  %v6715 = vsel %vm6670, %v6650, %v5979
  %v6716 = vsel %vm6670, %v6651, %v5981
  %v6717 = vsel %vm6670, %v6652, %v5983
  %v6718 = vsel %vm6670, %v6653, %v5985
  %v6719 = vsel %vm6670, %v6654, %v5987
  %v6720 = vsel %vm6670, %v6655, %v5989
  %v6721 = vsel %vm6670, %v6656, %v5991
  %v6722 = vsel %vm6670, %v6657, %v5993
  %v6723 = vsel %vm6670, %v6658, %v5995
  %v6724 = vsel %vm6670, %v6659, %v5997
  %v6725 = vsel %vm6670, %v6660, %v5999
  %v6726 = vsel %vm6670, %v6661, %v6001
  %v6727 = vsel %vm6670, %v6662, %v6003
  %v6728 = vsel %vm6670, %v6663, %v6005
  %v6729 = vsel %vm6670, %v6664, %v6007
  %v6730 = vsel %vm6670, %v6665, %v6009
  %v6731 = vsel %vm6670, %v6666, %v6011
  %v6732 = vsel %vm6670, %v6667, %v6013
  %v6733 = vsel %vm6670, %v6668, %v6015
  %v6734 = vsel %vm6670, %v6669, %v6017
  %vm6735 = vcmask 523264
  %v6736 = vsel %vm6735, %v6671, %v6093
  %v6737 = vsel %vm6735, %v6672, %v6095
  %v6738 = vsel %vm6735, %v6673, %v6097
  %v6739 = vsel %vm6735, %v6674, %v6099
  %v6740 = vsel %vm6735, %v6675, %v6101
  %v6741 = vsel %vm6735, %v6676, %v6103
  %v6742 = vsel %vm6735, %v6677, %v6105
  %v6743 = vsel %vm6735, %v6678, %v6107
  %v6744 = vsel %vm6735, %v6679, %v6109
  %v6745 = vsel %vm6735, %v6680, %v6111
  %v6746 = vsel %vm6735, %v6681, %v6113
  %v6747 = vsel %vm6735, %v6682, %v6115
  %v6748 = vsel %vm6735, %v6683, %v6117
  %v6749 = vsel %vm6735, %v6684, %v6119
  %v6750 = vsel %vm6735, %v6685, %v6121
  %v6751 = vsel %vm6735, %v6686, %v6123
  %v6752 = vsel %vm6735, %v6687, %v6125
  %v6753 = vsel %vm6735, %v6688, %v6127
  %v6754 = vsel %vm6735, %v6689, %v6129
  %v6755 = vsel %vm6735, %v6690, %v6131
  %v6756 = vsel %vm6735, %v6691, %v6133
  %v6757 = vsel %vm6735, %v6692, %v6135
  %v6758 = vsel %vm6735, %v6693, %v6137
  %v6759 = vsel %vm6735, %v6694, %v6139
  %v6760 = vsel %vm6735, %v6695, %v6141
  %v6761 = vsel %vm6735, %v6696, %v6143
  %v6762 = vsel %vm6735, %v6697, %v6145
  %v6763 = vsel %vm6735, %v6698, %v6147
  %v6764 = vsel %vm6735, %v6699, %v6149
  %v6765 = vsel %vm6735, %v6700, %v6151
  %v6766 = vsel %vm6735, %v6701, %v6153
  %v6767 = vsel %vm6735, %v6702, %v6155
  %v6768 = vsel %vm6735, %v6703, %v6157
  %v6769 = vsel %vm6735, %v6704, %v6159
  %v6770 = vsel %vm6735, %v6705, %v6161
  %v6771 = vsel %vm6735, %v6706, %v6163
  %v6772 = vsel %vm6735, %v6707, %v6165
  %v6773 = vsel %vm6735, %v6708, %v6167
  %v6774 = vsel %vm6735, %v6709, %v6169
  %v6775 = vsel %vm6735, %v6710, %v6171
  %v6776 = vsel %vm6735, %v6711, %v6173
  %v6777 = vsel %vm6735, %v6712, %v6175
  %v6778 = vsel %vm6735, %v6713, %v6177
  %v6779 = vsel %vm6735, %v6714, %v6179
  %v6780 = vsel %vm6735, %v6715, %v6181
  %v6781 = vsel %vm6735, %v6716, %v6183
  %v6782 = vsel %vm6735, %v6717, %v6185
  %v6783 = vsel %vm6735, %v6718, %v6187
  %v6784 = vsel %vm6735, %v6719, %v6189
  %v6785 = vsel %vm6735, %v6720, %v6191
  %v6786 = vsel %vm6735, %v6721, %v6193
  %v6787 = vsel %vm6735, %v6722, %v6195
  %v6788 = vsel %vm6735, %v6723, %v6197
  %v6789 = vsel %vm6735, %v6724, %v6199
  %v6790 = vsel %vm6735, %v6725, %v6201
  %v6791 = vsel %vm6735, %v6726, %v6203
  %v6792 = vsel %vm6735, %v6727, %v6205
  %v6793 = vsel %vm6735, %v6728, %v6207
  %v6794 = vsel %vm6735, %v6729, %v6209
  %v6795 = vsel %vm6735, %v6730, %v6211
  %v6796 = vsel %vm6735, %v6731, %v6213
  %v6797 = vsel %vm6735, %v6732, %v6215
  %v6798 = vsel %vm6735, %v6733, %v6217
  %v6799 = vsel %vm6735, %v6734, %v6219
  %vm6800 = vcmask 588800
  %v6802 = vsel %vm6800, %v6736, 0
  %v6805 = vsel %vm6800, %v6737, 0
  %v6808 = vsel %vm6800, %v6738, 0
  %v6811 = vsel %vm6800, %v6739, 0
  %v6814 = vsel %vm6800, %v6740, 0
  %v6817 = vsel %vm6800, %v6741, 0
  %v6820 = vsel %vm6800, %v6742, 0
  %v6823 = vsel %vm6800, %v6743, 0
  %v6826 = vsel %vm6800, %v6744, 0
  %v6829 = vsel %vm6800, %v6745, 0
  %v6832 = vsel %vm6800, %v6746, 0
  %v6835 = vsel %vm6800, %v6747, 0
  %v6838 = vsel %vm6800, %v6748, 0
  %v6841 = vsel %vm6800, %v6749, 0
  %v6844 = vsel %vm6800, %v6750, 0
  %v6847 = vsel %vm6800, %v6751, 0
  %v6850 = vsel %vm6800, %v6752, 0
  %v6853 = vsel %vm6800, %v6753, 0
  %v6856 = vsel %vm6800, %v6754, 0
  %v6859 = vsel %vm6800, %v6755, 0
  %v6862 = vsel %vm6800, %v6756, 0
  %v6865 = vsel %vm6800, %v6757, 0
  %v6868 = vsel %vm6800, %v6758, 0
  %v6871 = vsel %vm6800, %v6759, 0
  %v6874 = vsel %vm6800, %v6760, 0
  %v6877 = vsel %vm6800, %v6761, 0
  %v6880 = vsel %vm6800, %v6762, 0
  %v6883 = vsel %vm6800, %v6763, 0
  %v6886 = vsel %vm6800, %v6764, 0
  %v6889 = vsel %vm6800, %v6765, 0
  %v6892 = vsel %vm6800, %v6766, 0
  %v6895 = vsel %vm6800, %v6767, 0
  %v6898 = vsel %vm6800, %v6768, 0
  %v6901 = vsel %vm6800, %v6769, 0
  %v6904 = vsel %vm6800, %v6770, 0
  %v6907 = vsel %vm6800, %v6771, 0
  %v6910 = vsel %vm6800, %v6772, 0
  %v6913 = vsel %vm6800, %v6773, 0
  %v6916 = vsel %vm6800, %v6774, 0
  %v6919 = vsel %vm6800, %v6775, 0
  %v6922 = vsel %vm6800, %v6776, 0
  %v6925 = vsel %vm6800, %v6777, 0
  %v6928 = vsel %vm6800, %v6778, 0
  %v6931 = vsel %vm6800, %v6779, 0
  %v6934 = vsel %vm6800, %v6780, 0
  %v6937 = vsel %vm6800, %v6781, 0
  %v6940 = vsel %vm6800, %v6782, 0
  %v6943 = vsel %vm6800, %v6783, 0
  %v6946 = vsel %vm6800, %v6784, 0
  %v6949 = vsel %vm6800, %v6785, 0
  %v6952 = vsel %vm6800, %v6786, 0
  %v6955 = vsel %vm6800, %v6787, 0
  %v6958 = vsel %vm6800, %v6788, 0
  %v6961 = vsel %vm6800, %v6789, 0
  %v6964 = vsel %vm6800, %v6790, 0
  %v6967 = vsel %vm6800, %v6791, 0
  %v6970 = vsel %vm6800, %v6792, 0
  %v6973 = vsel %vm6800, %v6793, 0
  %v6976 = vsel %vm6800, %v6794, 0
  %v6979 = vsel %vm6800, %v6795, 0
  %v6982 = vsel %vm6800, %v6796, 0
  %v6985 = vsel %vm6800, %v6797, 0
  %v6988 = vsel %vm6800, %v6798, 0
  %v6991 = vsel %vm6800, %v6799, 0
  %6993 = vmatprep.subr.mxu0 0.0
  %6994 = vmatpush1.msra.mxu0 %v4161
  %6995 = vmatprep.subr.mxu0 0.0
  %6996 = vmatpush1.msra.mxu0 %v4162
  %6997 = vmatprep.subr.mxu0 0.0
  %6998 = vmatpush1.msra.mxu0 %v4163
  %6999 = vmatprep.subr.mxu0 0.0
  %7000 = vmatpush1.msra.mxu0 %v4164
  %7001 = vmatprep.subr.mxu0 0.0
  %7002 = vmatpush1.msra.mxu0 %v4165
  %7003 = vmatprep.subr.mxu0 0.0
  %7004 = vmatpush1.msra.mxu0 %v4166
  %7005 = vmatprep.subr.mxu0 0.0
  %7006 = vmatpush1.msra.mxu0 %v4167
  %7007 = vmatprep.subr.mxu0 0.0
  %7008 = vmatpush1.msra.mxu0 %v4168
  %7009 = vmatprep.subr.mxu0 0.0
  %7010 = vmatpush1.msra.mxu0 %v4169
  %7011 = vmatprep.subr.mxu0 0.0
  %7012 = vmatpush1.msra.mxu0 0.0
  %7013 = vmatprep.subr.mxu0 0.0
  %7014 = vmatpush1.msra.mxu0 0.0
  %7015 = vmatprep.subr.mxu0 0.0
  %7016 = vmatpush1.msra.mxu0 0.0
  %7017 = vmatprep.subr.mxu0 0.0
  %7018 = vmatpush1.msra.mxu0 0.0
  %7019 = vmatprep.subr.mxu0 0.0
  %7020 = vmatpush1.msra.mxu0 0.0
  %7021 = vmatprep.subr.mxu0 0.0
  %7022 = vmatpush1.msra.mxu0 0.0
  %7023 = vmatprep.subr.mxu0 0.0
  %7024 = vmatpush1.msra.mxu0 0.0
  %7025 = vmatprep.subr.mxu0 0.0
  %7026 = vmatpush1.msra.mxu0 0.0
  %7027 = vmatprep.subr.mxu0 0.0
  %7028 = vmatpush1.msra.mxu0 0.0
  %7029 = vmatprep.subr.mxu0 0.0
  %7030 = vmatpush1.msra.mxu0 0.0
  %7031 = vmatprep.subr.mxu0 0.0
  %7032 = vmatpush1.msra.mxu0 0.0
  %7033 = vmatprep.subr.mxu0 0.0
  %7034 = vmatpush1.msra.mxu0 0.0
  %7035 = vmatprep.subr.mxu0 0.0
  %7036 = vmatpush1.msra.mxu0 0.0
  %7037 = vmatprep.subr.mxu0 0.0
  %7038 = vmatpush1.msra.mxu0 0.0
  %7039 = vmatprep.subr.mxu0 0.0
  %7040 = vmatpush1.msra.mxu0 0.0
  %7041 = vmatprep.subr.mxu0 0.0
  %7042 = vmatpush1.msra.mxu0 0.0
  %7043 = vmatprep.subr.mxu0 0.0
  %7044 = vmatpush1.msra.mxu0 0.0
  %7045 = vmatprep.subr.mxu0 0.0
  %7046 = vmatpush1.msra.mxu0 0.0
  %7047 = vmatprep.subr.mxu0 0.0
  %7048 = vmatpush1.msra.mxu0 0.0
  %7049 = vmatprep.subr.mxu0 0.0
  %7050 = vmatpush1.msra.mxu0 0.0
  %7051 = vmatprep.subr.mxu0 0.0
  %7052 = vmatpush1.msra.mxu0 0.0
  %7053 = vmatprep.subr.mxu0 0.0
  %7054 = vmatpush1.msra.mxu0 0.0
  %7055 = vmatprep.subr.mxu0 0.0
  %7056 = vmatpush1.msra.mxu0 0.0
  %7057 = vmatprep.mubr.f32.mxu0 0.0
  %7058 = vmatmul.mubr.f32.gmra.mrb[0].mxu0 %v6802
  %v7059 = vpop.f32.mrb[0].mxu0
  %v7060 = vadd.f32 0.0, %v7059
  %v7061 = vpop.f32.mrb[0].mxu0
  %7062 = vmatprep.mubr.f32.mxu0 0.0
  %7063 = vmatmul.mubr.f32.gmra.mrb[0].mxu0 %v6805
  %v7064 = vpop.f32.mrb[0].mxu0
  %v7065 = vadd.f32 0.0, %v7064
  %v7066 = vpop.f32.mrb[0].mxu0
  %7067 = vmatprep.mubr.f32.mxu0 0.0
  %7068 = vmatmul.mubr.f32.gmra.mrb[0].mxu0 %v6808
  %v7069 = vpop.f32.mrb[0].mxu0
  %v7070 = vadd.f32 0.0, %v7069
  %v7071 = vpop.f32.mrb[0].mxu0
  %7072 = vmatprep.mubr.f32.mxu0 0.0
  %7073 = vmatmul.mubr.f32.gmra.mrb[0].mxu0 %v6811
  %v7074 = vpop.f32.mrb[0].mxu0
  %v7075 = vadd.f32 0.0, %v7074
  %v7076 = vpop.f32.mrb[0].mxu0
  %7077 = vmatprep.mubr.f32.mxu0 0.0
  %7078 = vmatmul.mubr.f32.gmra.mrb[0].mxu0 %v6814
  %v7079 = vpop.f32.mrb[0].mxu0
  %v7080 = vadd.f32 0.0, %v7079
  %v7081 = vpop.f32.mrb[0].mxu0
  %7082 = vmatprep.mubr.f32.mxu0 0.0
  %7083 = vmatmul.mubr.f32.gmra.mrb[0].mxu0 %v6817
  %v7084 = vpop.f32.mrb[0].mxu0
  %v7085 = vadd.f32 0.0, %v7084
  %v7086 = vpop.f32.mrb[0].mxu0
  %7087 = vmatprep.mubr.f32.mxu0 0.0
  %7088 = vmatmul.mubr.f32.gmra.mrb[0].mxu0 %v6820
  %v7089 = vpop.f32.mrb[0].mxu0
  %v7090 = vadd.f32 0.0, %v7089
  %v7091 = vpop.f32.mrb[0].mxu0
  %7092 = vmatprep.mubr.f32.mxu0 0.0
  %7093 = vmatmul.mubr.f32.gmra.mrb[0].mxu0 %v6823
  %v7094 = vpop.f32.mrb[0].mxu0
  %v7095 = vadd.f32 0.0, %v7094
  %v7096 = vpop.f32.mrb[0].mxu0
  %7097 = vmatprep.mubr.f32.mxu0 0.0
  %7098 = vmatmul.mubr.f32.gmra.mrb[0].mxu0 %v6826
  %v7099 = vpop.f32.mrb[0].mxu0
  %v7100 = vadd.f32 0.0, %v7099
  %v7101 = vpop.f32.mrb[0].mxu0
  %7102 = vmatprep.mubr.f32.mxu0 0.0
  %7103 = vmatmul.mubr.f32.gmra.mrb[0].mxu0 %v6829
  %v7104 = vpop.f32.mrb[0].mxu0
  %v7105 = vadd.f32 0.0, %v7104
  %v7106 = vpop.f32.mrb[0].mxu0
  %7107 = vmatprep.mubr.f32.mxu0 0.0
  %7108 = vmatmul.mubr.f32.gmra.mrb[0].mxu0 %v6832
  %v7109 = vpop.f32.mrb[0].mxu0
  %v7110 = vadd.f32 0.0, %v7109
  %v7111 = vpop.f32.mrb[0].mxu0
  %7112 = vmatprep.mubr.f32.mxu0 0.0
  %7113 = vmatmul.mubr.f32.gmra.mrb[0].mxu0 %v6835
  %v7114 = vpop.f32.mrb[0].mxu0
  %v7115 = vadd.f32 0.0, %v7114
  %v7116 = vpop.f32.mrb[0].mxu0
  %7117 = vmatprep.mubr.f32.mxu0 0.0
  %7118 = vmatmul.mubr.f32.gmra.mrb[0].mxu0 %v6838
  %v7119 = vpop.f32.mrb[0].mxu0
  %v7120 = vadd.f32 0.0, %v7119
  %v7121 = vpop.f32.mrb[0].mxu0
  %7122 = vmatprep.mubr.f32.mxu0 0.0
  %7123 = vmatmul.mubr.f32.gmra.mrb[0].mxu0 %v6841
  %v7124 = vpop.f32.mrb[0].mxu0
  %v7125 = vadd.f32 0.0, %v7124
  %v7126 = vpop.f32.mrb[0].mxu0
  %7127 = vmatprep.mubr.f32.mxu0 0.0
  %7128 = vmatmul.mubr.f32.gmra.mrb[0].mxu0 %v6844
  %v7129 = vpop.f32.mrb[0].mxu0
  %v7130 = vadd.f32 0.0, %v7129
  %v7131 = vpop.f32.mrb[0].mxu0
  %7132 = vmatprep.mubr.f32.mxu0 0.0
  %7133 = vmatmul.mubr.f32.gmra.mrb[0].mxu0 %v6847
  %v7134 = vpop.f32.mrb[0].mxu0
  %v7135 = vadd.f32 0.0, %v7134
  %v7136 = vpop.f32.mrb[0].mxu0
  %7137 = vmatprep.mubr.f32.mxu0 0.0
  %7138 = vmatmul.mubr.f32.gmra.mrb[0].mxu0 %v6850
  %v7139 = vpop.f32.mrb[0].mxu0
  %v7140 = vadd.f32 0.0, %v7139
  %v7141 = vpop.f32.mrb[0].mxu0
  %7142 = vmatprep.mubr.f32.mxu0 0.0
  %7143 = vmatmul.mubr.f32.gmra.mrb[0].mxu0 %v6853
  %v7144 = vpop.f32.mrb[0].mxu0
  %v7145 = vadd.f32 0.0, %v7144
  %v7146 = vpop.f32.mrb[0].mxu0
  %7147 = vmatprep.mubr.f32.mxu0 0.0
  %7148 = vmatmul.mubr.f32.gmra.mrb[0].mxu0 %v6856
  %v7149 = vpop.f32.mrb[0].mxu0
  %v7150 = vadd.f32 0.0, %v7149
  %v7151 = vpop.f32.mrb[0].mxu0
  %7152 = vmatprep.mubr.f32.mxu0 0.0
  %7153 = vmatmul.mubr.f32.gmra.mrb[0].mxu0 %v6859
  %v7154 = vpop.f32.mrb[0].mxu0
  %v7155 = vadd.f32 0.0, %v7154
  %v7156 = vpop.f32.mrb[0].mxu0
  %7157 = vmatprep.mubr.f32.mxu0 0.0
  %7158 = vmatmul.mubr.f32.gmra.mrb[0].mxu0 %v6862
  %v7159 = vpop.f32.mrb[0].mxu0
  %v7160 = vadd.f32 0.0, %v7159
  %v7161 = vpop.f32.mrb[0].mxu0
  %7162 = vmatprep.mubr.f32.mxu0 0.0
  %7163 = vmatmul.mubr.f32.gmra.mrb[0].mxu0 %v6865
  %v7164 = vpop.f32.mrb[0].mxu0
  %v7165 = vadd.f32 0.0, %v7164
  %v7166 = vpop.f32.mrb[0].mxu0
  %7167 = vmatprep.mubr.f32.mxu0 0.0
  %7168 = vmatmul.mubr.f32.gmra.mrb[0].mxu0 %v6868
  %v7169 = vpop.f32.mrb[0].mxu0
  %v7170 = vadd.f32 0.0, %v7169
  %v7171 = vpop.f32.mrb[0].mxu0
  %7172 = vmatprep.mubr.f32.mxu0 0.0
  %7173 = vmatmul.mubr.f32.gmra.mrb[0].mxu0 %v6871
  %v7174 = vpop.f32.mrb[0].mxu0
  %v7175 = vadd.f32 0.0, %v7174
  %v7176 = vpop.f32.mrb[0].mxu0
  %7177 = vmatprep.mubr.f32.mxu0 0.0
  %7178 = vmatmul.mubr.f32.gmra.mrb[0].mxu0 %v6874
  %v7179 = vpop.f32.mrb[0].mxu0
  %v7180 = vadd.f32 0.0, %v7179
  %v7181 = vpop.f32.mrb[0].mxu0
  %7182 = vmatprep.mubr.f32.mxu0 0.0
  %7183 = vmatmul.mubr.f32.gmra.mrb[0].mxu0 %v6877
  %v7184 = vpop.f32.mrb[0].mxu0
  %v7185 = vadd.f32 0.0, %v7184
  %v7186 = vpop.f32.mrb[0].mxu0
  %7187 = vmatprep.mubr.f32.mxu0 0.0
  %7188 = vmatmul.mubr.f32.gmra.mrb[0].mxu0 %v6880
  %v7189 = vpop.f32.mrb[0].mxu0
  %v7190 = vadd.f32 0.0, %v7189
  %v7191 = vpop.f32.mrb[0].mxu0
  %7192 = vmatprep.mubr.f32.mxu0 0.0
  %7193 = vmatmul.mubr.f32.gmra.mrb[0].mxu0 %v6883
  %v7194 = vpop.f32.mrb[0].mxu0
  %v7195 = vadd.f32 0.0, %v7194
  %v7196 = vpop.f32.mrb[0].mxu0
  %7197 = vmatprep.mubr.f32.mxu0 0.0
  %7198 = vmatmul.mubr.f32.gmra.mrb[0].mxu0 %v6886
  %v7199 = vpop.f32.mrb[0].mxu0
  %v7200 = vadd.f32 0.0, %v7199
  %v7201 = vpop.f32.mrb[0].mxu0
  %7202 = vmatprep.mubr.f32.mxu0 0.0
  %7203 = vmatmul.mubr.f32.gmra.mrb[0].mxu0 %v6889
  %v7204 = vpop.f32.mrb[0].mxu0
  %v7205 = vadd.f32 0.0, %v7204
  %v7206 = vpop.f32.mrb[0].mxu0
  %7207 = vmatprep.mubr.f32.mxu0 0.0
  %7208 = vmatmul.mubr.f32.gmra.mrb[0].mxu0 %v6892
  %v7209 = vpop.f32.mrb[0].mxu0
  %v7210 = vadd.f32 0.0, %v7209
  %v7211 = vpop.f32.mrb[0].mxu0
  %7212 = vmatprep.mubr.f32.mxu0 0.0
  %7213 = vmatmul.mubr.f32.gmra.mrb[0].mxu0 %v6895
  %v7214 = vpop.f32.mrb[0].mxu0
  %v7215 = vadd.f32 0.0, %v7214
  %v7216 = vpop.f32.mrb[0].mxu0
  %7217 = vmatprep.mubr.f32.mxu0 0.0
  %7218 = vmatmul.mubr.f32.gmra.mrb[0].mxu0 %v6898
  %v7219 = vpop.f32.mrb[0].mxu0
  %v7220 = vadd.f32 0.0, %v7219
  %v7221 = vpop.f32.mrb[0].mxu0
  %7222 = vmatprep.mubr.f32.mxu0 0.0
  %7223 = vmatmul.mubr.f32.gmra.mrb[0].mxu0 %v6901
  %v7224 = vpop.f32.mrb[0].mxu0
  %v7225 = vadd.f32 0.0, %v7224
  %v7226 = vpop.f32.mrb[0].mxu0
  %7227 = vmatprep.mubr.f32.mxu0 0.0
  %7228 = vmatmul.mubr.f32.gmra.mrb[0].mxu0 %v6904
  %v7229 = vpop.f32.mrb[0].mxu0
  %v7230 = vadd.f32 0.0, %v7229
  %v7231 = vpop.f32.mrb[0].mxu0
  %7232 = vmatprep.mubr.f32.mxu0 0.0
  %7233 = vmatmul.mubr.f32.gmra.mrb[0].mxu0 %v6907
  %v7234 = vpop.f32.mrb[0].mxu0
  %v7235 = vadd.f32 0.0, %v7234
  %v7236 = vpop.f32.mrb[0].mxu0
  %7237 = vmatprep.mubr.f32.mxu0 0.0
  %7238 = vmatmul.mubr.f32.gmra.mrb[0].mxu0 %v6910
  %v7239 = vpop.f32.mrb[0].mxu0
  %v7240 = vadd.f32 0.0, %v7239
  %v7241 = vpop.f32.mrb[0].mxu0
  %7242 = vmatprep.mubr.f32.mxu0 0.0
  %7243 = vmatmul.mubr.f32.gmra.mrb[0].mxu0 %v6913
  %v7244 = vpop.f32.mrb[0].mxu0
  %v7245 = vadd.f32 0.0, %v7244
  %v7246 = vpop.f32.mrb[0].mxu0
  %7247 = vmatprep.mubr.f32.mxu0 0.0
  %7248 = vmatmul.mubr.f32.gmra.mrb[0].mxu0 %v6916
  %v7249 = vpop.f32.mrb[0].mxu0
  %v7250 = vadd.f32 0.0, %v7249
  %v7251 = vpop.f32.mrb[0].mxu0
  %7252 = vmatprep.mubr.f32.mxu0 0.0
  %7253 = vmatmul.mubr.f32.gmra.mrb[0].mxu0 %v6919
  %v7254 = vpop.f32.mrb[0].mxu0
  %v7255 = vadd.f32 0.0, %v7254
  %v7256 = vpop.f32.mrb[0].mxu0
  %7257 = vmatprep.mubr.f32.mxu0 0.0
  %7258 = vmatmul.mubr.f32.gmra.mrb[0].mxu0 %v6922
  %v7259 = vpop.f32.mrb[0].mxu0
  %v7260 = vadd.f32 0.0, %v7259
  %v7261 = vpop.f32.mrb[0].mxu0
  %7262 = vmatprep.mubr.f32.mxu0 0.0
  %7263 = vmatmul.mubr.f32.gmra.mrb[0].mxu0 %v6925
  %v7264 = vpop.f32.mrb[0].mxu0
  %v7265 = vadd.f32 0.0, %v7264
  %v7266 = vpop.f32.mrb[0].mxu0
  %7267 = vmatprep.mubr.f32.mxu0 0.0
  %7268 = vmatmul.mubr.f32.gmra.mrb[0].mxu0 %v6928
  %v7269 = vpop.f32.mrb[0].mxu0
  %v7270 = vadd.f32 0.0, %v7269
  %v7271 = vpop.f32.mrb[0].mxu0
  %7272 = vmatprep.mubr.f32.mxu0 0.0
  %7273 = vmatmul.mubr.f32.gmra.mrb[0].mxu0 %v6931
  %v7274 = vpop.f32.mrb[0].mxu0
  %v7275 = vadd.f32 0.0, %v7274
  %v7276 = vpop.f32.mrb[0].mxu0
  %7277 = vmatprep.mubr.f32.mxu0 0.0
  %7278 = vmatmul.mubr.f32.gmra.mrb[0].mxu0 %v6934
  %v7279 = vpop.f32.mrb[0].mxu0
  %v7280 = vadd.f32 0.0, %v7279
  %v7281 = vpop.f32.mrb[0].mxu0
  %7282 = vmatprep.mubr.f32.mxu0 0.0
  %7283 = vmatmul.mubr.f32.gmra.mrb[0].mxu0 %v6937
  %v7284 = vpop.f32.mrb[0].mxu0
  %v7285 = vadd.f32 0.0, %v7284
  %v7286 = vpop.f32.mrb[0].mxu0
  %7287 = vmatprep.mubr.f32.mxu0 0.0
  %7288 = vmatmul.mubr.f32.gmra.mrb[0].mxu0 %v6940
  %v7289 = vpop.f32.mrb[0].mxu0
  %v7290 = vadd.f32 0.0, %v7289
  %v7291 = vpop.f32.mrb[0].mxu0
  %7292 = vmatprep.mubr.f32.mxu0 0.0
  %7293 = vmatmul.mubr.f32.gmra.mrb[0].mxu0 %v6943
  %v7294 = vpop.f32.mrb[0].mxu0
  %v7295 = vadd.f32 0.0, %v7294
  %v7296 = vpop.f32.mrb[0].mxu0
  %7297 = vmatprep.mubr.f32.mxu0 0.0
  %7298 = vmatmul.mubr.f32.gmra.mrb[0].mxu0 %v6946
  %v7299 = vpop.f32.mrb[0].mxu0
  %v7300 = vadd.f32 0.0, %v7299
  %v7301 = vpop.f32.mrb[0].mxu0
  %7302 = vmatprep.mubr.f32.mxu0 0.0
  %7303 = vmatmul.mubr.f32.gmra.mrb[0].mxu0 %v6949
  %v7304 = vpop.f32.mrb[0].mxu0
  %v7305 = vadd.f32 0.0, %v7304
  %v7306 = vpop.f32.mrb[0].mxu0
  %7307 = vmatprep.mubr.f32.mxu0 0.0
  %7308 = vmatmul.mubr.f32.gmra.mrb[0].mxu0 %v6952
  %v7309 = vpop.f32.mrb[0].mxu0
  %v7310 = vadd.f32 0.0, %v7309
  %v7311 = vpop.f32.mrb[0].mxu0
  %7312 = vmatprep.mubr.f32.mxu0 0.0
  %7313 = vmatmul.mubr.f32.gmra.mrb[0].mxu0 %v6955
  %v7314 = vpop.f32.mrb[0].mxu0
  %v7315 = vadd.f32 0.0, %v7314
  %v7316 = vpop.f32.mrb[0].mxu0
  %7317 = vmatprep.mubr.f32.mxu0 0.0
  %7318 = vmatmul.mubr.f32.gmra.mrb[0].mxu0 %v6958
  %v7319 = vpop.f32.mrb[0].mxu0
  %v7320 = vadd.f32 0.0, %v7319
  %v7321 = vpop.f32.mrb[0].mxu0
  %7322 = vmatprep.mubr.f32.mxu0 0.0
  %7323 = vmatmul.mubr.f32.gmra.mrb[0].mxu0 %v6961
  %v7324 = vpop.f32.mrb[0].mxu0
  %v7325 = vadd.f32 0.0, %v7324
  %v7326 = vpop.f32.mrb[0].mxu0
  %7327 = vmatprep.mubr.f32.mxu0 0.0
  %7328 = vmatmul.mubr.f32.gmra.mrb[0].mxu0 %v6964
  %v7329 = vpop.f32.mrb[0].mxu0
  %v7330 = vadd.f32 0.0, %v7329
  %v7331 = vpop.f32.mrb[0].mxu0
  %7332 = vmatprep.mubr.f32.mxu0 0.0
  %7333 = vmatmul.mubr.f32.gmra.mrb[0].mxu0 %v6967
  %v7334 = vpop.f32.mrb[0].mxu0
  %v7335 = vadd.f32 0.0, %v7334
  %v7336 = vpop.f32.mrb[0].mxu0
  %7337 = vmatprep.mubr.f32.mxu0 0.0
  %7338 = vmatmul.mubr.f32.gmra.mrb[0].mxu0 %v6970
  %v7339 = vpop.f32.mrb[0].mxu0
  %v7340 = vadd.f32 0.0, %v7339
  %v7341 = vpop.f32.mrb[0].mxu0
  %7342 = vmatprep.mubr.f32.mxu0 0.0
  %7343 = vmatmul.mubr.f32.gmra.mrb[0].mxu0 %v6973
  %v7344 = vpop.f32.mrb[0].mxu0
  %v7345 = vadd.f32 0.0, %v7344
  %v7346 = vpop.f32.mrb[0].mxu0
  %7347 = vmatprep.mubr.f32.mxu0 0.0
  %7348 = vmatmul.mubr.f32.gmra.mrb[0].mxu0 %v6976
  %v7349 = vpop.f32.mrb[0].mxu0
  %v7350 = vadd.f32 0.0, %v7349
  %v7351 = vpop.f32.mrb[0].mxu0
  %7352 = vmatprep.mubr.f32.mxu0 0.0
  %7353 = vmatmul.mubr.f32.gmra.mrb[0].mxu0 %v6979
  %v7354 = vpop.f32.mrb[0].mxu0
  %v7355 = vadd.f32 0.0, %v7354
  %v7356 = vpop.f32.mrb[0].mxu0
  %7357 = vmatprep.mubr.f32.mxu0 0.0
  %7358 = vmatmul.mubr.f32.gmra.mrb[0].mxu0 %v6982
  %v7359 = vpop.f32.mrb[0].mxu0
  %v7360 = vadd.f32 0.0, %v7359
  %v7361 = vpop.f32.mrb[0].mxu0
  %7362 = vmatprep.mubr.f32.mxu0 0.0
  %7363 = vmatmul.mubr.f32.gmra.mrb[0].mxu0 %v6985
  %v7364 = vpop.f32.mrb[0].mxu0
  %v7365 = vadd.f32 0.0, %v7364
  %v7366 = vpop.f32.mrb[0].mxu0
  %7367 = vmatprep.mubr.f32.mxu0 0.0
  %7368 = vmatmul.mubr.f32.gmra.mrb[0].mxu0 %v6988
  %v7369 = vpop.f32.mrb[0].mxu0
  %v7370 = vadd.f32 0.0, %v7369
  %v7371 = vpop.f32.mrb[0].mxu0
  %7372 = vmatprep.mubr.f32.mxu0 0.0
  %7373 = vmatmul.mubr.f32.gmra.mrb[0].mxu0 %v6991
  %v7374 = vpop.f32.mrb[0].mxu0
  %v7375 = vadd.f32 0.0, %v7374
  %v7376 = vpop.f32.mrb[0].mxu0
  %7377 = vdwg.mxu0
  %v7378 = vsel %vm2428, %v7060, 0.0
  %v7379 = vsel %vm2428, %v7065, 0.0
  %v7380 = vadd.f32 %v7378, %v7379
  %v7381 = vsel %vm2428, %v7070, 0.0
  %v7382 = vadd.f32 %v7380, %v7381
  %v7383 = vsel %vm2428, %v7075, 0.0
  %v7384 = vadd.f32 %v7382, %v7383
  %v7385 = vsel %vm2428, %v7080, 0.0
  %v7386 = vadd.f32 %v7384, %v7385
  %v7387 = vsel %vm2428, %v7085, 0.0
  %v7388 = vadd.f32 %v7386, %v7387
  %v7389 = vsel %vm2428, %v7090, 0.0
  %v7390 = vadd.f32 %v7388, %v7389
  %v7391 = vsel %vm2428, %v7095, 0.0
  %v7392 = vadd.f32 %v7390, %v7391
  %v7393 = vsel %vm2428, %v7100, 0.0
  %v7394 = vadd.f32 %v7392, %v7393
  %v7395 = vsel %vm2428, %v7105, 0.0
  %v7396 = vadd.f32 %v7394, %v7395
  %v7397 = vsel %vm2428, %v7110, 0.0
  %v7398 = vadd.f32 %v7396, %v7397
  %v7399 = vsel %vm2428, %v7115, 0.0
  %v7400 = vadd.f32 %v7398, %v7399
  %v7401 = vsel %vm2428, %v7120, 0.0
  %v7402 = vadd.f32 %v7400, %v7401
  %v7403 = vsel %vm2428, %v7125, 0.0
  %v7404 = vadd.f32 %v7402, %v7403
  %v7405 = vsel %vm2428, %v7130, 0.0
  %v7406 = vadd.f32 %v7404, %v7405
  %v7407 = vsel %vm2428, %v7135, 0.0
  %v7408 = vadd.f32 %v7406, %v7407
  %v7409 = vsel %vm2428, %v7140, 0.0
  %v7410 = vadd.f32 %v7408, %v7409
  %v7411 = vsel %vm2428, %v7145, 0.0
  %v7412 = vadd.f32 %v7410, %v7411
  %v7413 = vsel %vm2428, %v7150, 0.0
  %v7414 = vadd.f32 %v7412, %v7413
  %v7415 = vsel %vm2428, %v7155, 0.0
  %v7416 = vadd.f32 %v7414, %v7415
  %v7417 = vsel %vm2428, %v7160, 0.0
  %v7418 = vadd.f32 %v7416, %v7417
  %v7419 = vsel %vm2428, %v7165, 0.0
  %v7420 = vadd.f32 %v7418, %v7419
  %v7421 = vsel %vm2428, %v7170, 0.0
  %v7422 = vadd.f32 %v7420, %v7421
  %v7423 = vsel %vm2428, %v7175, 0.0
  %v7424 = vadd.f32 %v7422, %v7423
  %v7425 = vsel %vm2428, %v7180, 0.0
  %v7426 = vadd.f32 %v7424, %v7425
  %v7427 = vsel %vm2428, %v7185, 0.0
  %v7428 = vadd.f32 %v7426, %v7427
  %v7429 = vsel %vm2428, %v7190, 0.0
  %v7430 = vadd.f32 %v7428, %v7429
  %v7431 = vsel %vm2428, %v7195, 0.0
  %v7432 = vadd.f32 %v7430, %v7431
  %v7433 = vsel %vm2428, %v7200, 0.0
  %v7434 = vadd.f32 %v7432, %v7433
  %v7435 = vsel %vm2428, %v7205, 0.0
  %v7436 = vadd.f32 %v7434, %v7435
  %v7437 = vsel %vm2428, %v7210, 0.0
  %v7438 = vadd.f32 %v7436, %v7437
  %v7439 = vsel %vm2428, %v7215, 0.0
  %v7440 = vadd.f32 %v7438, %v7439
  %v7441 = vsel %vm2428, %v7220, 0.0
  %v7442 = vadd.f32 %v7440, %v7441
  %v7443 = vsel %vm2428, %v7225, 0.0
  %v7444 = vadd.f32 %v7442, %v7443
  %v7445 = vsel %vm2428, %v7230, 0.0
  %v7446 = vadd.f32 %v7444, %v7445
  %v7447 = vsel %vm2428, %v7235, 0.0
  %v7448 = vadd.f32 %v7446, %v7447
  %v7449 = vsel %vm2428, %v7240, 0.0
  %v7450 = vadd.f32 %v7448, %v7449
  %v7451 = vsel %vm2428, %v7245, 0.0
  %v7452 = vadd.f32 %v7450, %v7451
  %v7453 = vsel %vm2428, %v7250, 0.0
  %v7454 = vadd.f32 %v7452, %v7453
  %v7455 = vsel %vm2428, %v7255, 0.0
  %v7456 = vadd.f32 %v7454, %v7455
  %v7457 = vsel %vm2428, %v7260, 0.0
  %v7458 = vadd.f32 %v7456, %v7457
  %v7459 = vsel %vm2428, %v7265, 0.0
  %v7460 = vadd.f32 %v7458, %v7459
  %v7461 = vsel %vm2428, %v7270, 0.0
  %v7462 = vadd.f32 %v7460, %v7461
  %v7463 = vsel %vm2428, %v7275, 0.0
  %v7464 = vadd.f32 %v7462, %v7463
  %v7465 = vsel %vm2428, %v7280, 0.0
  %v7466 = vadd.f32 %v7464, %v7465
  %v7467 = vsel %vm2428, %v7285, 0.0
  %v7468 = vadd.f32 %v7466, %v7467
  %v7469 = vsel %vm2428, %v7290, 0.0
  %v7470 = vadd.f32 %v7468, %v7469
  %v7471 = vsel %vm2428, %v7295, 0.0
  %v7472 = vadd.f32 %v7470, %v7471
  %v7473 = vsel %vm2428, %v7300, 0.0
  %v7474 = vadd.f32 %v7472, %v7473
  %v7475 = vsel %vm2428, %v7305, 0.0
  %v7476 = vadd.f32 %v7474, %v7475
  %v7477 = vsel %vm2428, %v7310, 0.0
  %v7478 = vadd.f32 %v7476, %v7477
  %v7479 = vsel %vm2428, %v7315, 0.0
  %v7480 = vadd.f32 %v7478, %v7479
  %v7481 = vsel %vm2428, %v7320, 0.0
  %v7482 = vadd.f32 %v7480, %v7481
  %v7483 = vsel %vm2428, %v7325, 0.0
  %v7484 = vadd.f32 %v7482, %v7483
  %v7485 = vsel %vm2428, %v7330, 0.0
  %v7486 = vadd.f32 %v7484, %v7485
  %v7487 = vsel %vm2428, %v7335, 0.0
  %v7488 = vadd.f32 %v7486, %v7487
  %v7489 = vsel %vm2428, %v7340, 0.0
  %v7490 = vadd.f32 %v7488, %v7489
  %v7491 = vsel %vm2428, %v7345, 0.0
  %v7492 = vadd.f32 %v7490, %v7491
  %v7493 = vsel %vm2428, %v7350, 0.0
  %v7494 = vadd.f32 %v7492, %v7493
  %v7495 = vsel %vm2428, %v7355, 0.0
  %v7496 = vadd.f32 %v7494, %v7495
  %v7497 = vsel %vm2428, %v7360, 0.0
  %v7498 = vadd.f32 %v7496, %v7497
  %v7499 = vsel %vm2428, %v7365, 0.0
  %v7500 = vadd.f32 %v7498, %v7499
  %v7501 = vsel %vm2428, %v7370, 0.0
  %v7502 = vadd.f32 %v7500, %v7501
  %v7503 = vsel %vm2428, %v7375, 0.0
  %v7504 = vadd.f32 %v7502, %v7503
  %v7505 = vrot.slane %v7504, 4
  %v7506 = vadd.f32 %v7504, %v7505
  %v7507 = vrot.slane %v7506, 2
  %v7508 = vadd.f32 %v7506, %v7507
  %v7509 = vrot.slane %v7508, 1
  %v7510 = vadd.f32 %v7508, %v7509
  %v7511 = vmul.f32 %v7060, %v7060
  %v7512 = vmul.f32 %v7065, %v7065
  %v7513 = vmul.f32 %v7070, %v7070
  %v7514 = vmul.f32 %v7075, %v7075
  %v7515 = vmul.f32 %v7080, %v7080
  %v7516 = vmul.f32 %v7085, %v7085
  %v7517 = vmul.f32 %v7090, %v7090
  %v7518 = vmul.f32 %v7095, %v7095
  %v7519 = vmul.f32 %v7100, %v7100
  %v7520 = vmul.f32 %v7105, %v7105
  %v7521 = vmul.f32 %v7110, %v7110
  %v7522 = vmul.f32 %v7115, %v7115
  %v7523 = vmul.f32 %v7120, %v7120
  %v7524 = vmul.f32 %v7125, %v7125
  %v7525 = vmul.f32 %v7130, %v7130
  %v7526 = vmul.f32 %v7135, %v7135
  %v7527 = vmul.f32 %v7140, %v7140
  %v7528 = vmul.f32 %v7145, %v7145
  %v7529 = vmul.f32 %v7150, %v7150
  %v7530 = vmul.f32 %v7155, %v7155
  %v7531 = vmul.f32 %v7160, %v7160
  %v7532 = vmul.f32 %v7165, %v7165
  %v7533 = vmul.f32 %v7170, %v7170
  %v7534 = vmul.f32 %v7175, %v7175
  %v7535 = vmul.f32 %v7180, %v7180
  %v7536 = vmul.f32 %v7185, %v7185
  %v7537 = vmul.f32 %v7190, %v7190
  %v7538 = vmul.f32 %v7195, %v7195
  %v7539 = vmul.f32 %v7200, %v7200
  %v7540 = vmul.f32 %v7205, %v7205
  %v7541 = vmul.f32 %v7210, %v7210
  %v7542 = vmul.f32 %v7215, %v7215
  %v7543 = vmul.f32 %v7220, %v7220
  %v7544 = vmul.f32 %v7225, %v7225
  %v7545 = vmul.f32 %v7230, %v7230
  %v7546 = vmul.f32 %v7235, %v7235
  %v7547 = vmul.f32 %v7240, %v7240
  %v7548 = vmul.f32 %v7245, %v7245
  %v7549 = vmul.f32 %v7250, %v7250
  %v7550 = vmul.f32 %v7255, %v7255
  %v7551 = vmul.f32 %v7260, %v7260
  %v7552 = vmul.f32 %v7265, %v7265
  %v7553 = vmul.f32 %v7270, %v7270
  %v7554 = vmul.f32 %v7275, %v7275
  %v7555 = vmul.f32 %v7280, %v7280
  %v7556 = vmul.f32 %v7285, %v7285
  %v7557 = vmul.f32 %v7290, %v7290
  %v7558 = vmul.f32 %v7295, %v7295
  %v7559 = vmul.f32 %v7300, %v7300
  %v7560 = vmul.f32 %v7305, %v7305
  %v7561 = vmul.f32 %v7310, %v7310
  %v7562 = vmul.f32 %v7315, %v7315
  %v7563 = vmul.f32 %v7320, %v7320
  %v7564 = vmul.f32 %v7325, %v7325
  %v7565 = vmul.f32 %v7330, %v7330
  %v7566 = vmul.f32 %v7335, %v7335
  %v7567 = vmul.f32 %v7340, %v7340
  %v7568 = vmul.f32 %v7345, %v7345
  %v7569 = vmul.f32 %v7350, %v7350
  %v7570 = vmul.f32 %v7355, %v7355
  %v7571 = vmul.f32 %v7360, %v7360
  %v7572 = vmul.f32 %v7365, %v7365
  %v7573 = vmul.f32 %v7370, %v7370
  %v7574 = vmul.f32 %v7375, %v7375
  %v7575 = vsel %vm2428, %v7511, 0.0
  %v7576 = vsel %vm2428, %v7512, 0.0
  %v7577 = vadd.f32 %v7575, %v7576
  %v7578 = vsel %vm2428, %v7513, 0.0
  %v7579 = vadd.f32 %v7577, %v7578
  %v7580 = vsel %vm2428, %v7514, 0.0
  %v7581 = vadd.f32 %v7579, %v7580
  %v7582 = vsel %vm2428, %v7515, 0.0
  %v7583 = vadd.f32 %v7581, %v7582
  %v7584 = vsel %vm2428, %v7516, 0.0
  %v7585 = vadd.f32 %v7583, %v7584
  %v7586 = vsel %vm2428, %v7517, 0.0
  %v7587 = vadd.f32 %v7585, %v7586
  %v7588 = vsel %vm2428, %v7518, 0.0
  %v7589 = vadd.f32 %v7587, %v7588
  %v7590 = vsel %vm2428, %v7519, 0.0
  %v7591 = vadd.f32 %v7589, %v7590
  %v7592 = vsel %vm2428, %v7520, 0.0
  %v7593 = vadd.f32 %v7591, %v7592
  %v7594 = vsel %vm2428, %v7521, 0.0
  %v7595 = vadd.f32 %v7593, %v7594
  %v7596 = vsel %vm2428, %v7522, 0.0
  %v7597 = vadd.f32 %v7595, %v7596
  %v7598 = vsel %vm2428, %v7523, 0.0
  %v7599 = vadd.f32 %v7597, %v7598
  %v7600 = vsel %vm2428, %v7524, 0.0
  %v7601 = vadd.f32 %v7599, %v7600
  %v7602 = vsel %vm2428, %v7525, 0.0
  %v7603 = vadd.f32 %v7601, %v7602
  %v7604 = vsel %vm2428, %v7526, 0.0
  %v7605 = vadd.f32 %v7603, %v7604
  %v7606 = vsel %vm2428, %v7527, 0.0
  %v7607 = vadd.f32 %v7605, %v7606
  %v7608 = vsel %vm2428, %v7528, 0.0
  %v7609 = vadd.f32 %v7607, %v7608
  %v7610 = vsel %vm2428, %v7529, 0.0
  %v7611 = vadd.f32 %v7609, %v7610
  %v7612 = vsel %vm2428, %v7530, 0.0
  %v7613 = vadd.f32 %v7611, %v7612
  %v7614 = vsel %vm2428, %v7531, 0.0
  %v7615 = vadd.f32 %v7613, %v7614
  %v7616 = vsel %vm2428, %v7532, 0.0
  %v7617 = vadd.f32 %v7615, %v7616
  %v7618 = vsel %vm2428, %v7533, 0.0
  %v7619 = vadd.f32 %v7617, %v7618
  %v7620 = vsel %vm2428, %v7534, 0.0
  %v7621 = vadd.f32 %v7619, %v7620
  %v7622 = vsel %vm2428, %v7535, 0.0
  %v7623 = vadd.f32 %v7621, %v7622
  %v7624 = vsel %vm2428, %v7536, 0.0
  %v7625 = vadd.f32 %v7623, %v7624
  %v7626 = vsel %vm2428, %v7537, 0.0
  %v7627 = vadd.f32 %v7625, %v7626
  %v7628 = vsel %vm2428, %v7538, 0.0
  %v7629 = vadd.f32 %v7627, %v7628
  %v7630 = vsel %vm2428, %v7539, 0.0
  %v7631 = vadd.f32 %v7629, %v7630
  %v7632 = vsel %vm2428, %v7540, 0.0
  %v7633 = vadd.f32 %v7631, %v7632
  %v7634 = vsel %vm2428, %v7541, 0.0
  %v7635 = vadd.f32 %v7633, %v7634
  %v7636 = vsel %vm2428, %v7542, 0.0
  %v7637 = vadd.f32 %v7635, %v7636
  %v7638 = vsel %vm2428, %v7543, 0.0
  %v7639 = vadd.f32 %v7637, %v7638
  %v7640 = vsel %vm2428, %v7544, 0.0
  %v7641 = vadd.f32 %v7639, %v7640
  %v7642 = vsel %vm2428, %v7545, 0.0
  %v7643 = vadd.f32 %v7641, %v7642
  %v7644 = vsel %vm2428, %v7546, 0.0
  %v7645 = vadd.f32 %v7643, %v7644
  %v7646 = vsel %vm2428, %v7547, 0.0
  %v7647 = vadd.f32 %v7645, %v7646
  %v7648 = vsel %vm2428, %v7548, 0.0
  %v7649 = vadd.f32 %v7647, %v7648
  %v7650 = vsel %vm2428, %v7549, 0.0
  %v7651 = vadd.f32 %v7649, %v7650
  %v7652 = vsel %vm2428, %v7550, 0.0
  %v7653 = vadd.f32 %v7651, %v7652
  %v7654 = vsel %vm2428, %v7551, 0.0
  %v7655 = vadd.f32 %v7653, %v7654
  %v7656 = vsel %vm2428, %v7552, 0.0
  %v7657 = vadd.f32 %v7655, %v7656
  %v7658 = vsel %vm2428, %v7553, 0.0
  %v7659 = vadd.f32 %v7657, %v7658
  %v7660 = vsel %vm2428, %v7554, 0.0
  %v7661 = vadd.f32 %v7659, %v7660
  %v7662 = vsel %vm2428, %v7555, 0.0
  %v7663 = vadd.f32 %v7661, %v7662
  %v7664 = vsel %vm2428, %v7556, 0.0
  %v7665 = vadd.f32 %v7663, %v7664
  %v7666 = vsel %vm2428, %v7557, 0.0
  %v7667 = vadd.f32 %v7665, %v7666
  %v7668 = vsel %vm2428, %v7558, 0.0
  %v7669 = vadd.f32 %v7667, %v7668
  %v7670 = vsel %vm2428, %v7559, 0.0
  %v7671 = vadd.f32 %v7669, %v7670
  %v7672 = vsel %vm2428, %v7560, 0.0
  %v7673 = vadd.f32 %v7671, %v7672
  %v7674 = vsel %vm2428, %v7561, 0.0
  %v7675 = vadd.f32 %v7673, %v7674
  %v7676 = vsel %vm2428, %v7562, 0.0
  %v7677 = vadd.f32 %v7675, %v7676
  %v7678 = vsel %vm2428, %v7563, 0.0
  %v7679 = vadd.f32 %v7677, %v7678
  %v7680 = vsel %vm2428, %v7564, 0.0
  %v7681 = vadd.f32 %v7679, %v7680
  %v7682 = vsel %vm2428, %v7565, 0.0
  %v7683 = vadd.f32 %v7681, %v7682
  %v7684 = vsel %vm2428, %v7566, 0.0
  %v7685 = vadd.f32 %v7683, %v7684
  %v7686 = vsel %vm2428, %v7567, 0.0
  %v7687 = vadd.f32 %v7685, %v7686
  %v7688 = vsel %vm2428, %v7568, 0.0
  %v7689 = vadd.f32 %v7687, %v7688
  %v7690 = vsel %vm2428, %v7569, 0.0
  %v7691 = vadd.f32 %v7689, %v7690
  %v7692 = vsel %vm2428, %v7570, 0.0
  %v7693 = vadd.f32 %v7691, %v7692
  %v7694 = vsel %vm2428, %v7571, 0.0
  %v7695 = vadd.f32 %v7693, %v7694
  %v7696 = vsel %vm2428, %v7572, 0.0
  %v7697 = vadd.f32 %v7695, %v7696
  %v7698 = vsel %vm2428, %v7573, 0.0
  %v7699 = vadd.f32 %v7697, %v7698
  %v7700 = vsel %vm2428, %v7574, 0.0
  %v7701 = vadd.f32 %v7699, %v7700
  %v7702 = vrot.slane %v7701, 4
  %v7703 = vadd.f32 %v7701, %v7702
  %v7704 = vrot.slane %v7703, 2
  %v7705 = vadd.f32 %v7703, %v7704
  %v7706 = vrot.slane %v7705, 1
  %v7707 = vadd.f32 %v7705, %v7706
  %v7708 = vmul.f32 %v7510, 0.001953125
  %v7709 = vmul.f32 %v7707, 0.001953125
  %v7710 = vmul.f32 %v7708, %v7708
  %v7711 = vsub.f32 %v7709, %v7710
  %v7712 = vmax.f32 %v7711, 0.0
  %v7713 = vadd.f32 %v7712, 1e-05
  %v7714 = vrsqrt.pop %v7713
  %v7715 = vmul.f32 %v4170, %v7714
  %v7716 = vmul.f32 %v7708, %v7715
  %v7717 = vsub.f32 %v4171, %v7716
  %v7719 = vlaneseq
  %v7720 = vshrl.u32 %v7719, 7
  %v7721 = vsub.s32 0, %v7720
  %v7722 = vrot.slane %v7715, %v7721
  %v7724 = vmul.f32 %v7060, %v7722
  %v7725 = vmul.f32 %v7065, %v7722
  %v7726 = vmul.f32 %v7070, %v7722
  %v7727 = vmul.f32 %v7075, %v7722
  %v7728 = vmul.f32 %v7080, %v7722
  %v7729 = vmul.f32 %v7085, %v7722
  %v7730 = vmul.f32 %v7090, %v7722
  %v7731 = vmul.f32 %v7095, %v7722
  %v7732 = vmul.f32 %v7100, %v7722
  %v7733 = vmul.f32 %v7105, %v7722
  %v7734 = vmul.f32 %v7110, %v7722
  %v7735 = vmul.f32 %v7115, %v7722
  %v7736 = vmul.f32 %v7120, %v7722
  %v7737 = vmul.f32 %v7125, %v7722
  %v7738 = vmul.f32 %v7130, %v7722
  %v7739 = vmul.f32 %v7135, %v7722
  %v7740 = vmul.f32 %v7140, %v7722
  %v7741 = vmul.f32 %v7145, %v7722
  %v7742 = vmul.f32 %v7150, %v7722
  %v7743 = vmul.f32 %v7155, %v7722
  %v7744 = vmul.f32 %v7160, %v7722
  %v7745 = vmul.f32 %v7165, %v7722
  %v7746 = vmul.f32 %v7170, %v7722
  %v7747 = vmul.f32 %v7175, %v7722
  %v7748 = vmul.f32 %v7180, %v7722
  %v7749 = vmul.f32 %v7185, %v7722
  %v7750 = vmul.f32 %v7190, %v7722
  %v7751 = vmul.f32 %v7195, %v7722
  %v7752 = vmul.f32 %v7200, %v7722
  %v7753 = vmul.f32 %v7205, %v7722
  %v7754 = vmul.f32 %v7210, %v7722
  %v7755 = vmul.f32 %v7215, %v7722
  %v7756 = vmul.f32 %v7220, %v7722
  %v7757 = vmul.f32 %v7225, %v7722
  %v7758 = vmul.f32 %v7230, %v7722
  %v7759 = vmul.f32 %v7235, %v7722
  %v7760 = vmul.f32 %v7240, %v7722
  %v7761 = vmul.f32 %v7245, %v7722
  %v7762 = vmul.f32 %v7250, %v7722
  %v7763 = vmul.f32 %v7255, %v7722
  %v7764 = vmul.f32 %v7260, %v7722
  %v7765 = vmul.f32 %v7265, %v7722
  %v7766 = vmul.f32 %v7270, %v7722
  %v7767 = vmul.f32 %v7275, %v7722
  %v7768 = vmul.f32 %v7280, %v7722
  %v7769 = vmul.f32 %v7285, %v7722
  %v7770 = vmul.f32 %v7290, %v7722
  %v7771 = vmul.f32 %v7295, %v7722
  %v7772 = vmul.f32 %v7300, %v7722
  %v7773 = vmul.f32 %v7305, %v7722
  %v7774 = vmul.f32 %v7310, %v7722
  %v7775 = vmul.f32 %v7315, %v7722
  %v7776 = vmul.f32 %v7320, %v7722
  %v7777 = vmul.f32 %v7325, %v7722
  %v7778 = vmul.f32 %v7330, %v7722
  %v7779 = vmul.f32 %v7335, %v7722
  %v7780 = vmul.f32 %v7340, %v7722
  %v7781 = vmul.f32 %v7345, %v7722
  %v7782 = vmul.f32 %v7350, %v7722
  %v7783 = vmul.f32 %v7355, %v7722
  %v7784 = vmul.f32 %v7360, %v7722
  %v7785 = vmul.f32 %v7365, %v7722
  %v7786 = vmul.f32 %v7370, %v7722
  %v7787 = vmul.f32 %v7375, %v7722
  %v7789 = vlaneseq
  %v7790 = vshrl.u32 %v7789, 7
  %v7791 = vsub.s32 0, %v7790
  %v7792 = vrot.slane %v7717, %v7791
  %v7794 = vadd.f32 %v7724, %v7792
  %v7795 = vadd.f32 %v7725, %v7792
  %v7796 = vadd.f32 %v7726, %v7792
  %v7797 = vadd.f32 %v7727, %v7792
  %v7798 = vadd.f32 %v7728, %v7792
  %v7799 = vadd.f32 %v7729, %v7792
  %v7800 = vadd.f32 %v7730, %v7792
  %v7801 = vadd.f32 %v7731, %v7792
  %v7802 = vadd.f32 %v7732, %v7792
  %v7803 = vadd.f32 %v7733, %v7792
  %v7804 = vadd.f32 %v7734, %v7792
  %v7805 = vadd.f32 %v7735, %v7792
  %v7806 = vadd.f32 %v7736, %v7792
  %v7807 = vadd.f32 %v7737, %v7792
  %v7808 = vadd.f32 %v7738, %v7792
  %v7809 = vadd.f32 %v7739, %v7792
  %v7810 = vadd.f32 %v7740, %v7792
  %v7811 = vadd.f32 %v7741, %v7792
  %v7812 = vadd.f32 %v7742, %v7792
  %v7813 = vadd.f32 %v7743, %v7792
  %v7814 = vadd.f32 %v7744, %v7792
  %v7815 = vadd.f32 %v7745, %v7792
  %v7816 = vadd.f32 %v7746, %v7792
  %v7817 = vadd.f32 %v7747, %v7792
  %v7818 = vadd.f32 %v7748, %v7792
  %v7819 = vadd.f32 %v7749, %v7792
  %v7820 = vadd.f32 %v7750, %v7792
  %v7821 = vadd.f32 %v7751, %v7792
  %v7822 = vadd.f32 %v7752, %v7792
  %v7823 = vadd.f32 %v7753, %v7792
  %v7824 = vadd.f32 %v7754, %v7792
  %v7825 = vadd.f32 %v7755, %v7792
  %v7826 = vadd.f32 %v7756, %v7792
  %v7827 = vadd.f32 %v7757, %v7792
  %v7828 = vadd.f32 %v7758, %v7792
  %v7829 = vadd.f32 %v7759, %v7792
  %v7830 = vadd.f32 %v7760, %v7792
  %v7831 = vadd.f32 %v7761, %v7792
  %v7832 = vadd.f32 %v7762, %v7792
  %v7833 = vadd.f32 %v7763, %v7792
  %v7834 = vadd.f32 %v7764, %v7792
  %v7835 = vadd.f32 %v7765, %v7792
  %v7836 = vadd.f32 %v7766, %v7792
  %v7837 = vadd.f32 %v7767, %v7792
  %v7838 = vadd.f32 %v7768, %v7792
  %v7839 = vadd.f32 %v7769, %v7792
  %v7840 = vadd.f32 %v7770, %v7792
  %v7841 = vadd.f32 %v7771, %v7792
  %v7842 = vadd.f32 %v7772, %v7792
  %v7843 = vadd.f32 %v7773, %v7792
  %v7844 = vadd.f32 %v7774, %v7792
  %v7845 = vadd.f32 %v7775, %v7792
  %v7846 = vadd.f32 %v7776, %v7792
  %v7847 = vadd.f32 %v7777, %v7792
  %v7848 = vadd.f32 %v7778, %v7792
  %v7849 = vadd.f32 %v7779, %v7792
  %v7850 = vadd.f32 %v7780, %v7792
  %v7851 = vadd.f32 %v7781, %v7792
  %v7852 = vadd.f32 %v7782, %v7792
  %v7853 = vadd.f32 %v7783, %v7792
  %v7854 = vadd.f32 %v7784, %v7792
  %v7855 = vadd.f32 %v7785, %v7792
  %v7856 = vadd.f32 %v7786, %v7792
  %v7857 = vadd.f32 %v7787, %v7792
  %v7858 = vmax.f32 %v7794, 0.0
  %v7859 = vmax.f32 %v7795, 0.0
  %v7860 = vmax.f32 %v7796, 0.0
  %v7861 = vmax.f32 %v7797, 0.0
  %v7862 = vmax.f32 %v7798, 0.0
  %v7863 = vmax.f32 %v7799, 0.0
  %v7864 = vmax.f32 %v7800, 0.0
  %v7865 = vmax.f32 %v7801, 0.0
  %v7866 = vmax.f32 %v7802, 0.0
  %v7867 = vmax.f32 %v7803, 0.0
  %v7868 = vmax.f32 %v7804, 0.0
  %v7869 = vmax.f32 %v7805, 0.0
  %v7870 = vmax.f32 %v7806, 0.0
  %v7871 = vmax.f32 %v7807, 0.0
  %v7872 = vmax.f32 %v7808, 0.0
  %v7873 = vmax.f32 %v7809, 0.0
  %v7874 = vmax.f32 %v7810, 0.0
  %v7875 = vmax.f32 %v7811, 0.0
  %v7876 = vmax.f32 %v7812, 0.0
  %v7877 = vmax.f32 %v7813, 0.0
  %v7878 = vmax.f32 %v7814, 0.0
  %v7879 = vmax.f32 %v7815, 0.0
  %v7880 = vmax.f32 %v7816, 0.0
  %v7881 = vmax.f32 %v7817, 0.0
  %v7882 = vmax.f32 %v7818, 0.0
  %v7883 = vmax.f32 %v7819, 0.0
  %v7884 = vmax.f32 %v7820, 0.0
  %v7885 = vmax.f32 %v7821, 0.0
  %v7886 = vmax.f32 %v7822, 0.0
  %v7887 = vmax.f32 %v7823, 0.0
  %v7888 = vmax.f32 %v7824, 0.0
  %v7889 = vmax.f32 %v7825, 0.0
  %v7890 = vmax.f32 %v7826, 0.0
  %v7891 = vmax.f32 %v7827, 0.0
  %v7892 = vmax.f32 %v7828, 0.0
  %v7893 = vmax.f32 %v7829, 0.0
  %v7894 = vmax.f32 %v7830, 0.0
  %v7895 = vmax.f32 %v7831, 0.0
  %v7896 = vmax.f32 %v7832, 0.0
  %v7897 = vmax.f32 %v7833, 0.0
  %v7898 = vmax.f32 %v7834, 0.0
  %v7899 = vmax.f32 %v7835, 0.0
  %v7900 = vmax.f32 %v7836, 0.0
  %v7901 = vmax.f32 %v7837, 0.0
  %v7902 = vmax.f32 %v7838, 0.0
  %v7903 = vmax.f32 %v7839, 0.0
  %v7904 = vmax.f32 %v7840, 0.0
  %v7905 = vmax.f32 %v7841, 0.0
  %v7906 = vmax.f32 %v7842, 0.0
  %v7907 = vmax.f32 %v7843, 0.0
  %v7908 = vmax.f32 %v7844, 0.0
  %v7909 = vmax.f32 %v7845, 0.0
  %v7910 = vmax.f32 %v7846, 0.0
  %v7911 = vmax.f32 %v7847, 0.0
  %v7912 = vmax.f32 %v7848, 0.0
  %v7913 = vmax.f32 %v7849, 0.0
  %v7914 = vmax.f32 %v7850, 0.0
  %v7915 = vmax.f32 %v7851, 0.0
  %v7916 = vmax.f32 %v7852, 0.0
  %v7917 = vmax.f32 %v7853, 0.0
  %v7918 = vmax.f32 %v7854, 0.0
  %v7919 = vmax.f32 %v7855, 0.0
  %v7920 = vmax.f32 %v7856, 0.0
  %v7921 = vmax.f32 %v7857, 0.0
  %7922 = vst.msk [vmem:[%s7] sm:$0xff] %vm2428, %v7858
  %7923 = vst.msk [vmem:[%s7 + $0x8] sm:$0xff] %vm2428, %v7859
  %7924 = vst.msk [vmem:[%s7 + $0x10] sm:$0xff] %vm2428, %v7860
  %7925 = vst.msk [vmem:[%s7 + $0x18] sm:$0xff] %vm2428, %v7861
  %7926 = vst.msk [vmem:[%s7 + $0x20] sm:$0xff] %vm2428, %v7862
  %7927 = vst.msk [vmem:[%s7 + $0x28] sm:$0xff] %vm2428, %v7863
  %7928 = vst.msk [vmem:[%s7 + $0x30] sm:$0xff] %vm2428, %v7864
  %7929 = vst.msk [vmem:[%s7 + $0x38] sm:$0xff] %vm2428, %v7865
  %7930 = vst.msk [vmem:[%s7 + $0x40] sm:$0xff] %vm2428, %v7866
  %7931 = vst.msk [vmem:[%s7 + $0x48] sm:$0xff] %vm2428, %v7867
  %7932 = vst.msk [vmem:[%s7 + $0x50] sm:$0xff] %vm2428, %v7868
  %7933 = vst.msk [vmem:[%s7 + $0x58] sm:$0xff] %vm2428, %v7869
  %7934 = vst.msk [vmem:[%s7 + $0x60] sm:$0xff] %vm2428, %v7870
  %7935 = vst.msk [vmem:[%s7 + $0x68] sm:$0xff] %vm2428, %v7871
  %7936 = vst.msk [vmem:[%s7 + $0x70] sm:$0xff] %vm2428, %v7872
  %7937 = vst.msk [vmem:[%s7 + $0x78] sm:$0xff] %vm2428, %v7873
  %7938 = vst.msk [vmem:[%s7 + $0x80] sm:$0xff] %vm2428, %v7874
  %7939 = vst.msk [vmem:[%s7 + $0x88] sm:$0xff] %vm2428, %v7875
  %7940 = vst.msk [vmem:[%s7 + $0x90] sm:$0xff] %vm2428, %v7876
  %7941 = vst.msk [vmem:[%s7 + $0x98] sm:$0xff] %vm2428, %v7877
  %7942 = vst.msk [vmem:[%s7 + $0xa0] sm:$0xff] %vm2428, %v7878
  %7943 = vst.msk [vmem:[%s7 + $0xa8] sm:$0xff] %vm2428, %v7879
  %7944 = vst.msk [vmem:[%s7 + $0xb0] sm:$0xff] %vm2428, %v7880
  %7945 = vst.msk [vmem:[%s7 + $0xb8] sm:$0xff] %vm2428, %v7881
  %7946 = vst.msk [vmem:[%s7 + $0xc0] sm:$0xff] %vm2428, %v7882
  %7947 = vst.msk [vmem:[%s7 + $0xc8] sm:$0xff] %vm2428, %v7883
  %7948 = vst.msk [vmem:[%s7 + $0xd0] sm:$0xff] %vm2428, %v7884
  %7949 = vst.msk [vmem:[%s7 + $0xd8] sm:$0xff] %vm2428, %v7885
  %7950 = vst.msk [vmem:[%s7 + $0xe0] sm:$0xff] %vm2428, %v7886
  %7951 = vst.msk [vmem:[%s7 + $0xe8] sm:$0xff] %vm2428, %v7887
  %7952 = vst.msk [vmem:[%s7 + $0xf0] sm:$0xff] %vm2428, %v7888
  %7953 = vst.msk [vmem:[%s7 + $0xf8] sm:$0xff] %vm2428, %v7889
  %7954 = vst.msk [vmem:[%s7 + $0x100] sm:$0xff] %vm2428, %v7890
  %7955 = vst.msk [vmem:[%s7 + $0x108] sm:$0xff] %vm2428, %v7891
  %7956 = vst.msk [vmem:[%s7 + $0x110] sm:$0xff] %vm2428, %v7892
  %7957 = vst.msk [vmem:[%s7 + $0x118] sm:$0xff] %vm2428, %v7893
  %7958 = vst.msk [vmem:[%s7 + $0x120] sm:$0xff] %vm2428, %v7894
  %7959 = vst.msk [vmem:[%s7 + $0x128] sm:$0xff] %vm2428, %v7895
  %7960 = vst.msk [vmem:[%s7 + $0x130] sm:$0xff] %vm2428, %v7896
  %7961 = vst.msk [vmem:[%s7 + $0x138] sm:$0xff] %vm2428, %v7897
  %7962 = vst.msk [vmem:[%s7 + $0x140] sm:$0xff] %vm2428, %v7898
  %7963 = vst.msk [vmem:[%s7 + $0x148] sm:$0xff] %vm2428, %v7899
  %7964 = vst.msk [vmem:[%s7 + $0x150] sm:$0xff] %vm2428, %v7900
  %7965 = vst.msk [vmem:[%s7 + $0x158] sm:$0xff] %vm2428, %v7901
  %7966 = vst.msk [vmem:[%s7 + $0x160] sm:$0xff] %vm2428, %v7902
  %7967 = vst.msk [vmem:[%s7 + $0x168] sm:$0xff] %vm2428, %v7903
  %7968 = vst.msk [vmem:[%s7 + $0x170] sm:$0xff] %vm2428, %v7904
  %7969 = vst.msk [vmem:[%s7 + $0x178] sm:$0xff] %vm2428, %v7905
  %7970 = vst.msk [vmem:[%s7 + $0x180] sm:$0xff] %vm2428, %v7906
  %7971 = vst.msk [vmem:[%s7 + $0x188] sm:$0xff] %vm2428, %v7907
  %7972 = vst.msk [vmem:[%s7 + $0x190] sm:$0xff] %vm2428, %v7908
  %7973 = vst.msk [vmem:[%s7 + $0x198] sm:$0xff] %vm2428, %v7909
  %7974 = vst.msk [vmem:[%s7 + $0x1a0] sm:$0xff] %vm2428, %v7910
  %7975 = vst.msk [vmem:[%s7 + $0x1a8] sm:$0xff] %vm2428, %v7911
  %7976 = vst.msk [vmem:[%s7 + $0x1b0] sm:$0xff] %vm2428, %v7912
  %7977 = vst.msk [vmem:[%s7 + $0x1b8] sm:$0xff] %vm2428, %v7913
  %7978 = vst.msk [vmem:[%s7 + $0x1c0] sm:$0xff] %vm2428, %v7914
  %7979 = vst.msk [vmem:[%s7 + $0x1c8] sm:$0xff] %vm2428, %v7915
  %7980 = vst.msk [vmem:[%s7 + $0x1d0] sm:$0xff] %vm2428, %v7916
  %7981 = vst.msk [vmem:[%s7 + $0x1d8] sm:$0xff] %vm2428, %v7917
  %7982 = vst.msk [vmem:[%s7 + $0x1e0] sm:$0xff] %vm2428, %v7918
  %7983 = vst.msk [vmem:[%s7 + $0x1e8] sm:$0xff] %vm2428, %v7919
  %7984 = vst.msk [vmem:[%s7 + $0x1f0] sm:$0xff] %vm2428, %v7920
  %7985 = vst.msk [vmem:[%s7 + $0x1f8] sm:$0xff] %vm2428, %v7921
  // Predicated region
  $region30: #{tpu_custom_call.1} parent=0 // pred_check
    _
  $region31: #{tpu_custom_call.1} parent=0 // pred_check_branch
    %7987 = sbr.rel (0) target = $region33
  $region32: #{tpu_custom_call.1} parent=0 // pred_region
    _
  $region33: #{tpu_custom_call.1} parent=0 // pred_fallthru
    _
  // Predicated region
  $region34: #{tpu_custom_call.1} parent=0 // pred_check
    _
  $region35: #{tpu_custom_call.1} parent=0 // pred_check_branch
    %7989 = sbr.rel (0) target = $region37
  $region36: #{tpu_custom_call.1} parent=0 // pred_region
    _
  $region37: #{tpu_custom_call.1} parent=0 // pred_fallthru
    _

</llo_original>
